<compile_context>
chip_gen: v5e
topology: v5e:2x2
jax: 0.10.0
libtpu: 0.0.40
codegen_flags: <defaults>
</compile_context>

<pallas_src>
import functools

import jax
import jax.numpy as jnp
from jax import lax
from jax.experimental import pallas as pl
from jax.experimental.pallas import tpu as pltpu

# ----------------------------- configuration -----------------------------
B = 2                         # batch
C_IN = 1                      # in_channels
IMG = (16, 16, 16)            # image_shape (small, consistent with module)
P = 4                         # patch_size
E = 32                        # embed_dim
NUM_HEADS = 4                 # num_heads
HEAD_DIM = E // NUM_HEADS
DEPTH = 2                     # transformer depth (kept small)
MLP_DIM = 4 * E
NUM_FMAPS = 12                # hardcoded to 12 inside ConfigurableUNETR.__init__
OUTPUT_SHAPES = [3]           # one head with 3 output channels
OC_TOTAL = sum(OUTPUT_SHAPES)
UPSAMPLE_FACTORS = [[2, 2, 2], [2, 2, 2]]       # patch grid 4^3 -> 16^3
GRID3 = tuple(s // P for s in IMG)
NTOK = GRID3[0] * GRID3[1] * GRID3[2]           # 64 tokens per batch element
DEC_CHANNELS = [E, 16, NUM_FMAPS]               # embed -> 16 -> num_fmaps
FVOL1 = UPSAMPLE_FACTORS[0][0] * UPSAMPLE_FACTORS[0][1] * UPSAMPLE_FACTORS[0][2]
FVOL2 = UPSAMPLE_FACTORS[1][0] * UPSAMPLE_FACTORS[1][1] * UPSAMPLE_FACTORS[1][2]
C1 = DEC_CHANNELS[1]
C2 = DEC_CHANNELS[2]
OUT_COLS = FVOL1 * FVOL2 * OC_TOTAL             # 192 output columns per token row

BLOCK_KEYS = ("ln1_g", "ln1_b", "w_qkv", "b_qkv", "w_o", "b_o",
              "ln2_g", "ln2_b", "w1", "b1", "w2", "b2")


# Generation-conditional batch split: one batch element per TensorCore on v7x
# (2 TCs/chip); one grid step covering both batch elements on v5e/v6e (1 TC)
# so every matmul sees M = 128 and no extra grid-step overhead is paid.
def _num_tensorcores():
    try:
        kind = jax.devices()[0].device_kind.lower()
    except Exception:
        return 1
    return 2 if "7" in kind else 1      # v7x has 2 TCs/chip; v5e/v6e have 1


NUM_TC = _num_tensorcores()
GRID_STEPS = B if NUM_TC >= 2 else 1
ROWS_PER_STEP = (B * NTOK) // GRID_STEPS
BATCH_PER_STEP = B // GRID_STEPS


# ----------------------------- helpers -----------------------------
def _const_spec(shape):
    """Full-array block that is identical for every grid step."""
    zeros = (0,) * len(shape)
    return pl.BlockSpec(tuple(shape), lambda i, _z=zeros: _z)


# ----------------------------- Pallas kernel -----------------------------
def _unetr_kernel(*refs, depth, num_heads, n_tokens, n_batch):
    """Patch embed + pos + ViT encoder + final LN + full decoder + sigmoid heads."""
    o_ref = refs[-1]
    in_refs = refs[:-1]
    patches_ref, pos_ref, pw_ref, pb_ref = in_refs[:4]
    rest = in_refs[4:]
    nper = len(BLOCK_KEYS)
    hd = HEAD_DIM

    def bdot(a, b):
        # bf16 MXU operands, f32 accumulation.
        return jnp.dot(a.astype(jnp.bfloat16), b.astype(jnp.bfloat16),
                       preferred_element_type=jnp.float32)

    def layernorm(x, g_ref, b_ref):
        mu = jnp.mean(x, axis=-1, keepdims=True)
        var = jnp.mean(jnp.square(x - mu), axis=-1, keepdims=True)
        return (x - mu) * lax.rsqrt(var + 1e-5) * g_ref[...] + b_ref[...]

    # patch embedding (Conv3d k=s=P as matmul) + bias + positional embedding
    x = bdot(patches_ref[...], pw_ref[...]) + pb_ref[...] + pos_ref[...]

    for d in range(depth):
        (ln1_g, ln1_b, w_qkv, b_qkv, w_o, b_o,
         ln2_g, ln2_b, w1, b1, w2, b2) = rest[d * nper:(d + 1) * nper]

        # --- attention: fused QKV matmul, head-batched bf16 score/AV dots ---
        xn = layernorm(x, ln1_g, ln1_b)
        qkv = bdot(xn, w_qkv[...]) + b_qkv[...]     # (rows, 3E); 1/sqrt(hd) folded into Q
        av_parts = []
        for b in range(n_batch):                    # self-attention is per batch element
            blk = qkv[b * n_tokens:(b + 1) * n_tokens]   # (N, 3E) static sublane slice

            def heads(off, _blk=blk):               # (N, E) columns -> (H, N, hd) bf16
                return jnp.stack(
                    [_blk[:, off + h * hd: off + (h + 1) * hd]
                     for h in range(num_heads)], axis=0).astype(jnp.bfloat16)

            qh, kh, vh = heads(0), heads(E), heads(2 * E)
            s = lax.dot_general(qh, kh, (((2,), (2,)), ((0,), (0,))),
                                preferred_element_type=jnp.float32)      # (H, N, N)
            m = jnp.max(s, axis=-1, keepdims=True)                       # one XLU reduce
            p = jnp.exp(s - m)
            l = jnp.sum(p, axis=-1, keepdims=True)                       # one XLU reduce
            av = lax.dot_general(p.astype(jnp.bfloat16), vh,
                                 (((2,), (1,)), ((0,), (0,))),
                                 preferred_element_type=jnp.float32)     # (H, N, hd)
            av_parts.append(av * pl.reciprocal(l, approx=True))          # denom on EUP
        av_all = av_parts[0] if n_batch == 1 else jnp.concatenate(av_parts, axis=1)
        # single out-projection: head-batched (hd x E) dot, then sum over heads
        ctx = lax.dot_general(av_all.astype(jnp.bfloat16), w_o[...],
                              (((2,), (1,)), ((0,), (0,))),
                              preferred_element_type=jnp.float32)        # (H, rows, E)
        x = x + jnp.sum(ctx, axis=0) + b_o[...]                          # fused residual

        # --- MLP ---
        xn = layernorm(x, ln2_g, ln2_b)
        # TODO(synk): tanh-approx GELU; PyTorch default is exact erf.
        h1 = jax.nn.gelu(bdot(xn, w1[...]) + b1[...], approximate=True)
        x = x + bdot(h1, w2[...]) + b2[...]                              # fused residual

    (lnf_g, lnf_b, dec1_w, dec1_b, dec2_w, dec2_b, head_w, head_b) = rest[depth * nper:]
    xf = layernorm(x, lnf_g, lnf_b)
    # decoder stage 1: ConvTranspose3d(k=s=f1) as per-token matmul + ReLU; cols (s1, c1)
    z1 = jnp.maximum(bdot(xf, dec1_w[...]) + dec1_b[...], 0.0)           # (rows, 128)
    # decoder stage 2: block-diagonal over the fvol1 stage-1 sub-voxels + ReLU
    z2 = jnp.maximum(bdot(z1, dec2_w[...]) + dec2_b[...], 0.0)           # (rows, 768)
    # fused 1x1x1 sigmoid heads: block-diagonal over the fvol1*fvol2 final sub-voxels
    o_ref[...] = jax.nn.sigmoid(bdot(z2, head_w[...]) + head_b[...])     # (rows, 192)


# ----------------------------- pallas_call wrapper -----------------------------
def unetr_call(params, patches):
    m_tot, k_patch = patches.shape
    flat = [patches, params["pos_full"], params["patch_w"], params["patch_b"]]
    for blk in params["blocks"]:
        flat += [blk[k] for k in BLOCK_KEYS]
    flat += [params["ln_f_g"], params["ln_f_b"],
             params["dec1_w"], params["dec1_b"],
             params["dec2_w"], params["dec2_b"],
             params["head_w"], params["head_b"]]

    in_specs = [pl.BlockSpec((ROWS_PER_STEP, k_patch), lambda i: (i, 0)),
                pl.BlockSpec((ROWS_PER_STEP, E), lambda i: (i, 0))]
    in_specs += [_const_spec(a.shape) for a in flat[2:]]

    kern = functools.partial(_unetr_kernel, depth=DEPTH, num_heads=NUM_HEADS,
                             n_tokens=NTOK, n_batch=BATCH_PER_STEP)
    return pl.pallas_call(
        kern,
        out_shape=jax.ShapeDtypeStruct((m_tot, OUT_COLS), jnp.float32),
        grid=(GRID_STEPS,),
        in_specs=in_specs,
        out_specs=pl.BlockSpec((ROWS_PER_STEP, OUT_COLS), lambda i: (i, 0)),
        compiler_params=pltpu.CompilerParams(dimension_semantics=("parallel",)),
    )(*flat)


# ----------------------------- parameters -----------------------------
def init_params(key):
    keys = iter(jax.random.split(key, 128))

    def nrm(shape, scale=0.02):
        return scale * jax.random.normal(next(keys), shape, jnp.float32)

    def bf(a):
        return a.astype(jnp.bfloat16)

    p = {
        "patch_w": bf(nrm((C_IN * P ** 3, E))),          # Conv3d(k=s=P) as matmul
        "patch_b": jnp.zeros((1, E), jnp.float32),
        "pos_full": jnp.tile(nrm((NTOK, E)), (B, 1)),    # pre-tiled over batch (free)
        "blocks": [],
        "ln_f_g": jnp.ones((1, E), jnp.float32),
        "ln_f_b": jnp.zeros((1, E), jnp.float32),
    }
    scale = 1.0 / (HEAD_DIM ** 0.5)
    for _ in range(DEPTH):
        w_qkv = nrm((E, 3 * E))
        # fold 1/sqrt(head_dim) into the Q projection (free at init)
        w_qkv = jnp.concatenate([w_qkv[:, :E] * scale, w_qkv[:, E:]], axis=1)
        w_o = nrm((E, E))
        p["blocks"].append(dict(
            ln1_g=jnp.ones((1, E), jnp.float32), ln1_b=jnp.zeros((1, E), jnp.float32),
            w_qkv=bf(w_qkv), b_qkv=jnp.zeros((1, 3 * E), jnp.float32),
            w_o=bf(w_o.reshape(NUM_HEADS, HEAD_DIM, E)),   # (H, hd, E) for batched dot
            b_o=jnp.zeros((1, E), jnp.float32),
            ln2_g=jnp.ones((1, E), jnp.float32), ln2_b=jnp.zeros((1, E), jnp.float32),
            w1=bf(nrm((E, MLP_DIM))), b1=jnp.zeros((1, MLP_DIM), jnp.float32),
            w2=bf(nrm((MLP_DIM, E))), b2=jnp.zeros((1, E), jnp.float32),
        ))

    # decoder stage 1: ConvTranspose3d(E -> C1, k=s=f1) as matmul; columns (s1, c1)
    p["dec1_w"] = bf(nrm((E, FVOL1 * C1)))
    p["dec1_b"] = jnp.zeros((1, FVOL1 * C1), jnp.float32)

    # decoder stage 2: ConvTranspose3d(C1 -> C2, k=s=f2); per stage-1 sub-voxel matmul
    # expressed as a block-diagonal (FVOL1*C1, FVOL1*FVOL2*C2) weight so it applies
    # directly to the (rows, 128) stage-1 output without any spatial reshuffle.
    w2s = nrm((C1, FVOL2 * C2))                          # inner columns ordered (s2, c2)
    eye1 = jnp.eye(FVOL1, dtype=jnp.float32)
    p["dec2_w"] = bf(jnp.einsum("st,cj->sctj", eye1, w2s)
                     .reshape(FVOL1 * C1, FVOL1 * FVOL2 * C2))
    p["dec2_b"] = jnp.zeros((1, FVOL1 * FVOL2 * C2), jnp.float32)

    # heads: 1x1x1 conv (C2 -> sum(OUTPUT_SHAPES)), Sigmoid; 1x1x1 conv commutes with
    # the spatial layout so it is a block-diagonal weight over the 64 final sub-voxels.
    whs = jnp.concatenate([nrm((C2, oc)) for oc in OUTPUT_SHAPES], axis=1)   # (C2, OC)
    eye12 = jnp.eye(FVOL1 * FVOL2, dtype=jnp.float32)
    p["head_w"] = bf(jnp.einsum("uv,co->ucvo", eye12, whs)
                     .reshape(FVOL1 * FVOL2 * C2, OUT_COLS))
    p["head_b"] = jnp.zeros((1, OUT_COLS), jnp.float32)
    return p


# ----------------------------- forward pass -----------------------------
def forward(params, x):
    # x: (B, C, D, H, W)  -- PyTorch NCDHW
    bb, c, d, hh, w = x.shape
    gd, gh, gw = d // P, hh // P, w // P
    n = gd * gh * gw

    # patch extraction (space-to-depth) — tiny XLA reshuffle feeding the kernel
    xp = x.reshape(bb, c, gd, P, gh, P, gw, P)
    xp = xp.transpose(0, 2, 4, 6, 1, 3, 5, 7).reshape(bb * n, c * P ** 3)

    # --- single fused kernel: encoder + decoder + sigmoid heads ---
    y = unetr_call(params, xp)                      # (B*N, FVOL1*FVOL2*OC) = (128, 192)

    # sub-voxel interleave to NCDHW (tiny XLA transpose of the final 96 KB output)
    f1, f2 = UPSAMPLE_FACTORS[0], UPSAMPLE_FACTORS[1]
    o = y.reshape(bb, gd, gh, gw, f1[0], f1[1], f1[2], f2[0], f2[1], f2[2], OC_TOTAL)
    o = o.transpose(0, 10, 1, 4, 7, 2, 5, 8, 3, 6, 9)
    o = o.reshape(bb, OC_TOTAL,
                  gd * f1[0] * f2[0], gh * f1[1] * f2[1], gw * f1[2] * f2[2])

    outs, off = [], 0
    for oc in OUTPUT_SHAPES:
        outs.append(o[:, off:off + oc])
        off += oc
    return tuple(outs)


# ----------------------------- main -----------------------------
if __name__ == "__main__":
    key = jax.random.PRNGKey(0)
    pkey, xkey = jax.random.split(key)
    params = init_params(pkey)
    x = jax.random.normal(xkey, (B, C_IN, *IMG), jnp.float32)

    outs = jax.jit(forward)(params, x)
    outs = jax.block_until_ready(outs)

    assert isinstance(outs, tuple) and len(outs) == len(OUTPUT_SHAPES)
    assert outs[0].shape == (B, OUTPUT_SHAPES[0], *IMG)
    assert bool(jnp.all(jnp.isfinite(outs[0])))
    assert bool(jnp.all((outs[0] >= 0.0) & (outs[0] <= 1.0)))   # sigmoid range
    print("KERNEL_OK")
</pallas_src>

<mosaic_0001>
module attributes {stable_mosaic.version = 11 : i64} {
  func.func @_unetr_kernel(%arg0: i32, %arg1: memref<128x64xf32, #tpu.memory_space<vmem>>, %arg2: memref<128x32xf32, #tpu.memory_space<vmem>>, %arg3: memref<64x32xbf16, #tpu.memory_space<vmem>>, %arg4: memref<1x32xf32, #tpu.memory_space<vmem>>, %arg5: memref<1x32xf32, #tpu.memory_space<vmem>>, %arg6: memref<1x32xf32, #tpu.memory_space<vmem>>, %arg7: memref<32x96xbf16, #tpu.memory_space<vmem>>, %arg8: memref<1x96xf32, #tpu.memory_space<vmem>>, %arg9: memref<4x8x32xbf16, #tpu.memory_space<vmem>>, %arg10: memref<1x32xf32, #tpu.memory_space<vmem>>, %arg11: memref<1x32xf32, #tpu.memory_space<vmem>>, %arg12: memref<1x32xf32, #tpu.memory_space<vmem>>, %arg13: memref<32x128xbf16, #tpu.memory_space<vmem>>, %arg14: memref<1x128xf32, #tpu.memory_space<vmem>>, %arg15: memref<128x32xbf16, #tpu.memory_space<vmem>>, %arg16: memref<1x32xf32, #tpu.memory_space<vmem>>, %arg17: memref<1x32xf32, #tpu.memory_space<vmem>>, %arg18: memref<1x32xf32, #tpu.memory_space<vmem>>, %arg19: memref<32x96xbf16, #tpu.memory_space<vmem>>, %arg20: memref<1x96xf32, #tpu.memory_space<vmem>>, %arg21: memref<4x8x32xbf16, #tpu.memory_space<vmem>>, %arg22: memref<1x32xf32, #tpu.memory_space<vmem>>, %arg23: memref<1x32xf32, #tpu.memory_space<vmem>>, %arg24: memref<1x32xf32, #tpu.memory_space<vmem>>, %arg25: memref<32x128xbf16, #tpu.memory_space<vmem>>, %arg26: memref<1x128xf32, #tpu.memory_space<vmem>>, %arg27: memref<128x32xbf16, #tpu.memory_space<vmem>>, %arg28: memref<1x32xf32, #tpu.memory_space<vmem>>, %arg29: memref<1x32xf32, #tpu.memory_space<vmem>>, %arg30: memref<1x32xf32, #tpu.memory_space<vmem>>, %arg31: memref<32x128xbf16, #tpu.memory_space<vmem>>, %arg32: memref<1x128xf32, #tpu.memory_space<vmem>>, %arg33: memref<128x768xbf16, #tpu.memory_space<vmem>>, %arg34: memref<1x768xf32, #tpu.memory_space<vmem>>, %arg35: memref<768x192xbf16, #tpu.memory_space<vmem>>, %arg36: memref<1x192xf32, #tpu.memory_space<vmem>>, %arg37: memref<128x192xf32, #tpu.memory_space<vmem>>) attributes {dimension_semantics = [#tpu.dimension_semantics<parallel>], iteration_bounds = array<i64: 1>, scalar_prefetch = 0 : i64, scratch_operands = 0 : i64, tpu.core_type = #tpu.core_type<tc>, window_params = [{transform_indices = @transform_0, window_bounds = array<i64: 128, 64>}, {transform_indices = @transform_1, window_bounds = array<i64: 128, 32>}, {pipeline_mode = #tpu.pipeline_mode<synchronous>, transform_indices = @transform_2, window_bounds = array<i64: 64, 32>}, {pipeline_mode = #tpu.pipeline_mode<synchronous>, transform_indices = @transform_3, window_bounds = array<i64: 1, 32>}, {pipeline_mode = #tpu.pipeline_mode<synchronous>, transform_indices = @transform_4, window_bounds = array<i64: 1, 32>}, {pipeline_mode = #tpu.pipeline_mode<synchronous>, transform_indices = @transform_5, window_bounds = array<i64: 1, 32>}, {pipeline_mode = #tpu.pipeline_mode<synchronous>, transform_indices = @transform_6, window_bounds = array<i64: 32, 96>}, {pipeline_mode = #tpu.pipeline_mode<synchronous>, transform_indices = @transform_7, window_bounds = array<i64: 1, 96>}, {pipeline_mode = #tpu.pipeline_mode<synchronous>, transform_indices = @transform_8, window_bounds = array<i64: 4, 8, 32>}, {pipeline_mode = #tpu.pipeline_mode<synchronous>, transform_indices = @transform_9, window_bounds = array<i64: 1, 32>}, {pipeline_mode = #tpu.pipeline_mode<synchronous>, transform_indices = @transform_10, window_bounds = array<i64: 1, 32>}, {pipeline_mode = #tpu.pipeline_mode<synchronous>, transform_indices = @transform_11, window_bounds = array<i64: 1, 32>}, {pipeline_mode = #tpu.pipeline_mode<synchronous>, transform_indices = @transform_12, window_bounds = array<i64: 32, 128>}, {pipeline_mode = #tpu.pipeline_mode<synchronous>, transform_indices = @transform_13, window_bounds = array<i64: 1, 128>}, {pipeline_mode = #tpu.pipeline_mode<synchronous>, transform_indices = @transform_14, window_bounds = array<i64: 128, 32>}, {pipeline_mode = #tpu.pipeline_mode<synchronous>, transform_indices = @transform_15, window_bounds = array<i64: 1, 32>}, {pipeline_mode = #tpu.pipeline_mode<synchronous>, transform_indices = @transform_16, window_bounds = array<i64: 1, 32>}, {pipeline_mode = #tpu.pipeline_mode<synchronous>, transform_indices = @transform_17, window_bounds = array<i64: 1, 32>}, {pipeline_mode = #tpu.pipeline_mode<synchronous>, transform_indices = @transform_18, window_bounds = array<i64: 32, 96>}, {pipeline_mode = #tpu.pipeline_mode<synchronous>, transform_indices = @transform_19, window_bounds = array<i64: 1, 96>}, {pipeline_mode = #tpu.pipeline_mode<synchronous>, transform_indices = @transform_20, window_bounds = array<i64: 4, 8, 32>}, {pipeline_mode = #tpu.pipeline_mode<synchronous>, transform_indices = @transform_21, window_bounds = array<i64: 1, 32>}, {pipeline_mode = #tpu.pipeline_mode<synchronous>, transform_indices = @transform_22, window_bounds = array<i64: 1, 32>}, {pipeline_mode = #tpu.pipeline_mode<synchronous>, transform_indices = @transform_23, window_bounds = array<i64: 1, 32>}, {pipeline_mode = #tpu.pipeline_mode<synchronous>, transform_indices = @transform_24, window_bounds = array<i64: 32, 128>}, {pipeline_mode = #tpu.pipeline_mode<synchronous>, transform_indices = @transform_25, window_bounds = array<i64: 1, 128>}, {pipeline_mode = #tpu.pipeline_mode<synchronous>, transform_indices = @transform_26, window_bounds = array<i64: 128, 32>}, {pipeline_mode = #tpu.pipeline_mode<synchronous>, transform_indices = @transform_27, window_bounds = array<i64: 1, 32>}, {pipeline_mode = #tpu.pipeline_mode<synchronous>, transform_indices = @transform_28, window_bounds = array<i64: 1, 32>}, {pipeline_mode = #tpu.pipeline_mode<synchronous>, transform_indices = @transform_29, window_bounds = array<i64: 1, 32>}, {pipeline_mode = #tpu.pipeline_mode<synchronous>, transform_indices = @transform_30, window_bounds = array<i64: 32, 128>}, {pipeline_mode = #tpu.pipeline_mode<synchronous>, transform_indices = @transform_31, window_bounds = array<i64: 1, 128>}, {pipeline_mode = #tpu.pipeline_mode<synchronous>, transform_indices = @transform_32, window_bounds = array<i64: 128, 768>}, {pipeline_mode = #tpu.pipeline_mode<synchronous>, transform_indices = @transform_33, window_bounds = array<i64: 1, 768>}, {pipeline_mode = #tpu.pipeline_mode<synchronous>, transform_indices = @transform_34, window_bounds = array<i64: 768, 192>}, {pipeline_mode = #tpu.pipeline_mode<synchronous>, transform_indices = @transform_35, window_bounds = array<i64: 1, 192>}, {transform_indices = @transform_36, window_bounds = array<i64: 128, 192>}]} {
    %c0 = arith.constant 0 : index
    %c0_0 = arith.constant 0 : index
    %0 = vector.load %arg1[%c0, %c0_0] : memref<128x64xf32, #tpu.memory_space<vmem>>, vector<128x64xf32>
    %c0_1 = arith.constant 0 : index
    %c0_2 = arith.constant 0 : index
    %1 = vector.load %arg3[%c0_1, %c0_2] : memref<64x32xbf16, #tpu.memory_space<vmem>>, vector<64x32xbf16>
    %2 = arith.truncf %0 : vector<128x64xf32> to vector<128x64xbf16>
    %cst = arith.constant dense<0.000000e+00> : vector<128x32xf32>
    %3 = tpu.matmul %2, %1, %cst {dimension_numbers = #tpu.dot_dimension_numbers<[1], [0], [0], [1], [0, 0, 1, 1], [], []>} : vector<128x64xbf16>, vector<64x32xbf16>, vector<128x32xf32> -> vector<128x32xf32>
    %c0_3 = arith.constant 0 : index
    %c0_4 = arith.constant 0 : index
    %4 = vector.load %arg4[%c0_3, %c0_4] : memref<1x32xf32, #tpu.memory_space<vmem>>, vector<1x32xf32>
    %5 = vector.broadcast %4 : vector<1x32xf32> to vector<128x32xf32>
    %6 = arith.addf %3, %5 : vector<128x32xf32>
    %c0_5 = arith.constant 0 : index
    %c0_6 = arith.constant 0 : index
    %7 = vector.load %arg2[%c0_5, %c0_6] : memref<128x32xf32, #tpu.memory_space<vmem>>, vector<128x32xf32>
    %8 = arith.addf %6, %7 : vector<128x32xf32>
    %cst_7 = arith.constant dense<0.000000e+00> : vector<128xf32>
    %9 = vector.multi_reduction <add>, %8, %cst_7 [1] : vector<128x32xf32> to vector<128xf32>
    %10 = vector.shape_cast %9 : vector<128xf32> to vector<128x1xf32>
    %cst_8 = arith.constant 3.200000e+01 : f32
    %11 = vector.broadcast %cst_8 : f32 to vector<128x1xf32>
    %12 = arith.divf %10, %11 : vector<128x1xf32>
    %13 = vector.broadcast %12 : vector<128x1xf32> to vector<128x32xf32>
    %14 = arith.subf %8, %13 : vector<128x32xf32>
    %15 = arith.mulf %14, %14 : vector<128x32xf32>
    %cst_9 = arith.constant dense<0.000000e+00> : vector<128xf32>
    %16 = vector.multi_reduction <add>, %15, %cst_9 [1] : vector<128x32xf32> to vector<128xf32>
    %17 = vector.shape_cast %16 : vector<128xf32> to vector<128x1xf32>
    %cst_10 = arith.constant 3.200000e+01 : f32
    %18 = vector.broadcast %cst_10 : f32 to vector<128x1xf32>
    %19 = arith.divf %17, %18 : vector<128x1xf32>
    %20 = vector.broadcast %12 : vector<128x1xf32> to vector<128x32xf32>
    %21 = arith.subf %8, %20 : vector<128x32xf32>
    %cst_11 = arith.constant 9.99999974E-6 : f32
    %22 = vector.broadcast %cst_11 : f32 to vector<128x1xf32>
    %23 = arith.addf %19, %22 : vector<128x1xf32>
    %24 = math.rsqrt %23 : vector<128x1xf32>
    %25 = vector.broadcast %24 : vector<128x1xf32> to vector<128x32xf32>
    %26 = arith.mulf %21, %25 : vector<128x32xf32>
    %c0_12 = arith.constant 0 : index
    %c0_13 = arith.constant 0 : index
    %27 = vector.load %arg5[%c0_12, %c0_13] : memref<1x32xf32, #tpu.memory_space<vmem>>, vector<1x32xf32>
    %28 = vector.broadcast %27 : vector<1x32xf32> to vector<128x32xf32>
    %29 = arith.mulf %26, %28 : vector<128x32xf32>
    %c0_14 = arith.constant 0 : index
    %c0_15 = arith.constant 0 : index
    %30 = vector.load %arg6[%c0_14, %c0_15] : memref<1x32xf32, #tpu.memory_space<vmem>>, vector<1x32xf32>
    %31 = vector.broadcast %30 : vector<1x32xf32> to vector<128x32xf32>
    %32 = arith.addf %29, %31 : vector<128x32xf32>
    %c0_16 = arith.constant 0 : index
    %c0_17 = arith.constant 0 : index
    %33 = vector.load %arg7[%c0_16, %c0_17] : memref<32x96xbf16, #tpu.memory_space<vmem>>, vector<32x96xbf16>
    %34 = arith.truncf %32 : vector<128x32xf32> to vector<128x32xbf16>
    %cst_18 = arith.constant dense<0.000000e+00> : vector<128x96xf32>
    %35 = tpu.matmul %34, %33, %cst_18 {dimension_numbers = #tpu.dot_dimension_numbers<[1], [0], [0], [1], [0, 0, 1, 1], [], []>} : vector<128x32xbf16>, vector<32x96xbf16>, vector<128x96xf32> -> vector<128x96xf32>
    %c0_19 = arith.constant 0 : index
    %c0_20 = arith.constant 0 : index
    %36 = vector.load %arg8[%c0_19, %c0_20] : memref<1x96xf32, #tpu.memory_space<vmem>>, vector<1x96xf32>
    %37 = vector.broadcast %36 : vector<1x96xf32> to vector<128x96xf32>
    %38 = arith.addf %35, %37 : vector<128x96xf32>
    %39 = vector.extract_strided_slice %38 {offsets = [0, 0], sizes = [64, 96], strides = [1, 1]} : vector<128x96xf32> to vector<64x96xf32>
    %40 = vector.extract_strided_slice %39 {offsets = [0, 0], sizes = [64, 8], strides = [1, 1]} : vector<64x96xf32> to vector<64x8xf32>
    %41 = vector.extract_strided_slice %39 {offsets = [0, 8], sizes = [64, 8], strides = [1, 1]} : vector<64x96xf32> to vector<64x8xf32>
    %42 = vector.extract_strided_slice %39 {offsets = [0, 16], sizes = [64, 8], strides = [1, 1]} : vector<64x96xf32> to vector<64x8xf32>
    %43 = vector.extract_strided_slice %39 {offsets = [0, 24], sizes = [64, 8], strides = [1, 1]} : vector<64x96xf32> to vector<64x8xf32>
    %44 = vector.shape_cast %40 : vector<64x8xf32> to vector<1x64x8xf32>
    %45 = vector.shape_cast %41 : vector<64x8xf32> to vector<1x64x8xf32>
    %46 = vector.shape_cast %42 : vector<64x8xf32> to vector<1x64x8xf32>
    %47 = vector.shape_cast %43 : vector<64x8xf32> to vector<1x64x8xf32>
    %48 = tpu.concatenate %44, %45, %46, %47 in 0 : vector<1x64x8xf32>, vector<1x64x8xf32>, vector<1x64x8xf32>, vector<1x64x8xf32> -> vector<4x64x8xf32>
    %49 = arith.truncf %48 : vector<4x64x8xf32> to vector<4x64x8xbf16>
    %50 = vector.extract_strided_slice %39 {offsets = [0, 32], sizes = [64, 8], strides = [1, 1]} : vector<64x96xf32> to vector<64x8xf32>
    %51 = vector.extract_strided_slice %39 {offsets = [0, 40], sizes = [64, 8], strides = [1, 1]} : vector<64x96xf32> to vector<64x8xf32>
    %52 = vector.extract_strided_slice %39 {offsets = [0, 48], sizes = [64, 8], strides = [1, 1]} : vector<64x96xf32> to vector<64x8xf32>
    %53 = vector.extract_strided_slice %39 {offsets = [0, 56], sizes = [64, 8], strides = [1, 1]} : vector<64x96xf32> to vector<64x8xf32>
    %54 = vector.shape_cast %50 : vector<64x8xf32> to vector<1x64x8xf32>
    %55 = vector.shape_cast %51 : vector<64x8xf32> to vector<1x64x8xf32>
    %56 = vector.shape_cast %52 : vector<64x8xf32> to vector<1x64x8xf32>
    %57 = vector.shape_cast %53 : vector<64x8xf32> to vector<1x64x8xf32>
    %58 = tpu.concatenate %54, %55, %56, %57 in 0 : vector<1x64x8xf32>, vector<1x64x8xf32>, vector<1x64x8xf32>, vector<1x64x8xf32> -> vector<4x64x8xf32>
    %59 = arith.truncf %58 : vector<4x64x8xf32> to vector<4x64x8xbf16>
    %60 = vector.extract_strided_slice %39 {offsets = [0, 64], sizes = [64, 8], strides = [1, 1]} : vector<64x96xf32> to vector<64x8xf32>
    %61 = vector.extract_strided_slice %39 {offsets = [0, 72], sizes = [64, 8], strides = [1, 1]} : vector<64x96xf32> to vector<64x8xf32>
    %62 = vector.extract_strided_slice %39 {offsets = [0, 80], sizes = [64, 8], strides = [1, 1]} : vector<64x96xf32> to vector<64x8xf32>
    %63 = vector.extract_strided_slice %39 {offsets = [0, 88], sizes = [64, 8], strides = [1, 1]} : vector<64x96xf32> to vector<64x8xf32>
    %64 = vector.shape_cast %60 : vector<64x8xf32> to vector<1x64x8xf32>
    %65 = vector.shape_cast %61 : vector<64x8xf32> to vector<1x64x8xf32>
    %66 = vector.shape_cast %62 : vector<64x8xf32> to vector<1x64x8xf32>
    %67 = vector.shape_cast %63 : vector<64x8xf32> to vector<1x64x8xf32>
    %68 = tpu.concatenate %64, %65, %66, %67 in 0 : vector<1x64x8xf32>, vector<1x64x8xf32>, vector<1x64x8xf32>, vector<1x64x8xf32> -> vector<4x64x8xf32>
    %69 = arith.truncf %68 : vector<4x64x8xf32> to vector<4x64x8xbf16>
    %cst_21 = arith.constant dense<0.000000e+00> : vector<4x64x64xf32>
    %70 = tpu.matmul %49, %59, %cst_21 {dimension_numbers = #tpu.dot_dimension_numbers<[2], [2], [1], [1], [0, 0, 0, 1, 1, 1], [0], [0]>} : vector<4x64x8xbf16>, vector<4x64x8xbf16>, vector<4x64x64xf32> -> vector<4x64x64xf32>
    %cst_22 = arith.constant dense<0xFF800000> : vector<4x64xf32>
    %71 = vector.multi_reduction <maximumf>, %70, %cst_22 [2] : vector<4x64x64xf32> to vector<4x64xf32>
    %72 = vector.shape_cast %71 : vector<4x64xf32> to vector<4x64x1xf32>
    %73 = vector.broadcast %72 : vector<4x64x1xf32> to vector<4x64x64xf32>
    %74 = arith.subf %70, %73 : vector<4x64x64xf32>
    %75 = math.exp %74 : vector<4x64x64xf32>
    %cst_23 = arith.constant dense<0.000000e+00> : vector<4x64xf32>
    %76 = vector.multi_reduction <add>, %75, %cst_23 [2] : vector<4x64x64xf32> to vector<4x64xf32>
    %77 = vector.shape_cast %76 : vector<4x64xf32> to vector<4x64x1xf32>
    %78 = arith.truncf %75 : vector<4x64x64xf32> to vector<4x64x64xbf16>
    %cst_24 = arith.constant dense<0.000000e+00> : vector<4x64x8xf32>
    %79 = tpu.matmul %78, %69, %cst_24 {dimension_numbers = #tpu.dot_dimension_numbers<[2], [1], [1], [2], [0, 0, 0, 1, 1, 2], [0], [0]>} : vector<4x64x64xbf16>, vector<4x64x8xbf16>, vector<4x64x8xf32> -> vector<4x64x8xf32>
    %80 = tpu.reciprocal %77 {approx = true} : vector<4x64x1xf32> -> vector<4x64x1xf32>
    %81 = vector.broadcast %80 : vector<4x64x1xf32> to vector<4x64x8xf32>
    %82 = arith.mulf %79, %81 : vector<4x64x8xf32>
    %83 = vector.extract_strided_slice %38 {offsets = [64, 0], sizes = [64, 96], strides = [1, 1]} : vector<128x96xf32> to vector<64x96xf32>
    %84 = vector.extract_strided_slice %83 {offsets = [0, 0], sizes = [64, 8], strides = [1, 1]} : vector<64x96xf32> to vector<64x8xf32>
    %85 = vector.extract_strided_slice %83 {offsets = [0, 8], sizes = [64, 8], strides = [1, 1]} : vector<64x96xf32> to vector<64x8xf32>
    %86 = vector.extract_strided_slice %83 {offsets = [0, 16], sizes = [64, 8], strides = [1, 1]} : vector<64x96xf32> to vector<64x8xf32>
    %87 = vector.extract_strided_slice %83 {offsets = [0, 24], sizes = [64, 8], strides = [1, 1]} : vector<64x96xf32> to vector<64x8xf32>
    %88 = vector.shape_cast %84 : vector<64x8xf32> to vector<1x64x8xf32>
    %89 = vector.shape_cast %85 : vector<64x8xf32> to vector<1x64x8xf32>
    %90 = vector.shape_cast %86 : vector<64x8xf32> to vector<1x64x8xf32>
    %91 = vector.shape_cast %87 : vector<64x8xf32> to vector<1x64x8xf32>
    %92 = tpu.concatenate %88, %89, %90, %91 in 0 : vector<1x64x8xf32>, vector<1x64x8xf32>, vector<1x64x8xf32>, vector<1x64x8xf32> -> vector<4x64x8xf32>
    %93 = arith.truncf %92 : vector<4x64x8xf32> to vector<4x64x8xbf16>
    %94 = vector.extract_strided_slice %83 {offsets = [0, 32], sizes = [64, 8], strides = [1, 1]} : vector<64x96xf32> to vector<64x8xf32>
    %95 = vector.extract_strided_slice %83 {offsets = [0, 40], sizes = [64, 8], strides = [1, 1]} : vector<64x96xf32> to vector<64x8xf32>
    %96 = vector.extract_strided_slice %83 {offsets = [0, 48], sizes = [64, 8], strides = [1, 1]} : vector<64x96xf32> to vector<64x8xf32>
    %97 = vector.extract_strided_slice %83 {offsets = [0, 56], sizes = [64, 8], strides = [1, 1]} : vector<64x96xf32> to vector<64x8xf32>
    %98 = vector.shape_cast %94 : vector<64x8xf32> to vector<1x64x8xf32>
    %99 = vector.shape_cast %95 : vector<64x8xf32> to vector<1x64x8xf32>
    %100 = vector.shape_cast %96 : vector<64x8xf32> to vector<1x64x8xf32>
    %101 = vector.shape_cast %97 : vector<64x8xf32> to vector<1x64x8xf32>
    %102 = tpu.concatenate %98, %99, %100, %101 in 0 : vector<1x64x8xf32>, vector<1x64x8xf32>, vector<1x64x8xf32>, vector<1x64x8xf32> -> vector<4x64x8xf32>
    %103 = arith.truncf %102 : vector<4x64x8xf32> to vector<4x64x8xbf16>
    %104 = vector.extract_strided_slice %83 {offsets = [0, 64], sizes = [64, 8], strides = [1, 1]} : vector<64x96xf32> to vector<64x8xf32>
    %105 = vector.extract_strided_slice %83 {offsets = [0, 72], sizes = [64, 8], strides = [1, 1]} : vector<64x96xf32> to vector<64x8xf32>
    %106 = vector.extract_strided_slice %83 {offsets = [0, 80], sizes = [64, 8], strides = [1, 1]} : vector<64x96xf32> to vector<64x8xf32>
    %107 = vector.extract_strided_slice %83 {offsets = [0, 88], sizes = [64, 8], strides = [1, 1]} : vector<64x96xf32> to vector<64x8xf32>
    %108 = vector.shape_cast %104 : vector<64x8xf32> to vector<1x64x8xf32>
    %109 = vector.shape_cast %105 : vector<64x8xf32> to vector<1x64x8xf32>
    %110 = vector.shape_cast %106 : vector<64x8xf32> to vector<1x64x8xf32>
    %111 = vector.shape_cast %107 : vector<64x8xf32> to vector<1x64x8xf32>
    %112 = tpu.concatenate %108, %109, %110, %111 in 0 : vector<1x64x8xf32>, vector<1x64x8xf32>, vector<1x64x8xf32>, vector<1x64x8xf32> -> vector<4x64x8xf32>
    %113 = arith.truncf %112 : vector<4x64x8xf32> to vector<4x64x8xbf16>
    %cst_25 = arith.constant dense<0.000000e+00> : vector<4x64x64xf32>
    %114 = tpu.matmul %93, %103, %cst_25 {dimension_numbers = #tpu.dot_dimension_numbers<[2], [2], [1], [1], [0, 0, 0, 1, 1, 1], [0], [0]>} : vector<4x64x8xbf16>, vector<4x64x8xbf16>, vector<4x64x64xf32> -> vector<4x64x64xf32>
    %cst_26 = arith.constant dense<0xFF800000> : vector<4x64xf32>
    %115 = vector.multi_reduction <maximumf>, %114, %cst_26 [2] : vector<4x64x64xf32> to vector<4x64xf32>
    %116 = vector.shape_cast %115 : vector<4x64xf32> to vector<4x64x1xf32>
    %117 = vector.broadcast %116 : vector<4x64x1xf32> to vector<4x64x64xf32>
    %118 = arith.subf %114, %117 : vector<4x64x64xf32>
    %119 = math.exp %118 : vector<4x64x64xf32>
    %cst_27 = arith.constant dense<0.000000e+00> : vector<4x64xf32>
    %120 = vector.multi_reduction <add>, %119, %cst_27 [2] : vector<4x64x64xf32> to vector<4x64xf32>
    %121 = vector.shape_cast %120 : vector<4x64xf32> to vector<4x64x1xf32>
    %122 = arith.truncf %119 : vector<4x64x64xf32> to vector<4x64x64xbf16>
    %cst_28 = arith.constant dense<0.000000e+00> : vector<4x64x8xf32>
    %123 = tpu.matmul %122, %113, %cst_28 {dimension_numbers = #tpu.dot_dimension_numbers<[2], [1], [1], [2], [0, 0, 0, 1, 1, 2], [0], [0]>} : vector<4x64x64xbf16>, vector<4x64x8xbf16>, vector<4x64x8xf32> -> vector<4x64x8xf32>
    %124 = tpu.reciprocal %121 {approx = true} : vector<4x64x1xf32> -> vector<4x64x1xf32>
    %125 = vector.broadcast %124 : vector<4x64x1xf32> to vector<4x64x8xf32>
    %126 = arith.mulf %123, %125 : vector<4x64x8xf32>
    %127 = tpu.concatenate %82, %126 in 1 : vector<4x64x8xf32>, vector<4x64x8xf32> -> vector<4x128x8xf32>
    %128 = arith.truncf %127 : vector<4x128x8xf32> to vector<4x128x8xbf16>
    %c0_29 = arith.constant 0 : index
    %c0_30 = arith.constant 0 : index
    %c0_31 = arith.constant 0 : index
    %129 = vector.load %arg9[%c0_29, %c0_30, %c0_31] : memref<4x8x32xbf16, #tpu.memory_space<vmem>>, vector<4x8x32xbf16>
    %cst_32 = arith.constant dense<0.000000e+00> : vector<4x128x32xf32>
    %130 = tpu.matmul %128, %129, %cst_32 {dimension_numbers = #tpu.dot_dimension_numbers<[2], [1], [1], [2], [0, 0, 0, 1, 1, 2], [0], [0]>} : vector<4x128x8xbf16>, vector<4x8x32xbf16>, vector<4x128x32xf32> -> vector<4x128x32xf32>
    %cst_33 = arith.constant dense<0.000000e+00> : vector<128x32xf32>
    %131 = vector.multi_reduction <add>, %130, %cst_33 [0] : vector<4x128x32xf32> to vector<128x32xf32>
    %132 = arith.addf %8, %131 : vector<128x32xf32>
    %c0_34 = arith.constant 0 : index
    %c0_35 = arith.constant 0 : index
    %133 = vector.load %arg10[%c0_34, %c0_35] : memref<1x32xf32, #tpu.memory_space<vmem>>, vector<1x32xf32>
    %134 = vector.broadcast %133 : vector<1x32xf32> to vector<128x32xf32>
    %135 = arith.addf %132, %134 : vector<128x32xf32>
    %cst_36 = arith.constant dense<0.000000e+00> : vector<128xf32>
    %136 = vector.multi_reduction <add>, %135, %cst_36 [1] : vector<128x32xf32> to vector<128xf32>
    %137 = vector.shape_cast %136 : vector<128xf32> to vector<128x1xf32>
    %cst_37 = arith.constant 3.200000e+01 : f32
    %138 = vector.broadcast %cst_37 : f32 to vector<128x1xf32>
    %139 = arith.divf %137, %138 : vector<128x1xf32>
    %140 = vector.broadcast %139 : vector<128x1xf32> to vector<128x32xf32>
    %141 = arith.subf %135, %140 : vector<128x32xf32>
    %142 = arith.mulf %141, %141 : vector<128x32xf32>
    %cst_38 = arith.constant dense<0.000000e+00> : vector<128xf32>
    %143 = vector.multi_reduction <add>, %142, %cst_38 [1] : vector<128x32xf32> to vector<128xf32>
    %144 = vector.shape_cast %143 : vector<128xf32> to vector<128x1xf32>
    %cst_39 = arith.constant 3.200000e+01 : f32
    %145 = vector.broadcast %cst_39 : f32 to vector<128x1xf32>
    %146 = arith.divf %144, %145 : vector<128x1xf32>
    %147 = vector.broadcast %139 : vector<128x1xf32> to vector<128x32xf32>
    %148 = arith.subf %135, %147 : vector<128x32xf32>
    %cst_40 = arith.constant 9.99999974E-6 : f32
    %149 = vector.broadcast %cst_40 : f32 to vector<128x1xf32>
    %150 = arith.addf %146, %149 : vector<128x1xf32>
    %151 = math.rsqrt %150 : vector<128x1xf32>
    %152 = vector.broadcast %151 : vector<128x1xf32> to vector<128x32xf32>
    %153 = arith.mulf %148, %152 : vector<128x32xf32>
    %c0_41 = arith.constant 0 : index
    %c0_42 = arith.constant 0 : index
    %154 = vector.load %arg11[%c0_41, %c0_42] : memref<1x32xf32, #tpu.memory_space<vmem>>, vector<1x32xf32>
    %155 = vector.broadcast %154 : vector<1x32xf32> to vector<128x32xf32>
    %156 = arith.mulf %153, %155 : vector<128x32xf32>
    %c0_43 = arith.constant 0 : index
    %c0_44 = arith.constant 0 : index
    %157 = vector.load %arg12[%c0_43, %c0_44] : memref<1x32xf32, #tpu.memory_space<vmem>>, vector<1x32xf32>
    %158 = vector.broadcast %157 : vector<1x32xf32> to vector<128x32xf32>
    %159 = arith.addf %156, %158 : vector<128x32xf32>
    %c0_45 = arith.constant 0 : index
    %c0_46 = arith.constant 0 : index
    %160 = vector.load %arg13[%c0_45, %c0_46] : memref<32x128xbf16, #tpu.memory_space<vmem>>, vector<32x128xbf16>
    %161 = arith.truncf %159 : vector<128x32xf32> to vector<128x32xbf16>
    %cst_47 = arith.constant dense<0.000000e+00> : vector<128x128xf32>
    %162 = tpu.matmul %161, %160, %cst_47 {dimension_numbers = #tpu.dot_dimension_numbers<[1], [0], [0], [1], [0, 0, 1, 1], [], []>} : vector<128x32xbf16>, vector<32x128xbf16>, vector<128x128xf32> -> vector<128x128xf32>
    %c0_48 = arith.constant 0 : index
    %c0_49 = arith.constant 0 : index
    %163 = vector.load %arg14[%c0_48, %c0_49] : memref<1x128xf32, #tpu.memory_space<vmem>>, vector<1x128xf32>
    %164 = vector.broadcast %163 : vector<1x128xf32> to vector<128x128xf32>
    %165 = arith.addf %162, %164 : vector<128x128xf32>
    %166 = arith.mulf %165, %165 : vector<128x128xf32>
    %167 = arith.mulf %165, %166 : vector<128x128xf32>
    %cst_50 = arith.constant 4.471500e-02 : f32
    %168 = vector.broadcast %cst_50 : f32 to vector<128x128xf32>
    %169 = arith.mulf %168, %167 : vector<128x128xf32>
    %170 = arith.addf %165, %169 : vector<128x128xf32>
    %cst_51 = arith.constant 0.797884583 : f32
    %171 = vector.broadcast %cst_51 : f32 to vector<128x128xf32>
    %172 = arith.mulf %171, %170 : vector<128x128xf32>
    %173 = math.tanh %172 : vector<128x128xf32>
    %cst_52 = arith.constant 1.000000e+00 : f32
    %174 = vector.broadcast %cst_52 : f32 to vector<128x128xf32>
    %175 = arith.addf %174, %173 : vector<128x128xf32>
    %cst_53 = arith.constant 5.000000e-01 : f32
    %176 = vector.broadcast %cst_53 : f32 to vector<128x128xf32>
    %177 = arith.mulf %176, %175 : vector<128x128xf32>
    %178 = arith.mulf %165, %177 : vector<128x128xf32>
    %c0_54 = arith.constant 0 : index
    %c0_55 = arith.constant 0 : index
    %179 = vector.load %arg15[%c0_54, %c0_55] : memref<128x32xbf16, #tpu.memory_space<vmem>>, vector<128x32xbf16>
    %180 = arith.truncf %178 : vector<128x128xf32> to vector<128x128xbf16>
    %cst_56 = arith.constant dense<0.000000e+00> : vector<128x32xf32>
    %181 = tpu.matmul %180, %179, %cst_56 {dimension_numbers = #tpu.dot_dimension_numbers<[1], [0], [0], [1], [0, 0, 1, 1], [], []>} : vector<128x128xbf16>, vector<128x32xbf16>, vector<128x32xf32> -> vector<128x32xf32>
    %182 = arith.addf %135, %181 : vector<128x32xf32>
    %c0_57 = arith.constant 0 : index
    %c0_58 = arith.constant 0 : index
    %183 = vector.load %arg16[%c0_57, %c0_58] : memref<1x32xf32, #tpu.memory_space<vmem>>, vector<1x32xf32>
    %184 = vector.broadcast %183 : vector<1x32xf32> to vector<128x32xf32>
    %185 = arith.addf %182, %184 : vector<128x32xf32>
    %cst_59 = arith.constant dense<0.000000e+00> : vector<128xf32>
    %186 = vector.multi_reduction <add>, %185, %cst_59 [1] : vector<128x32xf32> to vector<128xf32>
    %187 = vector.shape_cast %186 : vector<128xf32> to vector<128x1xf32>
    %cst_60 = arith.constant 3.200000e+01 : f32
    %188 = vector.broadcast %cst_60 : f32 to vector<128x1xf32>
    %189 = arith.divf %187, %188 : vector<128x1xf32>
    %190 = vector.broadcast %189 : vector<128x1xf32> to vector<128x32xf32>
    %191 = arith.subf %185, %190 : vector<128x32xf32>
    %192 = arith.mulf %191, %191 : vector<128x32xf32>
    %cst_61 = arith.constant dense<0.000000e+00> : vector<128xf32>
    %193 = vector.multi_reduction <add>, %192, %cst_61 [1] : vector<128x32xf32> to vector<128xf32>
    %194 = vector.shape_cast %193 : vector<128xf32> to vector<128x1xf32>
    %cst_62 = arith.constant 3.200000e+01 : f32
    %195 = vector.broadcast %cst_62 : f32 to vector<128x1xf32>
    %196 = arith.divf %194, %195 : vector<128x1xf32>
    %197 = vector.broadcast %189 : vector<128x1xf32> to vector<128x32xf32>
    %198 = arith.subf %185, %197 : vector<128x32xf32>
    %cst_63 = arith.constant 9.99999974E-6 : f32
    %199 = vector.broadcast %cst_63 : f32 to vector<128x1xf32>
    %200 = arith.addf %196, %199 : vector<128x1xf32>
    %201 = math.rsqrt %200 : vector<128x1xf32>
    %202 = vector.broadcast %201 : vector<128x1xf32> to vector<128x32xf32>
    %203 = arith.mulf %198, %202 : vector<128x32xf32>
    %c0_64 = arith.constant 0 : index
    %c0_65 = arith.constant 0 : index
    %204 = vector.load %arg17[%c0_64, %c0_65] : memref<1x32xf32, #tpu.memory_space<vmem>>, vector<1x32xf32>
    %205 = vector.broadcast %204 : vector<1x32xf32> to vector<128x32xf32>
    %206 = arith.mulf %203, %205 : vector<128x32xf32>
    %c0_66 = arith.constant 0 : index
    %c0_67 = arith.constant 0 : index
    %207 = vector.load %arg18[%c0_66, %c0_67] : memref<1x32xf32, #tpu.memory_space<vmem>>, vector<1x32xf32>
    %208 = vector.broadcast %207 : vector<1x32xf32> to vector<128x32xf32>
    %209 = arith.addf %206, %208 : vector<128x32xf32>
    %c0_68 = arith.constant 0 : index
    %c0_69 = arith.constant 0 : index
    %210 = vector.load %arg19[%c0_68, %c0_69] : memref<32x96xbf16, #tpu.memory_space<vmem>>, vector<32x96xbf16>
    %211 = arith.truncf %209 : vector<128x32xf32> to vector<128x32xbf16>
    %cst_70 = arith.constant dense<0.000000e+00> : vector<128x96xf32>
    %212 = tpu.matmul %211, %210, %cst_70 {dimension_numbers = #tpu.dot_dimension_numbers<[1], [0], [0], [1], [0, 0, 1, 1], [], []>} : vector<128x32xbf16>, vector<32x96xbf16>, vector<128x96xf32> -> vector<128x96xf32>
    %c0_71 = arith.constant 0 : index
    %c0_72 = arith.constant 0 : index
    %213 = vector.load %arg20[%c0_71, %c0_72] : memref<1x96xf32, #tpu.memory_space<vmem>>, vector<1x96xf32>
    %214 = vector.broadcast %213 : vector<1x96xf32> to vector<128x96xf32>
    %215 = arith.addf %212, %214 : vector<128x96xf32>
    %216 = vector.extract_strided_slice %215 {offsets = [0, 0], sizes = [64, 96], strides = [1, 1]} : vector<128x96xf32> to vector<64x96xf32>
    %217 = vector.extract_strided_slice %216 {offsets = [0, 0], sizes = [64, 8], strides = [1, 1]} : vector<64x96xf32> to vector<64x8xf32>
    %218 = vector.extract_strided_slice %216 {offsets = [0, 8], sizes = [64, 8], strides = [1, 1]} : vector<64x96xf32> to vector<64x8xf32>
    %219 = vector.extract_strided_slice %216 {offsets = [0, 16], sizes = [64, 8], strides = [1, 1]} : vector<64x96xf32> to vector<64x8xf32>
    %220 = vector.extract_strided_slice %216 {offsets = [0, 24], sizes = [64, 8], strides = [1, 1]} : vector<64x96xf32> to vector<64x8xf32>
    %221 = vector.shape_cast %217 : vector<64x8xf32> to vector<1x64x8xf32>
    %222 = vector.shape_cast %218 : vector<64x8xf32> to vector<1x64x8xf32>
    %223 = vector.shape_cast %219 : vector<64x8xf32> to vector<1x64x8xf32>
    %224 = vector.shape_cast %220 : vector<64x8xf32> to vector<1x64x8xf32>
    %225 = tpu.concatenate %221, %222, %223, %224 in 0 : vector<1x64x8xf32>, vector<1x64x8xf32>, vector<1x64x8xf32>, vector<1x64x8xf32> -> vector<4x64x8xf32>
    %226 = arith.truncf %225 : vector<4x64x8xf32> to vector<4x64x8xbf16>
    %227 = vector.extract_strided_slice %216 {offsets = [0, 32], sizes = [64, 8], strides = [1, 1]} : vector<64x96xf32> to vector<64x8xf32>
    %228 = vector.extract_strided_slice %216 {offsets = [0, 40], sizes = [64, 8], strides = [1, 1]} : vector<64x96xf32> to vector<64x8xf32>
    %229 = vector.extract_strided_slice %216 {offsets = [0, 48], sizes = [64, 8], strides = [1, 1]} : vector<64x96xf32> to vector<64x8xf32>
    %230 = vector.extract_strided_slice %216 {offsets = [0, 56], sizes = [64, 8], strides = [1, 1]} : vector<64x96xf32> to vector<64x8xf32>
    %231 = vector.shape_cast %227 : vector<64x8xf32> to vector<1x64x8xf32>
    %232 = vector.shape_cast %228 : vector<64x8xf32> to vector<1x64x8xf32>
    %233 = vector.shape_cast %229 : vector<64x8xf32> to vector<1x64x8xf32>
    %234 = vector.shape_cast %230 : vector<64x8xf32> to vector<1x64x8xf32>
    %235 = tpu.concatenate %231, %232, %233, %234 in 0 : vector<1x64x8xf32>, vector<1x64x8xf32>, vector<1x64x8xf32>, vector<1x64x8xf32> -> vector<4x64x8xf32>
    %236 = arith.truncf %235 : vector<4x64x8xf32> to vector<4x64x8xbf16>
    %237 = vector.extract_strided_slice %216 {offsets = [0, 64], sizes = [64, 8], strides = [1, 1]} : vector<64x96xf32> to vector<64x8xf32>
    %238 = vector.extract_strided_slice %216 {offsets = [0, 72], sizes = [64, 8], strides = [1, 1]} : vector<64x96xf32> to vector<64x8xf32>
    %239 = vector.extract_strided_slice %216 {offsets = [0, 80], sizes = [64, 8], strides = [1, 1]} : vector<64x96xf32> to vector<64x8xf32>
    %240 = vector.extract_strided_slice %216 {offsets = [0, 88], sizes = [64, 8], strides = [1, 1]} : vector<64x96xf32> to vector<64x8xf32>
    %241 = vector.shape_cast %237 : vector<64x8xf32> to vector<1x64x8xf32>
    %242 = vector.shape_cast %238 : vector<64x8xf32> to vector<1x64x8xf32>
    %243 = vector.shape_cast %239 : vector<64x8xf32> to vector<1x64x8xf32>
    %244 = vector.shape_cast %240 : vector<64x8xf32> to vector<1x64x8xf32>
    %245 = tpu.concatenate %241, %242, %243, %244 in 0 : vector<1x64x8xf32>, vector<1x64x8xf32>, vector<1x64x8xf32>, vector<1x64x8xf32> -> vector<4x64x8xf32>
    %246 = arith.truncf %245 : vector<4x64x8xf32> to vector<4x64x8xbf16>
    %cst_73 = arith.constant dense<0.000000e+00> : vector<4x64x64xf32>
    %247 = tpu.matmul %226, %236, %cst_73 {dimension_numbers = #tpu.dot_dimension_numbers<[2], [2], [1], [1], [0, 0, 0, 1, 1, 1], [0], [0]>} : vector<4x64x8xbf16>, vector<4x64x8xbf16>, vector<4x64x64xf32> -> vector<4x64x64xf32>
    %cst_74 = arith.constant dense<0xFF800000> : vector<4x64xf32>
    %248 = vector.multi_reduction <maximumf>, %247, %cst_74 [2] : vector<4x64x64xf32> to vector<4x64xf32>
    %249 = vector.shape_cast %248 : vector<4x64xf32> to vector<4x64x1xf32>
    %250 = vector.broadcast %249 : vector<4x64x1xf32> to vector<4x64x64xf32>
    %251 = arith.subf %247, %250 : vector<4x64x64xf32>
    %252 = math.exp %251 : vector<4x64x64xf32>
    %cst_75 = arith.constant dense<0.000000e+00> : vector<4x64xf32>
    %253 = vector.multi_reduction <add>, %252, %cst_75 [2] : vector<4x64x64xf32> to vector<4x64xf32>
    %254 = vector.shape_cast %253 : vector<4x64xf32> to vector<4x64x1xf32>
    %255 = arith.truncf %252 : vector<4x64x64xf32> to vector<4x64x64xbf16>
    %cst_76 = arith.constant dense<0.000000e+00> : vector<4x64x8xf32>
    %256 = tpu.matmul %255, %246, %cst_76 {dimension_numbers = #tpu.dot_dimension_numbers<[2], [1], [1], [2], [0, 0, 0, 1, 1, 2], [0], [0]>} : vector<4x64x64xbf16>, vector<4x64x8xbf16>, vector<4x64x8xf32> -> vector<4x64x8xf32>
    %257 = tpu.reciprocal %254 {approx = true} : vector<4x64x1xf32> -> vector<4x64x1xf32>
    %258 = vector.broadcast %257 : vector<4x64x1xf32> to vector<4x64x8xf32>
    %259 = arith.mulf %256, %258 : vector<4x64x8xf32>
    %260 = vector.extract_strided_slice %215 {offsets = [64, 0], sizes = [64, 96], strides = [1, 1]} : vector<128x96xf32> to vector<64x96xf32>
    %261 = vector.extract_strided_slice %260 {offsets = [0, 0], sizes = [64, 8], strides = [1, 1]} : vector<64x96xf32> to vector<64x8xf32>
    %262 = vector.extract_strided_slice %260 {offsets = [0, 8], sizes = [64, 8], strides = [1, 1]} : vector<64x96xf32> to vector<64x8xf32>
    %263 = vector.extract_strided_slice %260 {offsets = [0, 16], sizes = [64, 8], strides = [1, 1]} : vector<64x96xf32> to vector<64x8xf32>
    %264 = vector.extract_strided_slice %260 {offsets = [0, 24], sizes = [64, 8], strides = [1, 1]} : vector<64x96xf32> to vector<64x8xf32>
    %265 = vector.shape_cast %261 : vector<64x8xf32> to vector<1x64x8xf32>
    %266 = vector.shape_cast %262 : vector<64x8xf32> to vector<1x64x8xf32>
    %267 = vector.shape_cast %263 : vector<64x8xf32> to vector<1x64x8xf32>
    %268 = vector.shape_cast %264 : vector<64x8xf32> to vector<1x64x8xf32>
    %269 = tpu.concatenate %265, %266, %267, %268 in 0 : vector<1x64x8xf32>, vector<1x64x8xf32>, vector<1x64x8xf32>, vector<1x64x8xf32> -> vector<4x64x8xf32>
    %270 = arith.truncf %269 : vector<4x64x8xf32> to vector<4x64x8xbf16>
    %271 = vector.extract_strided_slice %260 {offsets = [0, 32], sizes = [64, 8], strides = [1, 1]} : vector<64x96xf32> to vector<64x8xf32>
    %272 = vector.extract_strided_slice %260 {offsets = [0, 40], sizes = [64, 8], strides = [1, 1]} : vector<64x96xf32> to vector<64x8xf32>
    %273 = vector.extract_strided_slice %260 {offsets = [0, 48], sizes = [64, 8], strides = [1, 1]} : vector<64x96xf32> to vector<64x8xf32>
    %274 = vector.extract_strided_slice %260 {offsets = [0, 56], sizes = [64, 8], strides = [1, 1]} : vector<64x96xf32> to vector<64x8xf32>
    %275 = vector.shape_cast %271 : vector<64x8xf32> to vector<1x64x8xf32>
    %276 = vector.shape_cast %272 : vector<64x8xf32> to vector<1x64x8xf32>
    %277 = vector.shape_cast %273 : vector<64x8xf32> to vector<1x64x8xf32>
    %278 = vector.shape_cast %274 : vector<64x8xf32> to vector<1x64x8xf32>
    %279 = tpu.concatenate %275, %276, %277, %278 in 0 : vector<1x64x8xf32>, vector<1x64x8xf32>, vector<1x64x8xf32>, vector<1x64x8xf32> -> vector<4x64x8xf32>
    %280 = arith.truncf %279 : vector<4x64x8xf32> to vector<4x64x8xbf16>
    %281 = vector.extract_strided_slice %260 {offsets = [0, 64], sizes = [64, 8], strides = [1, 1]} : vector<64x96xf32> to vector<64x8xf32>
    %282 = vector.extract_strided_slice %260 {offsets = [0, 72], sizes = [64, 8], strides = [1, 1]} : vector<64x96xf32> to vector<64x8xf32>
    %283 = vector.extract_strided_slice %260 {offsets = [0, 80], sizes = [64, 8], strides = [1, 1]} : vector<64x96xf32> to vector<64x8xf32>
    %284 = vector.extract_strided_slice %260 {offsets = [0, 88], sizes = [64, 8], strides = [1, 1]} : vector<64x96xf32> to vector<64x8xf32>
    %285 = vector.shape_cast %281 : vector<64x8xf32> to vector<1x64x8xf32>
    %286 = vector.shape_cast %282 : vector<64x8xf32> to vector<1x64x8xf32>
    %287 = vector.shape_cast %283 : vector<64x8xf32> to vector<1x64x8xf32>
    %288 = vector.shape_cast %284 : vector<64x8xf32> to vector<1x64x8xf32>
    %289 = tpu.concatenate %285, %286, %287, %288 in 0 : vector<1x64x8xf32>, vector<1x64x8xf32>, vector<1x64x8xf32>, vector<1x64x8xf32> -> vector<4x64x8xf32>
    %290 = arith.truncf %289 : vector<4x64x8xf32> to vector<4x64x8xbf16>
    %cst_77 = arith.constant dense<0.000000e+00> : vector<4x64x64xf32>
    %291 = tpu.matmul %270, %280, %cst_77 {dimension_numbers = #tpu.dot_dimension_numbers<[2], [2], [1], [1], [0, 0, 0, 1, 1, 1], [0], [0]>} : vector<4x64x8xbf16>, vector<4x64x8xbf16>, vector<4x64x64xf32> -> vector<4x64x64xf32>
    %cst_78 = arith.constant dense<0xFF800000> : vector<4x64xf32>
    %292 = vector.multi_reduction <maximumf>, %291, %cst_78 [2] : vector<4x64x64xf32> to vector<4x64xf32>
    %293 = vector.shape_cast %292 : vector<4x64xf32> to vector<4x64x1xf32>
    %294 = vector.broadcast %293 : vector<4x64x1xf32> to vector<4x64x64xf32>
    %295 = arith.subf %291, %294 : vector<4x64x64xf32>
    %296 = math.exp %295 : vector<4x64x64xf32>
    %cst_79 = arith.constant dense<0.000000e+00> : vector<4x64xf32>
    %297 = vector.multi_reduction <add>, %296, %cst_79 [2] : vector<4x64x64xf32> to vector<4x64xf32>
    %298 = vector.shape_cast %297 : vector<4x64xf32> to vector<4x64x1xf32>
    %299 = arith.truncf %296 : vector<4x64x64xf32> to vector<4x64x64xbf16>
    %cst_80 = arith.constant dense<0.000000e+00> : vector<4x64x8xf32>
    %300 = tpu.matmul %299, %290, %cst_80 {dimension_numbers = #tpu.dot_dimension_numbers<[2], [1], [1], [2], [0, 0, 0, 1, 1, 2], [0], [0]>} : vector<4x64x64xbf16>, vector<4x64x8xbf16>, vector<4x64x8xf32> -> vector<4x64x8xf32>
    %301 = tpu.reciprocal %298 {approx = true} : vector<4x64x1xf32> -> vector<4x64x1xf32>
    %302 = vector.broadcast %301 : vector<4x64x1xf32> to vector<4x64x8xf32>
    %303 = arith.mulf %300, %302 : vector<4x64x8xf32>
    %304 = tpu.concatenate %259, %303 in 1 : vector<4x64x8xf32>, vector<4x64x8xf32> -> vector<4x128x8xf32>
    %305 = arith.truncf %304 : vector<4x128x8xf32> to vector<4x128x8xbf16>
    %c0_81 = arith.constant 0 : index
    %c0_82 = arith.constant 0 : index
    %c0_83 = arith.constant 0 : index
    %306 = vector.load %arg21[%c0_81, %c0_82, %c0_83] : memref<4x8x32xbf16, #tpu.memory_space<vmem>>, vector<4x8x32xbf16>
    %cst_84 = arith.constant dense<0.000000e+00> : vector<4x128x32xf32>
    %307 = tpu.matmul %305, %306, %cst_84 {dimension_numbers = #tpu.dot_dimension_numbers<[2], [1], [1], [2], [0, 0, 0, 1, 1, 2], [0], [0]>} : vector<4x128x8xbf16>, vector<4x8x32xbf16>, vector<4x128x32xf32> -> vector<4x128x32xf32>
    %cst_85 = arith.constant dense<0.000000e+00> : vector<128x32xf32>
    %308 = vector.multi_reduction <add>, %307, %cst_85 [0] : vector<4x128x32xf32> to vector<128x32xf32>
    %309 = arith.addf %185, %308 : vector<128x32xf32>
    %c0_86 = arith.constant 0 : index
    %c0_87 = arith.constant 0 : index
    %310 = vector.load %arg22[%c0_86, %c0_87] : memref<1x32xf32, #tpu.memory_space<vmem>>, vector<1x32xf32>
    %311 = vector.broadcast %310 : vector<1x32xf32> to vector<128x32xf32>
    %312 = arith.addf %309, %311 : vector<128x32xf32>
    %cst_88 = arith.constant dense<0.000000e+00> : vector<128xf32>
    %313 = vector.multi_reduction <add>, %312, %cst_88 [1] : vector<128x32xf32> to vector<128xf32>
    %314 = vector.shape_cast %313 : vector<128xf32> to vector<128x1xf32>
    %cst_89 = arith.constant 3.200000e+01 : f32
    %315 = vector.broadcast %cst_89 : f32 to vector<128x1xf32>
    %316 = arith.divf %314, %315 : vector<128x1xf32>
    %317 = vector.broadcast %316 : vector<128x1xf32> to vector<128x32xf32>
    %318 = arith.subf %312, %317 : vector<128x32xf32>
    %319 = arith.mulf %318, %318 : vector<128x32xf32>
    %cst_90 = arith.constant dense<0.000000e+00> : vector<128xf32>
    %320 = vector.multi_reduction <add>, %319, %cst_90 [1] : vector<128x32xf32> to vector<128xf32>
    %321 = vector.shape_cast %320 : vector<128xf32> to vector<128x1xf32>
    %cst_91 = arith.constant 3.200000e+01 : f32
    %322 = vector.broadcast %cst_91 : f32 to vector<128x1xf32>
    %323 = arith.divf %321, %322 : vector<128x1xf32>
    %324 = vector.broadcast %316 : vector<128x1xf32> to vector<128x32xf32>
    %325 = arith.subf %312, %324 : vector<128x32xf32>
    %cst_92 = arith.constant 9.99999974E-6 : f32
    %326 = vector.broadcast %cst_92 : f32 to vector<128x1xf32>
    %327 = arith.addf %323, %326 : vector<128x1xf32>
    %328 = math.rsqrt %327 : vector<128x1xf32>
    %329 = vector.broadcast %328 : vector<128x1xf32> to vector<128x32xf32>
    %330 = arith.mulf %325, %329 : vector<128x32xf32>
    %c0_93 = arith.constant 0 : index
    %c0_94 = arith.constant 0 : index
    %331 = vector.load %arg23[%c0_93, %c0_94] : memref<1x32xf32, #tpu.memory_space<vmem>>, vector<1x32xf32>
    %332 = vector.broadcast %331 : vector<1x32xf32> to vector<128x32xf32>
    %333 = arith.mulf %330, %332 : vector<128x32xf32>
    %c0_95 = arith.constant 0 : index
    %c0_96 = arith.constant 0 : index
    %334 = vector.load %arg24[%c0_95, %c0_96] : memref<1x32xf32, #tpu.memory_space<vmem>>, vector<1x32xf32>
    %335 = vector.broadcast %334 : vector<1x32xf32> to vector<128x32xf32>
    %336 = arith.addf %333, %335 : vector<128x32xf32>
    %c0_97 = arith.constant 0 : index
    %c0_98 = arith.constant 0 : index
    %337 = vector.load %arg25[%c0_97, %c0_98] : memref<32x128xbf16, #tpu.memory_space<vmem>>, vector<32x128xbf16>
    %338 = arith.truncf %336 : vector<128x32xf32> to vector<128x32xbf16>
    %cst_99 = arith.constant dense<0.000000e+00> : vector<128x128xf32>
    %339 = tpu.matmul %338, %337, %cst_99 {dimension_numbers = #tpu.dot_dimension_numbers<[1], [0], [0], [1], [0, 0, 1, 1], [], []>} : vector<128x32xbf16>, vector<32x128xbf16>, vector<128x128xf32> -> vector<128x128xf32>
    %c0_100 = arith.constant 0 : index
    %c0_101 = arith.constant 0 : index
    %340 = vector.load %arg26[%c0_100, %c0_101] : memref<1x128xf32, #tpu.memory_space<vmem>>, vector<1x128xf32>
    %341 = vector.broadcast %340 : vector<1x128xf32> to vector<128x128xf32>
    %342 = arith.addf %339, %341 : vector<128x128xf32>
    %343 = arith.mulf %342, %342 : vector<128x128xf32>
    %344 = arith.mulf %342, %343 : vector<128x128xf32>
    %cst_102 = arith.constant 4.471500e-02 : f32
    %345 = vector.broadcast %cst_102 : f32 to vector<128x128xf32>
    %346 = arith.mulf %345, %344 : vector<128x128xf32>
    %347 = arith.addf %342, %346 : vector<128x128xf32>
    %cst_103 = arith.constant 0.797884583 : f32
    %348 = vector.broadcast %cst_103 : f32 to vector<128x128xf32>
    %349 = arith.mulf %348, %347 : vector<128x128xf32>
    %350 = math.tanh %349 : vector<128x128xf32>
    %cst_104 = arith.constant 1.000000e+00 : f32
    %351 = vector.broadcast %cst_104 : f32 to vector<128x128xf32>
    %352 = arith.addf %351, %350 : vector<128x128xf32>
    %cst_105 = arith.constant 5.000000e-01 : f32
    %353 = vector.broadcast %cst_105 : f32 to vector<128x128xf32>
    %354 = arith.mulf %353, %352 : vector<128x128xf32>
    %355 = arith.mulf %342, %354 : vector<128x128xf32>
    %c0_106 = arith.constant 0 : index
    %c0_107 = arith.constant 0 : index
    %356 = vector.load %arg27[%c0_106, %c0_107] : memref<128x32xbf16, #tpu.memory_space<vmem>>, vector<128x32xbf16>
    %357 = arith.truncf %355 : vector<128x128xf32> to vector<128x128xbf16>
    %cst_108 = arith.constant dense<0.000000e+00> : vector<128x32xf32>
    %358 = tpu.matmul %357, %356, %cst_108 {dimension_numbers = #tpu.dot_dimension_numbers<[1], [0], [0], [1], [0, 0, 1, 1], [], []>} : vector<128x128xbf16>, vector<128x32xbf16>, vector<128x32xf32> -> vector<128x32xf32>
    %359 = arith.addf %312, %358 : vector<128x32xf32>
    %c0_109 = arith.constant 0 : index
    %c0_110 = arith.constant 0 : index
    %360 = vector.load %arg28[%c0_109, %c0_110] : memref<1x32xf32, #tpu.memory_space<vmem>>, vector<1x32xf32>
    %361 = vector.broadcast %360 : vector<1x32xf32> to vector<128x32xf32>
    %362 = arith.addf %359, %361 : vector<128x32xf32>
    %cst_111 = arith.constant dense<0.000000e+00> : vector<128xf32>
    %363 = vector.multi_reduction <add>, %362, %cst_111 [1] : vector<128x32xf32> to vector<128xf32>
    %364 = vector.shape_cast %363 : vector<128xf32> to vector<128x1xf32>
    %cst_112 = arith.constant 3.200000e+01 : f32
    %365 = vector.broadcast %cst_112 : f32 to vector<128x1xf32>
    %366 = arith.divf %364, %365 : vector<128x1xf32>
    %367 = vector.broadcast %366 : vector<128x1xf32> to vector<128x32xf32>
    %368 = arith.subf %362, %367 : vector<128x32xf32>
    %369 = arith.mulf %368, %368 : vector<128x32xf32>
    %cst_113 = arith.constant dense<0.000000e+00> : vector<128xf32>
    %370 = vector.multi_reduction <add>, %369, %cst_113 [1] : vector<128x32xf32> to vector<128xf32>
    %371 = vector.shape_cast %370 : vector<128xf32> to vector<128x1xf32>
    %cst_114 = arith.constant 3.200000e+01 : f32
    %372 = vector.broadcast %cst_114 : f32 to vector<128x1xf32>
    %373 = arith.divf %371, %372 : vector<128x1xf32>
    %374 = vector.broadcast %366 : vector<128x1xf32> to vector<128x32xf32>
    %375 = arith.subf %362, %374 : vector<128x32xf32>
    %cst_115 = arith.constant 9.99999974E-6 : f32
    %376 = vector.broadcast %cst_115 : f32 to vector<128x1xf32>
    %377 = arith.addf %373, %376 : vector<128x1xf32>
    %378 = math.rsqrt %377 : vector<128x1xf32>
    %379 = vector.broadcast %378 : vector<128x1xf32> to vector<128x32xf32>
    %380 = arith.mulf %375, %379 : vector<128x32xf32>
    %c0_116 = arith.constant 0 : index
    %c0_117 = arith.constant 0 : index
    %381 = vector.load %arg29[%c0_116, %c0_117] : memref<1x32xf32, #tpu.memory_space<vmem>>, vector<1x32xf32>
    %382 = vector.broadcast %381 : vector<1x32xf32> to vector<128x32xf32>
    %383 = arith.mulf %380, %382 : vector<128x32xf32>
    %c0_118 = arith.constant 0 : index
    %c0_119 = arith.constant 0 : index
    %384 = vector.load %arg30[%c0_118, %c0_119] : memref<1x32xf32, #tpu.memory_space<vmem>>, vector<1x32xf32>
    %385 = vector.broadcast %384 : vector<1x32xf32> to vector<128x32xf32>
    %386 = arith.addf %383, %385 : vector<128x32xf32>
    %c0_120 = arith.constant 0 : index
    %c0_121 = arith.constant 0 : index
    %387 = vector.load %arg31[%c0_120, %c0_121] : memref<32x128xbf16, #tpu.memory_space<vmem>>, vector<32x128xbf16>
    %388 = arith.truncf %386 : vector<128x32xf32> to vector<128x32xbf16>
    %cst_122 = arith.constant dense<0.000000e+00> : vector<128x128xf32>
    %389 = tpu.matmul %388, %387, %cst_122 {dimension_numbers = #tpu.dot_dimension_numbers<[1], [0], [0], [1], [0, 0, 1, 1], [], []>} : vector<128x32xbf16>, vector<32x128xbf16>, vector<128x128xf32> -> vector<128x128xf32>
    %c0_123 = arith.constant 0 : index
    %c0_124 = arith.constant 0 : index
    %390 = vector.load %arg32[%c0_123, %c0_124] : memref<1x128xf32, #tpu.memory_space<vmem>>, vector<1x128xf32>
    %391 = vector.broadcast %390 : vector<1x128xf32> to vector<128x128xf32>
    %392 = arith.addf %389, %391 : vector<128x128xf32>
    %cst_125 = arith.constant 0.000000e+00 : f32
    %393 = vector.broadcast %cst_125 : f32 to vector<128x128xf32>
    %394 = arith.maximumf %392, %393 : vector<128x128xf32>
    %c0_126 = arith.constant 0 : index
    %c0_127 = arith.constant 0 : index
    %395 = vector.load %arg33[%c0_126, %c0_127] : memref<128x768xbf16, #tpu.memory_space<vmem>>, vector<128x768xbf16>
    %396 = arith.truncf %394 : vector<128x128xf32> to vector<128x128xbf16>
    %cst_128 = arith.constant dense<0.000000e+00> : vector<128x768xf32>
    %397 = tpu.matmul %396, %395, %cst_128 {dimension_numbers = #tpu.dot_dimension_numbers<[1], [0], [0], [1], [0, 0, 1, 1], [], []>} : vector<128x128xbf16>, vector<128x768xbf16>, vector<128x768xf32> -> vector<128x768xf32>
    %c0_129 = arith.constant 0 : index
    %c0_130 = arith.constant 0 : index
    %398 = vector.load %arg34[%c0_129, %c0_130] : memref<1x768xf32, #tpu.memory_space<vmem>>, vector<1x768xf32>
    %399 = vector.broadcast %398 : vector<1x768xf32> to vector<128x768xf32>
    %400 = arith.addf %397, %399 : vector<128x768xf32>
    %cst_131 = arith.constant 0.000000e+00 : f32
    %401 = vector.broadcast %cst_131 : f32 to vector<128x768xf32>
    %402 = arith.maximumf %400, %401 : vector<128x768xf32>
    %c0_132 = arith.constant 0 : index
    %c0_133 = arith.constant 0 : index
    %403 = vector.load %arg35[%c0_132, %c0_133] : memref<768x192xbf16, #tpu.memory_space<vmem>>, vector<768x192xbf16>
    %404 = arith.truncf %402 : vector<128x768xf32> to vector<128x768xbf16>
    %cst_134 = arith.constant dense<0.000000e+00> : vector<128x192xf32>
    %405 = tpu.matmul %404, %403, %cst_134 {dimension_numbers = #tpu.dot_dimension_numbers<[1], [0], [0], [1], [0, 0, 1, 1], [], []>} : vector<128x768xbf16>, vector<768x192xbf16>, vector<128x192xf32> -> vector<128x192xf32>
    %c0_135 = arith.constant 0 : index
    %c0_136 = arith.constant 0 : index
    %406 = vector.load %arg36[%c0_135, %c0_136] : memref<1x192xf32, #tpu.memory_space<vmem>>, vector<1x192xf32>
    %407 = vector.broadcast %406 : vector<1x192xf32> to vector<128x192xf32>
    %408 = arith.addf %405, %407 : vector<128x192xf32>
    %409 = arith.negf %408 : vector<128x192xf32>
    %410 = math.exp %409 : vector<128x192xf32>
    %cst_137 = arith.constant 1.000000e+00 : f32
    %411 = vector.broadcast %cst_137 : f32 to vector<128x192xf32>
    %412 = arith.addf %411, %410 : vector<128x192xf32>
    %413 = arith.divf %411, %412 : vector<128x192xf32>
    %c0_138 = arith.constant 0 : index
    %c0_139 = arith.constant 0 : index
    %414 = vector.load %arg37[%c0_138, %c0_139] : memref<128x192xf32, #tpu.memory_space<vmem>>, vector<128x192xf32>
    tpu.vector_store %arg37[%c0_138, %c0_139], %413 {strides = array<i32>} : memref<128x192xf32, #tpu.memory_space<vmem>>, vector<128x192xf32>,
    return
  }
  func.func @transform_0(%arg0: i32) -> (i32, i32) {
    %c0_i32 = arith.constant 0 : i32
    %c0_i32_0 = arith.constant 0 : i32
    return %arg0, %c0_i32 : i32, i32
  }
  func.func @transform_1(%arg0: i32) -> (i32, i32) {
    %c0_i32 = arith.constant 0 : i32
    %c0_i32_0 = arith.constant 0 : i32
    return %arg0, %c0_i32 : i32, i32
  }
  func.func @transform_2(%arg0: i32) -> (i32, i32) {
    %c0_i32 = arith.constant 0 : i32
    %c0_i32_0 = arith.constant 0 : i32
    %c0_i32_1 = arith.constant 0 : i32
    return %c0_i32, %c0_i32_0 : i32, i32
  }
  func.func @transform_3(%arg0: i32) -> (i32, i32) {
    %c0_i32 = arith.constant 0 : i32
    %c0_i32_0 = arith.constant 0 : i32
    %c0_i32_1 = arith.constant 0 : i32
    return %c0_i32, %c0_i32_0 : i32, i32
  }
  func.func @transform_4(%arg0: i32) -> (i32, i32) {
    %c0_i32 = arith.constant 0 : i32
    %c0_i32_0 = arith.constant 0 : i32
    %c0_i32_1 = arith.constant 0 : i32
    return %c0_i32, %c0_i32_0 : i32, i32
  }
  func.func @transform_5(%arg0: i32) -> (i32, i32) {
    %c0_i32 = arith.constant 0 : i32
    %c0_i32_0 = arith.constant 0 : i32
    %c0_i32_1 = arith.constant 0 : i32
    return %c0_i32, %c0_i32_0 : i32, i32
  }
  func.func @transform_6(%arg0: i32) -> (i32, i32) {
    %c0_i32 = arith.constant 0 : i32
    %c0_i32_0 = arith.constant 0 : i32
    %c0_i32_1 = arith.constant 0 : i32
    return %c0_i32, %c0_i32_0 : i32, i32
  }
  func.func @transform_7(%arg0: i32) -> (i32, i32) {
    %c0_i32 = arith.constant 0 : i32
    %c0_i32_0 = arith.constant 0 : i32
    %c0_i32_1 = arith.constant 0 : i32
    return %c0_i32, %c0_i32_0 : i32, i32
  }
  func.func @transform_8(%arg0: i32) -> (i32, i32, i32) {
    %c0_i32 = arith.constant 0 : i32
    %c0_i32_0 = arith.constant 0 : i32
    %c0_i32_1 = arith.constant 0 : i32
    %c0_i32_2 = arith.constant 0 : i32
    return %c0_i32, %c0_i32_0, %c0_i32_1 : i32, i32, i32
  }
  func.func @transform_9(%arg0: i32) -> (i32, i32) {
    %c0_i32 = arith.constant 0 : i32
    %c0_i32_0 = arith.constant 0 : i32
    %c0_i32_1 = arith.constant 0 : i32
    return %c0_i32, %c0_i32_0 : i32, i32
  }
  func.func @transform_10(%arg0: i32) -> (i32, i32) {
    %c0_i32 = arith.constant 0 : i32
    %c0_i32_0 = arith.constant 0 : i32
    %c0_i32_1 = arith.constant 0 : i32
    return %c0_i32, %c0_i32_0 : i32, i32
  }
  func.func @transform_11(%arg0: i32) -> (i32, i32) {
    %c0_i32 = arith.constant 0 : i32
    %c0_i32_0 = arith.constant 0 : i32
    %c0_i32_1 = arith.constant 0 : i32
    return %c0_i32, %c0_i32_0 : i32, i32
  }
  func.func @transform_12(%arg0: i32) -> (i32, i32) {
    %c0_i32 = arith.constant 0 : i32
    %c0_i32_0 = arith.constant 0 : i32
    %c0_i32_1 = arith.constant 0 : i32
    return %c0_i32, %c0_i32_0 : i32, i32
  }
  func.func @transform_13(%arg0: i32) -> (i32, i32) {
    %c0_i32 = arith.constant 0 : i32
    %c0_i32_0 = arith.constant 0 : i32
    %c0_i32_1 = arith.constant 0 : i32
    return %c0_i32, %c0_i32_0 : i32, i32
  }
  func.func @transform_14(%arg0: i32) -> (i32, i32) {
    %c0_i32 = arith.constant 0 : i32
    %c0_i32_0 = arith.constant 0 : i32
    %c0_i32_1 = arith.constant 0 : i32
    return %c0_i32, %c0_i32_0 : i32, i32
  }
  func.func @transform_15(%arg0: i32) -> (i32, i32) {
    %c0_i32 = arith.constant 0 : i32
    %c0_i32_0 = arith.constant 0 : i32
    %c0_i32_1 = arith.constant 0 : i32
    return %c0_i32, %c0_i32_0 : i32, i32
  }
  func.func @transform_16(%arg0: i32) -> (i32, i32) {
    %c0_i32 = arith.constant 0 : i32
    %c0_i32_0 = arith.constant 0 : i32
    %c0_i32_1 = arith.constant 0 : i32
    return %c0_i32, %c0_i32_0 : i32, i32
  }
  func.func @transform_17(%arg0: i32) -> (i32, i32) {
    %c0_i32 = arith.constant 0 : i32
    %c0_i32_0 = arith.constant 0 : i32
    %c0_i32_1 = arith.constant 0 : i32
    return %c0_i32, %c0_i32_0 : i32, i32
  }
  func.func @transform_18(%arg0: i32) -> (i32, i32) {
    %c0_i32 = arith.constant 0 : i32
    %c0_i32_0 = arith.constant 0 : i32
    %c0_i32_1 = arith.constant 0 : i32
    return %c0_i32, %c0_i32_0 : i32, i32
  }
  func.func @transform_19(%arg0: i32) -> (i32, i32) {
    %c0_i32 = arith.constant 0 : i32
    %c0_i32_0 = arith.constant 0 : i32
    %c0_i32_1 = arith.constant 0 : i32
    return %c0_i32, %c0_i32_0 : i32, i32
  }
  func.func @transform_20(%arg0: i32) -> (i32, i32, i32) {
    %c0_i32 = arith.constant 0 : i32
    %c0_i32_0 = arith.constant 0 : i32
    %c0_i32_1 = arith.constant 0 : i32
    %c0_i32_2 = arith.constant 0 : i32
    return %c0_i32, %c0_i32_0, %c0_i32_1 : i32, i32, i32
  }
  func.func @transform_21(%arg0: i32) -> (i32, i32) {
    %c0_i32 = arith.constant 0 : i32
    %c0_i32_0 = arith.constant 0 : i32
    %c0_i32_1 = arith.constant 0 : i32
    return %c0_i32, %c0_i32_0 : i32, i32
  }
  func.func @transform_22(%arg0: i32) -> (i32, i32) {
    %c0_i32 = arith.constant 0 : i32
    %c0_i32_0 = arith.constant 0 : i32
    %c0_i32_1 = arith.constant 0 : i32
    return %c0_i32, %c0_i32_0 : i32, i32
  }
  func.func @transform_23(%arg0: i32) -> (i32, i32) {
    %c0_i32 = arith.constant 0 : i32
    %c0_i32_0 = arith.constant 0 : i32
    %c0_i32_1 = arith.constant 0 : i32
    return %c0_i32, %c0_i32_0 : i32, i32
  }
  func.func @transform_24(%arg0: i32) -> (i32, i32) {
    %c0_i32 = arith.constant 0 : i32
    %c0_i32_0 = arith.constant 0 : i32
    %c0_i32_1 = arith.constant 0 : i32
    return %c0_i32, %c0_i32_0 : i32, i32
  }
  func.func @transform_25(%arg0: i32) -> (i32, i32) {
    %c0_i32 = arith.constant 0 : i32
    %c0_i32_0 = arith.constant 0 : i32
    %c0_i32_1 = arith.constant 0 : i32
    return %c0_i32, %c0_i32_0 : i32, i32
  }
  func.func @transform_26(%arg0: i32) -> (i32, i32) {
    %c0_i32 = arith.constant 0 : i32
    %c0_i32_0 = arith.constant 0 : i32
    %c0_i32_1 = arith.constant 0 : i32
    return %c0_i32, %c0_i32_0 : i32, i32
  }
  func.func @transform_27(%arg0: i32) -> (i32, i32) {
    %c0_i32 = arith.constant 0 : i32
    %c0_i32_0 = arith.constant 0 : i32
    %c0_i32_1 = arith.constant 0 : i32
    return %c0_i32, %c0_i32_0 : i32, i32
  }
  func.func @transform_28(%arg0: i32) -> (i32, i32) {
    %c0_i32 = arith.constant 0 : i32
    %c0_i32_0 = arith.constant 0 : i32
    %c0_i32_1 = arith.constant 0 : i32
    return %c0_i32, %c0_i32_0 : i32, i32
  }
  func.func @transform_29(%arg0: i32) -> (i32, i32) {
    %c0_i32 = arith.constant 0 : i32
    %c0_i32_0 = arith.constant 0 : i32
    %c0_i32_1 = arith.constant 0 : i32
    return %c0_i32, %c0_i32_0 : i32, i32
  }
  func.func @transform_30(%arg0: i32) -> (i32, i32) {
    %c0_i32 = arith.constant 0 : i32
    %c0_i32_0 = arith.constant 0 : i32
    %c0_i32_1 = arith.constant 0 : i32
    return %c0_i32, %c0_i32_0 : i32, i32
  }
  func.func @transform_31(%arg0: i32) -> (i32, i32) {
    %c0_i32 = arith.constant 0 : i32
    %c0_i32_0 = arith.constant 0 : i32
    %c0_i32_1 = arith.constant 0 : i32
    return %c0_i32, %c0_i32_0 : i32, i32
  }
  func.func @transform_32(%arg0: i32) -> (i32, i32) {
    %c0_i32 = arith.constant 0 : i32
    %c0_i32_0 = arith.constant 0 : i32
    %c0_i32_1 = arith.constant 0 : i32
    return %c0_i32, %c0_i32_0 : i32, i32
  }
  func.func @transform_33(%arg0: i32) -> (i32, i32) {
    %c0_i32 = arith.constant 0 : i32
    %c0_i32_0 = arith.constant 0 : i32
    %c0_i32_1 = arith.constant 0 : i32
    return %c0_i32, %c0_i32_0 : i32, i32
  }
  func.func @transform_34(%arg0: i32) -> (i32, i32) {
    %c0_i32 = arith.constant 0 : i32
    %c0_i32_0 = arith.constant 0 : i32
    %c0_i32_1 = arith.constant 0 : i32
    return %c0_i32, %c0_i32_0 : i32, i32
  }
  func.func @transform_35(%arg0: i32) -> (i32, i32) {
    %c0_i32 = arith.constant 0 : i32
    %c0_i32_0 = arith.constant 0 : i32
    %c0_i32_1 = arith.constant 0 : i32
    return %c0_i32, %c0_i32_0 : i32, i32
  }
  func.func @transform_36(%arg0: i32) -> (i32, i32) {
    %c0_i32 = arith.constant 0 : i32
    %c0_i32_0 = arith.constant 0 : i32
    return %arg0, %c0_i32 : i32, i32
  }
}

</mosaic_0001>

<llo_original>
// kernel: forward.1
$region0: #{forward.1}
  #allocation0 [shape = 'u32[]', space=smem, size = 0x4, offset = 0x4, fixed_abs, tag = 'smem constant byte address 0x4 - core index']
  #allocation1 [shape = 'u32[72,128]{1,0:T(1,128)}', space=vmem, size = 0x9000, scoped, tag = 'internal scratch']
  %s0 = inlined_call_operand.smem [shape: u32[37], index: -1, kind: input, shape index: {}]
  %s1 = sld [smem:[%s0]]
  %s2 = scalar_lea.smem %s0, 1
  %s3 = sld [smem:[%s2]]
  %s4 = scalar_lea.smem %s0, 2
  %s5 = sld [smem:[%s4]]
  %s6 = scalar_lea.smem %s0, 3
  %s7 = sld [smem:[%s6]]
  %s8 = scalar_lea.smem %s0, 4
  %s9 = sld [smem:[%s8]]
  %s10 = scalar_lea.smem %s0, 5
  %s11 = sld [smem:[%s10]]
  %s12 = scalar_lea.smem %s0, 6
  %s13 = sld [smem:[%s12]]
  %s14 = scalar_lea.smem %s0, 7
  %s15 = sld [smem:[%s14]]
  %s16 = scalar_lea.smem %s0, 8
  %s17 = sld [smem:[%s16]]
  %s18 = scalar_lea.smem %s0, 9
  %s19 = sld [smem:[%s18]]
  %s20 = scalar_lea.smem %s0, 10
  %s21 = sld [smem:[%s20]]
  %s22 = scalar_lea.smem %s0, 11
  %s23 = sld [smem:[%s22]]
  %s24 = scalar_lea.smem %s0, 12
  %s25 = sld [smem:[%s24]]
  %s26 = scalar_lea.smem %s0, 13
  %s27 = sld [smem:[%s26]]
  %s28 = scalar_lea.smem %s0, 14
  %s29 = sld [smem:[%s28]]
  %s30 = scalar_lea.smem %s0, 15
  %s31 = sld [smem:[%s30]]
  %s32 = scalar_lea.smem %s0, 16
  %s33 = sld [smem:[%s32]]
  %s34 = scalar_lea.smem %s0, 17
  %s35 = sld [smem:[%s34]]
  %s36 = scalar_lea.smem %s0, 18
  %s37 = sld [smem:[%s36]]
  %s38 = scalar_lea.smem %s0, 19
  %s39 = sld [smem:[%s38]]
  %s40 = scalar_lea.smem %s0, 20
  %s41 = sld [smem:[%s40]]
  %s42 = scalar_lea.smem %s0, 21
  %s43 = sld [smem:[%s42]]
  %s44 = scalar_lea.smem %s0, 22
  %s45 = sld [smem:[%s44]]
  %s46 = scalar_lea.smem %s0, 23
  %s47 = sld [smem:[%s46]]
  %s48 = scalar_lea.smem %s0, 24
  %s49 = sld [smem:[%s48]]
  %s50 = scalar_lea.smem %s0, 25
  %s51 = sld [smem:[%s50]]
  %s52 = scalar_lea.smem %s0, 26
  %s53 = sld [smem:[%s52]]
  %s54 = scalar_lea.smem %s0, 27
  %s55 = sld [smem:[%s54]]
  %s56 = scalar_lea.smem %s0, 28
  %s57 = sld [smem:[%s56]]
  %s58 = scalar_lea.smem %s0, 29
  %s59 = sld [smem:[%s58]]
  %s60 = scalar_lea.smem %s0, 30
  %s61 = sld [smem:[%s60]]
  %s62 = scalar_lea.smem %s0, 31
  %s63 = sld [smem:[%s62]]
  %s64 = scalar_lea.smem %s0, 32
  %s65 = sld [smem:[%s64]]
  %s66 = scalar_lea.smem %s0, 33
  %s67 = sld [smem:[%s66]]
  %s68 = scalar_lea.smem %s0, 34
  %s69 = sld [smem:[%s68]]
  %s70 = scalar_lea.smem %s0, 35
  %s71 = sld [smem:[%s70]]
  %s72 = scalar_lea.smem %s0, 36
  %s73 = sld [smem:[%s72]]
  %s74 = sld [smem:[#allocation0]]
  $region274: #{forward.1} parent=0
    _
  %s76 = ssub.s32 1, %s74
  %s77 = scalar_select 0, %s76, %s74
  $region1: #{forward.1} parent=0
    #allocation2 [shape = 'u8[512]{0}', space=vmem, size = 0x400, scoped, tag = 'input window, operand 3, single buffered']
    #allocation3 [shape = 's32[1]{0}', space=sflag, size = 0x4, scoped, tag = 'scoped memory for forward.1']
    #allocation4 [shape = 'u8[512]{0}', space=vmem, size = 0x400, scoped, tag = 'input window, operand 4, single buffered']
    #allocation5 [shape = 's32[1]{0}', space=sflag, size = 0x4, scoped, tag = 'scoped memory for forward.1']
    #allocation6 [shape = 'u8[512]{0}', space=vmem, size = 0x400, scoped, tag = 'input window, operand 5, single buffered']
    #allocation7 [shape = 'u8[8192]{0}', space=vmem, size = 0x2000, scoped, tag = 'input window, operand 6, single buffered']
    #allocation8 [shape = 's32[1]{0}', space=sflag, size = 0x4, scoped, tag = 'scoped memory for forward.1']
    #allocation9 [shape = 'u8[512]{0}', space=vmem, size = 0x400, scoped, tag = 'input window, operand 7, single buffered']
    #allocation10 [shape = 'u8[8192]{0}', space=vmem, size = 0x2000, scoped, tag = 'input window, operand 8, single buffered']
    #allocation11 [shape = 's32[1]{0}', space=sflag, size = 0x4, scoped, tag = 'scoped memory for forward.1']
    #allocation12 [shape = 'u8[512]{0}', space=vmem, size = 0x400, scoped, tag = 'input window, operand 9, single buffered']
    #allocation13 [shape = 'u8[512]{0}', space=vmem, size = 0x400, scoped, tag = 'input window, operand 10, single buffered']
    #allocation14 [shape = 's32[1]{0}', space=sflag, size = 0x4, scoped, tag = 'scoped memory for forward.1']
    #allocation15 [shape = 'u8[512]{0}', space=vmem, size = 0x400, scoped, tag = 'input window, operand 11, single buffered']
    #allocation16 [shape = 'u8[8192]{0}', space=vmem, size = 0x2000, scoped, tag = 'input window, operand 12, single buffered']
    #allocation17 [shape = 's32[1]{0}', space=sflag, size = 0x4, scoped, tag = 'scoped memory for forward.1']
    #allocation18 [shape = 'u8[512]{0}', space=vmem, size = 0x400, scoped, tag = 'input window, operand 13, single buffered']
    #allocation19 [shape = 'u8[512]{0}', space=vmem, size = 0x400, scoped, tag = 'input window, operand 15, single buffered']
    #allocation20 [shape = 's32[1]{0}', space=sflag, size = 0x4, scoped, tag = 'scoped memory for forward.1']
    #allocation21 [shape = 'u8[512]{0}', space=vmem, size = 0x400, scoped, tag = 'input window, operand 16, single buffered']
    #allocation22 [shape = 'u8[512]{0}', space=vmem, size = 0x400, scoped, tag = 'input window, operand 17, single buffered']
    #allocation23 [shape = 's32[1]{0}', space=sflag, size = 0x4, scoped, tag = 'scoped memory for forward.1']
    #allocation24 [shape = 'u8[8192]{0}', space=vmem, size = 0x2000, scoped, tag = 'input window, operand 18, single buffered']
    #allocation25 [shape = 'u8[512]{0}', space=vmem, size = 0x400, scoped, tag = 'input window, operand 19, single buffered']
    #allocation26 [shape = 's32[1]{0}', space=sflag, size = 0x4, scoped, tag = 'scoped memory for forward.1']
    #allocation27 [shape = 'u8[8192]{0}', space=vmem, size = 0x2000, scoped, tag = 'input window, operand 20, single buffered']
    #allocation28 [shape = 'u8[512]{0}', space=vmem, size = 0x400, scoped, tag = 'input window, operand 21, single buffered']
    #allocation29 [shape = 's32[1]{0}', space=sflag, size = 0x4, scoped, tag = 'scoped memory for forward.1']
    #allocation30 [shape = 'u8[512]{0}', space=vmem, size = 0x400, scoped, tag = 'input window, operand 22, single buffered']
    #allocation31 [shape = 'u8[512]{0}', space=vmem, size = 0x400, scoped, tag = 'input window, operand 23, single buffered']
    #allocation32 [shape = 's32[1]{0}', space=sflag, size = 0x4, scoped, tag = 'scoped memory for forward.1']
    #allocation33 [shape = 'u8[8192]{0}', space=vmem, size = 0x2000, scoped, tag = 'input window, operand 24, single buffered']
    #allocation34 [shape = 'u8[512]{0}', space=vmem, size = 0x400, scoped, tag = 'input window, operand 25, single buffered']
    #allocation35 [shape = 's32[1]{0}', space=sflag, size = 0x4, scoped, tag = 'scoped memory for forward.1']
    #allocation36 [shape = 'u8[512]{0}', space=vmem, size = 0x400, scoped, tag = 'input window, operand 27, single buffered']
    #allocation37 [shape = 'u8[512]{0}', space=vmem, size = 0x400, scoped, tag = 'input window, operand 28, single buffered']
    #allocation38 [shape = 's32[1]{0}', space=sflag, size = 0x4, scoped, tag = 'scoped memory for forward.1']
    #allocation39 [shape = 'u8[512]{0}', space=vmem, size = 0x400, scoped, tag = 'input window, operand 29, single buffered']
    #allocation40 [shape = 'u8[8192]{0}', space=vmem, size = 0x2000, scoped, tag = 'input window, operand 30, single buffered']
    #allocation41 [shape = 's32[1]{0}', space=sflag, size = 0x4, scoped, tag = 'scoped memory for forward.1']
    #allocation42 [shape = 'u8[512]{0}', space=vmem, size = 0x400, scoped, tag = 'input window, operand 31, single buffered']
    #allocation43 [shape = 'u8[196608]{0}', space=vmem, size = 0x30000, scoped, tag = 'input window, operand 32, single buffered']
    #allocation44 [shape = 's32[1]{0}', space=sflag, size = 0x4, scoped, tag = 'scoped memory for forward.1']
    #allocation45 [shape = 'u8[3072]{0}', space=vmem, size = 0xc00, scoped, tag = 'input window, operand 33, single buffered']
    #allocation46 [shape = 'u8[1024]{0}', space=vmem, size = 0x400, scoped, tag = 'input window, operand 35, single buffered']
    #allocation47 [shape = 's32[1]{0}', space=sflag, size = 0x4, scoped, tag = 'scoped memory for forward.1']
    %78 = vsyncpa [#allocation3], 0
    %79 = vsyncpa [#allocation5], 0
    %80 = vsyncpa [#allocation8], 0
    %81 = vsyncpa [#allocation11], 0
    %82 = vsyncpa [#allocation14], 0
    %83 = vsyncpa [#allocation17], 0
    %84 = vsyncpa [#allocation20], 0
    %85 = vsyncpa [#allocation23], 0
    %86 = vsyncpa [#allocation26], 0
    %87 = vsyncpa [#allocation29], 0
    %88 = vsyncpa [#allocation32], 0
    %89 = vsyncpa [#allocation35], 0
    %90 = vsyncpa [#allocation38], 0
    %91 = vsyncpa [#allocation41], 0
    %92 = vsyncpa [#allocation44], 0
    %93 = vsyncpa [#allocation47], 0
    // Predicated region
    $region2: #{forward.1} parent=1 // pred_check
      _
    $region3: #{forward.1} parent=1 // pred_check_branch
      %95 = sbr.rel (0) target = $region5
    $region4: #{forward.1} parent=1 // pred_region
      _
    $region5: #{forward.1} parent=1 // pred_fallthru
      _
    // Predicated region
    $region6: #{forward.1} parent=1 // pred_check
      _
    $region7: #{forward.1} parent=1 // pred_check_branch
      %97 = sbr.rel (0) target = $region9
    $region8: #{forward.1} parent=1 // pred_region
      _
    $region9: #{forward.1} parent=1 // pred_fallthru
      _
    // Predicated region
    $region10: #{forward.1} parent=1 // pred_check
      _
    $region11: #{forward.1} parent=1 // pred_check_branch
      %99 = sbr.rel (0) target = $region13
    $region12: #{forward.1} parent=1 // pred_region
      _
    $region13: #{forward.1} parent=1 // pred_fallthru
      _
    // Predicated region
    $region14: #{forward.1} parent=1 // pred_check
      _
    $region15: #{forward.1} parent=1 // pred_check_branch
      %101 = sbr.rel (0) target = $region17
    $region16: #{forward.1} parent=1 // pred_region
      %103 = vsyncadd [#allocation3], 0
      %s105 = sshll.u32 %s7, 4
      %s106 = int_to_ptr.hbm [resolvable:$true] %s105
      %s107 = sshll.u32 [#allocation2], 4
      %s108 = int_to_ptr.vmem [resolvable:$true] %s107
      %110 = dma.hbm_to_vmem [thread:$0]  %s106, 16, %s108, [#allocation3]
    $region17: #{forward.1} parent=1 // pred_fallthru
      _
    // Predicated region
    $region18: #{forward.1} parent=1 // pred_check
      _
    $region19: #{forward.1} parent=1 // pred_check_branch
      %112 = sbr.rel (0) target = $region21
    $region20: #{forward.1} parent=1 // pred_region
      %114 = vsyncadd [#allocation5], 0
      %s116 = sshll.u32 %s9, 4
      %s117 = int_to_ptr.hbm [resolvable:$true] %s116
      %s118 = sshll.u32 [#allocation4], 4
      %s119 = int_to_ptr.vmem [resolvable:$true] %s118
      %121 = dma.hbm_to_vmem [thread:$0]  %s117, 16, %s119, [#allocation5]
    $region21: #{forward.1} parent=1 // pred_fallthru
      _
    // Predicated region
    $region22: #{forward.1} parent=1 // pred_check
      _
    $region23: #{forward.1} parent=1 // pred_check_branch
      %123 = sbr.rel (0) target = $region25
    $region24: #{forward.1} parent=1 // pred_region
      %125 = vsyncadd [#allocation5], 0
      %s127 = sshll.u32 %s11, 4
      %s128 = int_to_ptr.hbm [resolvable:$true] %s127
      %s129 = sshll.u32 [#allocation6], 4
      %s130 = int_to_ptr.vmem [resolvable:$true] %s129
      %132 = dma.hbm_to_vmem [thread:$0]  %s128, 16, %s130, [#allocation5]
    $region25: #{forward.1} parent=1 // pred_fallthru
      _
    // Predicated region
    $region26: #{forward.1} parent=1 // pred_check
      _
    $region27: #{forward.1} parent=1 // pred_check_branch
      %134 = sbr.rel (0) target = $region29
    $region28: #{forward.1} parent=1 // pred_region
      %136 = vsyncadd [#allocation8], 0
      %s137 = sshll.u32 %s13, 4
      %s138 = int_to_ptr.hbm [resolvable:$true] %s137
      %s139 = sshll.u32 [#allocation7], 4
      %s140 = int_to_ptr.vmem [resolvable:$true] %s139
      %145 = dma.hbm_to_vmem [thread:$0]  %s138, 256, %s140, [#allocation8], 64, 64, 4
    $region29: #{forward.1} parent=1 // pred_fallthru
      _
    // Predicated region
    $region30: #{forward.1} parent=1 // pred_check
      _
    $region31: #{forward.1} parent=1 // pred_check_branch
      %147 = sbr.rel (0) target = $region33
    $region32: #{forward.1} parent=1 // pred_region
      %149 = vsyncadd [#allocation8], 0
      %s151 = sshll.u32 %s15, 4
      %s152 = int_to_ptr.hbm [resolvable:$true] %s151
      %s153 = sshll.u32 [#allocation9], 4
      %s154 = int_to_ptr.vmem [resolvable:$true] %s153
      %156 = dma.hbm_to_vmem [thread:$0]  %s152, 16, %s154, [#allocation8]
    $region33: #{forward.1} parent=1 // pred_fallthru
      _
    // Predicated region
    $region34: #{forward.1} parent=1 // pred_check
      _
    $region35: #{forward.1} parent=1 // pred_check_branch
      %158 = sbr.rel (0) target = $region37
    $region36: #{forward.1} parent=1 // pred_region
      %160 = vsyncadd [#allocation11], 0
      %s161 = sshll.u32 %s17, 4
      %s162 = int_to_ptr.hbm [resolvable:$true] %s161
      %s163 = sshll.u32 [#allocation10], 4
      %s164 = int_to_ptr.vmem [resolvable:$true] %s163
      %169 = dma.hbm_to_vmem [thread:$0]  %s162, 256, %s164, [#allocation11], 64, 64, 4
    $region37: #{forward.1} parent=1 // pred_fallthru
      _
    // Predicated region
    $region38: #{forward.1} parent=1 // pred_check
      _
    $region39: #{forward.1} parent=1 // pred_check_branch
      %171 = sbr.rel (0) target = $region41
    $region40: #{forward.1} parent=1 // pred_region
      %173 = vsyncadd [#allocation11], 0
      %s175 = sshll.u32 %s19, 4
      %s176 = int_to_ptr.hbm [resolvable:$true] %s175
      %s177 = sshll.u32 [#allocation12], 4
      %s178 = int_to_ptr.vmem [resolvable:$true] %s177
      %180 = dma.hbm_to_vmem [thread:$0]  %s176, 16, %s178, [#allocation11]
    $region41: #{forward.1} parent=1 // pred_fallthru
      _
    // Predicated region
    $region42: #{forward.1} parent=1 // pred_check
      _
    $region43: #{forward.1} parent=1 // pred_check_branch
      %182 = sbr.rel (0) target = $region45
    $region44: #{forward.1} parent=1 // pred_region
      %184 = vsyncadd [#allocation14], 0
      %s186 = sshll.u32 %s21, 4
      %s187 = int_to_ptr.hbm [resolvable:$true] %s186
      %s188 = sshll.u32 [#allocation13], 4
      %s189 = int_to_ptr.vmem [resolvable:$true] %s188
      %191 = dma.hbm_to_vmem [thread:$0]  %s187, 16, %s189, [#allocation14]
    $region45: #{forward.1} parent=1 // pred_fallthru
      _
    // Predicated region
    $region46: #{forward.1} parent=1 // pred_check
      _
    $region47: #{forward.1} parent=1 // pred_check_branch
      %193 = sbr.rel (0) target = $region49
    $region48: #{forward.1} parent=1 // pred_region
      %195 = vsyncadd [#allocation14], 0
      %s197 = sshll.u32 %s23, 4
      %s198 = int_to_ptr.hbm [resolvable:$true] %s197
      %s199 = sshll.u32 [#allocation15], 4
      %s200 = int_to_ptr.vmem [resolvable:$true] %s199
      %202 = dma.hbm_to_vmem [thread:$0]  %s198, 16, %s200, [#allocation14]
    $region49: #{forward.1} parent=1 // pred_fallthru
      _
    // Predicated region
    $region50: #{forward.1} parent=1 // pred_check
      _
    $region51: #{forward.1} parent=1 // pred_check_branch
      %204 = sbr.rel (0) target = $region53
    $region52: #{forward.1} parent=1 // pred_region
      %206 = vsyncadd [#allocation17], 0
      %s207 = sshll.u32 %s25, 4
      %s208 = int_to_ptr.hbm [resolvable:$true] %s207
      %s209 = sshll.u32 [#allocation16], 4
      %s210 = int_to_ptr.vmem [resolvable:$true] %s209
      %215 = dma.hbm_to_vmem [thread:$0]  %s208, 256, %s210, [#allocation17], 64, 64, 4
    $region53: #{forward.1} parent=1 // pred_fallthru
      _
    // Predicated region
    $region54: #{forward.1} parent=1 // pred_check
      _
    $region55: #{forward.1} parent=1 // pred_check_branch
      %217 = sbr.rel (0) target = $region57
    $region56: #{forward.1} parent=1 // pred_region
      %219 = vsyncadd [#allocation17], 0
      %s221 = sshll.u32 %s27, 4
      %s222 = int_to_ptr.hbm [resolvable:$true] %s221
      %s223 = sshll.u32 [#allocation18], 4
      %s224 = int_to_ptr.vmem [resolvable:$true] %s223
      %226 = dma.hbm_to_vmem [thread:$0]  %s222, 16, %s224, [#allocation17]
    $region57: #{forward.1} parent=1 // pred_fallthru
      _
    // Predicated region
    $region58: #{forward.1} parent=1 // pred_check
      _
    $region59: #{forward.1} parent=1 // pred_check_branch
      %228 = sbr.rel (0) target = $region61
    $region60: #{forward.1} parent=1 // pred_region
      _
    $region61: #{forward.1} parent=1 // pred_fallthru
      _
    // Predicated region
    $region62: #{forward.1} parent=1 // pred_check
      _
    $region63: #{forward.1} parent=1 // pred_check_branch
      %230 = sbr.rel (0) target = $region65
    $region64: #{forward.1} parent=1 // pred_region
      %232 = vsyncadd [#allocation20], 0
      %s234 = sshll.u32 %s31, 4
      %s235 = int_to_ptr.hbm [resolvable:$true] %s234
      %s236 = sshll.u32 [#allocation19], 4
      %s237 = int_to_ptr.vmem [resolvable:$true] %s236
      %239 = dma.hbm_to_vmem [thread:$0]  %s235, 16, %s237, [#allocation20]
    $region65: #{forward.1} parent=1 // pred_fallthru
      _
    // Predicated region
    $region66: #{forward.1} parent=1 // pred_check
      _
    $region67: #{forward.1} parent=1 // pred_check_branch
      %241 = sbr.rel (0) target = $region69
    $region68: #{forward.1} parent=1 // pred_region
      %243 = vsyncadd [#allocation20], 0
      %s245 = sshll.u32 %s33, 4
      %s246 = int_to_ptr.hbm [resolvable:$true] %s245
      %s247 = sshll.u32 [#allocation21], 4
      %s248 = int_to_ptr.vmem [resolvable:$true] %s247
      %250 = dma.hbm_to_vmem [thread:$0]  %s246, 16, %s248, [#allocation20]
    $region69: #{forward.1} parent=1 // pred_fallthru
      _
    // Predicated region
    $region70: #{forward.1} parent=1 // pred_check
      _
    $region71: #{forward.1} parent=1 // pred_check_branch
      %252 = sbr.rel (0) target = $region73
    $region72: #{forward.1} parent=1 // pred_region
      %254 = vsyncadd [#allocation23], 0
      %s256 = sshll.u32 %s35, 4
      %s257 = int_to_ptr.hbm [resolvable:$true] %s256
      %s258 = sshll.u32 [#allocation22], 4
      %s259 = int_to_ptr.vmem [resolvable:$true] %s258
      %261 = dma.hbm_to_vmem [thread:$0]  %s257, 16, %s259, [#allocation23]
    $region73: #{forward.1} parent=1 // pred_fallthru
      _
    // Predicated region
    $region74: #{forward.1} parent=1 // pred_check
      _
    $region75: #{forward.1} parent=1 // pred_check_branch
      %263 = sbr.rel (0) target = $region77
    $region76: #{forward.1} parent=1 // pred_region
      %265 = vsyncadd [#allocation23], 0
      %s266 = sshll.u32 %s37, 4
      %s267 = int_to_ptr.hbm [resolvable:$true] %s266
      %s268 = sshll.u32 [#allocation24], 4
      %s269 = int_to_ptr.vmem [resolvable:$true] %s268
      %274 = dma.hbm_to_vmem [thread:$0]  %s267, 256, %s269, [#allocation23], 64, 64, 4
    $region77: #{forward.1} parent=1 // pred_fallthru
      _
    // Predicated region
    $region78: #{forward.1} parent=1 // pred_check
      _
    $region79: #{forward.1} parent=1 // pred_check_branch
      %276 = sbr.rel (0) target = $region81
    $region80: #{forward.1} parent=1 // pred_region
      %278 = vsyncadd [#allocation26], 0
      %s280 = sshll.u32 %s39, 4
      %s281 = int_to_ptr.hbm [resolvable:$true] %s280
      %s282 = sshll.u32 [#allocation25], 4
      %s283 = int_to_ptr.vmem [resolvable:$true] %s282
      %285 = dma.hbm_to_vmem [thread:$0]  %s281, 16, %s283, [#allocation26]
    $region81: #{forward.1} parent=1 // pred_fallthru
      _
    // Predicated region
    $region82: #{forward.1} parent=1 // pred_check
      _
    $region83: #{forward.1} parent=1 // pred_check_branch
      %287 = sbr.rel (0) target = $region85
    $region84: #{forward.1} parent=1 // pred_region
      %289 = vsyncadd [#allocation26], 0
      %s290 = sshll.u32 %s41, 4
      %s291 = int_to_ptr.hbm [resolvable:$true] %s290
      %s292 = sshll.u32 [#allocation27], 4
      %s293 = int_to_ptr.vmem [resolvable:$true] %s292
      %298 = dma.hbm_to_vmem [thread:$0]  %s291, 256, %s293, [#allocation26], 64, 64, 4
    $region85: #{forward.1} parent=1 // pred_fallthru
      _
    // Predicated region
    $region86: #{forward.1} parent=1 // pred_check
      _
    $region87: #{forward.1} parent=1 // pred_check_branch
      %300 = sbr.rel (0) target = $region89
    $region88: #{forward.1} parent=1 // pred_region
      %302 = vsyncadd [#allocation29], 0
      %s304 = sshll.u32 %s43, 4
      %s305 = int_to_ptr.hbm [resolvable:$true] %s304
      %s306 = sshll.u32 [#allocation28], 4
      %s307 = int_to_ptr.vmem [resolvable:$true] %s306
      %309 = dma.hbm_to_vmem [thread:$0]  %s305, 16, %s307, [#allocation29]
    $region89: #{forward.1} parent=1 // pred_fallthru
      _
    // Predicated region
    $region90: #{forward.1} parent=1 // pred_check
      _
    $region91: #{forward.1} parent=1 // pred_check_branch
      %311 = sbr.rel (0) target = $region93
    $region92: #{forward.1} parent=1 // pred_region
      %313 = vsyncadd [#allocation29], 0
      %s315 = sshll.u32 %s45, 4
      %s316 = int_to_ptr.hbm [resolvable:$true] %s315
      %s317 = sshll.u32 [#allocation30], 4
      %s318 = int_to_ptr.vmem [resolvable:$true] %s317
      %320 = dma.hbm_to_vmem [thread:$0]  %s316, 16, %s318, [#allocation29]
    $region93: #{forward.1} parent=1 // pred_fallthru
      _
    // Predicated region
    $region94: #{forward.1} parent=1 // pred_check
      _
    $region95: #{forward.1} parent=1 // pred_check_branch
      %322 = sbr.rel (0) target = $region97
    $region96: #{forward.1} parent=1 // pred_region
      %324 = vsyncadd [#allocation32], 0
      %s326 = sshll.u32 %s47, 4
      %s327 = int_to_ptr.hbm [resolvable:$true] %s326
      %s328 = sshll.u32 [#allocation31], 4
      %s329 = int_to_ptr.vmem [resolvable:$true] %s328
      %331 = dma.hbm_to_vmem [thread:$0]  %s327, 16, %s329, [#allocation32]
    $region97: #{forward.1} parent=1 // pred_fallthru
      _
    // Predicated region
    $region98: #{forward.1} parent=1 // pred_check
      _
    $region99: #{forward.1} parent=1 // pred_check_branch
      %333 = sbr.rel (0) target = $region101
    $region100: #{forward.1} parent=1 // pred_region
      %335 = vsyncadd [#allocation32], 0
      %s336 = sshll.u32 %s49, 4
      %s337 = int_to_ptr.hbm [resolvable:$true] %s336
      %s338 = sshll.u32 [#allocation33], 4
      %s339 = int_to_ptr.vmem [resolvable:$true] %s338
      %344 = dma.hbm_to_vmem [thread:$0]  %s337, 256, %s339, [#allocation32], 64, 64, 4
    $region101: #{forward.1} parent=1 // pred_fallthru
      _
    // Predicated region
    $region102: #{forward.1} parent=1 // pred_check
      _
    $region103: #{forward.1} parent=1 // pred_check_branch
      %346 = sbr.rel (0) target = $region105
    $region104: #{forward.1} parent=1 // pred_region
      %348 = vsyncadd [#allocation35], 0
      %s350 = sshll.u32 %s51, 4
      %s351 = int_to_ptr.hbm [resolvable:$true] %s350
      %s352 = sshll.u32 [#allocation34], 4
      %s353 = int_to_ptr.vmem [resolvable:$true] %s352
      %355 = dma.hbm_to_vmem [thread:$0]  %s351, 16, %s353, [#allocation35]
    $region105: #{forward.1} parent=1 // pred_fallthru
      _
    // Predicated region
    $region106: #{forward.1} parent=1 // pred_check
      _
    $region107: #{forward.1} parent=1 // pred_check_branch
      %357 = sbr.rel (0) target = $region109
    $region108: #{forward.1} parent=1 // pred_region
      _
    $region109: #{forward.1} parent=1 // pred_fallthru
      _
    // Predicated region
    $region110: #{forward.1} parent=1 // pred_check
      _
    $region111: #{forward.1} parent=1 // pred_check_branch
      %359 = sbr.rel (0) target = $region113
    $region112: #{forward.1} parent=1 // pred_region
      %361 = vsyncadd [#allocation35], 0
      %s363 = sshll.u32 %s55, 4
      %s364 = int_to_ptr.hbm [resolvable:$true] %s363
      %s365 = sshll.u32 [#allocation36], 4
      %s366 = int_to_ptr.vmem [resolvable:$true] %s365
      %368 = dma.hbm_to_vmem [thread:$0]  %s364, 16, %s366, [#allocation35]
    $region113: #{forward.1} parent=1 // pred_fallthru
      _
    // Predicated region
    $region114: #{forward.1} parent=1 // pred_check
      _
    $region115: #{forward.1} parent=1 // pred_check_branch
      %370 = sbr.rel (0) target = $region117
    $region116: #{forward.1} parent=1 // pred_region
      %372 = vsyncadd [#allocation38], 0
      %s374 = sshll.u32 %s57, 4
      %s375 = int_to_ptr.hbm [resolvable:$true] %s374
      %s376 = sshll.u32 [#allocation37], 4
      %s377 = int_to_ptr.vmem [resolvable:$true] %s376
      %379 = dma.hbm_to_vmem [thread:$0]  %s375, 16, %s377, [#allocation38]
    $region117: #{forward.1} parent=1 // pred_fallthru
      _
    // Predicated region
    $region118: #{forward.1} parent=1 // pred_check
      _
    $region119: #{forward.1} parent=1 // pred_check_branch
      %381 = sbr.rel (0) target = $region121
    $region120: #{forward.1} parent=1 // pred_region
      %383 = vsyncadd [#allocation38], 0
      %s385 = sshll.u32 %s59, 4
      %s386 = int_to_ptr.hbm [resolvable:$true] %s385
      %s387 = sshll.u32 [#allocation39], 4
      %s388 = int_to_ptr.vmem [resolvable:$true] %s387
      %390 = dma.hbm_to_vmem [thread:$0]  %s386, 16, %s388, [#allocation38]
    $region121: #{forward.1} parent=1 // pred_fallthru
      _
    // Predicated region
    $region122: #{forward.1} parent=1 // pred_check
      _
    $region123: #{forward.1} parent=1 // pred_check_branch
      %392 = sbr.rel (0) target = $region125
    $region124: #{forward.1} parent=1 // pred_region
      %394 = vsyncadd [#allocation41], 0
      %s395 = sshll.u32 %s61, 4
      %s396 = int_to_ptr.hbm [resolvable:$true] %s395
      %s397 = sshll.u32 [#allocation40], 4
      %s398 = int_to_ptr.vmem [resolvable:$true] %s397
      %403 = dma.hbm_to_vmem [thread:$0]  %s396, 256, %s398, [#allocation41], 64, 64, 4
    $region125: #{forward.1} parent=1 // pred_fallthru
      _
    // Predicated region
    $region126: #{forward.1} parent=1 // pred_check
      _
    $region127: #{forward.1} parent=1 // pred_check_branch
      %405 = sbr.rel (0) target = $region129
    $region128: #{forward.1} parent=1 // pred_region
      %407 = vsyncadd [#allocation41], 0
      %s409 = sshll.u32 %s63, 4
      %s410 = int_to_ptr.hbm [resolvable:$true] %s409
      %s411 = sshll.u32 [#allocation42], 4
      %s412 = int_to_ptr.vmem [resolvable:$true] %s411
      %414 = dma.hbm_to_vmem [thread:$0]  %s410, 16, %s412, [#allocation41]
    $region129: #{forward.1} parent=1 // pred_fallthru
      _
    // Predicated region
    $region130: #{forward.1} parent=1 // pred_check
      _
    $region131: #{forward.1} parent=1 // pred_check_branch
      %416 = sbr.rel (0) target = $region133
    $region132: #{forward.1} parent=1 // pred_region
      %418 = vsyncadd [#allocation44], 0
      %s419 = sshll.u32 %s65, 4
      %s420 = int_to_ptr.hbm [resolvable:$true] %s419
      %s421 = sshll.u32 [#allocation43], 4
      %s422 = int_to_ptr.vmem [resolvable:$true] %s421
      %427 = dma.hbm_to_vmem [thread:$0]  %s420, 6144, %s422, [#allocation44], 384, 384, 24
    $region133: #{forward.1} parent=1 // pred_fallthru
      _
    // Predicated region
    $region134: #{forward.1} parent=1 // pred_check
      _
    $region135: #{forward.1} parent=1 // pred_check_branch
      %429 = sbr.rel (0) target = $region137
    $region136: #{forward.1} parent=1 // pred_region
      %431 = vsyncadd [#allocation44], 0
      %s433 = sshll.u32 %s67, 4
      %s434 = int_to_ptr.hbm [resolvable:$true] %s433
      %s435 = sshll.u32 [#allocation45], 4
      %s436 = int_to_ptr.vmem [resolvable:$true] %s435
      %438 = dma.hbm_to_vmem [thread:$0]  %s434, 96, %s436, [#allocation44]
    $region137: #{forward.1} parent=1 // pred_fallthru
      _
    // Predicated region
    $region138: #{forward.1} parent=1 // pred_check
      _
    $region139: #{forward.1} parent=1 // pred_check_branch
      %440 = sbr.rel (0) target = $region141
    $region140: #{forward.1} parent=1 // pred_region
      _
    $region141: #{forward.1} parent=1 // pred_fallthru
      _
    // Predicated region
    $region142: #{forward.1} parent=1 // pred_check
      _
    $region143: #{forward.1} parent=1 // pred_check_branch
      %442 = sbr.rel (0) target = $region145
    $region144: #{forward.1} parent=1 // pred_region
      %444 = vsyncadd [#allocation47], 0
      %s446 = sshll.u32 %s71, 4
      %s447 = int_to_ptr.hbm [resolvable:$true] %s446
      %s448 = sshll.u32 [#allocation46], 4
      %s449 = int_to_ptr.vmem [resolvable:$true] %s448
      %451 = dma.hbm_to_vmem [thread:$0]  %s447, 32, %s449, [#allocation47]
    $region145: #{forward.1} parent=1 // pred_fallthru
      _
    // Predicated region
    $region146: #{forward.1} parent=1 // pred_check
      _
    $region147: #{forward.1} parent=1 // pred_check_branch
      %453 = sbr.rel (0) target = $region149
    $region148: #{forward.1} parent=1 // pred_region
      %455 = dma.done [#allocation3], 16
    $region149: #{forward.1} parent=1 // pred_fallthru
      _
    // Predicated region
    $region150: #{forward.1} parent=1 // pred_check
      _
    $region151: #{forward.1} parent=1 // pred_check_branch
      %457 = sbr.rel (0) target = $region153
    $region152: #{forward.1} parent=1 // pred_region
      %459 = dma.done [#allocation5], 16
    $region153: #{forward.1} parent=1 // pred_fallthru
      _
    // Predicated region
    $region154: #{forward.1} parent=1 // pred_check
      _
    $region155: #{forward.1} parent=1 // pred_check_branch
      %461 = sbr.rel (0) target = $region157
    $region156: #{forward.1} parent=1 // pred_region
      %463 = dma.done [#allocation5], 16
    $region157: #{forward.1} parent=1 // pred_fallthru
      _
    // Predicated region
    $region158: #{forward.1} parent=1 // pred_check
      _
    $region159: #{forward.1} parent=1 // pred_check_branch
      %465 = sbr.rel (0) target = $region161
    $region160: #{forward.1} parent=1 // pred_region
      %467 = dma.done [#allocation8], 256
    $region161: #{forward.1} parent=1 // pred_fallthru
      _
    // Predicated region
    $region162: #{forward.1} parent=1 // pred_check
      _
    $region163: #{forward.1} parent=1 // pred_check_branch
      %469 = sbr.rel (0) target = $region165
    $region164: #{forward.1} parent=1 // pred_region
      %471 = dma.done [#allocation8], 16
    $region165: #{forward.1} parent=1 // pred_fallthru
      _
    // Predicated region
    $region166: #{forward.1} parent=1 // pred_check
      _
    $region167: #{forward.1} parent=1 // pred_check_branch
      %473 = sbr.rel (0) target = $region169
    $region168: #{forward.1} parent=1 // pred_region
      %475 = dma.done [#allocation11], 256
    $region169: #{forward.1} parent=1 // pred_fallthru
      _
    // Predicated region
    $region170: #{forward.1} parent=1 // pred_check
      _
    $region171: #{forward.1} parent=1 // pred_check_branch
      %477 = sbr.rel (0) target = $region173
    $region172: #{forward.1} parent=1 // pred_region
      %479 = dma.done [#allocation11], 16
    $region173: #{forward.1} parent=1 // pred_fallthru
      _
    // Predicated region
    $region174: #{forward.1} parent=1 // pred_check
      _
    $region175: #{forward.1} parent=1 // pred_check_branch
      %481 = sbr.rel (0) target = $region177
    $region176: #{forward.1} parent=1 // pred_region
      %483 = dma.done [#allocation14], 16
    $region177: #{forward.1} parent=1 // pred_fallthru
      _
    // Predicated region
    $region178: #{forward.1} parent=1 // pred_check
      _
    $region179: #{forward.1} parent=1 // pred_check_branch
      %485 = sbr.rel (0) target = $region181
    $region180: #{forward.1} parent=1 // pred_region
      %487 = dma.done [#allocation14], 16
    $region181: #{forward.1} parent=1 // pred_fallthru
      _
    // Predicated region
    $region182: #{forward.1} parent=1 // pred_check
      _
    $region183: #{forward.1} parent=1 // pred_check_branch
      %489 = sbr.rel (0) target = $region185
    $region184: #{forward.1} parent=1 // pred_region
      %491 = dma.done [#allocation17], 256
    $region185: #{forward.1} parent=1 // pred_fallthru
      _
    // Predicated region
    $region186: #{forward.1} parent=1 // pred_check
      _
    $region187: #{forward.1} parent=1 // pred_check_branch
      %493 = sbr.rel (0) target = $region189
    $region188: #{forward.1} parent=1 // pred_region
      %495 = dma.done [#allocation17], 16
    $region189: #{forward.1} parent=1 // pred_fallthru
      _
    // Predicated region
    $region190: #{forward.1} parent=1 // pred_check
      _
    $region191: #{forward.1} parent=1 // pred_check_branch
      %497 = sbr.rel (0) target = $region193
    $region192: #{forward.1} parent=1 // pred_region
      %499 = dma.done [#allocation20], 16
    $region193: #{forward.1} parent=1 // pred_fallthru
      _
    // Predicated region
    $region194: #{forward.1} parent=1 // pred_check
      _
    $region195: #{forward.1} parent=1 // pred_check_branch
      %501 = sbr.rel (0) target = $region197
    $region196: #{forward.1} parent=1 // pred_region
      %503 = dma.done [#allocation20], 16
    $region197: #{forward.1} parent=1 // pred_fallthru
      _
    // Predicated region
    $region198: #{forward.1} parent=1 // pred_check
      _
    $region199: #{forward.1} parent=1 // pred_check_branch
      %505 = sbr.rel (0) target = $region201
    $region200: #{forward.1} parent=1 // pred_region
      %507 = dma.done [#allocation23], 16
    $region201: #{forward.1} parent=1 // pred_fallthru
      _
    // Predicated region
    $region202: #{forward.1} parent=1 // pred_check
      _
    $region203: #{forward.1} parent=1 // pred_check_branch
      %509 = sbr.rel (0) target = $region205
    $region204: #{forward.1} parent=1 // pred_region
      %511 = dma.done [#allocation23], 256
    $region205: #{forward.1} parent=1 // pred_fallthru
      _
    // Predicated region
    $region206: #{forward.1} parent=1 // pred_check
      _
    $region207: #{forward.1} parent=1 // pred_check_branch
      %513 = sbr.rel (0) target = $region209
    $region208: #{forward.1} parent=1 // pred_region
      %515 = dma.done [#allocation26], 16
    $region209: #{forward.1} parent=1 // pred_fallthru
      _
    // Predicated region
    $region210: #{forward.1} parent=1 // pred_check
      _
    $region211: #{forward.1} parent=1 // pred_check_branch
      %517 = sbr.rel (0) target = $region213
    $region212: #{forward.1} parent=1 // pred_region
      %519 = dma.done [#allocation26], 256
    $region213: #{forward.1} parent=1 // pred_fallthru
      _
    // Predicated region
    $region214: #{forward.1} parent=1 // pred_check
      _
    $region215: #{forward.1} parent=1 // pred_check_branch
      %521 = sbr.rel (0) target = $region217
    $region216: #{forward.1} parent=1 // pred_region
      %523 = dma.done [#allocation29], 16
    $region217: #{forward.1} parent=1 // pred_fallthru
      _
    // Predicated region
    $region218: #{forward.1} parent=1 // pred_check
      _
    $region219: #{forward.1} parent=1 // pred_check_branch
      %525 = sbr.rel (0) target = $region221
    $region220: #{forward.1} parent=1 // pred_region
      %527 = dma.done [#allocation29], 16
    $region221: #{forward.1} parent=1 // pred_fallthru
      _
    // Predicated region
    $region222: #{forward.1} parent=1 // pred_check
      _
    $region223: #{forward.1} parent=1 // pred_check_branch
      %529 = sbr.rel (0) target = $region225
    $region224: #{forward.1} parent=1 // pred_region
      %531 = dma.done [#allocation32], 16
    $region225: #{forward.1} parent=1 // pred_fallthru
      _
    // Predicated region
    $region226: #{forward.1} parent=1 // pred_check
      _
    $region227: #{forward.1} parent=1 // pred_check_branch
      %533 = sbr.rel (0) target = $region229
    $region228: #{forward.1} parent=1 // pred_region
      %535 = dma.done [#allocation32], 256
    $region229: #{forward.1} parent=1 // pred_fallthru
      _
    // Predicated region
    $region230: #{forward.1} parent=1 // pred_check
      _
    $region231: #{forward.1} parent=1 // pred_check_branch
      %537 = sbr.rel (0) target = $region233
    $region232: #{forward.1} parent=1 // pred_region
      %539 = dma.done [#allocation35], 16
    $region233: #{forward.1} parent=1 // pred_fallthru
      _
    // Predicated region
    $region234: #{forward.1} parent=1 // pred_check
      _
    $region235: #{forward.1} parent=1 // pred_check_branch
      %541 = sbr.rel (0) target = $region237
    $region236: #{forward.1} parent=1 // pred_region
      %543 = dma.done [#allocation35], 16
    $region237: #{forward.1} parent=1 // pred_fallthru
      _
    // Predicated region
    $region238: #{forward.1} parent=1 // pred_check
      _
    $region239: #{forward.1} parent=1 // pred_check_branch
      %545 = sbr.rel (0) target = $region241
    $region240: #{forward.1} parent=1 // pred_region
      %547 = dma.done [#allocation38], 16
    $region241: #{forward.1} parent=1 // pred_fallthru
      _
    // Predicated region
    $region242: #{forward.1} parent=1 // pred_check
      _
    $region243: #{forward.1} parent=1 // pred_check_branch
      %549 = sbr.rel (0) target = $region245
    $region244: #{forward.1} parent=1 // pred_region
      %551 = dma.done [#allocation38], 16
    $region245: #{forward.1} parent=1 // pred_fallthru
      _
    // Predicated region
    $region246: #{forward.1} parent=1 // pred_check
      _
    $region247: #{forward.1} parent=1 // pred_check_branch
      %553 = sbr.rel (0) target = $region249
    $region248: #{forward.1} parent=1 // pred_region
      %555 = dma.done [#allocation41], 256
    $region249: #{forward.1} parent=1 // pred_fallthru
      _
    // Predicated region
    $region250: #{forward.1} parent=1 // pred_check
      _
    $region251: #{forward.1} parent=1 // pred_check_branch
      %557 = sbr.rel (0) target = $region253
    $region252: #{forward.1} parent=1 // pred_region
      %559 = dma.done [#allocation41], 16
    $region253: #{forward.1} parent=1 // pred_fallthru
      _
    // Predicated region
    $region254: #{forward.1} parent=1 // pred_check
      _
    $region255: #{forward.1} parent=1 // pred_check_branch
      %561 = sbr.rel (0) target = $region257
    $region256: #{forward.1} parent=1 // pred_region
      %563 = dma.done [#allocation44], 6144
    $region257: #{forward.1} parent=1 // pred_fallthru
      _
    // Predicated region
    $region258: #{forward.1} parent=1 // pred_check
      _
    $region259: #{forward.1} parent=1 // pred_check_branch
      %565 = sbr.rel (0) target = $region261
    $region260: #{forward.1} parent=1 // pred_region
      %567 = dma.done [#allocation44], 96
    $region261: #{forward.1} parent=1 // pred_fallthru
      _
    // Predicated region
    $region262: #{forward.1} parent=1 // pred_check
      _
    $region263: #{forward.1} parent=1 // pred_check_branch
      %569 = sbr.rel (0) target = $region265
    $region264: #{forward.1} parent=1 // pred_region
      %571 = dma.done [#allocation47], 32
    $region265: #{forward.1} parent=1 // pred_fallthru
      _
    %v573 = vld [vmem:[%s1] sm:$0xff]
    %v574 = vld [vmem:[%s1 + $0x8] sm:$0xff]
    %v575 = vld [vmem:[%s1 + $0x10] sm:$0xff]
    %v576 = vld [vmem:[%s1 + $0x18] sm:$0xff]
    %v577 = vld [vmem:[%s1 + $0x20] sm:$0xff]
    %v578 = vld [vmem:[%s1 + $0x28] sm:$0xff]
    %v579 = vld [vmem:[%s1 + $0x30] sm:$0xff]
    %v580 = vld [vmem:[%s1 + $0x38] sm:$0xff]
    %v581 = vld [vmem:[%s1 + $0x40] sm:$0xff]
    %v582 = vld [vmem:[%s1 + $0x48] sm:$0xff]
    %v583 = vld [vmem:[%s1 + $0x50] sm:$0xff]
    %v584 = vld [vmem:[%s1 + $0x58] sm:$0xff]
    %v585 = vld [vmem:[%s1 + $0x60] sm:$0xff]
    %v586 = vld [vmem:[%s1 + $0x68] sm:$0xff]
    %v587 = vld [vmem:[%s1 + $0x70] sm:$0xff]
    %v588 = vld [vmem:[%s1 + $0x78] sm:$0xff]
    %v589 = vld [vmem:[%s5] sm:$0xf]
    %v590 = vld [vmem:[%s5 + $0x4] sm:$0xf]
    %v591 = vld [vmem:[%s5 + $0x8] sm:$0xf]
    %v592 = vld [vmem:[%s5 + $0xc] sm:$0xf]
    %v593 = vld [vmem:[%s5 + $0x10] sm:$0xf]
    %v594 = vld [vmem:[%s5 + $0x14] sm:$0xf]
    %v595 = vld [vmem:[%s5 + $0x18] sm:$0xf]
    %v596 = vld [vmem:[%s5 + $0x1c] sm:$0xf]
    %v597 = vpack.c.bf16 %v574, %v573
    %v598 = vpack.c.bf16 %v576, %v575
    %v599 = vpack.c.bf16 %v578, %v577
    %v600 = vpack.c.bf16 %v580, %v579
    %v601 = vpack.c.bf16 %v582, %v581
    %v602 = vpack.c.bf16 %v584, %v583
    %v603 = vpack.c.bf16 %v586, %v585
    %v604 = vpack.c.bf16 %v588, %v587
    %v605 = vld [vmem:[#allocation2] sm:$0x1]
    %v607 = vperm.slane %v605, 0
    %v617 = vunpack.c.l.b16 %v589
    %v618 = vunpack.c.l.b16 %v590
    %v619 = vunpack.c.l.b16 %v591
    %v620 = vunpack.c.l.b16 %v592
    %v621 = vunpack.c.l.b16 %v593
    %v622 = vunpack.c.l.b16 %v594
    %v623 = vunpack.c.l.b16 %v595
    %v624 = vunpack.c.l.b16 %v596
    %v625 = vpack.c.b16 %v618, %v617
    %v626 = vpack.c.b16 %v620, %v619
    %v627 = vpack.c.b16 %v622, %v621
    %v628 = vpack.c.b16 %v624, %v623
    %vm633 = vcmask 523264
    %v635 = vsel %vm633, %v597, 0
    %v638 = vsel %vm633, %v598, 0
    %v641 = vsel %vm633, %v599, 0
    %v644 = vsel %vm633, %v600, 0
    %v647 = vsel %vm633, %v601, 0
    %v650 = vsel %vm633, %v602, 0
    %v653 = vsel %vm633, %v603, 0
    %v656 = vsel %vm633, %v604, 0
    %658 = vmatpush.bf16.msra.mxu0 0
    %659 = vmatpush.bf16.msra.mxu0 0
    %660 = vmatpush.bf16.msra.mxu0 0
    %661 = vmatpush.bf16.msra.mxu0 0
    %662 = vmatpush.bf16.msra.mxu0 %v628
    %663 = vmatpush.bf16.msra.mxu0 %v627
    %664 = vmatpush.bf16.msra.mxu0 %v626
    %665 = vmatpush.bf16.msra.mxu0 %v625
    %666 = vmatmul.bf16.gmra.mxu0 %v635
    %v667 = vpop.f32.mrf.mxu0
    %v668 = vadd.f32 %v607, %v667
    %v669 = vpop.f32.mrf.mxu0
    %v670 = vadd.f32 %v607, %v669
    %671 = vmatmul.bf16.gmra.mxu0 %v638
    %v672 = vpop.f32.mrf.mxu0
    %v673 = vadd.f32 %v607, %v672
    %v674 = vpop.f32.mrf.mxu0
    %v675 = vadd.f32 %v607, %v674
    %676 = vmatmul.bf16.gmra.mxu0 %v641
    %v677 = vpop.f32.mrf.mxu0
    %v678 = vadd.f32 %v607, %v677
    %v679 = vpop.f32.mrf.mxu0
    %v680 = vadd.f32 %v607, %v679
    %681 = vmatmul.bf16.gmra.mxu0 %v644
    %v682 = vpop.f32.mrf.mxu0
    %v683 = vadd.f32 %v607, %v682
    %v684 = vpop.f32.mrf.mxu0
    %v685 = vadd.f32 %v607, %v684
    %686 = vmatmul.bf16.gmra.mxu0 %v647
    %v687 = vpop.f32.mrf.mxu0
    %v688 = vadd.f32 %v607, %v687
    %v689 = vpop.f32.mrf.mxu0
    %v690 = vadd.f32 %v607, %v689
    %691 = vmatmul.bf16.gmra.mxu0 %v650
    %v692 = vpop.f32.mrf.mxu0
    %v693 = vadd.f32 %v607, %v692
    %v694 = vpop.f32.mrf.mxu0
    %v695 = vadd.f32 %v607, %v694
    %696 = vmatmul.bf16.gmra.mxu0 %v653
    %v697 = vpop.f32.mrf.mxu0
    %v698 = vadd.f32 %v607, %v697
    %v699 = vpop.f32.mrf.mxu0
    %v700 = vadd.f32 %v607, %v699
    %701 = vmatmul.bf16.gmra.mxu0 %v656
    %v702 = vpop.f32.mrf.mxu0
    %v703 = vadd.f32 %v607, %v702
    %v704 = vpop.f32.mrf.mxu0
    %v705 = vadd.f32 %v607, %v704
    %706 = vdwg.mxu0
    %v707 = vld [vmem:[%s3] sm:$0xff]
    %v708 = vld [vmem:[%s3 + $0x8] sm:$0xff]
    %v709 = vld [vmem:[%s3 + $0x10] sm:$0xff]
    %v710 = vld [vmem:[%s3 + $0x18] sm:$0xff]
    %v711 = vld [vmem:[%s3 + $0x20] sm:$0xff]
    %v712 = vld [vmem:[%s3 + $0x28] sm:$0xff]
    %v713 = vld [vmem:[%s3 + $0x30] sm:$0xff]
    %v714 = vld [vmem:[%s3 + $0x38] sm:$0xff]
    %v715 = vld [vmem:[%s3 + $0x40] sm:$0xff]
    %v716 = vld [vmem:[%s3 + $0x48] sm:$0xff]
    %v717 = vld [vmem:[%s3 + $0x50] sm:$0xff]
    %v718 = vld [vmem:[%s3 + $0x58] sm:$0xff]
    %v719 = vld [vmem:[%s3 + $0x60] sm:$0xff]
    %v720 = vld [vmem:[%s3 + $0x68] sm:$0xff]
    %v721 = vld [vmem:[%s3 + $0x70] sm:$0xff]
    %v722 = vld [vmem:[%s3 + $0x78] sm:$0xff]
    %v723 = vadd.f32 %v668, %v707
    %v724 = vadd.f32 %v670, %v708
    %v725 = vadd.f32 %v673, %v709
    %v726 = vadd.f32 %v675, %v710
    %v727 = vadd.f32 %v678, %v711
    %v728 = vadd.f32 %v680, %v712
    %v729 = vadd.f32 %v683, %v713
    %v730 = vadd.f32 %v685, %v714
    %v731 = vadd.f32 %v688, %v715
    %v732 = vadd.f32 %v690, %v716
    %v733 = vadd.f32 %v693, %v717
    %v734 = vadd.f32 %v695, %v718
    %v735 = vadd.f32 %v698, %v719
    %v736 = vadd.f32 %v700, %v720
    %v737 = vadd.f32 %v703, %v721
    %v738 = vadd.f32 %v705, %v722
    %vm739 = vcmask 261120
    %v740 = vsel %vm739, %v723, 0.0
    %741 = vadd.xlane.f32.xlu0 %v740
    %v742 = vpop.xlane.xlu0 %741
    %v743 = vsel %vm739, %v724, 0.0
    %744 = vadd.xlane.f32.xlu0 %v743
    %v745 = vpop.xlane.xlu0 %744
    %v746 = vsel %vm739, %v725, 0.0
    %747 = vadd.xlane.f32.xlu0 %v746
    %v748 = vpop.xlane.xlu0 %747
    %v749 = vsel %vm739, %v726, 0.0
    %750 = vadd.xlane.f32.xlu0 %v749
    %v751 = vpop.xlane.xlu0 %750
    %v752 = vsel %vm739, %v727, 0.0
    %753 = vadd.xlane.f32.xlu0 %v752
    %v754 = vpop.xlane.xlu0 %753
    %v755 = vsel %vm739, %v728, 0.0
    %756 = vadd.xlane.f32.xlu0 %v755
    %v757 = vpop.xlane.xlu0 %756
    %v758 = vsel %vm739, %v729, 0.0
    %759 = vadd.xlane.f32.xlu0 %v758
    %v760 = vpop.xlane.xlu0 %759
    %v761 = vsel %vm739, %v730, 0.0
    %762 = vadd.xlane.f32.xlu0 %v761
    %v763 = vpop.xlane.xlu0 %762
    %v764 = vsel %vm739, %v731, 0.0
    %765 = vadd.xlane.f32.xlu0 %v764
    %v766 = vpop.xlane.xlu0 %765
    %v767 = vsel %vm739, %v732, 0.0
    %768 = vadd.xlane.f32.xlu0 %v767
    %v769 = vpop.xlane.xlu0 %768
    %v770 = vsel %vm739, %v733, 0.0
    %771 = vadd.xlane.f32.xlu0 %v770
    %v772 = vpop.xlane.xlu0 %771
    %v773 = vsel %vm739, %v734, 0.0
    %774 = vadd.xlane.f32.xlu0 %v773
    %v775 = vpop.xlane.xlu0 %774
    %v776 = vsel %vm739, %v735, 0.0
    %777 = vadd.xlane.f32.xlu0 %v776
    %v778 = vpop.xlane.xlu0 %777
    %v779 = vsel %vm739, %v736, 0.0
    %780 = vadd.xlane.f32.xlu0 %v779
    %v781 = vpop.xlane.xlu0 %780
    %v782 = vsel %vm739, %v737, 0.0
    %783 = vadd.xlane.f32.xlu0 %v782
    %v784 = vpop.xlane.xlu0 %783
    %v785 = vsel %vm739, %v738, 0.0
    %786 = vadd.xlane.f32.xlu0 %v785
    %v787 = vpop.xlane.xlu0 %786
    %v788 = vrcp.pop 32.0
    %v789 = vmul.f32 32.0, %v788
    %v790 = vsub.f32 1.0, %v789
    %v791 = vmul.f32 %v788, %v790
    %v792 = vadd.f32 %v788, %v791
    %vm793 = vweird.f32 %v788
    %v794 = vsel %vm793, %v788, %v792
    %v795 = vmul.f32 %v742, %v794
    %v796 = vmul.f32 %v745, %v794
    %v797 = vmul.f32 %v748, %v794
    %v798 = vmul.f32 %v751, %v794
    %v799 = vmul.f32 %v754, %v794
    %v800 = vmul.f32 %v757, %v794
    %v801 = vmul.f32 %v760, %v794
    %v802 = vmul.f32 %v763, %v794
    %v803 = vmul.f32 %v766, %v794
    %v804 = vmul.f32 %v769, %v794
    %v805 = vmul.f32 %v772, %v794
    %v806 = vmul.f32 %v775, %v794
    %v807 = vmul.f32 %v778, %v794
    %v808 = vmul.f32 %v781, %v794
    %v809 = vmul.f32 %v784, %v794
    %v810 = vmul.f32 %v787, %v794
    %v811 = vsub.f32 %v723, %v795
    %v812 = vsub.f32 %v724, %v796
    %v813 = vsub.f32 %v725, %v797
    %v814 = vsub.f32 %v726, %v798
    %v815 = vsub.f32 %v727, %v799
    %v816 = vsub.f32 %v728, %v800
    %v817 = vsub.f32 %v729, %v801
    %v818 = vsub.f32 %v730, %v802
    %v819 = vsub.f32 %v731, %v803
    %v820 = vsub.f32 %v732, %v804
    %v821 = vsub.f32 %v733, %v805
    %v822 = vsub.f32 %v734, %v806
    %v823 = vsub.f32 %v735, %v807
    %v824 = vsub.f32 %v736, %v808
    %v825 = vsub.f32 %v737, %v809
    %v826 = vsub.f32 %v738, %v810
    %v827 = vmul.f32 %v811, %v811
    %v828 = vmul.f32 %v812, %v812
    %v829 = vmul.f32 %v813, %v813
    %v830 = vmul.f32 %v814, %v814
    %v831 = vmul.f32 %v815, %v815
    %v832 = vmul.f32 %v816, %v816
    %v833 = vmul.f32 %v817, %v817
    %v834 = vmul.f32 %v818, %v818
    %v835 = vmul.f32 %v819, %v819
    %v836 = vmul.f32 %v820, %v820
    %v837 = vmul.f32 %v821, %v821
    %v838 = vmul.f32 %v822, %v822
    %v839 = vmul.f32 %v823, %v823
    %v840 = vmul.f32 %v824, %v824
    %v841 = vmul.f32 %v825, %v825
    %v842 = vmul.f32 %v826, %v826
    %v843 = vsel %vm739, %v827, 0.0
    %844 = vadd.xlane.f32.xlu0 %v843
    %v845 = vpop.xlane.xlu0 %844
    %v846 = vsel %vm739, %v828, 0.0
    %847 = vadd.xlane.f32.xlu0 %v846
    %v848 = vpop.xlane.xlu0 %847
    %v849 = vsel %vm739, %v829, 0.0
    %850 = vadd.xlane.f32.xlu0 %v849
    %v851 = vpop.xlane.xlu0 %850
    %v852 = vsel %vm739, %v830, 0.0
    %853 = vadd.xlane.f32.xlu0 %v852
    %v854 = vpop.xlane.xlu0 %853
    %v855 = vsel %vm739, %v831, 0.0
    %856 = vadd.xlane.f32.xlu0 %v855
    %v857 = vpop.xlane.xlu0 %856
    %v858 = vsel %vm739, %v832, 0.0
    %859 = vadd.xlane.f32.xlu0 %v858
    %v860 = vpop.xlane.xlu0 %859
    %v861 = vsel %vm739, %v833, 0.0
    %862 = vadd.xlane.f32.xlu0 %v861
    %v863 = vpop.xlane.xlu0 %862
    %v864 = vsel %vm739, %v834, 0.0
    %865 = vadd.xlane.f32.xlu0 %v864
    %v866 = vpop.xlane.xlu0 %865
    %v867 = vsel %vm739, %v835, 0.0
    %868 = vadd.xlane.f32.xlu0 %v867
    %v869 = vpop.xlane.xlu0 %868
    %v870 = vsel %vm739, %v836, 0.0
    %871 = vadd.xlane.f32.xlu0 %v870
    %v872 = vpop.xlane.xlu0 %871
    %v873 = vsel %vm739, %v837, 0.0
    %874 = vadd.xlane.f32.xlu0 %v873
    %v875 = vpop.xlane.xlu0 %874
    %v876 = vsel %vm739, %v838, 0.0
    %877 = vadd.xlane.f32.xlu0 %v876
    %v878 = vpop.xlane.xlu0 %877
    %v879 = vsel %vm739, %v839, 0.0
    %880 = vadd.xlane.f32.xlu0 %v879
    %v881 = vpop.xlane.xlu0 %880
    %v882 = vsel %vm739, %v840, 0.0
    %883 = vadd.xlane.f32.xlu0 %v882
    %v884 = vpop.xlane.xlu0 %883
    %v885 = vsel %vm739, %v841, 0.0
    %886 = vadd.xlane.f32.xlu0 %v885
    %v887 = vpop.xlane.xlu0 %886
    %v888 = vsel %vm739, %v842, 0.0
    %889 = vadd.xlane.f32.xlu0 %v888
    %v890 = vpop.xlane.xlu0 %889
    %v891 = vmul.f32 %v845, %v794
    %v892 = vmul.f32 %v848, %v794
    %v893 = vmul.f32 %v851, %v794
    %v894 = vmul.f32 %v854, %v794
    %v895 = vmul.f32 %v857, %v794
    %v896 = vmul.f32 %v860, %v794
    %v897 = vmul.f32 %v863, %v794
    %v898 = vmul.f32 %v866, %v794
    %v899 = vmul.f32 %v869, %v794
    %v900 = vmul.f32 %v872, %v794
    %v901 = vmul.f32 %v875, %v794
    %v902 = vmul.f32 %v878, %v794
    %v903 = vmul.f32 %v881, %v794
    %v904 = vmul.f32 %v884, %v794
    %v905 = vmul.f32 %v887, %v794
    %v906 = vmul.f32 %v890, %v794
    %v907 = vadd.f32 %v891, 1e-05
    %v908 = vadd.f32 %v892, 1e-05
    %v909 = vadd.f32 %v893, 1e-05
    %v910 = vadd.f32 %v894, 1e-05
    %v911 = vadd.f32 %v895, 1e-05
    %v912 = vadd.f32 %v896, 1e-05
    %v913 = vadd.f32 %v897, 1e-05
    %v914 = vadd.f32 %v898, 1e-05
    %v915 = vadd.f32 %v899, 1e-05
    %v916 = vadd.f32 %v900, 1e-05
    %v917 = vadd.f32 %v901, 1e-05
    %v918 = vadd.f32 %v902, 1e-05
    %v919 = vadd.f32 %v903, 1e-05
    %v920 = vadd.f32 %v904, 1e-05
    %v921 = vadd.f32 %v905, 1e-05
    %v922 = vadd.f32 %v906, 1e-05
    %v923 = vrsqrt.pop %v907
    %v924 = vmul.f32 %v923, %v907
    %v925 = vmul.f32 %v924, %v923
    %v926 = vmul.f32 0.5, %v925
    %v927 = vsub.f32 1.5, %v926
    %v928 = vmul.f32 %v923, %v927
    %vm929 = vweird.f32 %v907
    %vm930 = vweird.f32 %v923
    %vm931 = vmor %vm929, %vm930
    %v932 = vsel %vm931, %v923, %v928
    %v933 = vrsqrt.pop %v908
    %v934 = vmul.f32 %v933, %v908
    %v935 = vmul.f32 %v934, %v933
    %v936 = vmul.f32 0.5, %v935
    %v937 = vsub.f32 1.5, %v936
    %v938 = vmul.f32 %v933, %v937
    %vm939 = vweird.f32 %v908
    %vm940 = vweird.f32 %v933
    %vm941 = vmor %vm939, %vm940
    %v942 = vsel %vm941, %v933, %v938
    %v943 = vrsqrt.pop %v909
    %v944 = vmul.f32 %v943, %v909
    %v945 = vmul.f32 %v944, %v943
    %v946 = vmul.f32 0.5, %v945
    %v947 = vsub.f32 1.5, %v946
    %v948 = vmul.f32 %v943, %v947
    %vm949 = vweird.f32 %v909
    %vm950 = vweird.f32 %v943
    %vm951 = vmor %vm949, %vm950
    %v952 = vsel %vm951, %v943, %v948
    %v953 = vrsqrt.pop %v910
    %v954 = vmul.f32 %v953, %v910
    %v955 = vmul.f32 %v954, %v953
    %v956 = vmul.f32 0.5, %v955
    %v957 = vsub.f32 1.5, %v956
    %v958 = vmul.f32 %v953, %v957
    %vm959 = vweird.f32 %v910
    %vm960 = vweird.f32 %v953
    %vm961 = vmor %vm959, %vm960
    %v962 = vsel %vm961, %v953, %v958
    %v963 = vrsqrt.pop %v911
    %v964 = vmul.f32 %v963, %v911
    %v965 = vmul.f32 %v964, %v963
    %v966 = vmul.f32 0.5, %v965
    %v967 = vsub.f32 1.5, %v966
    %v968 = vmul.f32 %v963, %v967
    %vm969 = vweird.f32 %v911
    %vm970 = vweird.f32 %v963
    %vm971 = vmor %vm969, %vm970
    %v972 = vsel %vm971, %v963, %v968
    %v973 = vrsqrt.pop %v912
    %v974 = vmul.f32 %v973, %v912
    %v975 = vmul.f32 %v974, %v973
    %v976 = vmul.f32 0.5, %v975
    %v977 = vsub.f32 1.5, %v976
    %v978 = vmul.f32 %v973, %v977
    %vm979 = vweird.f32 %v912
    %vm980 = vweird.f32 %v973
    %vm981 = vmor %vm979, %vm980
    %v982 = vsel %vm981, %v973, %v978
    %v983 = vrsqrt.pop %v913
    %v984 = vmul.f32 %v983, %v913
    %v985 = vmul.f32 %v984, %v983
    %v986 = vmul.f32 0.5, %v985
    %v987 = vsub.f32 1.5, %v986
    %v988 = vmul.f32 %v983, %v987
    %vm989 = vweird.f32 %v913
    %vm990 = vweird.f32 %v983
    %vm991 = vmor %vm989, %vm990
    %v992 = vsel %vm991, %v983, %v988
    %v993 = vrsqrt.pop %v914
    %v994 = vmul.f32 %v993, %v914
    %v995 = vmul.f32 %v994, %v993
    %v996 = vmul.f32 0.5, %v995
    %v997 = vsub.f32 1.5, %v996
    %v998 = vmul.f32 %v993, %v997
    %vm999 = vweird.f32 %v914
    %vm1000 = vweird.f32 %v993
    %vm1001 = vmor %vm999, %vm1000
    %v1002 = vsel %vm1001, %v993, %v998
    %v1003 = vrsqrt.pop %v915
    %v1004 = vmul.f32 %v1003, %v915
    %v1005 = vmul.f32 %v1004, %v1003
    %v1006 = vmul.f32 0.5, %v1005
    %v1007 = vsub.f32 1.5, %v1006
    %v1008 = vmul.f32 %v1003, %v1007
    %vm1009 = vweird.f32 %v915
    %vm1010 = vweird.f32 %v1003
    %vm1011 = vmor %vm1009, %vm1010
    %v1012 = vsel %vm1011, %v1003, %v1008
    %v1013 = vrsqrt.pop %v916
    %v1014 = vmul.f32 %v1013, %v916
    %v1015 = vmul.f32 %v1014, %v1013
    %v1016 = vmul.f32 0.5, %v1015
    %v1017 = vsub.f32 1.5, %v1016
    %v1018 = vmul.f32 %v1013, %v1017
    %vm1019 = vweird.f32 %v916
    %vm1020 = vweird.f32 %v1013
    %vm1021 = vmor %vm1019, %vm1020
    %v1022 = vsel %vm1021, %v1013, %v1018
    %v1023 = vrsqrt.pop %v917
    %v1024 = vmul.f32 %v1023, %v917
    %v1025 = vmul.f32 %v1024, %v1023
    %v1026 = vmul.f32 0.5, %v1025
    %v1027 = vsub.f32 1.5, %v1026
    %v1028 = vmul.f32 %v1023, %v1027
    %vm1029 = vweird.f32 %v917
    %vm1030 = vweird.f32 %v1023
    %vm1031 = vmor %vm1029, %vm1030
    %v1032 = vsel %vm1031, %v1023, %v1028
    %v1033 = vrsqrt.pop %v918
    %v1034 = vmul.f32 %v1033, %v918
    %v1035 = vmul.f32 %v1034, %v1033
    %v1036 = vmul.f32 0.5, %v1035
    %v1037 = vsub.f32 1.5, %v1036
    %v1038 = vmul.f32 %v1033, %v1037
    %vm1039 = vweird.f32 %v918
    %vm1040 = vweird.f32 %v1033
    %vm1041 = vmor %vm1039, %vm1040
    %v1042 = vsel %vm1041, %v1033, %v1038
    %v1043 = vrsqrt.pop %v919
    %v1044 = vmul.f32 %v1043, %v919
    %v1045 = vmul.f32 %v1044, %v1043
    %v1046 = vmul.f32 0.5, %v1045
    %v1047 = vsub.f32 1.5, %v1046
    %v1048 = vmul.f32 %v1043, %v1047
    %vm1049 = vweird.f32 %v919
    %vm1050 = vweird.f32 %v1043
    %vm1051 = vmor %vm1049, %vm1050
    %v1052 = vsel %vm1051, %v1043, %v1048
    %v1053 = vrsqrt.pop %v920
    %v1054 = vmul.f32 %v1053, %v920
    %v1055 = vmul.f32 %v1054, %v1053
    %v1056 = vmul.f32 0.5, %v1055
    %v1057 = vsub.f32 1.5, %v1056
    %v1058 = vmul.f32 %v1053, %v1057
    %vm1059 = vweird.f32 %v920
    %vm1060 = vweird.f32 %v1053
    %vm1061 = vmor %vm1059, %vm1060
    %v1062 = vsel %vm1061, %v1053, %v1058
    %v1063 = vrsqrt.pop %v921
    %v1064 = vmul.f32 %v1063, %v921
    %v1065 = vmul.f32 %v1064, %v1063
    %v1066 = vmul.f32 0.5, %v1065
    %v1067 = vsub.f32 1.5, %v1066
    %v1068 = vmul.f32 %v1063, %v1067
    %vm1069 = vweird.f32 %v921
    %vm1070 = vweird.f32 %v1063
    %vm1071 = vmor %vm1069, %vm1070
    %v1072 = vsel %vm1071, %v1063, %v1068
    %v1073 = vrsqrt.pop %v922
    %v1074 = vmul.f32 %v1073, %v922
    %v1075 = vmul.f32 %v1074, %v1073
    %v1076 = vmul.f32 0.5, %v1075
    %v1077 = vsub.f32 1.5, %v1076
    %v1078 = vmul.f32 %v1073, %v1077
    %vm1079 = vweird.f32 %v922
    %vm1080 = vweird.f32 %v1073
    %vm1081 = vmor %vm1079, %vm1080
    %v1082 = vsel %vm1081, %v1073, %v1078
    %v1083 = vmul.f32 %v811, %v932
    %v1084 = vmul.f32 %v812, %v942
    %v1085 = vmul.f32 %v813, %v952
    %v1086 = vmul.f32 %v814, %v962
    %v1087 = vmul.f32 %v815, %v972
    %v1088 = vmul.f32 %v816, %v982
    %v1089 = vmul.f32 %v817, %v992
    %v1090 = vmul.f32 %v818, %v1002
    %v1091 = vmul.f32 %v819, %v1012
    %v1092 = vmul.f32 %v820, %v1022
    %v1093 = vmul.f32 %v821, %v1032
    %v1094 = vmul.f32 %v822, %v1042
    %v1095 = vmul.f32 %v823, %v1052
    %v1096 = vmul.f32 %v824, %v1062
    %v1097 = vmul.f32 %v825, %v1072
    %v1098 = vmul.f32 %v826, %v1082
    %v1099 = vld [vmem:[#allocation4] sm:$0x1]
    %v1101 = vperm.slane %v1099, 0
    %v1103 = vmul.f32 %v1083, %v1101
    %v1104 = vmul.f32 %v1084, %v1101
    %v1105 = vmul.f32 %v1085, %v1101
    %v1106 = vmul.f32 %v1086, %v1101
    %v1107 = vmul.f32 %v1087, %v1101
    %v1108 = vmul.f32 %v1088, %v1101
    %v1109 = vmul.f32 %v1089, %v1101
    %v1110 = vmul.f32 %v1090, %v1101
    %v1111 = vmul.f32 %v1091, %v1101
    %v1112 = vmul.f32 %v1092, %v1101
    %v1113 = vmul.f32 %v1093, %v1101
    %v1114 = vmul.f32 %v1094, %v1101
    %v1115 = vmul.f32 %v1095, %v1101
    %v1116 = vmul.f32 %v1096, %v1101
    %v1117 = vmul.f32 %v1097, %v1101
    %v1118 = vmul.f32 %v1098, %v1101
    %v1119 = vld [vmem:[#allocation6] sm:$0x1]
    %v1121 = vperm.slane %v1119, 0
    %v1123 = vadd.f32 %v1103, %v1121
    %v1124 = vadd.f32 %v1104, %v1121
    %v1125 = vadd.f32 %v1105, %v1121
    %v1126 = vadd.f32 %v1106, %v1121
    %v1127 = vadd.f32 %v1107, %v1121
    %v1128 = vadd.f32 %v1108, %v1121
    %v1129 = vadd.f32 %v1109, %v1121
    %v1130 = vadd.f32 %v1110, %v1121
    %v1131 = vadd.f32 %v1111, %v1121
    %v1132 = vadd.f32 %v1112, %v1121
    %v1133 = vadd.f32 %v1113, %v1121
    %v1134 = vadd.f32 %v1114, %v1121
    %v1135 = vadd.f32 %v1115, %v1121
    %v1136 = vadd.f32 %v1116, %v1121
    %v1137 = vadd.f32 %v1117, %v1121
    %v1138 = vadd.f32 %v1118, %v1121
    %v1139 = vld [vmem:[#allocation7] sm:$0xf]
    %v1140 = vld [vmem:[#allocation7 + $0x4] sm:$0xf]
    %v1141 = vld [vmem:[#allocation7 + $0x8] sm:$0xf]
    %v1142 = vld [vmem:[#allocation7 + $0xc] sm:$0xf]
    %v1143 = vpack.c.bf16 %v1124, %v1123
    %v1144 = vpack.c.bf16 %v1126, %v1125
    %v1145 = vpack.c.bf16 %v1128, %v1127
    %v1146 = vpack.c.bf16 %v1130, %v1129
    %v1147 = vpack.c.bf16 %v1132, %v1131
    %v1148 = vpack.c.bf16 %v1134, %v1133
    %v1149 = vpack.c.bf16 %v1136, %v1135
    %v1150 = vpack.c.bf16 %v1138, %v1137
    %v1151 = vld [vmem:[#allocation9] sm:$0x1]
    %v1153 = vperm.slane %v1151, 0
    %v1159 = vunpack.c.l.b16 %v1139
    %v1160 = vunpack.c.l.b16 %v1140
    %v1161 = vunpack.c.l.b16 %v1141
    %v1162 = vunpack.c.l.b16 %v1142
    %v1163 = vpack.c.b16 %v1160, %v1159
    %v1164 = vpack.c.b16 %v1162, %v1161
    %v1168 = vsel %vm739, %v1143, 0
    %v1171 = vsel %vm739, %v1144, 0
    %v1174 = vsel %vm739, %v1145, 0
    %v1177 = vsel %vm739, %v1146, 0
    %v1180 = vsel %vm739, %v1147, 0
    %v1183 = vsel %vm739, %v1148, 0
    %v1186 = vsel %vm739, %v1149, 0
    %v1189 = vsel %vm739, %v1150, 0
    %1191 = vmatpush.bf16.msra.mxu0 0
    %1192 = vmatpush.bf16.msra.mxu0 0
    %1193 = vmatpush.bf16.msra.mxu0 0
    %1194 = vmatpush.bf16.msra.mxu0 0
    %1195 = vmatpush.bf16.msra.mxu0 0
    %1196 = vmatpush.bf16.msra.mxu0 0
    %1197 = vmatpush.bf16.msra.mxu0 %v1164
    %1198 = vmatpush.bf16.msra.mxu0 %v1163
    %1199 = vmatmul.bf16.gmra.mxu0 %v1168
    %v1200 = vpop.f32.mrf.mxu0
    %v1201 = vadd.f32 %v1153, %v1200
    %v1202 = vpop.f32.mrf.mxu0
    %v1203 = vadd.f32 %v1153, %v1202
    %1204 = vmatmul.bf16.gmra.mxu0 %v1171
    %v1205 = vpop.f32.mrf.mxu0
    %v1206 = vadd.f32 %v1153, %v1205
    %v1207 = vpop.f32.mrf.mxu0
    %v1208 = vadd.f32 %v1153, %v1207
    %1209 = vmatmul.bf16.gmra.mxu0 %v1174
    %v1210 = vpop.f32.mrf.mxu0
    %v1211 = vadd.f32 %v1153, %v1210
    %v1212 = vpop.f32.mrf.mxu0
    %v1213 = vadd.f32 %v1153, %v1212
    %1214 = vmatmul.bf16.gmra.mxu0 %v1177
    %v1215 = vpop.f32.mrf.mxu0
    %v1216 = vadd.f32 %v1153, %v1215
    %v1217 = vpop.f32.mrf.mxu0
    %v1218 = vadd.f32 %v1153, %v1217
    %1219 = vmatmul.bf16.gmra.mxu0 %v1180
    %v1220 = vpop.f32.mrf.mxu0
    %v1221 = vadd.f32 %v1153, %v1220
    %v1222 = vpop.f32.mrf.mxu0
    %v1223 = vadd.f32 %v1153, %v1222
    %1224 = vmatmul.bf16.gmra.mxu0 %v1183
    %v1225 = vpop.f32.mrf.mxu0
    %v1226 = vadd.f32 %v1153, %v1225
    %v1227 = vpop.f32.mrf.mxu0
    %v1228 = vadd.f32 %v1153, %v1227
    %1229 = vmatmul.bf16.gmra.mxu0 %v1186
    %v1230 = vpop.f32.mrf.mxu0
    %v1231 = vadd.f32 %v1153, %v1230
    %v1232 = vpop.f32.mrf.mxu0
    %v1233 = vadd.f32 %v1153, %v1232
    %1234 = vmatmul.bf16.gmra.mxu0 %v1189
    %v1235 = vpop.f32.mrf.mxu0
    %v1236 = vadd.f32 %v1153, %v1235
    %v1237 = vpop.f32.mrf.mxu0
    %v1238 = vadd.f32 %v1153, %v1237
    %1239 = vdwg.mxu0
    %1248 = vrot.lane.b32.xlu0 %v1201, 120
    %v1249 = vpop.permute.xlu0 %1248
    %1250 = vrot.lane.b32.xlu0 %v1203, 120
    %v1251 = vpop.permute.xlu0 %1250
    %1252 = vrot.lane.b32.xlu0 %v1206, 120
    %v1253 = vpop.permute.xlu0 %1252
    %1254 = vrot.lane.b32.xlu0 %v1208, 120
    %v1255 = vpop.permute.xlu0 %1254
    %1256 = vrot.lane.b32.xlu0 %v1211, 120
    %v1257 = vpop.permute.xlu0 %1256
    %1258 = vrot.lane.b32.xlu0 %v1213, 120
    %v1259 = vpop.permute.xlu0 %1258
    %1260 = vrot.lane.b32.xlu0 %v1216, 120
    %v1261 = vpop.permute.xlu0 %1260
    %1262 = vrot.lane.b32.xlu0 %v1218, 120
    %v1263 = vpop.permute.xlu0 %1262
    %1272 = vrot.lane.b32.xlu0 %v1201, 112
    %v1273 = vpop.permute.xlu0 %1272
    %1274 = vrot.lane.b32.xlu0 %v1203, 112
    %v1275 = vpop.permute.xlu0 %1274
    %1276 = vrot.lane.b32.xlu0 %v1206, 112
    %v1277 = vpop.permute.xlu0 %1276
    %1278 = vrot.lane.b32.xlu0 %v1208, 112
    %v1279 = vpop.permute.xlu0 %1278
    %1280 = vrot.lane.b32.xlu0 %v1211, 112
    %v1281 = vpop.permute.xlu0 %1280
    %1282 = vrot.lane.b32.xlu0 %v1213, 112
    %v1283 = vpop.permute.xlu0 %1282
    %1284 = vrot.lane.b32.xlu0 %v1216, 112
    %v1285 = vpop.permute.xlu0 %1284
    %1286 = vrot.lane.b32.xlu0 %v1218, 112
    %v1287 = vpop.permute.xlu0 %1286
    %1296 = vrot.lane.b32.xlu0 %v1201, 104
    %v1297 = vpop.permute.xlu0 %1296
    %1298 = vrot.lane.b32.xlu0 %v1203, 104
    %v1299 = vpop.permute.xlu0 %1298
    %1300 = vrot.lane.b32.xlu0 %v1206, 104
    %v1301 = vpop.permute.xlu0 %1300
    %1302 = vrot.lane.b32.xlu0 %v1208, 104
    %v1303 = vpop.permute.xlu0 %1302
    %1304 = vrot.lane.b32.xlu0 %v1211, 104
    %v1305 = vpop.permute.xlu0 %1304
    %1306 = vrot.lane.b32.xlu0 %v1213, 104
    %v1307 = vpop.permute.xlu0 %1306
    %1308 = vrot.lane.b32.xlu0 %v1216, 104
    %v1309 = vpop.permute.xlu0 %1308
    %1310 = vrot.lane.b32.xlu0 %v1218, 104
    %v1311 = vpop.permute.xlu0 %1310
    %v1320 = vpack.c.bf16 %v1201, %v1201
    %v1321 = vpack.c.bf16 %v1203, %v1203
    %v1322 = vpack.c.bf16 %v1206, %v1206
    %v1323 = vpack.c.bf16 %v1208, %v1208
    %v1324 = vpack.c.bf16 %v1211, %v1211
    %v1325 = vpack.c.bf16 %v1213, %v1213
    %v1326 = vpack.c.bf16 %v1216, %v1216
    %v1327 = vpack.c.bf16 %v1218, %v1218
    %v1328 = vpack.c.bf16 %v1249, %v1249
    %v1329 = vpack.c.bf16 %v1251, %v1251
    %v1330 = vpack.c.bf16 %v1253, %v1253
    %v1331 = vpack.c.bf16 %v1255, %v1255
    %v1332 = vpack.c.bf16 %v1257, %v1257
    %v1333 = vpack.c.bf16 %v1259, %v1259
    %v1334 = vpack.c.bf16 %v1261, %v1261
    %v1335 = vpack.c.bf16 %v1263, %v1263
    %v1336 = vpack.c.bf16 %v1273, %v1273
    %v1337 = vpack.c.bf16 %v1275, %v1275
    %v1338 = vpack.c.bf16 %v1277, %v1277
    %v1339 = vpack.c.bf16 %v1279, %v1279
    %v1340 = vpack.c.bf16 %v1281, %v1281
    %v1341 = vpack.c.bf16 %v1283, %v1283
    %v1342 = vpack.c.bf16 %v1285, %v1285
    %v1343 = vpack.c.bf16 %v1287, %v1287
    %v1344 = vpack.c.bf16 %v1297, %v1297
    %v1345 = vpack.c.bf16 %v1299, %v1299
    %v1346 = vpack.c.bf16 %v1301, %v1301
    %v1347 = vpack.c.bf16 %v1303, %v1303
    %v1348 = vpack.c.bf16 %v1305, %v1305
    %v1349 = vpack.c.bf16 %v1307, %v1307
    %v1350 = vpack.c.bf16 %v1309, %v1309
    %v1351 = vpack.c.bf16 %v1311, %v1311
    %v1360 = vunpack.c.l.b16 %v1320
    %v1361 = vunpack.c.l.b16 %v1321
    %v1362 = vunpack.c.l.b16 %v1322
    %v1363 = vunpack.c.l.b16 %v1323
    %v1364 = vunpack.c.l.b16 %v1324
    %v1365 = vunpack.c.l.b16 %v1325
    %v1366 = vunpack.c.l.b16 %v1326
    %v1367 = vunpack.c.l.b16 %v1327
    %v1368 = vpack.c.b16 %v1361, %v1360
    %v1369 = vpack.c.b16 %v1363, %v1362
    %v1370 = vpack.c.b16 %v1365, %v1364
    %v1371 = vpack.c.b16 %v1367, %v1366
    %1372 = vrot.lane.b32.xlu0 %v1368, 96
    %v1373 = vpop.permute.xlu0 %1372
    %1374 = vrot.lane.b32.xlu0 %v1369, 96
    %v1375 = vpop.permute.xlu0 %1374
    %1376 = vrot.lane.b32.xlu0 %v1370, 96
    %v1377 = vpop.permute.xlu0 %1376
    %1378 = vrot.lane.b32.xlu0 %v1371, 96
    %v1379 = vpop.permute.xlu0 %1378
    %vm1380 = vcmask 64512
    %v1382 = vsel %vm1380, %v1368, 0
    %v1385 = vsel %vm1380, %v1369, 0
    %v1388 = vsel %vm1380, %v1370, 0
    %v1391 = vsel %vm1380, %v1371, 0
    %v1394 = vsel %vm1380, %v1373, 0
    %v1397 = vsel %vm1380, %v1375, 0
    %v1400 = vsel %vm1380, %v1377, 0
    %v1403 = vsel %vm1380, %v1379, 0
    %1405 = vmatpush.bf16.xpose.msra.mxu0 0
    %1406 = vmatpush.bf16.xpose.msra.mxu0 0
    %1407 = vmatpush.bf16.xpose.msra.mxu0 0
    %1408 = vmatpush.bf16.xpose.msra.mxu0 0
    %1409 = vmatpush.bf16.xpose.msra.mxu0 %v1403
    %1410 = vmatpush.bf16.xpose.msra.mxu0 %v1400
    %1411 = vmatpush.bf16.xpose.msra.mxu0 %v1397
    %1412 = vmatpush.bf16.xpose.msra.mxu0 %v1394
    %1413 = vmatmul.bf16.gmra.mxu0 %v1382
    %v1414 = vpop.f32.mrf.mxu0
    %v1415 = vadd.f32 0.0, %v1414
    %v1416 = vpop.f32.mrf.mxu0
    %v1417 = vadd.f32 0.0, %v1416
    %1418 = vmatmul.bf16.gmra.mxu0 %v1385
    %v1419 = vpop.f32.mrf.mxu0
    %v1420 = vadd.f32 0.0, %v1419
    %v1421 = vpop.f32.mrf.mxu0
    %v1422 = vadd.f32 0.0, %v1421
    %1423 = vmatmul.bf16.gmra.mxu0 %v1388
    %v1424 = vpop.f32.mrf.mxu0
    %v1425 = vadd.f32 0.0, %v1424
    %v1426 = vpop.f32.mrf.mxu0
    %v1427 = vadd.f32 0.0, %v1426
    %1428 = vmatmul.bf16.gmra.mxu0 %v1391
    %v1429 = vpop.f32.mrf.mxu0
    %v1430 = vadd.f32 0.0, %v1429
    %v1431 = vpop.f32.mrf.mxu0
    %v1432 = vadd.f32 0.0, %v1431
    %1433 = vdwg.mxu0
    %v1442 = vunpack.c.l.b16 %v1328
    %v1443 = vunpack.c.l.b16 %v1329
    %v1444 = vunpack.c.l.b16 %v1330
    %v1445 = vunpack.c.l.b16 %v1331
    %v1446 = vunpack.c.l.b16 %v1332
    %v1447 = vunpack.c.l.b16 %v1333
    %v1448 = vunpack.c.l.b16 %v1334
    %v1449 = vunpack.c.l.b16 %v1335
    %v1450 = vpack.c.b16 %v1443, %v1442
    %v1451 = vpack.c.b16 %v1445, %v1444
    %v1452 = vpack.c.b16 %v1447, %v1446
    %v1453 = vpack.c.b16 %v1449, %v1448
    %1454 = vrot.lane.b32.xlu0 %v1450, 96
    %v1455 = vpop.permute.xlu0 %1454
    %1456 = vrot.lane.b32.xlu0 %v1451, 96
    %v1457 = vpop.permute.xlu0 %1456
    %1458 = vrot.lane.b32.xlu0 %v1452, 96
    %v1459 = vpop.permute.xlu0 %1458
    %1460 = vrot.lane.b32.xlu0 %v1453, 96
    %v1461 = vpop.permute.xlu0 %1460
    %v1463 = vsel %vm1380, %v1450, 0
    %v1466 = vsel %vm1380, %v1451, 0
    %v1469 = vsel %vm1380, %v1452, 0
    %v1472 = vsel %vm1380, %v1453, 0
    %v1475 = vsel %vm1380, %v1455, 0
    %v1478 = vsel %vm1380, %v1457, 0
    %v1481 = vsel %vm1380, %v1459, 0
    %v1484 = vsel %vm1380, %v1461, 0
    %1486 = vmatpush.bf16.xpose.msra.mxu0 0
    %1487 = vmatpush.bf16.xpose.msra.mxu0 0
    %1488 = vmatpush.bf16.xpose.msra.mxu0 0
    %1489 = vmatpush.bf16.xpose.msra.mxu0 0
    %1490 = vmatpush.bf16.xpose.msra.mxu0 %v1484
    %1491 = vmatpush.bf16.xpose.msra.mxu0 %v1481
    %1492 = vmatpush.bf16.xpose.msra.mxu0 %v1478
    %1493 = vmatpush.bf16.xpose.msra.mxu0 %v1475
    %1494 = vmatmul.bf16.gmra.mxu0 %v1463
    %v1495 = vpop.f32.mrf.mxu0
    %v1496 = vadd.f32 0.0, %v1495
    %v1497 = vpop.f32.mrf.mxu0
    %v1498 = vadd.f32 0.0, %v1497
    %1499 = vmatmul.bf16.gmra.mxu0 %v1466
    %v1500 = vpop.f32.mrf.mxu0
    %v1501 = vadd.f32 0.0, %v1500
    %v1502 = vpop.f32.mrf.mxu0
    %v1503 = vadd.f32 0.0, %v1502
    %1504 = vmatmul.bf16.gmra.mxu0 %v1469
    %v1505 = vpop.f32.mrf.mxu0
    %v1506 = vadd.f32 0.0, %v1505
    %v1507 = vpop.f32.mrf.mxu0
    %v1508 = vadd.f32 0.0, %v1507
    %1509 = vmatmul.bf16.gmra.mxu0 %v1472
    %v1510 = vpop.f32.mrf.mxu0
    %v1511 = vadd.f32 0.0, %v1510
    %v1512 = vpop.f32.mrf.mxu0
    %v1513 = vadd.f32 0.0, %v1512
    %1514 = vdwg.mxu0
    %v1523 = vunpack.c.l.b16 %v1336
    %v1524 = vunpack.c.l.b16 %v1337
    %v1525 = vunpack.c.l.b16 %v1338
    %v1526 = vunpack.c.l.b16 %v1339
    %v1527 = vunpack.c.l.b16 %v1340
    %v1528 = vunpack.c.l.b16 %v1341
    %v1529 = vunpack.c.l.b16 %v1342
    %v1530 = vunpack.c.l.b16 %v1343
    %v1531 = vpack.c.b16 %v1524, %v1523
    %v1532 = vpack.c.b16 %v1526, %v1525
    %v1533 = vpack.c.b16 %v1528, %v1527
    %v1534 = vpack.c.b16 %v1530, %v1529
    %1535 = vrot.lane.b32.xlu0 %v1531, 96
    %v1536 = vpop.permute.xlu0 %1535
    %1537 = vrot.lane.b32.xlu0 %v1532, 96
    %v1538 = vpop.permute.xlu0 %1537
    %1539 = vrot.lane.b32.xlu0 %v1533, 96
    %v1540 = vpop.permute.xlu0 %1539
    %1541 = vrot.lane.b32.xlu0 %v1534, 96
    %v1542 = vpop.permute.xlu0 %1541
    %v1544 = vsel %vm1380, %v1531, 0
    %v1547 = vsel %vm1380, %v1532, 0
    %v1550 = vsel %vm1380, %v1533, 0
    %v1553 = vsel %vm1380, %v1534, 0
    %v1556 = vsel %vm1380, %v1536, 0
    %v1559 = vsel %vm1380, %v1538, 0
    %v1562 = vsel %vm1380, %v1540, 0
    %v1565 = vsel %vm1380, %v1542, 0
    %1567 = vmatpush.bf16.xpose.msra.mxu0 0
    %1568 = vmatpush.bf16.xpose.msra.mxu0 0
    %1569 = vmatpush.bf16.xpose.msra.mxu0 0
    %1570 = vmatpush.bf16.xpose.msra.mxu0 0
    %1571 = vmatpush.bf16.xpose.msra.mxu0 %v1565
    %1572 = vmatpush.bf16.xpose.msra.mxu0 %v1562
    %1573 = vmatpush.bf16.xpose.msra.mxu0 %v1559
    %1574 = vmatpush.bf16.xpose.msra.mxu0 %v1556
    %1575 = vmatmul.bf16.gmra.mxu0 %v1544
    %v1576 = vpop.f32.mrf.mxu0
    %v1577 = vadd.f32 0.0, %v1576
    %v1578 = vpop.f32.mrf.mxu0
    %v1579 = vadd.f32 0.0, %v1578
    %1580 = vmatmul.bf16.gmra.mxu0 %v1547
    %v1581 = vpop.f32.mrf.mxu0
    %v1582 = vadd.f32 0.0, %v1581
    %v1583 = vpop.f32.mrf.mxu0
    %v1584 = vadd.f32 0.0, %v1583
    %1585 = vmatmul.bf16.gmra.mxu0 %v1550
    %v1586 = vpop.f32.mrf.mxu0
    %v1587 = vadd.f32 0.0, %v1586
    %v1588 = vpop.f32.mrf.mxu0
    %v1589 = vadd.f32 0.0, %v1588
    %1590 = vmatmul.bf16.gmra.mxu0 %v1553
    %v1591 = vpop.f32.mrf.mxu0
    %v1592 = vadd.f32 0.0, %v1591
    %v1593 = vpop.f32.mrf.mxu0
    %v1594 = vadd.f32 0.0, %v1593
    %1595 = vdwg.mxu0
    %v1604 = vunpack.c.l.b16 %v1344
    %v1605 = vunpack.c.l.b16 %v1345
    %v1606 = vunpack.c.l.b16 %v1346
    %v1607 = vunpack.c.l.b16 %v1347
    %v1608 = vunpack.c.l.b16 %v1348
    %v1609 = vunpack.c.l.b16 %v1349
    %v1610 = vunpack.c.l.b16 %v1350
    %v1611 = vunpack.c.l.b16 %v1351
    %v1612 = vpack.c.b16 %v1605, %v1604
    %v1613 = vpack.c.b16 %v1607, %v1606
    %v1614 = vpack.c.b16 %v1609, %v1608
    %v1615 = vpack.c.b16 %v1611, %v1610
    %1616 = vrot.lane.b32.xlu0 %v1612, 96
    %v1617 = vpop.permute.xlu0 %1616
    %1618 = vrot.lane.b32.xlu0 %v1613, 96
    %v1619 = vpop.permute.xlu0 %1618
    %1620 = vrot.lane.b32.xlu0 %v1614, 96
    %v1621 = vpop.permute.xlu0 %1620
    %1622 = vrot.lane.b32.xlu0 %v1615, 96
    %v1623 = vpop.permute.xlu0 %1622
    %v1625 = vsel %vm1380, %v1612, 0
    %v1628 = vsel %vm1380, %v1613, 0
    %v1631 = vsel %vm1380, %v1614, 0
    %v1634 = vsel %vm1380, %v1615, 0
    %v1637 = vsel %vm1380, %v1617, 0
    %v1640 = vsel %vm1380, %v1619, 0
    %v1643 = vsel %vm1380, %v1621, 0
    %v1646 = vsel %vm1380, %v1623, 0
    %1648 = vmatpush.bf16.xpose.msra.mxu0 0
    %1649 = vmatpush.bf16.xpose.msra.mxu0 0
    %1650 = vmatpush.bf16.xpose.msra.mxu0 0
    %1651 = vmatpush.bf16.xpose.msra.mxu0 0
    %1652 = vmatpush.bf16.xpose.msra.mxu0 %v1646
    %1653 = vmatpush.bf16.xpose.msra.mxu0 %v1643
    %1654 = vmatpush.bf16.xpose.msra.mxu0 %v1640
    %1655 = vmatpush.bf16.xpose.msra.mxu0 %v1637
    %1656 = vmatmul.bf16.gmra.mxu0 %v1625
    %v1657 = vpop.f32.mrf.mxu0
    %v1658 = vadd.f32 0.0, %v1657
    %v1659 = vpop.f32.mrf.mxu0
    %v1660 = vadd.f32 0.0, %v1659
    %1661 = vmatmul.bf16.gmra.mxu0 %v1628
    %v1662 = vpop.f32.mrf.mxu0
    %v1663 = vadd.f32 0.0, %v1662
    %v1664 = vpop.f32.mrf.mxu0
    %v1665 = vadd.f32 0.0, %v1664
    %1666 = vmatmul.bf16.gmra.mxu0 %v1631
    %v1667 = vpop.f32.mrf.mxu0
    %v1668 = vadd.f32 0.0, %v1667
    %v1669 = vpop.f32.mrf.mxu0
    %v1670 = vadd.f32 0.0, %v1669
    %1671 = vmatmul.bf16.gmra.mxu0 %v1634
    %v1672 = vpop.f32.mrf.mxu0
    %v1673 = vadd.f32 0.0, %v1672
    %v1674 = vpop.f32.mrf.mxu0
    %v1675 = vadd.f32 0.0, %v1674
    %1676 = vdwg.mxu0
    %v1677 = vsel %vm633, %v1415, -inf
    %1678 = vmax.xlane.f32.xlu0 %v1677
    %v1679 = vpop.xlane.xlu0 %1678
    %v1680 = vsel %vm633, %v1417, -inf
    %1681 = vmax.xlane.f32.xlu0 %v1680
    %v1682 = vpop.xlane.xlu0 %1681
    %v1683 = vsel %vm633, %v1420, -inf
    %1684 = vmax.xlane.f32.xlu0 %v1683
    %v1685 = vpop.xlane.xlu0 %1684
    %v1686 = vsel %vm633, %v1422, -inf
    %1687 = vmax.xlane.f32.xlu0 %v1686
    %v1688 = vpop.xlane.xlu0 %1687
    %v1689 = vsel %vm633, %v1425, -inf
    %1690 = vmax.xlane.f32.xlu0 %v1689
    %v1691 = vpop.xlane.xlu0 %1690
    %v1692 = vsel %vm633, %v1427, -inf
    %1693 = vmax.xlane.f32.xlu0 %v1692
    %v1694 = vpop.xlane.xlu0 %1693
    %v1695 = vsel %vm633, %v1430, -inf
    %1696 = vmax.xlane.f32.xlu0 %v1695
    %v1697 = vpop.xlane.xlu0 %1696
    %v1698 = vsel %vm633, %v1432, -inf
    %1699 = vmax.xlane.f32.xlu0 %v1698
    %v1700 = vpop.xlane.xlu0 %1699
    %v1701 = vsel %vm633, %v1496, -inf
    %1702 = vmax.xlane.f32.xlu0 %v1701
    %v1703 = vpop.xlane.xlu0 %1702
    %v1704 = vsel %vm633, %v1498, -inf
    %1705 = vmax.xlane.f32.xlu0 %v1704
    %v1706 = vpop.xlane.xlu0 %1705
    %v1707 = vsel %vm633, %v1501, -inf
    %1708 = vmax.xlane.f32.xlu0 %v1707
    %v1709 = vpop.xlane.xlu0 %1708
    %v1710 = vsel %vm633, %v1503, -inf
    %1711 = vmax.xlane.f32.xlu0 %v1710
    %v1712 = vpop.xlane.xlu0 %1711
    %v1713 = vsel %vm633, %v1506, -inf
    %1714 = vmax.xlane.f32.xlu0 %v1713
    %v1715 = vpop.xlane.xlu0 %1714
    %v1716 = vsel %vm633, %v1508, -inf
    %1717 = vmax.xlane.f32.xlu0 %v1716
    %v1718 = vpop.xlane.xlu0 %1717
    %v1719 = vsel %vm633, %v1511, -inf
    %1720 = vmax.xlane.f32.xlu0 %v1719
    %v1721 = vpop.xlane.xlu0 %1720
    %v1722 = vsel %vm633, %v1513, -inf
    %1723 = vmax.xlane.f32.xlu0 %v1722
    %v1724 = vpop.xlane.xlu0 %1723
    %v1725 = vsel %vm633, %v1577, -inf
    %1726 = vmax.xlane.f32.xlu0 %v1725
    %v1727 = vpop.xlane.xlu0 %1726
    %v1728 = vsel %vm633, %v1579, -inf
    %1729 = vmax.xlane.f32.xlu0 %v1728
    %v1730 = vpop.xlane.xlu0 %1729
    %v1731 = vsel %vm633, %v1582, -inf
    %1732 = vmax.xlane.f32.xlu0 %v1731
    %v1733 = vpop.xlane.xlu0 %1732
    %v1734 = vsel %vm633, %v1584, -inf
    %1735 = vmax.xlane.f32.xlu0 %v1734
    %v1736 = vpop.xlane.xlu0 %1735
    %v1737 = vsel %vm633, %v1587, -inf
    %1738 = vmax.xlane.f32.xlu0 %v1737
    %v1739 = vpop.xlane.xlu0 %1738
    %v1740 = vsel %vm633, %v1589, -inf
    %1741 = vmax.xlane.f32.xlu0 %v1740
    %v1742 = vpop.xlane.xlu0 %1741
    %v1743 = vsel %vm633, %v1592, -inf
    %1744 = vmax.xlane.f32.xlu0 %v1743
    %v1745 = vpop.xlane.xlu0 %1744
    %v1746 = vsel %vm633, %v1594, -inf
    %1747 = vmax.xlane.f32.xlu0 %v1746
    %v1748 = vpop.xlane.xlu0 %1747
    %v1749 = vsel %vm633, %v1658, -inf
    %1750 = vmax.xlane.f32.xlu0 %v1749
    %v1751 = vpop.xlane.xlu0 %1750
    %v1752 = vsel %vm633, %v1660, -inf
    %1753 = vmax.xlane.f32.xlu0 %v1752
    %v1754 = vpop.xlane.xlu0 %1753
    %v1755 = vsel %vm633, %v1663, -inf
    %1756 = vmax.xlane.f32.xlu0 %v1755
    %v1757 = vpop.xlane.xlu0 %1756
    %v1758 = vsel %vm633, %v1665, -inf
    %1759 = vmax.xlane.f32.xlu0 %v1758
    %v1760 = vpop.xlane.xlu0 %1759
    %v1761 = vsel %vm633, %v1668, -inf
    %1762 = vmax.xlane.f32.xlu0 %v1761
    %v1763 = vpop.xlane.xlu0 %1762
    %v1764 = vsel %vm633, %v1670, -inf
    %1765 = vmax.xlane.f32.xlu0 %v1764
    %v1766 = vpop.xlane.xlu0 %1765
    %v1767 = vsel %vm633, %v1673, -inf
    %1768 = vmax.xlane.f32.xlu0 %v1767
    %v1769 = vpop.xlane.xlu0 %1768
    %v1770 = vsel %vm633, %v1675, -inf
    %1771 = vmax.xlane.f32.xlu0 %v1770
    %v1772 = vpop.xlane.xlu0 %1771
    %v1773 = vsub.f32 %v1415, %v1679
    %v1774 = vsub.f32 %v1417, %v1682
    %v1775 = vsub.f32 %v1420, %v1685
    %v1776 = vsub.f32 %v1422, %v1688
    %v1777 = vsub.f32 %v1425, %v1691
    %v1778 = vsub.f32 %v1427, %v1694
    %v1779 = vsub.f32 %v1430, %v1697
    %v1780 = vsub.f32 %v1432, %v1700
    %v1781 = vsub.f32 %v1496, %v1703
    %v1782 = vsub.f32 %v1498, %v1706
    %v1783 = vsub.f32 %v1501, %v1709
    %v1784 = vsub.f32 %v1503, %v1712
    %v1785 = vsub.f32 %v1506, %v1715
    %v1786 = vsub.f32 %v1508, %v1718
    %v1787 = vsub.f32 %v1511, %v1721
    %v1788 = vsub.f32 %v1513, %v1724
    %v1789 = vsub.f32 %v1577, %v1727
    %v1790 = vsub.f32 %v1579, %v1730
    %v1791 = vsub.f32 %v1582, %v1733
    %v1792 = vsub.f32 %v1584, %v1736
    %v1793 = vsub.f32 %v1587, %v1739
    %v1794 = vsub.f32 %v1589, %v1742
    %v1795 = vsub.f32 %v1592, %v1745
    %v1796 = vsub.f32 %v1594, %v1748
    %v1797 = vsub.f32 %v1658, %v1751
    %v1798 = vsub.f32 %v1660, %v1754
    %v1799 = vsub.f32 %v1663, %v1757
    %v1800 = vsub.f32 %v1665, %v1760
    %v1801 = vsub.f32 %v1668, %v1763
    %v1802 = vsub.f32 %v1670, %v1766
    %v1803 = vsub.f32 %v1673, %v1769
    %v1804 = vsub.f32 %v1675, %v1772
    %v1805 = vmul.f32 %v1773, 1.442695
    %v1806 = vpow.pop %v1805
    %v1807 = vmul.f32 %v1774, 1.442695
    %v1808 = vpow.pop %v1807
    %v1809 = vmul.f32 %v1775, 1.442695
    %v1810 = vpow.pop %v1809
    %v1811 = vmul.f32 %v1776, 1.442695
    %v1812 = vpow.pop %v1811
    %v1813 = vmul.f32 %v1777, 1.442695
    %v1814 = vpow.pop %v1813
    %v1815 = vmul.f32 %v1778, 1.442695
    %v1816 = vpow.pop %v1815
    %v1817 = vmul.f32 %v1779, 1.442695
    %v1818 = vpow.pop %v1817
    %v1819 = vmul.f32 %v1780, 1.442695
    %v1820 = vpow.pop %v1819
    %v1821 = vmul.f32 %v1781, 1.442695
    %v1822 = vpow.pop %v1821
    %v1823 = vmul.f32 %v1782, 1.442695
    %v1824 = vpow.pop %v1823
    %v1825 = vmul.f32 %v1783, 1.442695
    %v1826 = vpow.pop %v1825
    %v1827 = vmul.f32 %v1784, 1.442695
    %v1828 = vpow.pop %v1827
    %v1829 = vmul.f32 %v1785, 1.442695
    %v1830 = vpow.pop %v1829
    %v1831 = vmul.f32 %v1786, 1.442695
    %v1832 = vpow.pop %v1831
    %v1833 = vmul.f32 %v1787, 1.442695
    %v1834 = vpow.pop %v1833
    %v1835 = vmul.f32 %v1788, 1.442695
    %v1836 = vpow.pop %v1835
    %v1837 = vmul.f32 %v1789, 1.442695
    %v1838 = vpow.pop %v1837
    %v1839 = vmul.f32 %v1790, 1.442695
    %v1840 = vpow.pop %v1839
    %v1841 = vmul.f32 %v1791, 1.442695
    %v1842 = vpow.pop %v1841
    %v1843 = vmul.f32 %v1792, 1.442695
    %v1844 = vpow.pop %v1843
    %v1845 = vmul.f32 %v1793, 1.442695
    %v1846 = vpow.pop %v1845
    %v1847 = vmul.f32 %v1794, 1.442695
    %v1848 = vpow.pop %v1847
    %v1849 = vmul.f32 %v1795, 1.442695
    %v1850 = vpow.pop %v1849
    %v1851 = vmul.f32 %v1796, 1.442695
    %v1852 = vpow.pop %v1851
    %v1853 = vmul.f32 %v1797, 1.442695
    %v1854 = vpow.pop %v1853
    %v1855 = vmul.f32 %v1798, 1.442695
    %v1856 = vpow.pop %v1855
    %v1857 = vmul.f32 %v1799, 1.442695
    %v1858 = vpow.pop %v1857
    %v1859 = vmul.f32 %v1800, 1.442695
    %v1860 = vpow.pop %v1859
    %v1861 = vmul.f32 %v1801, 1.442695
    %v1862 = vpow.pop %v1861
    %v1863 = vmul.f32 %v1802, 1.442695
    %v1864 = vpow.pop %v1863
    %v1865 = vmul.f32 %v1803, 1.442695
    %v1866 = vpow.pop %v1865
    %v1867 = vmul.f32 %v1804, 1.442695
    %v1868 = vpow.pop %v1867
    %v1869 = vsel %vm633, %v1806, 0.0
    %1870 = vadd.xlane.f32.xlu0 %v1869
    %v1871 = vpop.xlane.xlu0 %1870
    %v1872 = vsel %vm633, %v1808, 0.0
    %1873 = vadd.xlane.f32.xlu0 %v1872
    %v1874 = vpop.xlane.xlu0 %1873
    %v1875 = vsel %vm633, %v1810, 0.0
    %1876 = vadd.xlane.f32.xlu0 %v1875
    %v1877 = vpop.xlane.xlu0 %1876
    %v1878 = vsel %vm633, %v1812, 0.0
    %1879 = vadd.xlane.f32.xlu0 %v1878
    %v1880 = vpop.xlane.xlu0 %1879
    %v1881 = vsel %vm633, %v1814, 0.0
    %1882 = vadd.xlane.f32.xlu0 %v1881
    %v1883 = vpop.xlane.xlu0 %1882
    %v1884 = vsel %vm633, %v1816, 0.0
    %1885 = vadd.xlane.f32.xlu0 %v1884
    %v1886 = vpop.xlane.xlu0 %1885
    %v1887 = vsel %vm633, %v1818, 0.0
    %1888 = vadd.xlane.f32.xlu0 %v1887
    %v1889 = vpop.xlane.xlu0 %1888
    %v1890 = vsel %vm633, %v1820, 0.0
    %1891 = vadd.xlane.f32.xlu0 %v1890
    %v1892 = vpop.xlane.xlu0 %1891
    %v1893 = vsel %vm633, %v1822, 0.0
    %1894 = vadd.xlane.f32.xlu0 %v1893
    %v1895 = vpop.xlane.xlu0 %1894
    %v1896 = vsel %vm633, %v1824, 0.0
    %1897 = vadd.xlane.f32.xlu0 %v1896
    %v1898 = vpop.xlane.xlu0 %1897
    %v1899 = vsel %vm633, %v1826, 0.0
    %1900 = vadd.xlane.f32.xlu0 %v1899
    %v1901 = vpop.xlane.xlu0 %1900
    %v1902 = vsel %vm633, %v1828, 0.0
    %1903 = vadd.xlane.f32.xlu0 %v1902
    %v1904 = vpop.xlane.xlu0 %1903
    %v1905 = vsel %vm633, %v1830, 0.0
    %1906 = vadd.xlane.f32.xlu0 %v1905
    %v1907 = vpop.xlane.xlu0 %1906
    %v1908 = vsel %vm633, %v1832, 0.0
    %1909 = vadd.xlane.f32.xlu0 %v1908
    %v1910 = vpop.xlane.xlu0 %1909
    %v1911 = vsel %vm633, %v1834, 0.0
    %1912 = vadd.xlane.f32.xlu0 %v1911
    %v1913 = vpop.xlane.xlu0 %1912
    %v1914 = vsel %vm633, %v1836, 0.0
    %1915 = vadd.xlane.f32.xlu0 %v1914
    %v1916 = vpop.xlane.xlu0 %1915
    %v1917 = vsel %vm633, %v1838, 0.0
    %1918 = vadd.xlane.f32.xlu0 %v1917
    %v1919 = vpop.xlane.xlu0 %1918
    %v1920 = vsel %vm633, %v1840, 0.0
    %1921 = vadd.xlane.f32.xlu0 %v1920
    %v1922 = vpop.xlane.xlu0 %1921
    %v1923 = vsel %vm633, %v1842, 0.0
    %1924 = vadd.xlane.f32.xlu0 %v1923
    %v1925 = vpop.xlane.xlu0 %1924
    %v1926 = vsel %vm633, %v1844, 0.0
    %1927 = vadd.xlane.f32.xlu0 %v1926
    %v1928 = vpop.xlane.xlu0 %1927
    %v1929 = vsel %vm633, %v1846, 0.0
    %1930 = vadd.xlane.f32.xlu0 %v1929
    %v1931 = vpop.xlane.xlu0 %1930
    %v1932 = vsel %vm633, %v1848, 0.0
    %1933 = vadd.xlane.f32.xlu0 %v1932
    %v1934 = vpop.xlane.xlu0 %1933
    %v1935 = vsel %vm633, %v1850, 0.0
    %1936 = vadd.xlane.f32.xlu0 %v1935
    %v1937 = vpop.xlane.xlu0 %1936
    %v1938 = vsel %vm633, %v1852, 0.0
    %1939 = vadd.xlane.f32.xlu0 %v1938
    %v1940 = vpop.xlane.xlu0 %1939
    %v1941 = vsel %vm633, %v1854, 0.0
    %1942 = vadd.xlane.f32.xlu0 %v1941
    %v1943 = vpop.xlane.xlu0 %1942
    %v1944 = vsel %vm633, %v1856, 0.0
    %1945 = vadd.xlane.f32.xlu0 %v1944
    %v1946 = vpop.xlane.xlu0 %1945
    %v1947 = vsel %vm633, %v1858, 0.0
    %1948 = vadd.xlane.f32.xlu0 %v1947
    %v1949 = vpop.xlane.xlu0 %1948
    %v1950 = vsel %vm633, %v1860, 0.0
    %1951 = vadd.xlane.f32.xlu0 %v1950
    %v1952 = vpop.xlane.xlu0 %1951
    %v1953 = vsel %vm633, %v1862, 0.0
    %1954 = vadd.xlane.f32.xlu0 %v1953
    %v1955 = vpop.xlane.xlu0 %1954
    %v1956 = vsel %vm633, %v1864, 0.0
    %1957 = vadd.xlane.f32.xlu0 %v1956
    %v1958 = vpop.xlane.xlu0 %1957
    %v1959 = vsel %vm633, %v1866, 0.0
    %1960 = vadd.xlane.f32.xlu0 %v1959
    %v1961 = vpop.xlane.xlu0 %1960
    %v1962 = vsel %vm633, %v1868, 0.0
    %1963 = vadd.xlane.f32.xlu0 %v1962
    %v1964 = vpop.xlane.xlu0 %1963
    %v1965 = vpack.c.bf16 %v1806, %v1806
    %v1966 = vpack.c.bf16 %v1808, %v1808
    %v1967 = vpack.c.bf16 %v1810, %v1810
    %v1968 = vpack.c.bf16 %v1812, %v1812
    %v1969 = vpack.c.bf16 %v1814, %v1814
    %v1970 = vpack.c.bf16 %v1816, %v1816
    %v1971 = vpack.c.bf16 %v1818, %v1818
    %v1972 = vpack.c.bf16 %v1820, %v1820
    %v1973 = vpack.c.bf16 %v1822, %v1822
    %v1974 = vpack.c.bf16 %v1824, %v1824
    %v1975 = vpack.c.bf16 %v1826, %v1826
    %v1976 = vpack.c.bf16 %v1828, %v1828
    %v1977 = vpack.c.bf16 %v1830, %v1830
    %v1978 = vpack.c.bf16 %v1832, %v1832
    %v1979 = vpack.c.bf16 %v1834, %v1834
    %v1980 = vpack.c.bf16 %v1836, %v1836
    %v1981 = vpack.c.bf16 %v1838, %v1838
    %v1982 = vpack.c.bf16 %v1840, %v1840
    %v1983 = vpack.c.bf16 %v1842, %v1842
    %v1984 = vpack.c.bf16 %v1844, %v1844
    %v1985 = vpack.c.bf16 %v1846, %v1846
    %v1986 = vpack.c.bf16 %v1848, %v1848
    %v1987 = vpack.c.bf16 %v1850, %v1850
    %v1988 = vpack.c.bf16 %v1852, %v1852
    %v1989 = vpack.c.bf16 %v1854, %v1854
    %v1990 = vpack.c.bf16 %v1856, %v1856
    %v1991 = vpack.c.bf16 %v1858, %v1858
    %v1992 = vpack.c.bf16 %v1860, %v1860
    %v1993 = vpack.c.bf16 %v1862, %v1862
    %v1994 = vpack.c.bf16 %v1864, %v1864
    %v1995 = vpack.c.bf16 %v1866, %v1866
    %v1996 = vpack.c.bf16 %v1868, %v1868
    %v2005 = vunpack.c.l.b16 %v1965
    %v2006 = vunpack.c.l.b16 %v1966
    %v2007 = vunpack.c.l.b16 %v1967
    %v2008 = vunpack.c.l.b16 %v1968
    %v2009 = vunpack.c.l.b16 %v1969
    %v2010 = vunpack.c.l.b16 %v1970
    %v2011 = vunpack.c.l.b16 %v1971
    %v2012 = vunpack.c.l.b16 %v1972
    %v2013 = vpack.c.b16 %v2006, %v2005
    %v2014 = vpack.c.b16 %v2008, %v2007
    %v2015 = vpack.c.b16 %v2010, %v2009
    %v2016 = vpack.c.b16 %v2012, %v2011
    %2017 = vrot.lane.b32.xlu0 %v1368, 64
    %v2018 = vpop.permute.xlu0 %2017
    %2019 = vrot.lane.b32.xlu0 %v1369, 64
    %v2020 = vpop.permute.xlu0 %2019
    %2021 = vrot.lane.b32.xlu0 %v1370, 64
    %v2022 = vpop.permute.xlu0 %2021
    %2023 = vrot.lane.b32.xlu0 %v1371, 64
    %v2024 = vpop.permute.xlu0 %2023
    %v2030 = vsel %vm633, %v2013, 0
    %v2033 = vsel %vm633, %v2014, 0
    %v2036 = vsel %vm633, %v2015, 0
    %v2039 = vsel %vm633, %v2016, 0
    %2041 = vmatpush.bf16.msra.mxu0 0
    %2042 = vmatpush.bf16.msra.mxu0 0
    %2043 = vmatpush.bf16.msra.mxu0 0
    %2044 = vmatpush.bf16.msra.mxu0 0
    %2045 = vmatpush.bf16.msra.mxu0 %v2024
    %2046 = vmatpush.bf16.msra.mxu0 %v2022
    %2047 = vmatpush.bf16.msra.mxu0 %v2020
    %2048 = vmatpush.bf16.msra.mxu0 %v2018
    %2049 = vmatmul.bf16.gmra.mxu0 %v2030
    %v2050 = vpop.f32.mrf.mxu0
    %v2051 = vadd.f32 0.0, %v2050
    %v2052 = vpop.f32.mrf.mxu0
    %v2053 = vadd.f32 0.0, %v2052
    %2054 = vmatmul.bf16.gmra.mxu0 %v2033
    %v2055 = vpop.f32.mrf.mxu0
    %v2056 = vadd.f32 0.0, %v2055
    %v2057 = vpop.f32.mrf.mxu0
    %v2058 = vadd.f32 0.0, %v2057
    %2059 = vmatmul.bf16.gmra.mxu0 %v2036
    %v2060 = vpop.f32.mrf.mxu0
    %v2061 = vadd.f32 0.0, %v2060
    %v2062 = vpop.f32.mrf.mxu0
    %v2063 = vadd.f32 0.0, %v2062
    %2064 = vmatmul.bf16.gmra.mxu0 %v2039
    %v2065 = vpop.f32.mrf.mxu0
    %v2066 = vadd.f32 0.0, %v2065
    %v2067 = vpop.f32.mrf.mxu0
    %v2068 = vadd.f32 0.0, %v2067
    %2069 = vdwg.mxu0
    %v2078 = vunpack.c.l.b16 %v1973
    %v2079 = vunpack.c.l.b16 %v1974
    %v2080 = vunpack.c.l.b16 %v1975
    %v2081 = vunpack.c.l.b16 %v1976
    %v2082 = vunpack.c.l.b16 %v1977
    %v2083 = vunpack.c.l.b16 %v1978
    %v2084 = vunpack.c.l.b16 %v1979
    %v2085 = vunpack.c.l.b16 %v1980
    %v2086 = vpack.c.b16 %v2079, %v2078
    %v2087 = vpack.c.b16 %v2081, %v2080
    %v2088 = vpack.c.b16 %v2083, %v2082
    %v2089 = vpack.c.b16 %v2085, %v2084
    %2090 = vrot.lane.b32.xlu0 %v1450, 64
    %v2091 = vpop.permute.xlu0 %2090
    %2092 = vrot.lane.b32.xlu0 %v1451, 64
    %v2093 = vpop.permute.xlu0 %2092
    %2094 = vrot.lane.b32.xlu0 %v1452, 64
    %v2095 = vpop.permute.xlu0 %2094
    %2096 = vrot.lane.b32.xlu0 %v1453, 64
    %v2097 = vpop.permute.xlu0 %2096
    %v2103 = vsel %vm633, %v2086, 0
    %v2106 = vsel %vm633, %v2087, 0
    %v2109 = vsel %vm633, %v2088, 0
    %v2112 = vsel %vm633, %v2089, 0
    %2114 = vmatpush.bf16.msra.mxu0 0
    %2115 = vmatpush.bf16.msra.mxu0 0
    %2116 = vmatpush.bf16.msra.mxu0 0
    %2117 = vmatpush.bf16.msra.mxu0 0
    %2118 = vmatpush.bf16.msra.mxu0 %v2097
    %2119 = vmatpush.bf16.msra.mxu0 %v2095
    %2120 = vmatpush.bf16.msra.mxu0 %v2093
    %2121 = vmatpush.bf16.msra.mxu0 %v2091
    %2122 = vmatmul.bf16.gmra.mxu0 %v2103
    %v2123 = vpop.f32.mrf.mxu0
    %v2124 = vadd.f32 0.0, %v2123
    %v2125 = vpop.f32.mrf.mxu0
    %v2126 = vadd.f32 0.0, %v2125
    %2127 = vmatmul.bf16.gmra.mxu0 %v2106
    %v2128 = vpop.f32.mrf.mxu0
    %v2129 = vadd.f32 0.0, %v2128
    %v2130 = vpop.f32.mrf.mxu0
    %v2131 = vadd.f32 0.0, %v2130
    %2132 = vmatmul.bf16.gmra.mxu0 %v2109
    %v2133 = vpop.f32.mrf.mxu0
    %v2134 = vadd.f32 0.0, %v2133
    %v2135 = vpop.f32.mrf.mxu0
    %v2136 = vadd.f32 0.0, %v2135
    %2137 = vmatmul.bf16.gmra.mxu0 %v2112
    %v2138 = vpop.f32.mrf.mxu0
    %v2139 = vadd.f32 0.0, %v2138
    %v2140 = vpop.f32.mrf.mxu0
    %v2141 = vadd.f32 0.0, %v2140
    %2142 = vdwg.mxu0
    %v2151 = vunpack.c.l.b16 %v1981
    %v2152 = vunpack.c.l.b16 %v1982
    %v2153 = vunpack.c.l.b16 %v1983
    %v2154 = vunpack.c.l.b16 %v1984
    %v2155 = vunpack.c.l.b16 %v1985
    %v2156 = vunpack.c.l.b16 %v1986
    %v2157 = vunpack.c.l.b16 %v1987
    %v2158 = vunpack.c.l.b16 %v1988
    %v2159 = vpack.c.b16 %v2152, %v2151
    %v2160 = vpack.c.b16 %v2154, %v2153
    %v2161 = vpack.c.b16 %v2156, %v2155
    %v2162 = vpack.c.b16 %v2158, %v2157
    %2163 = vrot.lane.b32.xlu0 %v1531, 64
    %v2164 = vpop.permute.xlu0 %2163
    %2165 = vrot.lane.b32.xlu0 %v1532, 64
    %v2166 = vpop.permute.xlu0 %2165
    %2167 = vrot.lane.b32.xlu0 %v1533, 64
    %v2168 = vpop.permute.xlu0 %2167
    %2169 = vrot.lane.b32.xlu0 %v1534, 64
    %v2170 = vpop.permute.xlu0 %2169
    %v2176 = vsel %vm633, %v2159, 0
    %v2179 = vsel %vm633, %v2160, 0
    %v2182 = vsel %vm633, %v2161, 0
    %v2185 = vsel %vm633, %v2162, 0
    %2187 = vmatpush.bf16.msra.mxu0 0
    %2188 = vmatpush.bf16.msra.mxu0 0
    %2189 = vmatpush.bf16.msra.mxu0 0
    %2190 = vmatpush.bf16.msra.mxu0 0
    %2191 = vmatpush.bf16.msra.mxu0 %v2170
    %2192 = vmatpush.bf16.msra.mxu0 %v2168
    %2193 = vmatpush.bf16.msra.mxu0 %v2166
    %2194 = vmatpush.bf16.msra.mxu0 %v2164
    %2195 = vmatmul.bf16.gmra.mxu0 %v2176
    %v2196 = vpop.f32.mrf.mxu0
    %v2197 = vadd.f32 0.0, %v2196
    %v2198 = vpop.f32.mrf.mxu0
    %v2199 = vadd.f32 0.0, %v2198
    %2200 = vmatmul.bf16.gmra.mxu0 %v2179
    %v2201 = vpop.f32.mrf.mxu0
    %v2202 = vadd.f32 0.0, %v2201
    %v2203 = vpop.f32.mrf.mxu0
    %v2204 = vadd.f32 0.0, %v2203
    %2205 = vmatmul.bf16.gmra.mxu0 %v2182
    %v2206 = vpop.f32.mrf.mxu0
    %v2207 = vadd.f32 0.0, %v2206
    %v2208 = vpop.f32.mrf.mxu0
    %v2209 = vadd.f32 0.0, %v2208
    %2210 = vmatmul.bf16.gmra.mxu0 %v2185
    %v2211 = vpop.f32.mrf.mxu0
    %v2212 = vadd.f32 0.0, %v2211
    %v2213 = vpop.f32.mrf.mxu0
    %v2214 = vadd.f32 0.0, %v2213
    %2215 = vdwg.mxu0
    %v2224 = vunpack.c.l.b16 %v1989
    %v2225 = vunpack.c.l.b16 %v1990
    %v2226 = vunpack.c.l.b16 %v1991
    %v2227 = vunpack.c.l.b16 %v1992
    %v2228 = vunpack.c.l.b16 %v1993
    %v2229 = vunpack.c.l.b16 %v1994
    %v2230 = vunpack.c.l.b16 %v1995
    %v2231 = vunpack.c.l.b16 %v1996
    %v2232 = vpack.c.b16 %v2225, %v2224
    %v2233 = vpack.c.b16 %v2227, %v2226
    %v2234 = vpack.c.b16 %v2229, %v2228
    %v2235 = vpack.c.b16 %v2231, %v2230
    %2236 = vrot.lane.b32.xlu0 %v1612, 64
    %v2237 = vpop.permute.xlu0 %2236
    %2238 = vrot.lane.b32.xlu0 %v1613, 64
    %v2239 = vpop.permute.xlu0 %2238
    %2240 = vrot.lane.b32.xlu0 %v1614, 64
    %v2241 = vpop.permute.xlu0 %2240
    %2242 = vrot.lane.b32.xlu0 %v1615, 64
    %v2243 = vpop.permute.xlu0 %2242
    %v2249 = vsel %vm633, %v2232, 0
    %v2252 = vsel %vm633, %v2233, 0
    %v2255 = vsel %vm633, %v2234, 0
    %v2258 = vsel %vm633, %v2235, 0
    %2260 = vmatpush.bf16.msra.mxu0 0
    %2261 = vmatpush.bf16.msra.mxu0 0
    %2262 = vmatpush.bf16.msra.mxu0 0
    %2263 = vmatpush.bf16.msra.mxu0 0
    %2264 = vmatpush.bf16.msra.mxu0 %v2243
    %2265 = vmatpush.bf16.msra.mxu0 %v2241
    %2266 = vmatpush.bf16.msra.mxu0 %v2239
    %2267 = vmatpush.bf16.msra.mxu0 %v2237
    %2268 = vmatmul.bf16.gmra.mxu0 %v2249
    %v2269 = vpop.f32.mrf.mxu0
    %v2270 = vadd.f32 0.0, %v2269
    %v2271 = vpop.f32.mrf.mxu0
    %v2272 = vadd.f32 0.0, %v2271
    %2273 = vmatmul.bf16.gmra.mxu0 %v2252
    %v2274 = vpop.f32.mrf.mxu0
    %v2275 = vadd.f32 0.0, %v2274
    %v2276 = vpop.f32.mrf.mxu0
    %v2277 = vadd.f32 0.0, %v2276
    %2278 = vmatmul.bf16.gmra.mxu0 %v2255
    %v2279 = vpop.f32.mrf.mxu0
    %v2280 = vadd.f32 0.0, %v2279
    %v2281 = vpop.f32.mrf.mxu0
    %v2282 = vadd.f32 0.0, %v2281
    %2283 = vmatmul.bf16.gmra.mxu0 %v2258
    %v2284 = vpop.f32.mrf.mxu0
    %v2285 = vadd.f32 0.0, %v2284
    %v2286 = vpop.f32.mrf.mxu0
    %v2287 = vadd.f32 0.0, %v2286
    %2288 = vdwg.mxu0
    %v2289 = vrcp.pop %v1871
    %v2290 = vrcp.pop %v1874
    %v2291 = vrcp.pop %v1877
    %v2292 = vrcp.pop %v1880
    %v2293 = vrcp.pop %v1883
    %v2294 = vrcp.pop %v1886
    %v2295 = vrcp.pop %v1889
    %v2296 = vrcp.pop %v1892
    %v2297 = vrcp.pop %v1895
    %v2298 = vrcp.pop %v1898
    %v2299 = vrcp.pop %v1901
    %v2300 = vrcp.pop %v1904
    %v2301 = vrcp.pop %v1907
    %v2302 = vrcp.pop %v1910
    %v2303 = vrcp.pop %v1913
    %v2304 = vrcp.pop %v1916
    %v2305 = vrcp.pop %v1919
    %v2306 = vrcp.pop %v1922
    %v2307 = vrcp.pop %v1925
    %v2308 = vrcp.pop %v1928
    %v2309 = vrcp.pop %v1931
    %v2310 = vrcp.pop %v1934
    %v2311 = vrcp.pop %v1937
    %v2312 = vrcp.pop %v1940
    %v2313 = vrcp.pop %v1943
    %v2314 = vrcp.pop %v1946
    %v2315 = vrcp.pop %v1949
    %v2316 = vrcp.pop %v1952
    %v2317 = vrcp.pop %v1955
    %v2318 = vrcp.pop %v1958
    %v2319 = vrcp.pop %v1961
    %v2320 = vrcp.pop %v1964
    %v2321 = vmul.f32 %v2051, %v2289
    %v2322 = vmul.f32 %v2053, %v2290
    %v2323 = vmul.f32 %v2056, %v2291
    %v2324 = vmul.f32 %v2058, %v2292
    %v2325 = vmul.f32 %v2061, %v2293
    %v2326 = vmul.f32 %v2063, %v2294
    %v2327 = vmul.f32 %v2066, %v2295
    %v2328 = vmul.f32 %v2068, %v2296
    %v2329 = vmul.f32 %v2124, %v2297
    %v2330 = vmul.f32 %v2126, %v2298
    %v2331 = vmul.f32 %v2129, %v2299
    %v2332 = vmul.f32 %v2131, %v2300
    %v2333 = vmul.f32 %v2134, %v2301
    %v2334 = vmul.f32 %v2136, %v2302
    %v2335 = vmul.f32 %v2139, %v2303
    %v2336 = vmul.f32 %v2141, %v2304
    %v2337 = vmul.f32 %v2197, %v2305
    %v2338 = vmul.f32 %v2199, %v2306
    %v2339 = vmul.f32 %v2202, %v2307
    %v2340 = vmul.f32 %v2204, %v2308
    %v2341 = vmul.f32 %v2207, %v2309
    %v2342 = vmul.f32 %v2209, %v2310
    %v2343 = vmul.f32 %v2212, %v2311
    %v2344 = vmul.f32 %v2214, %v2312
    %v2345 = vmul.f32 %v2270, %v2313
    %v2346 = vmul.f32 %v2272, %v2314
    %v2347 = vmul.f32 %v2275, %v2315
    %v2348 = vmul.f32 %v2277, %v2316
    %v2349 = vmul.f32 %v2280, %v2317
    %v2350 = vmul.f32 %v2282, %v2318
    %v2351 = vmul.f32 %v2285, %v2319
    %v2352 = vmul.f32 %v2287, %v2320
    %2361 = vrot.lane.b32.xlu0 %v1221, 120
    %v2362 = vpop.permute.xlu0 %2361
    %2363 = vrot.lane.b32.xlu0 %v1223, 120
    %v2364 = vpop.permute.xlu0 %2363
    %2365 = vrot.lane.b32.xlu0 %v1226, 120
    %v2366 = vpop.permute.xlu0 %2365
    %2367 = vrot.lane.b32.xlu0 %v1228, 120
    %v2368 = vpop.permute.xlu0 %2367
    %2369 = vrot.lane.b32.xlu0 %v1231, 120
    %v2370 = vpop.permute.xlu0 %2369
    %2371 = vrot.lane.b32.xlu0 %v1233, 120
    %v2372 = vpop.permute.xlu0 %2371
    %2373 = vrot.lane.b32.xlu0 %v1236, 120
    %v2374 = vpop.permute.xlu0 %2373
    %2375 = vrot.lane.b32.xlu0 %v1238, 120
    %v2376 = vpop.permute.xlu0 %2375
    %2385 = vrot.lane.b32.xlu0 %v1221, 112
    %v2386 = vpop.permute.xlu0 %2385
    %2387 = vrot.lane.b32.xlu0 %v1223, 112
    %v2388 = vpop.permute.xlu0 %2387
    %2389 = vrot.lane.b32.xlu0 %v1226, 112
    %v2390 = vpop.permute.xlu0 %2389
    %2391 = vrot.lane.b32.xlu0 %v1228, 112
    %v2392 = vpop.permute.xlu0 %2391
    %2393 = vrot.lane.b32.xlu0 %v1231, 112
    %v2394 = vpop.permute.xlu0 %2393
    %2395 = vrot.lane.b32.xlu0 %v1233, 112
    %v2396 = vpop.permute.xlu0 %2395
    %2397 = vrot.lane.b32.xlu0 %v1236, 112
    %v2398 = vpop.permute.xlu0 %2397
    %2399 = vrot.lane.b32.xlu0 %v1238, 112
    %v2400 = vpop.permute.xlu0 %2399
    %2409 = vrot.lane.b32.xlu0 %v1221, 104
    %v2410 = vpop.permute.xlu0 %2409
    %2411 = vrot.lane.b32.xlu0 %v1223, 104
    %v2412 = vpop.permute.xlu0 %2411
    %2413 = vrot.lane.b32.xlu0 %v1226, 104
    %v2414 = vpop.permute.xlu0 %2413
    %2415 = vrot.lane.b32.xlu0 %v1228, 104
    %v2416 = vpop.permute.xlu0 %2415
    %2417 = vrot.lane.b32.xlu0 %v1231, 104
    %v2418 = vpop.permute.xlu0 %2417
    %2419 = vrot.lane.b32.xlu0 %v1233, 104
    %v2420 = vpop.permute.xlu0 %2419
    %2421 = vrot.lane.b32.xlu0 %v1236, 104
    %v2422 = vpop.permute.xlu0 %2421
    %2423 = vrot.lane.b32.xlu0 %v1238, 104
    %v2424 = vpop.permute.xlu0 %2423
    %v2433 = vpack.c.bf16 %v1221, %v1221
    %v2434 = vpack.c.bf16 %v1223, %v1223
    %v2435 = vpack.c.bf16 %v1226, %v1226
    %v2436 = vpack.c.bf16 %v1228, %v1228
    %v2437 = vpack.c.bf16 %v1231, %v1231
    %v2438 = vpack.c.bf16 %v1233, %v1233
    %v2439 = vpack.c.bf16 %v1236, %v1236
    %v2440 = vpack.c.bf16 %v1238, %v1238
    %v2441 = vpack.c.bf16 %v2362, %v2362
    %v2442 = vpack.c.bf16 %v2364, %v2364
    %v2443 = vpack.c.bf16 %v2366, %v2366
    %v2444 = vpack.c.bf16 %v2368, %v2368
    %v2445 = vpack.c.bf16 %v2370, %v2370
    %v2446 = vpack.c.bf16 %v2372, %v2372
    %v2447 = vpack.c.bf16 %v2374, %v2374
    %v2448 = vpack.c.bf16 %v2376, %v2376
    %v2449 = vpack.c.bf16 %v2386, %v2386
    %v2450 = vpack.c.bf16 %v2388, %v2388
    %v2451 = vpack.c.bf16 %v2390, %v2390
    %v2452 = vpack.c.bf16 %v2392, %v2392
    %v2453 = vpack.c.bf16 %v2394, %v2394
    %v2454 = vpack.c.bf16 %v2396, %v2396
    %v2455 = vpack.c.bf16 %v2398, %v2398
    %v2456 = vpack.c.bf16 %v2400, %v2400
    %v2457 = vpack.c.bf16 %v2410, %v2410
    %v2458 = vpack.c.bf16 %v2412, %v2412
    %v2459 = vpack.c.bf16 %v2414, %v2414
    %v2460 = vpack.c.bf16 %v2416, %v2416
    %v2461 = vpack.c.bf16 %v2418, %v2418
    %v2462 = vpack.c.bf16 %v2420, %v2420
    %v2463 = vpack.c.bf16 %v2422, %v2422
    %v2464 = vpack.c.bf16 %v2424, %v2424
    %v2473 = vunpack.c.l.b16 %v2433
    %v2474 = vunpack.c.l.b16 %v2434
    %v2475 = vunpack.c.l.b16 %v2435
    %v2476 = vunpack.c.l.b16 %v2436
    %v2477 = vunpack.c.l.b16 %v2437
    %v2478 = vunpack.c.l.b16 %v2438
    %v2479 = vunpack.c.l.b16 %v2439
    %v2480 = vunpack.c.l.b16 %v2440
    %v2481 = vpack.c.b16 %v2474, %v2473
    %v2482 = vpack.c.b16 %v2476, %v2475
    %v2483 = vpack.c.b16 %v2478, %v2477
    %v2484 = vpack.c.b16 %v2480, %v2479
    %2485 = vrot.lane.b32.xlu0 %v2481, 96
    %v2486 = vpop.permute.xlu0 %2485
    %2487 = vrot.lane.b32.xlu0 %v2482, 96
    %v2488 = vpop.permute.xlu0 %2487
    %2489 = vrot.lane.b32.xlu0 %v2483, 96
    %v2490 = vpop.permute.xlu0 %2489
    %2491 = vrot.lane.b32.xlu0 %v2484, 96
    %v2492 = vpop.permute.xlu0 %2491
    %v2494 = vsel %vm1380, %v2481, 0
    %v2497 = vsel %vm1380, %v2482, 0
    %v2500 = vsel %vm1380, %v2483, 0
    %v2503 = vsel %vm1380, %v2484, 0
    %v2506 = vsel %vm1380, %v2486, 0
    %v2509 = vsel %vm1380, %v2488, 0
    %v2512 = vsel %vm1380, %v2490, 0
    %v2515 = vsel %vm1380, %v2492, 0
    %2517 = vmatpush.bf16.xpose.msra.mxu0 0
    %2518 = vmatpush.bf16.xpose.msra.mxu0 0
    %2519 = vmatpush.bf16.xpose.msra.mxu0 0
    %2520 = vmatpush.bf16.xpose.msra.mxu0 0
    %2521 = vmatpush.bf16.xpose.msra.mxu0 %v2515
    %2522 = vmatpush.bf16.xpose.msra.mxu0 %v2512
    %2523 = vmatpush.bf16.xpose.msra.mxu0 %v2509
    %2524 = vmatpush.bf16.xpose.msra.mxu0 %v2506
    %2525 = vmatmul.bf16.gmra.mxu0 %v2494
    %v2526 = vpop.f32.mrf.mxu0
    %v2527 = vadd.f32 0.0, %v2526
    %v2528 = vpop.f32.mrf.mxu0
    %v2529 = vadd.f32 0.0, %v2528
    %2530 = vmatmul.bf16.gmra.mxu0 %v2497
    %v2531 = vpop.f32.mrf.mxu0
    %v2532 = vadd.f32 0.0, %v2531
    %v2533 = vpop.f32.mrf.mxu0
    %v2534 = vadd.f32 0.0, %v2533
    %2535 = vmatmul.bf16.gmra.mxu0 %v2500
    %v2536 = vpop.f32.mrf.mxu0
    %v2537 = vadd.f32 0.0, %v2536
    %v2538 = vpop.f32.mrf.mxu0
    %v2539 = vadd.f32 0.0, %v2538
    %2540 = vmatmul.bf16.gmra.mxu0 %v2503
    %v2541 = vpop.f32.mrf.mxu0
    %v2542 = vadd.f32 0.0, %v2541
    %v2543 = vpop.f32.mrf.mxu0
    %v2544 = vadd.f32 0.0, %v2543
    %2545 = vdwg.mxu0
    %v2554 = vunpack.c.l.b16 %v2441
    %v2555 = vunpack.c.l.b16 %v2442
    %v2556 = vunpack.c.l.b16 %v2443
    %v2557 = vunpack.c.l.b16 %v2444
    %v2558 = vunpack.c.l.b16 %v2445
    %v2559 = vunpack.c.l.b16 %v2446
    %v2560 = vunpack.c.l.b16 %v2447
    %v2561 = vunpack.c.l.b16 %v2448
    %v2562 = vpack.c.b16 %v2555, %v2554
    %v2563 = vpack.c.b16 %v2557, %v2556
    %v2564 = vpack.c.b16 %v2559, %v2558
    %v2565 = vpack.c.b16 %v2561, %v2560
    %2566 = vrot.lane.b32.xlu0 %v2562, 96
    %v2567 = vpop.permute.xlu0 %2566
    %2568 = vrot.lane.b32.xlu0 %v2563, 96
    %v2569 = vpop.permute.xlu0 %2568
    %2570 = vrot.lane.b32.xlu0 %v2564, 96
    %v2571 = vpop.permute.xlu0 %2570
    %2572 = vrot.lane.b32.xlu0 %v2565, 96
    %v2573 = vpop.permute.xlu0 %2572
    %v2575 = vsel %vm1380, %v2562, 0
    %v2578 = vsel %vm1380, %v2563, 0
    %v2581 = vsel %vm1380, %v2564, 0
    %v2584 = vsel %vm1380, %v2565, 0
    %v2587 = vsel %vm1380, %v2567, 0
    %v2590 = vsel %vm1380, %v2569, 0
    %v2593 = vsel %vm1380, %v2571, 0
    %v2596 = vsel %vm1380, %v2573, 0
    %2598 = vmatpush.bf16.xpose.msra.mxu0 0
    %2599 = vmatpush.bf16.xpose.msra.mxu0 0
    %2600 = vmatpush.bf16.xpose.msra.mxu0 0
    %2601 = vmatpush.bf16.xpose.msra.mxu0 0
    %2602 = vmatpush.bf16.xpose.msra.mxu0 %v2596
    %2603 = vmatpush.bf16.xpose.msra.mxu0 %v2593
    %2604 = vmatpush.bf16.xpose.msra.mxu0 %v2590
    %2605 = vmatpush.bf16.xpose.msra.mxu0 %v2587
    %2606 = vmatmul.bf16.gmra.mxu0 %v2575
    %v2607 = vpop.f32.mrf.mxu0
    %v2608 = vadd.f32 0.0, %v2607
    %v2609 = vpop.f32.mrf.mxu0
    %v2610 = vadd.f32 0.0, %v2609
    %2611 = vmatmul.bf16.gmra.mxu0 %v2578
    %v2612 = vpop.f32.mrf.mxu0
    %v2613 = vadd.f32 0.0, %v2612
    %v2614 = vpop.f32.mrf.mxu0
    %v2615 = vadd.f32 0.0, %v2614
    %2616 = vmatmul.bf16.gmra.mxu0 %v2581
    %v2617 = vpop.f32.mrf.mxu0
    %v2618 = vadd.f32 0.0, %v2617
    %v2619 = vpop.f32.mrf.mxu0
    %v2620 = vadd.f32 0.0, %v2619
    %2621 = vmatmul.bf16.gmra.mxu0 %v2584
    %v2622 = vpop.f32.mrf.mxu0
    %v2623 = vadd.f32 0.0, %v2622
    %v2624 = vpop.f32.mrf.mxu0
    %v2625 = vadd.f32 0.0, %v2624
    %2626 = vdwg.mxu0
    %v2635 = vunpack.c.l.b16 %v2449
    %v2636 = vunpack.c.l.b16 %v2450
    %v2637 = vunpack.c.l.b16 %v2451
    %v2638 = vunpack.c.l.b16 %v2452
    %v2639 = vunpack.c.l.b16 %v2453
    %v2640 = vunpack.c.l.b16 %v2454
    %v2641 = vunpack.c.l.b16 %v2455
    %v2642 = vunpack.c.l.b16 %v2456
    %v2643 = vpack.c.b16 %v2636, %v2635
    %v2644 = vpack.c.b16 %v2638, %v2637
    %v2645 = vpack.c.b16 %v2640, %v2639
    %v2646 = vpack.c.b16 %v2642, %v2641
    %2647 = vrot.lane.b32.xlu0 %v2643, 96
    %v2648 = vpop.permute.xlu0 %2647
    %2649 = vrot.lane.b32.xlu0 %v2644, 96
    %v2650 = vpop.permute.xlu0 %2649
    %2651 = vrot.lane.b32.xlu0 %v2645, 96
    %v2652 = vpop.permute.xlu0 %2651
    %2653 = vrot.lane.b32.xlu0 %v2646, 96
    %v2654 = vpop.permute.xlu0 %2653
    %v2656 = vsel %vm1380, %v2643, 0
    %v2659 = vsel %vm1380, %v2644, 0
    %v2662 = vsel %vm1380, %v2645, 0
    %v2665 = vsel %vm1380, %v2646, 0
    %v2668 = vsel %vm1380, %v2648, 0
    %v2671 = vsel %vm1380, %v2650, 0
    %v2674 = vsel %vm1380, %v2652, 0
    %v2677 = vsel %vm1380, %v2654, 0
    %2679 = vmatpush.bf16.xpose.msra.mxu0 0
    %2680 = vmatpush.bf16.xpose.msra.mxu0 0
    %2681 = vmatpush.bf16.xpose.msra.mxu0 0
    %2682 = vmatpush.bf16.xpose.msra.mxu0 0
    %2683 = vmatpush.bf16.xpose.msra.mxu0 %v2677
    %2684 = vmatpush.bf16.xpose.msra.mxu0 %v2674
    %2685 = vmatpush.bf16.xpose.msra.mxu0 %v2671
    %2686 = vmatpush.bf16.xpose.msra.mxu0 %v2668
    %2687 = vmatmul.bf16.gmra.mxu0 %v2656
    %v2688 = vpop.f32.mrf.mxu0
    %v2689 = vadd.f32 0.0, %v2688
    %v2690 = vpop.f32.mrf.mxu0
    %v2691 = vadd.f32 0.0, %v2690
    %2692 = vmatmul.bf16.gmra.mxu0 %v2659
    %v2693 = vpop.f32.mrf.mxu0
    %v2694 = vadd.f32 0.0, %v2693
    %v2695 = vpop.f32.mrf.mxu0
    %v2696 = vadd.f32 0.0, %v2695
    %2697 = vmatmul.bf16.gmra.mxu0 %v2662
    %v2698 = vpop.f32.mrf.mxu0
    %v2699 = vadd.f32 0.0, %v2698
    %v2700 = vpop.f32.mrf.mxu0
    %v2701 = vadd.f32 0.0, %v2700
    %2702 = vmatmul.bf16.gmra.mxu0 %v2665
    %v2703 = vpop.f32.mrf.mxu0
    %v2704 = vadd.f32 0.0, %v2703
    %v2705 = vpop.f32.mrf.mxu0
    %v2706 = vadd.f32 0.0, %v2705
    %2707 = vdwg.mxu0
    %v2716 = vunpack.c.l.b16 %v2457
    %v2717 = vunpack.c.l.b16 %v2458
    %v2718 = vunpack.c.l.b16 %v2459
    %v2719 = vunpack.c.l.b16 %v2460
    %v2720 = vunpack.c.l.b16 %v2461
    %v2721 = vunpack.c.l.b16 %v2462
    %v2722 = vunpack.c.l.b16 %v2463
    %v2723 = vunpack.c.l.b16 %v2464
    %v2724 = vpack.c.b16 %v2717, %v2716
    %v2725 = vpack.c.b16 %v2719, %v2718
    %v2726 = vpack.c.b16 %v2721, %v2720
    %v2727 = vpack.c.b16 %v2723, %v2722
    %2728 = vrot.lane.b32.xlu0 %v2724, 96
    %v2729 = vpop.permute.xlu0 %2728
    %2730 = vrot.lane.b32.xlu0 %v2725, 96
    %v2731 = vpop.permute.xlu0 %2730
    %2732 = vrot.lane.b32.xlu0 %v2726, 96
    %v2733 = vpop.permute.xlu0 %2732
    %2734 = vrot.lane.b32.xlu0 %v2727, 96
    %v2735 = vpop.permute.xlu0 %2734
    %v2737 = vsel %vm1380, %v2724, 0
    %v2740 = vsel %vm1380, %v2725, 0
    %v2743 = vsel %vm1380, %v2726, 0
    %v2746 = vsel %vm1380, %v2727, 0
    %v2749 = vsel %vm1380, %v2729, 0
    %v2752 = vsel %vm1380, %v2731, 0
    %v2755 = vsel %vm1380, %v2733, 0
    %v2758 = vsel %vm1380, %v2735, 0
    %2760 = vmatpush.bf16.xpose.msra.mxu0 0
    %2761 = vmatpush.bf16.xpose.msra.mxu0 0
    %2762 = vmatpush.bf16.xpose.msra.mxu0 0
    %2763 = vmatpush.bf16.xpose.msra.mxu0 0
    %2764 = vmatpush.bf16.xpose.msra.mxu0 %v2758
    %2765 = vmatpush.bf16.xpose.msra.mxu0 %v2755
    %2766 = vmatpush.bf16.xpose.msra.mxu0 %v2752
    %2767 = vmatpush.bf16.xpose.msra.mxu0 %v2749
    %2768 = vmatmul.bf16.gmra.mxu0 %v2737
    %v2769 = vpop.f32.mrf.mxu0
    %v2770 = vadd.f32 0.0, %v2769
    %v2771 = vpop.f32.mrf.mxu0
    %v2772 = vadd.f32 0.0, %v2771
    %2773 = vmatmul.bf16.gmra.mxu0 %v2740
    %v2774 = vpop.f32.mrf.mxu0
    %v2775 = vadd.f32 0.0, %v2774
    %v2776 = vpop.f32.mrf.mxu0
    %v2777 = vadd.f32 0.0, %v2776
    %2778 = vmatmul.bf16.gmra.mxu0 %v2743
    %v2779 = vpop.f32.mrf.mxu0
    %v2780 = vadd.f32 0.0, %v2779
    %v2781 = vpop.f32.mrf.mxu0
    %v2782 = vadd.f32 0.0, %v2781
    %2783 = vmatmul.bf16.gmra.mxu0 %v2746
    %v2784 = vpop.f32.mrf.mxu0
    %v2785 = vadd.f32 0.0, %v2784
    %v2786 = vpop.f32.mrf.mxu0
    %v2787 = vadd.f32 0.0, %v2786
    %2788 = vdwg.mxu0
    %v2789 = vsel %vm633, %v2527, -inf
    %2790 = vmax.xlane.f32.xlu0 %v2789
    %v2791 = vpop.xlane.xlu0 %2790
    %v2792 = vsel %vm633, %v2529, -inf
    %2793 = vmax.xlane.f32.xlu0 %v2792
    %v2794 = vpop.xlane.xlu0 %2793
    %v2795 = vsel %vm633, %v2532, -inf
    %2796 = vmax.xlane.f32.xlu0 %v2795
    %v2797 = vpop.xlane.xlu0 %2796
    %v2798 = vsel %vm633, %v2534, -inf
    %2799 = vmax.xlane.f32.xlu0 %v2798
    %v2800 = vpop.xlane.xlu0 %2799
    %v2801 = vsel %vm633, %v2537, -inf
    %2802 = vmax.xlane.f32.xlu0 %v2801
    %v2803 = vpop.xlane.xlu0 %2802
    %v2804 = vsel %vm633, %v2539, -inf
    %2805 = vmax.xlane.f32.xlu0 %v2804
    %v2806 = vpop.xlane.xlu0 %2805
    %v2807 = vsel %vm633, %v2542, -inf
    %2808 = vmax.xlane.f32.xlu0 %v2807
    %v2809 = vpop.xlane.xlu0 %2808
    %v2810 = vsel %vm633, %v2544, -inf
    %2811 = vmax.xlane.f32.xlu0 %v2810
    %v2812 = vpop.xlane.xlu0 %2811
    %v2813 = vsel %vm633, %v2608, -inf
    %2814 = vmax.xlane.f32.xlu0 %v2813
    %v2815 = vpop.xlane.xlu0 %2814
    %v2816 = vsel %vm633, %v2610, -inf
    %2817 = vmax.xlane.f32.xlu0 %v2816
    %v2818 = vpop.xlane.xlu0 %2817
    %v2819 = vsel %vm633, %v2613, -inf
    %2820 = vmax.xlane.f32.xlu0 %v2819
    %v2821 = vpop.xlane.xlu0 %2820
    %v2822 = vsel %vm633, %v2615, -inf
    %2823 = vmax.xlane.f32.xlu0 %v2822
    %v2824 = vpop.xlane.xlu0 %2823
    %v2825 = vsel %vm633, %v2618, -inf
    %2826 = vmax.xlane.f32.xlu0 %v2825
    %v2827 = vpop.xlane.xlu0 %2826
    %v2828 = vsel %vm633, %v2620, -inf
    %2829 = vmax.xlane.f32.xlu0 %v2828
    %v2830 = vpop.xlane.xlu0 %2829
    %v2831 = vsel %vm633, %v2623, -inf
    %2832 = vmax.xlane.f32.xlu0 %v2831
    %v2833 = vpop.xlane.xlu0 %2832
    %v2834 = vsel %vm633, %v2625, -inf
    %2835 = vmax.xlane.f32.xlu0 %v2834
    %v2836 = vpop.xlane.xlu0 %2835
    %v2837 = vsel %vm633, %v2689, -inf
    %2838 = vmax.xlane.f32.xlu0 %v2837
    %v2839 = vpop.xlane.xlu0 %2838
    %v2840 = vsel %vm633, %v2691, -inf
    %2841 = vmax.xlane.f32.xlu0 %v2840
    %v2842 = vpop.xlane.xlu0 %2841
    %v2843 = vsel %vm633, %v2694, -inf
    %2844 = vmax.xlane.f32.xlu0 %v2843
    %v2845 = vpop.xlane.xlu0 %2844
    %v2846 = vsel %vm633, %v2696, -inf
    %2847 = vmax.xlane.f32.xlu0 %v2846
    %v2848 = vpop.xlane.xlu0 %2847
    %v2849 = vsel %vm633, %v2699, -inf
    %2850 = vmax.xlane.f32.xlu0 %v2849
    %v2851 = vpop.xlane.xlu0 %2850
    %v2852 = vsel %vm633, %v2701, -inf
    %2853 = vmax.xlane.f32.xlu0 %v2852
    %v2854 = vpop.xlane.xlu0 %2853
    %v2855 = vsel %vm633, %v2704, -inf
    %2856 = vmax.xlane.f32.xlu0 %v2855
    %v2857 = vpop.xlane.xlu0 %2856
    %v2858 = vsel %vm633, %v2706, -inf
    %2859 = vmax.xlane.f32.xlu0 %v2858
    %v2860 = vpop.xlane.xlu0 %2859
    %v2861 = vsel %vm633, %v2770, -inf
    %2862 = vmax.xlane.f32.xlu0 %v2861
    %v2863 = vpop.xlane.xlu0 %2862
    %v2864 = vsel %vm633, %v2772, -inf
    %2865 = vmax.xlane.f32.xlu0 %v2864
    %v2866 = vpop.xlane.xlu0 %2865
    %v2867 = vsel %vm633, %v2775, -inf
    %2868 = vmax.xlane.f32.xlu0 %v2867
    %v2869 = vpop.xlane.xlu0 %2868
    %v2870 = vsel %vm633, %v2777, -inf
    %2871 = vmax.xlane.f32.xlu0 %v2870
    %v2872 = vpop.xlane.xlu0 %2871
    %v2873 = vsel %vm633, %v2780, -inf
    %2874 = vmax.xlane.f32.xlu0 %v2873
    %v2875 = vpop.xlane.xlu0 %2874
    %v2876 = vsel %vm633, %v2782, -inf
    %2877 = vmax.xlane.f32.xlu0 %v2876
    %v2878 = vpop.xlane.xlu0 %2877
    %v2879 = vsel %vm633, %v2785, -inf
    %2880 = vmax.xlane.f32.xlu0 %v2879
    %v2881 = vpop.xlane.xlu0 %2880
    %v2882 = vsel %vm633, %v2787, -inf
    %2883 = vmax.xlane.f32.xlu0 %v2882
    %v2884 = vpop.xlane.xlu0 %2883
    %v2885 = vsub.f32 %v2527, %v2791
    %v2886 = vsub.f32 %v2529, %v2794
    %v2887 = vsub.f32 %v2532, %v2797
    %v2888 = vsub.f32 %v2534, %v2800
    %v2889 = vsub.f32 %v2537, %v2803
    %v2890 = vsub.f32 %v2539, %v2806
    %v2891 = vsub.f32 %v2542, %v2809
    %v2892 = vsub.f32 %v2544, %v2812
    %v2893 = vsub.f32 %v2608, %v2815
    %v2894 = vsub.f32 %v2610, %v2818
    %v2895 = vsub.f32 %v2613, %v2821
    %v2896 = vsub.f32 %v2615, %v2824
    %v2897 = vsub.f32 %v2618, %v2827
    %v2898 = vsub.f32 %v2620, %v2830
    %v2899 = vsub.f32 %v2623, %v2833
    %v2900 = vsub.f32 %v2625, %v2836
    %v2901 = vsub.f32 %v2689, %v2839
    %v2902 = vsub.f32 %v2691, %v2842
    %v2903 = vsub.f32 %v2694, %v2845
    %v2904 = vsub.f32 %v2696, %v2848
    %v2905 = vsub.f32 %v2699, %v2851
    %v2906 = vsub.f32 %v2701, %v2854
    %v2907 = vsub.f32 %v2704, %v2857
    %v2908 = vsub.f32 %v2706, %v2860
    %v2909 = vsub.f32 %v2770, %v2863
    %v2910 = vsub.f32 %v2772, %v2866
    %v2911 = vsub.f32 %v2775, %v2869
    %v2912 = vsub.f32 %v2777, %v2872
    %v2913 = vsub.f32 %v2780, %v2875
    %v2914 = vsub.f32 %v2782, %v2878
    %v2915 = vsub.f32 %v2785, %v2881
    %v2916 = vsub.f32 %v2787, %v2884
    %v2917 = vmul.f32 %v2885, 1.442695
    %v2918 = vpow.pop %v2917
    %v2919 = vmul.f32 %v2886, 1.442695
    %v2920 = vpow.pop %v2919
    %v2921 = vmul.f32 %v2887, 1.442695
    %v2922 = vpow.pop %v2921
    %v2923 = vmul.f32 %v2888, 1.442695
    %v2924 = vpow.pop %v2923
    %v2925 = vmul.f32 %v2889, 1.442695
    %v2926 = vpow.pop %v2925
    %v2927 = vmul.f32 %v2890, 1.442695
    %v2928 = vpow.pop %v2927
    %v2929 = vmul.f32 %v2891, 1.442695
    %v2930 = vpow.pop %v2929
    %v2931 = vmul.f32 %v2892, 1.442695
    %v2932 = vpow.pop %v2931
    %v2933 = vmul.f32 %v2893, 1.442695
    %v2934 = vpow.pop %v2933
    %v2935 = vmul.f32 %v2894, 1.442695
    %v2936 = vpow.pop %v2935
    %v2937 = vmul.f32 %v2895, 1.442695
    %v2938 = vpow.pop %v2937
    %v2939 = vmul.f32 %v2896, 1.442695
    %v2940 = vpow.pop %v2939
    %v2941 = vmul.f32 %v2897, 1.442695
    %v2942 = vpow.pop %v2941
    %v2943 = vmul.f32 %v2898, 1.442695
    %v2944 = vpow.pop %v2943
    %v2945 = vmul.f32 %v2899, 1.442695
    %v2946 = vpow.pop %v2945
    %v2947 = vmul.f32 %v2900, 1.442695
    %v2948 = vpow.pop %v2947
    %v2949 = vmul.f32 %v2901, 1.442695
    %v2950 = vpow.pop %v2949
    %v2951 = vmul.f32 %v2902, 1.442695
    %v2952 = vpow.pop %v2951
    %v2953 = vmul.f32 %v2903, 1.442695
    %v2954 = vpow.pop %v2953
    %v2955 = vmul.f32 %v2904, 1.442695
    %v2956 = vpow.pop %v2955
    %v2957 = vmul.f32 %v2905, 1.442695
    %v2958 = vpow.pop %v2957
    %v2959 = vmul.f32 %v2906, 1.442695
    %v2960 = vpow.pop %v2959
    %v2961 = vmul.f32 %v2907, 1.442695
    %v2962 = vpow.pop %v2961
    %v2963 = vmul.f32 %v2908, 1.442695
    %v2964 = vpow.pop %v2963
    %v2965 = vmul.f32 %v2909, 1.442695
    %v2966 = vpow.pop %v2965
    %v2967 = vmul.f32 %v2910, 1.442695
    %v2968 = vpow.pop %v2967
    %v2969 = vmul.f32 %v2911, 1.442695
    %v2970 = vpow.pop %v2969
    %v2971 = vmul.f32 %v2912, 1.442695
    %v2972 = vpow.pop %v2971
    %v2973 = vmul.f32 %v2913, 1.442695
    %v2974 = vpow.pop %v2973
    %v2975 = vmul.f32 %v2914, 1.442695
    %v2976 = vpow.pop %v2975
    %v2977 = vmul.f32 %v2915, 1.442695
    %v2978 = vpow.pop %v2977
    %v2979 = vmul.f32 %v2916, 1.442695
    %v2980 = vpow.pop %v2979
    %v2981 = vsel %vm633, %v2918, 0.0
    %2982 = vadd.xlane.f32.xlu0 %v2981
    %v2983 = vpop.xlane.xlu0 %2982
    %v2984 = vsel %vm633, %v2920, 0.0
    %2985 = vadd.xlane.f32.xlu0 %v2984
    %v2986 = vpop.xlane.xlu0 %2985
    %v2987 = vsel %vm633, %v2922, 0.0
    %2988 = vadd.xlane.f32.xlu0 %v2987
    %v2989 = vpop.xlane.xlu0 %2988
    %v2990 = vsel %vm633, %v2924, 0.0
    %2991 = vadd.xlane.f32.xlu0 %v2990
    %v2992 = vpop.xlane.xlu0 %2991
    %v2993 = vsel %vm633, %v2926, 0.0
    %2994 = vadd.xlane.f32.xlu0 %v2993
    %v2995 = vpop.xlane.xlu0 %2994
    %v2996 = vsel %vm633, %v2928, 0.0
    %2997 = vadd.xlane.f32.xlu0 %v2996
    %v2998 = vpop.xlane.xlu0 %2997
    %v2999 = vsel %vm633, %v2930, 0.0
    %3000 = vadd.xlane.f32.xlu0 %v2999
    %v3001 = vpop.xlane.xlu0 %3000
    %v3002 = vsel %vm633, %v2932, 0.0
    %3003 = vadd.xlane.f32.xlu0 %v3002
    %v3004 = vpop.xlane.xlu0 %3003
    %v3005 = vsel %vm633, %v2934, 0.0
    %3006 = vadd.xlane.f32.xlu0 %v3005
    %v3007 = vpop.xlane.xlu0 %3006
    %v3008 = vsel %vm633, %v2936, 0.0
    %3009 = vadd.xlane.f32.xlu0 %v3008
    %v3010 = vpop.xlane.xlu0 %3009
    %v3011 = vsel %vm633, %v2938, 0.0
    %3012 = vadd.xlane.f32.xlu0 %v3011
    %v3013 = vpop.xlane.xlu0 %3012
    %v3014 = vsel %vm633, %v2940, 0.0
    %3015 = vadd.xlane.f32.xlu0 %v3014
    %v3016 = vpop.xlane.xlu0 %3015
    %v3017 = vsel %vm633, %v2942, 0.0
    %3018 = vadd.xlane.f32.xlu0 %v3017
    %v3019 = vpop.xlane.xlu0 %3018
    %v3020 = vsel %vm633, %v2944, 0.0
    %3021 = vadd.xlane.f32.xlu0 %v3020
    %v3022 = vpop.xlane.xlu0 %3021
    %v3023 = vsel %vm633, %v2946, 0.0
    %3024 = vadd.xlane.f32.xlu0 %v3023
    %v3025 = vpop.xlane.xlu0 %3024
    %v3026 = vsel %vm633, %v2948, 0.0
    %3027 = vadd.xlane.f32.xlu0 %v3026
    %v3028 = vpop.xlane.xlu0 %3027
    %v3029 = vsel %vm633, %v2950, 0.0
    %3030 = vadd.xlane.f32.xlu0 %v3029
    %v3031 = vpop.xlane.xlu0 %3030
    %v3032 = vsel %vm633, %v2952, 0.0
    %3033 = vadd.xlane.f32.xlu0 %v3032
    %v3034 = vpop.xlane.xlu0 %3033
    %v3035 = vsel %vm633, %v2954, 0.0
    %3036 = vadd.xlane.f32.xlu0 %v3035
    %v3037 = vpop.xlane.xlu0 %3036
    %v3038 = vsel %vm633, %v2956, 0.0
    %3039 = vadd.xlane.f32.xlu0 %v3038
    %v3040 = vpop.xlane.xlu0 %3039
    %v3041 = vsel %vm633, %v2958, 0.0
    %3042 = vadd.xlane.f32.xlu0 %v3041
    %v3043 = vpop.xlane.xlu0 %3042
    %v3044 = vsel %vm633, %v2960, 0.0
    %3045 = vadd.xlane.f32.xlu0 %v3044
    %v3046 = vpop.xlane.xlu0 %3045
    %v3047 = vsel %vm633, %v2962, 0.0
    %3048 = vadd.xlane.f32.xlu0 %v3047
    %v3049 = vpop.xlane.xlu0 %3048
    %v3050 = vsel %vm633, %v2964, 0.0
    %3051 = vadd.xlane.f32.xlu0 %v3050
    %v3052 = vpop.xlane.xlu0 %3051
    %v3053 = vsel %vm633, %v2966, 0.0
    %3054 = vadd.xlane.f32.xlu0 %v3053
    %v3055 = vpop.xlane.xlu0 %3054
    %v3056 = vsel %vm633, %v2968, 0.0
    %3057 = vadd.xlane.f32.xlu0 %v3056
    %v3058 = vpop.xlane.xlu0 %3057
    %v3059 = vsel %vm633, %v2970, 0.0
    %3060 = vadd.xlane.f32.xlu0 %v3059
    %v3061 = vpop.xlane.xlu0 %3060
    %v3062 = vsel %vm633, %v2972, 0.0
    %3063 = vadd.xlane.f32.xlu0 %v3062
    %v3064 = vpop.xlane.xlu0 %3063
    %v3065 = vsel %vm633, %v2974, 0.0
    %3066 = vadd.xlane.f32.xlu0 %v3065
    %v3067 = vpop.xlane.xlu0 %3066
    %v3068 = vsel %vm633, %v2976, 0.0
    %3069 = vadd.xlane.f32.xlu0 %v3068
    %v3070 = vpop.xlane.xlu0 %3069
    %v3071 = vsel %vm633, %v2978, 0.0
    %3072 = vadd.xlane.f32.xlu0 %v3071
    %v3073 = vpop.xlane.xlu0 %3072
    %v3074 = vsel %vm633, %v2980, 0.0
    %3075 = vadd.xlane.f32.xlu0 %v3074
    %v3076 = vpop.xlane.xlu0 %3075
    %v3077 = vpack.c.bf16 %v2918, %v2918
    %v3078 = vpack.c.bf16 %v2920, %v2920
    %v3079 = vpack.c.bf16 %v2922, %v2922
    %v3080 = vpack.c.bf16 %v2924, %v2924
    %v3081 = vpack.c.bf16 %v2926, %v2926
    %v3082 = vpack.c.bf16 %v2928, %v2928
    %v3083 = vpack.c.bf16 %v2930, %v2930
    %v3084 = vpack.c.bf16 %v2932, %v2932
    %v3085 = vpack.c.bf16 %v2934, %v2934
    %v3086 = vpack.c.bf16 %v2936, %v2936
    %v3087 = vpack.c.bf16 %v2938, %v2938
    %v3088 = vpack.c.bf16 %v2940, %v2940
    %v3089 = vpack.c.bf16 %v2942, %v2942
    %v3090 = vpack.c.bf16 %v2944, %v2944
    %v3091 = vpack.c.bf16 %v2946, %v2946
    %v3092 = vpack.c.bf16 %v2948, %v2948
    %v3093 = vpack.c.bf16 %v2950, %v2950
    %v3094 = vpack.c.bf16 %v2952, %v2952
    %v3095 = vpack.c.bf16 %v2954, %v2954
    %v3096 = vpack.c.bf16 %v2956, %v2956
    %v3097 = vpack.c.bf16 %v2958, %v2958
    %v3098 = vpack.c.bf16 %v2960, %v2960
    %v3099 = vpack.c.bf16 %v2962, %v2962
    %v3100 = vpack.c.bf16 %v2964, %v2964
    %v3101 = vpack.c.bf16 %v2966, %v2966
    %v3102 = vpack.c.bf16 %v2968, %v2968
    %v3103 = vpack.c.bf16 %v2970, %v2970
    %v3104 = vpack.c.bf16 %v2972, %v2972
    %v3105 = vpack.c.bf16 %v2974, %v2974
    %v3106 = vpack.c.bf16 %v2976, %v2976
    %v3107 = vpack.c.bf16 %v2978, %v2978
    %v3108 = vpack.c.bf16 %v2980, %v2980
    %v3117 = vunpack.c.l.b16 %v3077
    %v3118 = vunpack.c.l.b16 %v3078
    %v3119 = vunpack.c.l.b16 %v3079
    %v3120 = vunpack.c.l.b16 %v3080
    %v3121 = vunpack.c.l.b16 %v3081
    %v3122 = vunpack.c.l.b16 %v3082
    %v3123 = vunpack.c.l.b16 %v3083
    %v3124 = vunpack.c.l.b16 %v3084
    %v3125 = vpack.c.b16 %v3118, %v3117
    %v3126 = vpack.c.b16 %v3120, %v3119
    %v3127 = vpack.c.b16 %v3122, %v3121
    %v3128 = vpack.c.b16 %v3124, %v3123
    %3129 = vrot.lane.b32.xlu0 %v2481, 64
    %v3130 = vpop.permute.xlu0 %3129
    %3131 = vrot.lane.b32.xlu0 %v2482, 64
    %v3132 = vpop.permute.xlu0 %3131
    %3133 = vrot.lane.b32.xlu0 %v2483, 64
    %v3134 = vpop.permute.xlu0 %3133
    %3135 = vrot.lane.b32.xlu0 %v2484, 64
    %v3136 = vpop.permute.xlu0 %3135
    %v3142 = vsel %vm633, %v3125, 0
    %v3145 = vsel %vm633, %v3126, 0
    %v3148 = vsel %vm633, %v3127, 0
    %v3151 = vsel %vm633, %v3128, 0
    %3153 = vmatpush.bf16.msra.mxu0 0
    %3154 = vmatpush.bf16.msra.mxu0 0
    %3155 = vmatpush.bf16.msra.mxu0 0
    %3156 = vmatpush.bf16.msra.mxu0 0
    %3157 = vmatpush.bf16.msra.mxu0 %v3136
    %3158 = vmatpush.bf16.msra.mxu0 %v3134
    %3159 = vmatpush.bf16.msra.mxu0 %v3132
    %3160 = vmatpush.bf16.msra.mxu0 %v3130
    %3161 = vmatmul.bf16.gmra.mxu0 %v3142
    %v3162 = vpop.f32.mrf.mxu0
    %v3163 = vadd.f32 0.0, %v3162
    %v3164 = vpop.f32.mrf.mxu0
    %v3165 = vadd.f32 0.0, %v3164
    %3166 = vmatmul.bf16.gmra.mxu0 %v3145
    %v3167 = vpop.f32.mrf.mxu0
    %v3168 = vadd.f32 0.0, %v3167
    %v3169 = vpop.f32.mrf.mxu0
    %v3170 = vadd.f32 0.0, %v3169
    %3171 = vmatmul.bf16.gmra.mxu0 %v3148
    %v3172 = vpop.f32.mrf.mxu0
    %v3173 = vadd.f32 0.0, %v3172
    %v3174 = vpop.f32.mrf.mxu0
    %v3175 = vadd.f32 0.0, %v3174
    %3176 = vmatmul.bf16.gmra.mxu0 %v3151
    %v3177 = vpop.f32.mrf.mxu0
    %v3178 = vadd.f32 0.0, %v3177
    %v3179 = vpop.f32.mrf.mxu0
    %v3180 = vadd.f32 0.0, %v3179
    %3181 = vdwg.mxu0
    %v3190 = vunpack.c.l.b16 %v3085
    %v3191 = vunpack.c.l.b16 %v3086
    %v3192 = vunpack.c.l.b16 %v3087
    %v3193 = vunpack.c.l.b16 %v3088
    %v3194 = vunpack.c.l.b16 %v3089
    %v3195 = vunpack.c.l.b16 %v3090
    %v3196 = vunpack.c.l.b16 %v3091
    %v3197 = vunpack.c.l.b16 %v3092
    %v3198 = vpack.c.b16 %v3191, %v3190
    %v3199 = vpack.c.b16 %v3193, %v3192
    %v3200 = vpack.c.b16 %v3195, %v3194
    %v3201 = vpack.c.b16 %v3197, %v3196
    %3202 = vrot.lane.b32.xlu0 %v2562, 64
    %v3203 = vpop.permute.xlu0 %3202
    %3204 = vrot.lane.b32.xlu0 %v2563, 64
    %v3205 = vpop.permute.xlu0 %3204
    %3206 = vrot.lane.b32.xlu0 %v2564, 64
    %v3207 = vpop.permute.xlu0 %3206
    %3208 = vrot.lane.b32.xlu0 %v2565, 64
    %v3209 = vpop.permute.xlu0 %3208
    %v3215 = vsel %vm633, %v3198, 0
    %v3218 = vsel %vm633, %v3199, 0
    %v3221 = vsel %vm633, %v3200, 0
    %v3224 = vsel %vm633, %v3201, 0
    %3226 = vmatpush.bf16.msra.mxu0 0
    %3227 = vmatpush.bf16.msra.mxu0 0
    %3228 = vmatpush.bf16.msra.mxu0 0
    %3229 = vmatpush.bf16.msra.mxu0 0
    %3230 = vmatpush.bf16.msra.mxu0 %v3209
    %3231 = vmatpush.bf16.msra.mxu0 %v3207
    %3232 = vmatpush.bf16.msra.mxu0 %v3205
    %3233 = vmatpush.bf16.msra.mxu0 %v3203
    %3234 = vmatmul.bf16.gmra.mxu0 %v3215
    %v3235 = vpop.f32.mrf.mxu0
    %v3236 = vadd.f32 0.0, %v3235
    %v3237 = vpop.f32.mrf.mxu0
    %v3238 = vadd.f32 0.0, %v3237
    %3239 = vmatmul.bf16.gmra.mxu0 %v3218
    %v3240 = vpop.f32.mrf.mxu0
    %v3241 = vadd.f32 0.0, %v3240
    %v3242 = vpop.f32.mrf.mxu0
    %v3243 = vadd.f32 0.0, %v3242
    %3244 = vmatmul.bf16.gmra.mxu0 %v3221
    %v3245 = vpop.f32.mrf.mxu0
    %v3246 = vadd.f32 0.0, %v3245
    %v3247 = vpop.f32.mrf.mxu0
    %v3248 = vadd.f32 0.0, %v3247
    %3249 = vmatmul.bf16.gmra.mxu0 %v3224
    %v3250 = vpop.f32.mrf.mxu0
    %v3251 = vadd.f32 0.0, %v3250
    %v3252 = vpop.f32.mrf.mxu0
    %v3253 = vadd.f32 0.0, %v3252
    %3254 = vdwg.mxu0
    %v3263 = vunpack.c.l.b16 %v3093
    %v3264 = vunpack.c.l.b16 %v3094
    %v3265 = vunpack.c.l.b16 %v3095
    %v3266 = vunpack.c.l.b16 %v3096
    %v3267 = vunpack.c.l.b16 %v3097
    %v3268 = vunpack.c.l.b16 %v3098
    %v3269 = vunpack.c.l.b16 %v3099
    %v3270 = vunpack.c.l.b16 %v3100
    %v3271 = vpack.c.b16 %v3264, %v3263
    %v3272 = vpack.c.b16 %v3266, %v3265
    %v3273 = vpack.c.b16 %v3268, %v3267
    %v3274 = vpack.c.b16 %v3270, %v3269
    %3275 = vrot.lane.b32.xlu0 %v2643, 64
    %v3276 = vpop.permute.xlu0 %3275
    %3277 = vrot.lane.b32.xlu0 %v2644, 64
    %v3278 = vpop.permute.xlu0 %3277
    %3279 = vrot.lane.b32.xlu0 %v2645, 64
    %v3280 = vpop.permute.xlu0 %3279
    %3281 = vrot.lane.b32.xlu0 %v2646, 64
    %v3282 = vpop.permute.xlu0 %3281
    %v3288 = vsel %vm633, %v3271, 0
    %v3291 = vsel %vm633, %v3272, 0
    %v3294 = vsel %vm633, %v3273, 0
    %v3297 = vsel %vm633, %v3274, 0
    %3299 = vmatpush.bf16.msra.mxu0 0
    %3300 = vmatpush.bf16.msra.mxu0 0
    %3301 = vmatpush.bf16.msra.mxu0 0
    %3302 = vmatpush.bf16.msra.mxu0 0
    %3303 = vmatpush.bf16.msra.mxu0 %v3282
    %3304 = vmatpush.bf16.msra.mxu0 %v3280
    %3305 = vmatpush.bf16.msra.mxu0 %v3278
    %3306 = vmatpush.bf16.msra.mxu0 %v3276
    %3307 = vmatmul.bf16.gmra.mxu0 %v3288
    %v3308 = vpop.f32.mrf.mxu0
    %v3309 = vadd.f32 0.0, %v3308
    %v3310 = vpop.f32.mrf.mxu0
    %v3311 = vadd.f32 0.0, %v3310
    %3312 = vmatmul.bf16.gmra.mxu0 %v3291
    %v3313 = vpop.f32.mrf.mxu0
    %v3314 = vadd.f32 0.0, %v3313
    %v3315 = vpop.f32.mrf.mxu0
    %v3316 = vadd.f32 0.0, %v3315
    %3317 = vmatmul.bf16.gmra.mxu0 %v3294
    %v3318 = vpop.f32.mrf.mxu0
    %v3319 = vadd.f32 0.0, %v3318
    %v3320 = vpop.f32.mrf.mxu0
    %v3321 = vadd.f32 0.0, %v3320
    %3322 = vmatmul.bf16.gmra.mxu0 %v3297
    %v3323 = vpop.f32.mrf.mxu0
    %v3324 = vadd.f32 0.0, %v3323
    %v3325 = vpop.f32.mrf.mxu0
    %v3326 = vadd.f32 0.0, %v3325
    %3327 = vdwg.mxu0
    %v3336 = vunpack.c.l.b16 %v3101
    %v3337 = vunpack.c.l.b16 %v3102
    %v3338 = vunpack.c.l.b16 %v3103
    %v3339 = vunpack.c.l.b16 %v3104
    %v3340 = vunpack.c.l.b16 %v3105
    %v3341 = vunpack.c.l.b16 %v3106
    %v3342 = vunpack.c.l.b16 %v3107
    %v3343 = vunpack.c.l.b16 %v3108
    %v3344 = vpack.c.b16 %v3337, %v3336
    %v3345 = vpack.c.b16 %v3339, %v3338
    %v3346 = vpack.c.b16 %v3341, %v3340
    %v3347 = vpack.c.b16 %v3343, %v3342
    %3348 = vrot.lane.b32.xlu0 %v2724, 64
    %v3349 = vpop.permute.xlu0 %3348
    %3350 = vrot.lane.b32.xlu0 %v2725, 64
    %v3351 = vpop.permute.xlu0 %3350
    %3352 = vrot.lane.b32.xlu0 %v2726, 64
    %v3353 = vpop.permute.xlu0 %3352
    %3354 = vrot.lane.b32.xlu0 %v2727, 64
    %v3355 = vpop.permute.xlu0 %3354
    %v3361 = vsel %vm633, %v3344, 0
    %v3364 = vsel %vm633, %v3345, 0
    %v3367 = vsel %vm633, %v3346, 0
    %v3370 = vsel %vm633, %v3347, 0
    %3372 = vmatpush.bf16.msra.mxu0 0
    %3373 = vmatpush.bf16.msra.mxu0 0
    %3374 = vmatpush.bf16.msra.mxu0 0
    %3375 = vmatpush.bf16.msra.mxu0 0
    %3376 = vmatpush.bf16.msra.mxu0 %v3355
    %3377 = vmatpush.bf16.msra.mxu0 %v3353
    %3378 = vmatpush.bf16.msra.mxu0 %v3351
    %3379 = vmatpush.bf16.msra.mxu0 %v3349
    %3380 = vmatmul.bf16.gmra.mxu0 %v3361
    %v3381 = vpop.f32.mrf.mxu0
    %v3382 = vadd.f32 0.0, %v3381
    %v3383 = vpop.f32.mrf.mxu0
    %v3384 = vadd.f32 0.0, %v3383
    %3385 = vmatmul.bf16.gmra.mxu0 %v3364
    %v3386 = vpop.f32.mrf.mxu0
    %v3387 = vadd.f32 0.0, %v3386
    %v3388 = vpop.f32.mrf.mxu0
    %v3389 = vadd.f32 0.0, %v3388
    %3390 = vmatmul.bf16.gmra.mxu0 %v3367
    %v3391 = vpop.f32.mrf.mxu0
    %v3392 = vadd.f32 0.0, %v3391
    %v3393 = vpop.f32.mrf.mxu0
    %v3394 = vadd.f32 0.0, %v3393
    %3395 = vmatmul.bf16.gmra.mxu0 %v3370
    %v3396 = vpop.f32.mrf.mxu0
    %v3397 = vadd.f32 0.0, %v3396
    %v3398 = vpop.f32.mrf.mxu0
    %v3399 = vadd.f32 0.0, %v3398
    %3400 = vdwg.mxu0
    %v3401 = vrcp.pop %v2983
    %v3402 = vrcp.pop %v2986
    %v3403 = vrcp.pop %v2989
    %v3404 = vrcp.pop %v2992
    %v3405 = vrcp.pop %v2995
    %v3406 = vrcp.pop %v2998
    %v3407 = vrcp.pop %v3001
    %v3408 = vrcp.pop %v3004
    %v3409 = vrcp.pop %v3007
    %v3410 = vrcp.pop %v3010
    %v3411 = vrcp.pop %v3013
    %v3412 = vrcp.pop %v3016
    %v3413 = vrcp.pop %v3019
    %v3414 = vrcp.pop %v3022
    %v3415 = vrcp.pop %v3025
    %v3416 = vrcp.pop %v3028
    %v3417 = vrcp.pop %v3031
    %v3418 = vrcp.pop %v3034
    %v3419 = vrcp.pop %v3037
    %v3420 = vrcp.pop %v3040
    %v3421 = vrcp.pop %v3043
    %v3422 = vrcp.pop %v3046
    %v3423 = vrcp.pop %v3049
    %v3424 = vrcp.pop %v3052
    %v3425 = vrcp.pop %v3055
    %v3426 = vrcp.pop %v3058
    %v3427 = vrcp.pop %v3061
    %v3428 = vrcp.pop %v3064
    %v3429 = vrcp.pop %v3067
    %v3430 = vrcp.pop %v3070
    %v3431 = vrcp.pop %v3073
    %v3432 = vrcp.pop %v3076
    %v3433 = vmul.f32 %v3163, %v3401
    %v3434 = vmul.f32 %v3165, %v3402
    %v3435 = vmul.f32 %v3168, %v3403
    %v3436 = vmul.f32 %v3170, %v3404
    %v3437 = vmul.f32 %v3173, %v3405
    %v3438 = vmul.f32 %v3175, %v3406
    %v3439 = vmul.f32 %v3178, %v3407
    %v3440 = vmul.f32 %v3180, %v3408
    %v3441 = vmul.f32 %v3236, %v3409
    %v3442 = vmul.f32 %v3238, %v3410
    %v3443 = vmul.f32 %v3241, %v3411
    %v3444 = vmul.f32 %v3243, %v3412
    %v3445 = vmul.f32 %v3246, %v3413
    %v3446 = vmul.f32 %v3248, %v3414
    %v3447 = vmul.f32 %v3251, %v3415
    %v3448 = vmul.f32 %v3253, %v3416
    %v3449 = vmul.f32 %v3309, %v3417
    %v3450 = vmul.f32 %v3311, %v3418
    %v3451 = vmul.f32 %v3314, %v3419
    %v3452 = vmul.f32 %v3316, %v3420
    %v3453 = vmul.f32 %v3319, %v3421
    %v3454 = vmul.f32 %v3321, %v3422
    %v3455 = vmul.f32 %v3324, %v3423
    %v3456 = vmul.f32 %v3326, %v3424
    %v3457 = vmul.f32 %v3382, %v3425
    %v3458 = vmul.f32 %v3384, %v3426
    %v3459 = vmul.f32 %v3387, %v3427
    %v3460 = vmul.f32 %v3389, %v3428
    %v3461 = vmul.f32 %v3392, %v3429
    %v3462 = vmul.f32 %v3394, %v3430
    %v3463 = vmul.f32 %v3397, %v3431
    %v3464 = vmul.f32 %v3399, %v3432
    %v3465 = vpack.c.bf16 %v2321, %v2321
    %v3466 = vpack.c.bf16 %v2322, %v2322
    %v3467 = vpack.c.bf16 %v2323, %v2323
    %v3468 = vpack.c.bf16 %v2324, %v2324
    %v3469 = vpack.c.bf16 %v2325, %v2325
    %v3470 = vpack.c.bf16 %v2326, %v2326
    %v3471 = vpack.c.bf16 %v2327, %v2327
    %v3472 = vpack.c.bf16 %v2328, %v2328
    %v3473 = vpack.c.bf16 %v3433, %v3433
    %v3474 = vpack.c.bf16 %v3434, %v3434
    %v3475 = vpack.c.bf16 %v3435, %v3435
    %v3476 = vpack.c.bf16 %v3436, %v3436
    %v3477 = vpack.c.bf16 %v3437, %v3437
    %v3478 = vpack.c.bf16 %v3438, %v3438
    %v3479 = vpack.c.bf16 %v3439, %v3439
    %v3480 = vpack.c.bf16 %v3440, %v3440
    %v3481 = vpack.c.bf16 %v2329, %v2329
    %v3482 = vpack.c.bf16 %v2330, %v2330
    %v3483 = vpack.c.bf16 %v2331, %v2331
    %v3484 = vpack.c.bf16 %v2332, %v2332
    %v3485 = vpack.c.bf16 %v2333, %v2333
    %v3486 = vpack.c.bf16 %v2334, %v2334
    %v3487 = vpack.c.bf16 %v2335, %v2335
    %v3488 = vpack.c.bf16 %v2336, %v2336
    %v3489 = vpack.c.bf16 %v3441, %v3441
    %v3490 = vpack.c.bf16 %v3442, %v3442
    %v3491 = vpack.c.bf16 %v3443, %v3443
    %v3492 = vpack.c.bf16 %v3444, %v3444
    %v3493 = vpack.c.bf16 %v3445, %v3445
    %v3494 = vpack.c.bf16 %v3446, %v3446
    %v3495 = vpack.c.bf16 %v3447, %v3447
    %v3496 = vpack.c.bf16 %v3448, %v3448
    %v3497 = vpack.c.bf16 %v2337, %v2337
    %v3498 = vpack.c.bf16 %v2338, %v2338
    %v3499 = vpack.c.bf16 %v2339, %v2339
    %v3500 = vpack.c.bf16 %v2340, %v2340
    %v3501 = vpack.c.bf16 %v2341, %v2341
    %v3502 = vpack.c.bf16 %v2342, %v2342
    %v3503 = vpack.c.bf16 %v2343, %v2343
    %v3504 = vpack.c.bf16 %v2344, %v2344
    %v3505 = vpack.c.bf16 %v3449, %v3449
    %v3506 = vpack.c.bf16 %v3450, %v3450
    %v3507 = vpack.c.bf16 %v3451, %v3451
    %v3508 = vpack.c.bf16 %v3452, %v3452
    %v3509 = vpack.c.bf16 %v3453, %v3453
    %v3510 = vpack.c.bf16 %v3454, %v3454
    %v3511 = vpack.c.bf16 %v3455, %v3455
    %v3512 = vpack.c.bf16 %v3456, %v3456
    %v3513 = vpack.c.bf16 %v2345, %v2345
    %v3514 = vpack.c.bf16 %v2346, %v2346
    %v3515 = vpack.c.bf16 %v2347, %v2347
    %v3516 = vpack.c.bf16 %v2348, %v2348
    %v3517 = vpack.c.bf16 %v2349, %v2349
    %v3518 = vpack.c.bf16 %v2350, %v2350
    %v3519 = vpack.c.bf16 %v2351, %v2351
    %v3520 = vpack.c.bf16 %v2352, %v2352
    %v3521 = vpack.c.bf16 %v3457, %v3457
    %v3522 = vpack.c.bf16 %v3458, %v3458
    %v3523 = vpack.c.bf16 %v3459, %v3459
    %v3524 = vpack.c.bf16 %v3460, %v3460
    %v3525 = vpack.c.bf16 %v3461, %v3461
    %v3526 = vpack.c.bf16 %v3462, %v3462
    %v3527 = vpack.c.bf16 %v3463, %v3463
    %v3528 = vpack.c.bf16 %v3464, %v3464
    %v3529 = vld [vmem:[#allocation10] sm:$0xf]
    %v3530 = vld [vmem:[#allocation10 + $0x4] sm:$0xf]
    %v3531 = vld [vmem:[#allocation10 + $0x8] sm:$0xf]
    %v3532 = vld [vmem:[#allocation10 + $0xc] sm:$0xf]
    %v3549 = vunpack.c.l.b16 %v3465
    %v3550 = vunpack.c.l.b16 %v3466
    %v3551 = vunpack.c.l.b16 %v3467
    %v3552 = vunpack.c.l.b16 %v3468
    %v3553 = vunpack.c.l.b16 %v3469
    %v3554 = vunpack.c.l.b16 %v3470
    %v3555 = vunpack.c.l.b16 %v3471
    %v3556 = vunpack.c.l.b16 %v3472
    %v3557 = vunpack.c.l.b16 %v3473
    %v3558 = vunpack.c.l.b16 %v3474
    %v3559 = vunpack.c.l.b16 %v3475
    %v3560 = vunpack.c.l.b16 %v3476
    %v3561 = vunpack.c.l.b16 %v3477
    %v3562 = vunpack.c.l.b16 %v3478
    %v3563 = vunpack.c.l.b16 %v3479
    %v3564 = vunpack.c.l.b16 %v3480
    %v3565 = vpack.c.b16 %v3550, %v3549
    %v3566 = vpack.c.b16 %v3552, %v3551
    %v3567 = vpack.c.b16 %v3554, %v3553
    %v3568 = vpack.c.b16 %v3556, %v3555
    %v3569 = vpack.c.b16 %v3558, %v3557
    %v3570 = vpack.c.b16 %v3560, %v3559
    %v3571 = vpack.c.b16 %v3562, %v3561
    %v3572 = vpack.c.b16 %v3564, %v3563
    %v3574 = vsel %vm1380, %v3565, 0
    %v3577 = vsel %vm1380, %v3566, 0
    %v3580 = vsel %vm1380, %v3567, 0
    %v3583 = vsel %vm1380, %v3568, 0
    %v3586 = vsel %vm1380, %v3569, 0
    %v3589 = vsel %vm1380, %v3570, 0
    %v3592 = vsel %vm1380, %v3571, 0
    %v3595 = vsel %vm1380, %v3572, 0
    %vm3597 = vcmask 1043456
    %v3599 = vsel %vm3597, %v3529, 0
    %3601 = vmatpush.bf16.msra.mxu0 0
    %3602 = vmatpush.bf16.msra.mxu0 0
    %3603 = vmatpush.bf16.msra.mxu0 0
    %3604 = vmatpush.bf16.msra.mxu0 0
    %3605 = vmatpush.bf16.msra.mxu0 0
    %3606 = vmatpush.bf16.msra.mxu0 0
    %3607 = vmatpush.bf16.msra.mxu0 0
    %3608 = vmatpush.bf16.msra.mxu0 %v3599
    %3609 = vmatmul.bf16.gmra.mxu0 %v3574
    %v3610 = vpop.f32.mrf.mxu0
    %v3611 = vadd.f32 0.0, %v3610
    %v3612 = vpop.f32.mrf.mxu0
    %v3613 = vadd.f32 0.0, %v3612
    %3614 = vmatmul.bf16.gmra.mxu0 %v3577
    %v3615 = vpop.f32.mrf.mxu0
    %v3616 = vadd.f32 0.0, %v3615
    %v3617 = vpop.f32.mrf.mxu0
    %v3618 = vadd.f32 0.0, %v3617
    %3619 = vmatmul.bf16.gmra.mxu0 %v3580
    %v3620 = vpop.f32.mrf.mxu0
    %v3621 = vadd.f32 0.0, %v3620
    %v3622 = vpop.f32.mrf.mxu0
    %v3623 = vadd.f32 0.0, %v3622
    %3624 = vmatmul.bf16.gmra.mxu0 %v3583
    %v3625 = vpop.f32.mrf.mxu0
    %v3626 = vadd.f32 0.0, %v3625
    %v3627 = vpop.f32.mrf.mxu0
    %v3628 = vadd.f32 0.0, %v3627
    %3629 = vmatmul.bf16.gmra.mxu0 %v3586
    %v3630 = vpop.f32.mrf.mxu0
    %v3631 = vadd.f32 0.0, %v3630
    %v3632 = vpop.f32.mrf.mxu0
    %v3633 = vadd.f32 0.0, %v3632
    %3634 = vmatmul.bf16.gmra.mxu0 %v3589
    %v3635 = vpop.f32.mrf.mxu0
    %v3636 = vadd.f32 0.0, %v3635
    %v3637 = vpop.f32.mrf.mxu0
    %v3638 = vadd.f32 0.0, %v3637
    %3639 = vmatmul.bf16.gmra.mxu0 %v3592
    %v3640 = vpop.f32.mrf.mxu0
    %v3641 = vadd.f32 0.0, %v3640
    %v3642 = vpop.f32.mrf.mxu0
    %v3643 = vadd.f32 0.0, %v3642
    %3644 = vmatmul.bf16.gmra.mxu0 %v3595
    %v3645 = vpop.f32.mrf.mxu0
    %v3646 = vadd.f32 0.0, %v3645
    %v3647 = vpop.f32.mrf.mxu0
    %v3648 = vadd.f32 0.0, %v3647
    %3649 = vdwg.mxu0
    %v3666 = vunpack.c.l.b16 %v3481
    %v3667 = vunpack.c.l.b16 %v3482
    %v3668 = vunpack.c.l.b16 %v3483
    %v3669 = vunpack.c.l.b16 %v3484
    %v3670 = vunpack.c.l.b16 %v3485
    %v3671 = vunpack.c.l.b16 %v3486
    %v3672 = vunpack.c.l.b16 %v3487
    %v3673 = vunpack.c.l.b16 %v3488
    %v3674 = vunpack.c.l.b16 %v3489
    %v3675 = vunpack.c.l.b16 %v3490
    %v3676 = vunpack.c.l.b16 %v3491
    %v3677 = vunpack.c.l.b16 %v3492
    %v3678 = vunpack.c.l.b16 %v3493
    %v3679 = vunpack.c.l.b16 %v3494
    %v3680 = vunpack.c.l.b16 %v3495
    %v3681 = vunpack.c.l.b16 %v3496
    %v3682 = vpack.c.b16 %v3667, %v3666
    %v3683 = vpack.c.b16 %v3669, %v3668
    %v3684 = vpack.c.b16 %v3671, %v3670
    %v3685 = vpack.c.b16 %v3673, %v3672
    %v3686 = vpack.c.b16 %v3675, %v3674
    %v3687 = vpack.c.b16 %v3677, %v3676
    %v3688 = vpack.c.b16 %v3679, %v3678
    %v3689 = vpack.c.b16 %v3681, %v3680
    %v3691 = vsel %vm1380, %v3682, 0
    %v3694 = vsel %vm1380, %v3683, 0
    %v3697 = vsel %vm1380, %v3684, 0
    %v3700 = vsel %vm1380, %v3685, 0
    %v3703 = vsel %vm1380, %v3686, 0
    %v3706 = vsel %vm1380, %v3687, 0
    %v3709 = vsel %vm1380, %v3688, 0
    %v3712 = vsel %vm1380, %v3689, 0
    %v3715 = vsel %vm3597, %v3530, 0
    %3717 = vmatpush.bf16.msra.mxu0 0
    %3718 = vmatpush.bf16.msra.mxu0 0
    %3719 = vmatpush.bf16.msra.mxu0 0
    %3720 = vmatpush.bf16.msra.mxu0 0
    %3721 = vmatpush.bf16.msra.mxu0 0
    %3722 = vmatpush.bf16.msra.mxu0 0
    %3723 = vmatpush.bf16.msra.mxu0 0
    %3724 = vmatpush.bf16.msra.mxu0 %v3715
    %3725 = vmatmul.bf16.gmra.mxu0 %v3691
    %v3726 = vpop.f32.mrf.mxu0
    %v3727 = vadd.f32 0.0, %v3726
    %v3728 = vpop.f32.mrf.mxu0
    %v3729 = vadd.f32 0.0, %v3728
    %3730 = vmatmul.bf16.gmra.mxu0 %v3694
    %v3731 = vpop.f32.mrf.mxu0
    %v3732 = vadd.f32 0.0, %v3731
    %v3733 = vpop.f32.mrf.mxu0
    %v3734 = vadd.f32 0.0, %v3733
    %3735 = vmatmul.bf16.gmra.mxu0 %v3697
    %v3736 = vpop.f32.mrf.mxu0
    %v3737 = vadd.f32 0.0, %v3736
    %v3738 = vpop.f32.mrf.mxu0
    %v3739 = vadd.f32 0.0, %v3738
    %3740 = vmatmul.bf16.gmra.mxu0 %v3700
    %v3741 = vpop.f32.mrf.mxu0
    %v3742 = vadd.f32 0.0, %v3741
    %v3743 = vpop.f32.mrf.mxu0
    %v3744 = vadd.f32 0.0, %v3743
    %3745 = vmatmul.bf16.gmra.mxu0 %v3703
    %v3746 = vpop.f32.mrf.mxu0
    %v3747 = vadd.f32 0.0, %v3746
    %v3748 = vpop.f32.mrf.mxu0
    %v3749 = vadd.f32 0.0, %v3748
    %3750 = vmatmul.bf16.gmra.mxu0 %v3706
    %v3751 = vpop.f32.mrf.mxu0
    %v3752 = vadd.f32 0.0, %v3751
    %v3753 = vpop.f32.mrf.mxu0
    %v3754 = vadd.f32 0.0, %v3753
    %3755 = vmatmul.bf16.gmra.mxu0 %v3709
    %v3756 = vpop.f32.mrf.mxu0
    %v3757 = vadd.f32 0.0, %v3756
    %v3758 = vpop.f32.mrf.mxu0
    %v3759 = vadd.f32 0.0, %v3758
    %3760 = vmatmul.bf16.gmra.mxu0 %v3712
    %v3761 = vpop.f32.mrf.mxu0
    %v3762 = vadd.f32 0.0, %v3761
    %v3763 = vpop.f32.mrf.mxu0
    %v3764 = vadd.f32 0.0, %v3763
    %3765 = vdwg.mxu0
    %v3782 = vunpack.c.l.b16 %v3497
    %v3783 = vunpack.c.l.b16 %v3498
    %v3784 = vunpack.c.l.b16 %v3499
    %v3785 = vunpack.c.l.b16 %v3500
    %v3786 = vunpack.c.l.b16 %v3501
    %v3787 = vunpack.c.l.b16 %v3502
    %v3788 = vunpack.c.l.b16 %v3503
    %v3789 = vunpack.c.l.b16 %v3504
    %v3790 = vunpack.c.l.b16 %v3505
    %v3791 = vunpack.c.l.b16 %v3506
    %v3792 = vunpack.c.l.b16 %v3507
    %v3793 = vunpack.c.l.b16 %v3508
    %v3794 = vunpack.c.l.b16 %v3509
    %v3795 = vunpack.c.l.b16 %v3510
    %v3796 = vunpack.c.l.b16 %v3511
    %v3797 = vunpack.c.l.b16 %v3512
    %v3798 = vpack.c.b16 %v3783, %v3782
    %v3799 = vpack.c.b16 %v3785, %v3784
    %v3800 = vpack.c.b16 %v3787, %v3786
    %v3801 = vpack.c.b16 %v3789, %v3788
    %v3802 = vpack.c.b16 %v3791, %v3790
    %v3803 = vpack.c.b16 %v3793, %v3792
    %v3804 = vpack.c.b16 %v3795, %v3794
    %v3805 = vpack.c.b16 %v3797, %v3796
    %v3807 = vsel %vm1380, %v3798, 0
    %v3810 = vsel %vm1380, %v3799, 0
    %v3813 = vsel %vm1380, %v3800, 0
    %v3816 = vsel %vm1380, %v3801, 0
    %v3819 = vsel %vm1380, %v3802, 0
    %v3822 = vsel %vm1380, %v3803, 0
    %v3825 = vsel %vm1380, %v3804, 0
    %v3828 = vsel %vm1380, %v3805, 0
    %v3831 = vsel %vm3597, %v3531, 0
    %3833 = vmatpush.bf16.msra.mxu0 0
    %3834 = vmatpush.bf16.msra.mxu0 0
    %3835 = vmatpush.bf16.msra.mxu0 0
    %3836 = vmatpush.bf16.msra.mxu0 0
    %3837 = vmatpush.bf16.msra.mxu0 0
    %3838 = vmatpush.bf16.msra.mxu0 0
    %3839 = vmatpush.bf16.msra.mxu0 0
    %3840 = vmatpush.bf16.msra.mxu0 %v3831
    %3841 = vmatmul.bf16.gmra.mxu0 %v3807
    %v3842 = vpop.f32.mrf.mxu0
    %v3843 = vadd.f32 0.0, %v3842
    %v3844 = vpop.f32.mrf.mxu0
    %v3845 = vadd.f32 0.0, %v3844
    %3846 = vmatmul.bf16.gmra.mxu0 %v3810
    %v3847 = vpop.f32.mrf.mxu0
    %v3848 = vadd.f32 0.0, %v3847
    %v3849 = vpop.f32.mrf.mxu0
    %v3850 = vadd.f32 0.0, %v3849
    %3851 = vmatmul.bf16.gmra.mxu0 %v3813
    %v3852 = vpop.f32.mrf.mxu0
    %v3853 = vadd.f32 0.0, %v3852
    %v3854 = vpop.f32.mrf.mxu0
    %v3855 = vadd.f32 0.0, %v3854
    %3856 = vmatmul.bf16.gmra.mxu0 %v3816
    %v3857 = vpop.f32.mrf.mxu0
    %v3858 = vadd.f32 0.0, %v3857
    %v3859 = vpop.f32.mrf.mxu0
    %v3860 = vadd.f32 0.0, %v3859
    %3861 = vmatmul.bf16.gmra.mxu0 %v3819
    %v3862 = vpop.f32.mrf.mxu0
    %v3863 = vadd.f32 0.0, %v3862
    %v3864 = vpop.f32.mrf.mxu0
    %v3865 = vadd.f32 0.0, %v3864
    %3866 = vmatmul.bf16.gmra.mxu0 %v3822
    %v3867 = vpop.f32.mrf.mxu0
    %v3868 = vadd.f32 0.0, %v3867
    %v3869 = vpop.f32.mrf.mxu0
    %v3870 = vadd.f32 0.0, %v3869
    %3871 = vmatmul.bf16.gmra.mxu0 %v3825
    %v3872 = vpop.f32.mrf.mxu0
    %v3873 = vadd.f32 0.0, %v3872
    %v3874 = vpop.f32.mrf.mxu0
    %v3875 = vadd.f32 0.0, %v3874
    %3876 = vmatmul.bf16.gmra.mxu0 %v3828
    %v3877 = vpop.f32.mrf.mxu0
    %v3878 = vadd.f32 0.0, %v3877
    %v3879 = vpop.f32.mrf.mxu0
    %v3880 = vadd.f32 0.0, %v3879
    %3881 = vdwg.mxu0
    %v3898 = vunpack.c.l.b16 %v3513
    %v3899 = vunpack.c.l.b16 %v3514
    %v3900 = vunpack.c.l.b16 %v3515
    %v3901 = vunpack.c.l.b16 %v3516
    %v3902 = vunpack.c.l.b16 %v3517
    %v3903 = vunpack.c.l.b16 %v3518
    %v3904 = vunpack.c.l.b16 %v3519
    %v3905 = vunpack.c.l.b16 %v3520
    %v3906 = vunpack.c.l.b16 %v3521
    %v3907 = vunpack.c.l.b16 %v3522
    %v3908 = vunpack.c.l.b16 %v3523
    %v3909 = vunpack.c.l.b16 %v3524
    %v3910 = vunpack.c.l.b16 %v3525
    %v3911 = vunpack.c.l.b16 %v3526
    %v3912 = vunpack.c.l.b16 %v3527
    %v3913 = vunpack.c.l.b16 %v3528
    %v3914 = vpack.c.b16 %v3899, %v3898
    %v3915 = vpack.c.b16 %v3901, %v3900
    %v3916 = vpack.c.b16 %v3903, %v3902
    %v3917 = vpack.c.b16 %v3905, %v3904
    %v3918 = vpack.c.b16 %v3907, %v3906
    %v3919 = vpack.c.b16 %v3909, %v3908
    %v3920 = vpack.c.b16 %v3911, %v3910
    %v3921 = vpack.c.b16 %v3913, %v3912
    %v3923 = vsel %vm1380, %v3914, 0
    %v3926 = vsel %vm1380, %v3915, 0
    %v3929 = vsel %vm1380, %v3916, 0
    %v3932 = vsel %vm1380, %v3917, 0
    %v3935 = vsel %vm1380, %v3918, 0
    %v3938 = vsel %vm1380, %v3919, 0
    %v3941 = vsel %vm1380, %v3920, 0
    %v3944 = vsel %vm1380, %v3921, 0
    %v3947 = vsel %vm3597, %v3532, 0
    %3949 = vmatpush.bf16.msra.mxu0 0
    %3950 = vmatpush.bf16.msra.mxu0 0
    %3951 = vmatpush.bf16.msra.mxu0 0
    %3952 = vmatpush.bf16.msra.mxu0 0
    %3953 = vmatpush.bf16.msra.mxu0 0
    %3954 = vmatpush.bf16.msra.mxu0 0
    %3955 = vmatpush.bf16.msra.mxu0 0
    %3956 = vmatpush.bf16.msra.mxu0 %v3947
    %3957 = vmatmul.bf16.gmra.mxu0 %v3923
    %v3958 = vpop.f32.mrf.mxu0
    %v3959 = vadd.f32 0.0, %v3958
    %v3960 = vpop.f32.mrf.mxu0
    %v3961 = vadd.f32 0.0, %v3960
    %3962 = vmatmul.bf16.gmra.mxu0 %v3926
    %v3963 = vpop.f32.mrf.mxu0
    %v3964 = vadd.f32 0.0, %v3963
    %v3965 = vpop.f32.mrf.mxu0
    %v3966 = vadd.f32 0.0, %v3965
    %3967 = vmatmul.bf16.gmra.mxu0 %v3929
    %v3968 = vpop.f32.mrf.mxu0
    %v3969 = vadd.f32 0.0, %v3968
    %v3970 = vpop.f32.mrf.mxu0
    %v3971 = vadd.f32 0.0, %v3970
    %3972 = vmatmul.bf16.gmra.mxu0 %v3932
    %v3973 = vpop.f32.mrf.mxu0
    %v3974 = vadd.f32 0.0, %v3973
    %v3975 = vpop.f32.mrf.mxu0
    %v3976 = vadd.f32 0.0, %v3975
    %3977 = vmatmul.bf16.gmra.mxu0 %v3935
    %v3978 = vpop.f32.mrf.mxu0
    %v3979 = vadd.f32 0.0, %v3978
    %v3980 = vpop.f32.mrf.mxu0
    %v3981 = vadd.f32 0.0, %v3980
    %3982 = vmatmul.bf16.gmra.mxu0 %v3938
    %v3983 = vpop.f32.mrf.mxu0
    %v3984 = vadd.f32 0.0, %v3983
    %v3985 = vpop.f32.mrf.mxu0
    %v3986 = vadd.f32 0.0, %v3985
    %3987 = vmatmul.bf16.gmra.mxu0 %v3941
    %v3988 = vpop.f32.mrf.mxu0
    %v3989 = vadd.f32 0.0, %v3988
    %v3990 = vpop.f32.mrf.mxu0
    %v3991 = vadd.f32 0.0, %v3990
    %3992 = vmatmul.bf16.gmra.mxu0 %v3944
    %v3993 = vpop.f32.mrf.mxu0
    %v3994 = vadd.f32 0.0, %v3993
    %v3995 = vpop.f32.mrf.mxu0
    %v3996 = vadd.f32 0.0, %v3995
    %3997 = vdwg.mxu0
    %v3998 = vsel %vm739, %v3611, 0.0
    %v3999 = vsel %vm739, %v3727, 0.0
    %v4000 = vadd.f32 %v3998, %v3999
    %v4001 = vsel %vm739, %v3843, 0.0
    %v4002 = vadd.f32 %v4000, %v4001
    %v4003 = vsel %vm739, %v3959, 0.0
    %v4004 = vadd.f32 %v4002, %v4003
    %v4005 = vsel %vm739, %v3613, 0.0
    %v4006 = vsel %vm739, %v3729, 0.0
    %v4007 = vadd.f32 %v4005, %v4006
    %v4008 = vsel %vm739, %v3845, 0.0
    %v4009 = vadd.f32 %v4007, %v4008
    %v4010 = vsel %vm739, %v3961, 0.0
    %v4011 = vadd.f32 %v4009, %v4010
    %v4012 = vsel %vm739, %v3616, 0.0
    %v4013 = vsel %vm739, %v3732, 0.0
    %v4014 = vadd.f32 %v4012, %v4013
    %v4015 = vsel %vm739, %v3848, 0.0
    %v4016 = vadd.f32 %v4014, %v4015
    %v4017 = vsel %vm739, %v3964, 0.0
    %v4018 = vadd.f32 %v4016, %v4017
    %v4019 = vsel %vm739, %v3618, 0.0
    %v4020 = vsel %vm739, %v3734, 0.0
    %v4021 = vadd.f32 %v4019, %v4020
    %v4022 = vsel %vm739, %v3850, 0.0
    %v4023 = vadd.f32 %v4021, %v4022
    %v4024 = vsel %vm739, %v3966, 0.0
    %v4025 = vadd.f32 %v4023, %v4024
    %v4026 = vsel %vm739, %v3621, 0.0
    %v4027 = vsel %vm739, %v3737, 0.0
    %v4028 = vadd.f32 %v4026, %v4027
    %v4029 = vsel %vm739, %v3853, 0.0
    %v4030 = vadd.f32 %v4028, %v4029
    %v4031 = vsel %vm739, %v3969, 0.0
    %v4032 = vadd.f32 %v4030, %v4031
    %v4033 = vsel %vm739, %v3623, 0.0
    %v4034 = vsel %vm739, %v3739, 0.0
    %v4035 = vadd.f32 %v4033, %v4034
    %v4036 = vsel %vm739, %v3855, 0.0
    %v4037 = vadd.f32 %v4035, %v4036
    %v4038 = vsel %vm739, %v3971, 0.0
    %v4039 = vadd.f32 %v4037, %v4038
    %v4040 = vsel %vm739, %v3626, 0.0
    %v4041 = vsel %vm739, %v3742, 0.0
    %v4042 = vadd.f32 %v4040, %v4041
    %v4043 = vsel %vm739, %v3858, 0.0
    %v4044 = vadd.f32 %v4042, %v4043
    %v4045 = vsel %vm739, %v3974, 0.0
    %v4046 = vadd.f32 %v4044, %v4045
    %v4047 = vsel %vm739, %v3628, 0.0
    %v4048 = vsel %vm739, %v3744, 0.0
    %v4049 = vadd.f32 %v4047, %v4048
    %v4050 = vsel %vm739, %v3860, 0.0
    %v4051 = vadd.f32 %v4049, %v4050
    %v4052 = vsel %vm739, %v3976, 0.0
    %v4053 = vadd.f32 %v4051, %v4052
    %v4054 = vsel %vm739, %v3631, 0.0
    %v4055 = vsel %vm739, %v3747, 0.0
    %v4056 = vadd.f32 %v4054, %v4055
    %v4057 = vsel %vm739, %v3863, 0.0
    %v4058 = vadd.f32 %v4056, %v4057
    %v4059 = vsel %vm739, %v3979, 0.0
    %v4060 = vadd.f32 %v4058, %v4059
    %v4061 = vsel %vm739, %v3633, 0.0
    %v4062 = vsel %vm739, %v3749, 0.0
    %v4063 = vadd.f32 %v4061, %v4062
    %v4064 = vsel %vm739, %v3865, 0.0
    %v4065 = vadd.f32 %v4063, %v4064
    %v4066 = vsel %vm739, %v3981, 0.0
    %v4067 = vadd.f32 %v4065, %v4066
    %v4068 = vsel %vm739, %v3636, 0.0
    %v4069 = vsel %vm739, %v3752, 0.0
    %v4070 = vadd.f32 %v4068, %v4069
    %v4071 = vsel %vm739, %v3868, 0.0
    %v4072 = vadd.f32 %v4070, %v4071
    %v4073 = vsel %vm739, %v3984, 0.0
    %v4074 = vadd.f32 %v4072, %v4073
    %v4075 = vsel %vm739, %v3638, 0.0
    %v4076 = vsel %vm739, %v3754, 0.0
    %v4077 = vadd.f32 %v4075, %v4076
    %v4078 = vsel %vm739, %v3870, 0.0
    %v4079 = vadd.f32 %v4077, %v4078
    %v4080 = vsel %vm739, %v3986, 0.0
    %v4081 = vadd.f32 %v4079, %v4080
    %v4082 = vsel %vm739, %v3641, 0.0
    %v4083 = vsel %vm739, %v3757, 0.0
    %v4084 = vadd.f32 %v4082, %v4083
    %v4085 = vsel %vm739, %v3873, 0.0
    %v4086 = vadd.f32 %v4084, %v4085
    %v4087 = vsel %vm739, %v3989, 0.0
    %v4088 = vadd.f32 %v4086, %v4087
    %v4089 = vsel %vm739, %v3643, 0.0
    %v4090 = vsel %vm739, %v3759, 0.0
    %v4091 = vadd.f32 %v4089, %v4090
    %v4092 = vsel %vm739, %v3875, 0.0
    %v4093 = vadd.f32 %v4091, %v4092
    %v4094 = vsel %vm739, %v3991, 0.0
    %v4095 = vadd.f32 %v4093, %v4094
    %v4096 = vsel %vm739, %v3646, 0.0
    %v4097 = vsel %vm739, %v3762, 0.0
    %v4098 = vadd.f32 %v4096, %v4097
    %v4099 = vsel %vm739, %v3878, 0.0
    %v4100 = vadd.f32 %v4098, %v4099
    %v4101 = vsel %vm739, %v3994, 0.0
    %v4102 = vadd.f32 %v4100, %v4101
    %v4103 = vsel %vm739, %v3648, 0.0
    %v4104 = vsel %vm739, %v3764, 0.0
    %v4105 = vadd.f32 %v4103, %v4104
    %v4106 = vsel %vm739, %v3880, 0.0
    %v4107 = vadd.f32 %v4105, %v4106
    %v4108 = vsel %vm739, %v3996, 0.0
    %v4109 = vadd.f32 %v4107, %v4108
    %v4110 = vadd.f32 %v723, %v4004
    %v4111 = vadd.f32 %v724, %v4011
    %v4112 = vadd.f32 %v725, %v4018
    %v4113 = vadd.f32 %v726, %v4025
    %v4114 = vadd.f32 %v727, %v4032
    %v4115 = vadd.f32 %v728, %v4039
    %v4116 = vadd.f32 %v729, %v4046
    %v4117 = vadd.f32 %v730, %v4053
    %v4118 = vadd.f32 %v731, %v4060
    %v4119 = vadd.f32 %v732, %v4067
    %v4120 = vadd.f32 %v733, %v4074
    %v4121 = vadd.f32 %v734, %v4081
    %v4122 = vadd.f32 %v735, %v4088
    %v4123 = vadd.f32 %v736, %v4095
    %v4124 = vadd.f32 %v737, %v4102
    %v4125 = vadd.f32 %v738, %v4109
    %v4126 = vld [vmem:[#allocation12] sm:$0x1]
    %v4128 = vperm.slane %v4126, 0
    %v4130 = vadd.f32 %v4110, %v4128
    %v4131 = vadd.f32 %v4111, %v4128
    %v4132 = vadd.f32 %v4112, %v4128
    %v4133 = vadd.f32 %v4113, %v4128
    %v4134 = vadd.f32 %v4114, %v4128
    %v4135 = vadd.f32 %v4115, %v4128
    %v4136 = vadd.f32 %v4116, %v4128
    %v4137 = vadd.f32 %v4117, %v4128
    %v4138 = vadd.f32 %v4118, %v4128
    %v4139 = vadd.f32 %v4119, %v4128
    %v4140 = vadd.f32 %v4120, %v4128
    %v4141 = vadd.f32 %v4121, %v4128
    %v4142 = vadd.f32 %v4122, %v4128
    %v4143 = vadd.f32 %v4123, %v4128
    %v4144 = vadd.f32 %v4124, %v4128
    %v4145 = vadd.f32 %v4125, %v4128
    %v4146 = vsel %vm739, %v4130, 0.0
    %4147 = vadd.xlane.f32.xlu0 %v4146
    %v4148 = vpop.xlane.xlu0 %4147
    %v4149 = vsel %vm739, %v4131, 0.0
    %4150 = vadd.xlane.f32.xlu0 %v4149
    %v4151 = vpop.xlane.xlu0 %4150
    %v4152 = vsel %vm739, %v4132, 0.0
    %4153 = vadd.xlane.f32.xlu0 %v4152
    %v4154 = vpop.xlane.xlu0 %4153
    %v4155 = vsel %vm739, %v4133, 0.0
    %4156 = vadd.xlane.f32.xlu0 %v4155
    %v4157 = vpop.xlane.xlu0 %4156
    %v4158 = vsel %vm739, %v4134, 0.0
    %4159 = vadd.xlane.f32.xlu0 %v4158
    %v4160 = vpop.xlane.xlu0 %4159
    %v4161 = vsel %vm739, %v4135, 0.0
    %4162 = vadd.xlane.f32.xlu0 %v4161
    %v4163 = vpop.xlane.xlu0 %4162
    %v4164 = vsel %vm739, %v4136, 0.0
    %4165 = vadd.xlane.f32.xlu0 %v4164
    %v4166 = vpop.xlane.xlu0 %4165
    %v4167 = vsel %vm739, %v4137, 0.0
    %4168 = vadd.xlane.f32.xlu0 %v4167
    %v4169 = vpop.xlane.xlu0 %4168
    %v4170 = vsel %vm739, %v4138, 0.0
    %4171 = vadd.xlane.f32.xlu0 %v4170
    %v4172 = vpop.xlane.xlu0 %4171
    %v4173 = vsel %vm739, %v4139, 0.0
    %4174 = vadd.xlane.f32.xlu0 %v4173
    %v4175 = vpop.xlane.xlu0 %4174
    %v4176 = vsel %vm739, %v4140, 0.0
    %4177 = vadd.xlane.f32.xlu0 %v4176
    %v4178 = vpop.xlane.xlu0 %4177
    %v4179 = vsel %vm739, %v4141, 0.0
    %4180 = vadd.xlane.f32.xlu0 %v4179
    %v4181 = vpop.xlane.xlu0 %4180
    %v4182 = vsel %vm739, %v4142, 0.0
    %4183 = vadd.xlane.f32.xlu0 %v4182
    %v4184 = vpop.xlane.xlu0 %4183
    %v4185 = vsel %vm739, %v4143, 0.0
    %4186 = vadd.xlane.f32.xlu0 %v4185
    %v4187 = vpop.xlane.xlu0 %4186
    %v4188 = vsel %vm739, %v4144, 0.0
    %4189 = vadd.xlane.f32.xlu0 %v4188
    %v4190 = vpop.xlane.xlu0 %4189
    %v4191 = vsel %vm739, %v4145, 0.0
    %4192 = vadd.xlane.f32.xlu0 %v4191
    %v4193 = vpop.xlane.xlu0 %4192
    %v4194 = vmul.f32 %v4148, %v794
    %v4195 = vmul.f32 %v4151, %v794
    %v4196 = vmul.f32 %v4154, %v794
    %v4197 = vmul.f32 %v4157, %v794
    %v4198 = vmul.f32 %v4160, %v794
    %v4199 = vmul.f32 %v4163, %v794
    %v4200 = vmul.f32 %v4166, %v794
    %v4201 = vmul.f32 %v4169, %v794
    %v4202 = vmul.f32 %v4172, %v794
    %v4203 = vmul.f32 %v4175, %v794
    %v4204 = vmul.f32 %v4178, %v794
    %v4205 = vmul.f32 %v4181, %v794
    %v4206 = vmul.f32 %v4184, %v794
    %v4207 = vmul.f32 %v4187, %v794
    %v4208 = vmul.f32 %v4190, %v794
    %v4209 = vmul.f32 %v4193, %v794
    %v4210 = vsub.f32 %v4130, %v4194
    %v4211 = vsub.f32 %v4131, %v4195
    %v4212 = vsub.f32 %v4132, %v4196
    %v4213 = vsub.f32 %v4133, %v4197
    %v4214 = vsub.f32 %v4134, %v4198
    %v4215 = vsub.f32 %v4135, %v4199
    %v4216 = vsub.f32 %v4136, %v4200
    %v4217 = vsub.f32 %v4137, %v4201
    %v4218 = vsub.f32 %v4138, %v4202
    %v4219 = vsub.f32 %v4139, %v4203
    %v4220 = vsub.f32 %v4140, %v4204
    %v4221 = vsub.f32 %v4141, %v4205
    %v4222 = vsub.f32 %v4142, %v4206
    %v4223 = vsub.f32 %v4143, %v4207
    %v4224 = vsub.f32 %v4144, %v4208
    %v4225 = vsub.f32 %v4145, %v4209
    %v4226 = vmul.f32 %v4210, %v4210
    %v4227 = vmul.f32 %v4211, %v4211
    %v4228 = vmul.f32 %v4212, %v4212
    %v4229 = vmul.f32 %v4213, %v4213
    %v4230 = vmul.f32 %v4214, %v4214
    %v4231 = vmul.f32 %v4215, %v4215
    %v4232 = vmul.f32 %v4216, %v4216
    %v4233 = vmul.f32 %v4217, %v4217
    %v4234 = vmul.f32 %v4218, %v4218
    %v4235 = vmul.f32 %v4219, %v4219
    %v4236 = vmul.f32 %v4220, %v4220
    %v4237 = vmul.f32 %v4221, %v4221
    %v4238 = vmul.f32 %v4222, %v4222
    %v4239 = vmul.f32 %v4223, %v4223
    %v4240 = vmul.f32 %v4224, %v4224
    %v4241 = vmul.f32 %v4225, %v4225
    %v4242 = vsel %vm739, %v4226, 0.0
    %4243 = vadd.xlane.f32.xlu0 %v4242
    %v4244 = vpop.xlane.xlu0 %4243
    %v4245 = vsel %vm739, %v4227, 0.0
    %4246 = vadd.xlane.f32.xlu0 %v4245
    %v4247 = vpop.xlane.xlu0 %4246
    %v4248 = vsel %vm739, %v4228, 0.0
    %4249 = vadd.xlane.f32.xlu0 %v4248
    %v4250 = vpop.xlane.xlu0 %4249
    %v4251 = vsel %vm739, %v4229, 0.0
    %4252 = vadd.xlane.f32.xlu0 %v4251
    %v4253 = vpop.xlane.xlu0 %4252
    %v4254 = vsel %vm739, %v4230, 0.0
    %4255 = vadd.xlane.f32.xlu0 %v4254
    %v4256 = vpop.xlane.xlu0 %4255
    %v4257 = vsel %vm739, %v4231, 0.0
    %4258 = vadd.xlane.f32.xlu0 %v4257
    %v4259 = vpop.xlane.xlu0 %4258
    %v4260 = vsel %vm739, %v4232, 0.0
    %4261 = vadd.xlane.f32.xlu0 %v4260
    %v4262 = vpop.xlane.xlu0 %4261
    %v4263 = vsel %vm739, %v4233, 0.0
    %4264 = vadd.xlane.f32.xlu0 %v4263
    %v4265 = vpop.xlane.xlu0 %4264
    %v4266 = vsel %vm739, %v4234, 0.0
    %4267 = vadd.xlane.f32.xlu0 %v4266
    %v4268 = vpop.xlane.xlu0 %4267
    %v4269 = vsel %vm739, %v4235, 0.0
    %4270 = vadd.xlane.f32.xlu0 %v4269
    %v4271 = vpop.xlane.xlu0 %4270
    %v4272 = vsel %vm739, %v4236, 0.0
    %4273 = vadd.xlane.f32.xlu0 %v4272
    %v4274 = vpop.xlane.xlu0 %4273
    %v4275 = vsel %vm739, %v4237, 0.0
    %4276 = vadd.xlane.f32.xlu0 %v4275
    %v4277 = vpop.xlane.xlu0 %4276
    %v4278 = vsel %vm739, %v4238, 0.0
    %4279 = vadd.xlane.f32.xlu0 %v4278
    %v4280 = vpop.xlane.xlu0 %4279
    %v4281 = vsel %vm739, %v4239, 0.0
    %4282 = vadd.xlane.f32.xlu0 %v4281
    %v4283 = vpop.xlane.xlu0 %4282
    %v4284 = vsel %vm739, %v4240, 0.0
    %4285 = vadd.xlane.f32.xlu0 %v4284
    %v4286 = vpop.xlane.xlu0 %4285
    %v4287 = vsel %vm739, %v4241, 0.0
    %4288 = vadd.xlane.f32.xlu0 %v4287
    %v4289 = vpop.xlane.xlu0 %4288
    %v4290 = vmul.f32 %v4244, %v794
    %v4291 = vmul.f32 %v4247, %v794
    %v4292 = vmul.f32 %v4250, %v794
    %v4293 = vmul.f32 %v4253, %v794
    %v4294 = vmul.f32 %v4256, %v794
    %v4295 = vmul.f32 %v4259, %v794
    %v4296 = vmul.f32 %v4262, %v794
    %v4297 = vmul.f32 %v4265, %v794
    %v4298 = vmul.f32 %v4268, %v794
    %v4299 = vmul.f32 %v4271, %v794
    %v4300 = vmul.f32 %v4274, %v794
    %v4301 = vmul.f32 %v4277, %v794
    %v4302 = vmul.f32 %v4280, %v794
    %v4303 = vmul.f32 %v4283, %v794
    %v4304 = vmul.f32 %v4286, %v794
    %v4305 = vmul.f32 %v4289, %v794
    %v4306 = vadd.f32 %v4290, 1e-05
    %v4307 = vadd.f32 %v4291, 1e-05
    %v4308 = vadd.f32 %v4292, 1e-05
    %v4309 = vadd.f32 %v4293, 1e-05
    %v4310 = vadd.f32 %v4294, 1e-05
    %v4311 = vadd.f32 %v4295, 1e-05
    %v4312 = vadd.f32 %v4296, 1e-05
    %v4313 = vadd.f32 %v4297, 1e-05
    %v4314 = vadd.f32 %v4298, 1e-05
    %v4315 = vadd.f32 %v4299, 1e-05
    %v4316 = vadd.f32 %v4300, 1e-05
    %v4317 = vadd.f32 %v4301, 1e-05
    %v4318 = vadd.f32 %v4302, 1e-05
    %v4319 = vadd.f32 %v4303, 1e-05
    %v4320 = vadd.f32 %v4304, 1e-05
    %v4321 = vadd.f32 %v4305, 1e-05
    %v4322 = vrsqrt.pop %v4306
    %v4323 = vmul.f32 %v4322, %v4306
    %v4324 = vmul.f32 %v4323, %v4322
    %v4325 = vmul.f32 0.5, %v4324
    %v4326 = vsub.f32 1.5, %v4325
    %v4327 = vmul.f32 %v4322, %v4326
    %vm4328 = vweird.f32 %v4306
    %vm4329 = vweird.f32 %v4322
    %vm4330 = vmor %vm4328, %vm4329
    %v4331 = vsel %vm4330, %v4322, %v4327
    %v4332 = vrsqrt.pop %v4307
    %v4333 = vmul.f32 %v4332, %v4307
    %v4334 = vmul.f32 %v4333, %v4332
    %v4335 = vmul.f32 0.5, %v4334
    %v4336 = vsub.f32 1.5, %v4335
    %v4337 = vmul.f32 %v4332, %v4336
    %vm4338 = vweird.f32 %v4307
    %vm4339 = vweird.f32 %v4332
    %vm4340 = vmor %vm4338, %vm4339
    %v4341 = vsel %vm4340, %v4332, %v4337
    %v4342 = vrsqrt.pop %v4308
    %v4343 = vmul.f32 %v4342, %v4308
    %v4344 = vmul.f32 %v4343, %v4342
    %v4345 = vmul.f32 0.5, %v4344
    %v4346 = vsub.f32 1.5, %v4345
    %v4347 = vmul.f32 %v4342, %v4346
    %vm4348 = vweird.f32 %v4308
    %vm4349 = vweird.f32 %v4342
    %vm4350 = vmor %vm4348, %vm4349
    %v4351 = vsel %vm4350, %v4342, %v4347
    %v4352 = vrsqrt.pop %v4309
    %v4353 = vmul.f32 %v4352, %v4309
    %v4354 = vmul.f32 %v4353, %v4352
    %v4355 = vmul.f32 0.5, %v4354
    %v4356 = vsub.f32 1.5, %v4355
    %v4357 = vmul.f32 %v4352, %v4356
    %vm4358 = vweird.f32 %v4309
    %vm4359 = vweird.f32 %v4352
    %vm4360 = vmor %vm4358, %vm4359
    %v4361 = vsel %vm4360, %v4352, %v4357
    %v4362 = vrsqrt.pop %v4310
    %v4363 = vmul.f32 %v4362, %v4310
    %v4364 = vmul.f32 %v4363, %v4362
    %v4365 = vmul.f32 0.5, %v4364
    %v4366 = vsub.f32 1.5, %v4365
    %v4367 = vmul.f32 %v4362, %v4366
    %vm4368 = vweird.f32 %v4310
    %vm4369 = vweird.f32 %v4362
    %vm4370 = vmor %vm4368, %vm4369
    %v4371 = vsel %vm4370, %v4362, %v4367
    %v4372 = vrsqrt.pop %v4311
    %v4373 = vmul.f32 %v4372, %v4311
    %v4374 = vmul.f32 %v4373, %v4372
    %v4375 = vmul.f32 0.5, %v4374
    %v4376 = vsub.f32 1.5, %v4375
    %v4377 = vmul.f32 %v4372, %v4376
    %vm4378 = vweird.f32 %v4311
    %vm4379 = vweird.f32 %v4372
    %vm4380 = vmor %vm4378, %vm4379
    %v4381 = vsel %vm4380, %v4372, %v4377
    %v4382 = vrsqrt.pop %v4312
    %v4383 = vmul.f32 %v4382, %v4312
    %v4384 = vmul.f32 %v4383, %v4382
    %v4385 = vmul.f32 0.5, %v4384
    %v4386 = vsub.f32 1.5, %v4385
    %v4387 = vmul.f32 %v4382, %v4386
    %vm4388 = vweird.f32 %v4312
    %vm4389 = vweird.f32 %v4382
    %vm4390 = vmor %vm4388, %vm4389
    %v4391 = vsel %vm4390, %v4382, %v4387
    %v4392 = vrsqrt.pop %v4313
    %v4393 = vmul.f32 %v4392, %v4313
    %v4394 = vmul.f32 %v4393, %v4392
    %v4395 = vmul.f32 0.5, %v4394
    %v4396 = vsub.f32 1.5, %v4395
    %v4397 = vmul.f32 %v4392, %v4396
    %vm4398 = vweird.f32 %v4313
    %vm4399 = vweird.f32 %v4392
    %vm4400 = vmor %vm4398, %vm4399
    %v4401 = vsel %vm4400, %v4392, %v4397
    %v4402 = vrsqrt.pop %v4314
    %v4403 = vmul.f32 %v4402, %v4314
    %v4404 = vmul.f32 %v4403, %v4402
    %v4405 = vmul.f32 0.5, %v4404
    %v4406 = vsub.f32 1.5, %v4405
    %v4407 = vmul.f32 %v4402, %v4406
    %vm4408 = vweird.f32 %v4314
    %vm4409 = vweird.f32 %v4402
    %vm4410 = vmor %vm4408, %vm4409
    %v4411 = vsel %vm4410, %v4402, %v4407
    %v4412 = vrsqrt.pop %v4315
    %v4413 = vmul.f32 %v4412, %v4315
    %v4414 = vmul.f32 %v4413, %v4412
    %v4415 = vmul.f32 0.5, %v4414
    %v4416 = vsub.f32 1.5, %v4415
    %v4417 = vmul.f32 %v4412, %v4416
    %vm4418 = vweird.f32 %v4315
    %vm4419 = vweird.f32 %v4412
    %vm4420 = vmor %vm4418, %vm4419
    %v4421 = vsel %vm4420, %v4412, %v4417
    %v4422 = vrsqrt.pop %v4316
    %v4423 = vmul.f32 %v4422, %v4316
    %v4424 = vmul.f32 %v4423, %v4422
    %v4425 = vmul.f32 0.5, %v4424
    %v4426 = vsub.f32 1.5, %v4425
    %v4427 = vmul.f32 %v4422, %v4426
    %vm4428 = vweird.f32 %v4316
    %vm4429 = vweird.f32 %v4422
    %vm4430 = vmor %vm4428, %vm4429
    %v4431 = vsel %vm4430, %v4422, %v4427
    %v4432 = vrsqrt.pop %v4317
    %v4433 = vmul.f32 %v4432, %v4317
    %v4434 = vmul.f32 %v4433, %v4432
    %v4435 = vmul.f32 0.5, %v4434
    %v4436 = vsub.f32 1.5, %v4435
    %v4437 = vmul.f32 %v4432, %v4436
    %vm4438 = vweird.f32 %v4317
    %vm4439 = vweird.f32 %v4432
    %vm4440 = vmor %vm4438, %vm4439
    %v4441 = vsel %vm4440, %v4432, %v4437
    %v4442 = vrsqrt.pop %v4318
    %v4443 = vmul.f32 %v4442, %v4318
    %v4444 = vmul.f32 %v4443, %v4442
    %v4445 = vmul.f32 0.5, %v4444
    %v4446 = vsub.f32 1.5, %v4445
    %v4447 = vmul.f32 %v4442, %v4446
    %vm4448 = vweird.f32 %v4318
    %vm4449 = vweird.f32 %v4442
    %vm4450 = vmor %vm4448, %vm4449
    %v4451 = vsel %vm4450, %v4442, %v4447
    %v4452 = vrsqrt.pop %v4319
    %v4453 = vmul.f32 %v4452, %v4319
    %v4454 = vmul.f32 %v4453, %v4452
    %v4455 = vmul.f32 0.5, %v4454
    %v4456 = vsub.f32 1.5, %v4455
    %v4457 = vmul.f32 %v4452, %v4456
    %vm4458 = vweird.f32 %v4319
    %vm4459 = vweird.f32 %v4452
    %vm4460 = vmor %vm4458, %vm4459
    %v4461 = vsel %vm4460, %v4452, %v4457
    %v4462 = vrsqrt.pop %v4320
    %v4463 = vmul.f32 %v4462, %v4320
    %v4464 = vmul.f32 %v4463, %v4462
    %v4465 = vmul.f32 0.5, %v4464
    %v4466 = vsub.f32 1.5, %v4465
    %v4467 = vmul.f32 %v4462, %v4466
    %vm4468 = vweird.f32 %v4320
    %vm4469 = vweird.f32 %v4462
    %vm4470 = vmor %vm4468, %vm4469
    %v4471 = vsel %vm4470, %v4462, %v4467
    %v4472 = vrsqrt.pop %v4321
    %v4473 = vmul.f32 %v4472, %v4321
    %v4474 = vmul.f32 %v4473, %v4472
    %v4475 = vmul.f32 0.5, %v4474
    %v4476 = vsub.f32 1.5, %v4475
    %v4477 = vmul.f32 %v4472, %v4476
    %vm4478 = vweird.f32 %v4321
    %vm4479 = vweird.f32 %v4472
    %vm4480 = vmor %vm4478, %vm4479
    %v4481 = vsel %vm4480, %v4472, %v4477
    %v4482 = vmul.f32 %v4210, %v4331
    %v4483 = vmul.f32 %v4211, %v4341
    %v4484 = vmul.f32 %v4212, %v4351
    %v4485 = vmul.f32 %v4213, %v4361
    %v4486 = vmul.f32 %v4214, %v4371
    %v4487 = vmul.f32 %v4215, %v4381
    %v4488 = vmul.f32 %v4216, %v4391
    %v4489 = vmul.f32 %v4217, %v4401
    %v4490 = vmul.f32 %v4218, %v4411
    %v4491 = vmul.f32 %v4219, %v4421
    %v4492 = vmul.f32 %v4220, %v4431
    %v4493 = vmul.f32 %v4221, %v4441
    %v4494 = vmul.f32 %v4222, %v4451
    %v4495 = vmul.f32 %v4223, %v4461
    %v4496 = vmul.f32 %v4224, %v4471
    %v4497 = vmul.f32 %v4225, %v4481
    %v4498 = vld [vmem:[#allocation13] sm:$0x1]
    %v4500 = vperm.slane %v4498, 0
    %v4502 = vmul.f32 %v4482, %v4500
    %v4503 = vmul.f32 %v4483, %v4500
    %v4504 = vmul.f32 %v4484, %v4500
    %v4505 = vmul.f32 %v4485, %v4500
    %v4506 = vmul.f32 %v4486, %v4500
    %v4507 = vmul.f32 %v4487, %v4500
    %v4508 = vmul.f32 %v4488, %v4500
    %v4509 = vmul.f32 %v4489, %v4500
    %v4510 = vmul.f32 %v4490, %v4500
    %v4511 = vmul.f32 %v4491, %v4500
    %v4512 = vmul.f32 %v4492, %v4500
    %v4513 = vmul.f32 %v4493, %v4500
    %v4514 = vmul.f32 %v4494, %v4500
    %v4515 = vmul.f32 %v4495, %v4500
    %v4516 = vmul.f32 %v4496, %v4500
    %v4517 = vmul.f32 %v4497, %v4500
    %v4518 = vld [vmem:[#allocation15] sm:$0x1]
    %v4520 = vperm.slane %v4518, 0
    %v4522 = vadd.f32 %v4502, %v4520
    %v4523 = vadd.f32 %v4503, %v4520
    %v4524 = vadd.f32 %v4504, %v4520
    %v4525 = vadd.f32 %v4505, %v4520
    %v4526 = vadd.f32 %v4506, %v4520
    %v4527 = vadd.f32 %v4507, %v4520
    %v4528 = vadd.f32 %v4508, %v4520
    %v4529 = vadd.f32 %v4509, %v4520
    %v4530 = vadd.f32 %v4510, %v4520
    %v4531 = vadd.f32 %v4511, %v4520
    %v4532 = vadd.f32 %v4512, %v4520
    %v4533 = vadd.f32 %v4513, %v4520
    %v4534 = vadd.f32 %v4514, %v4520
    %v4535 = vadd.f32 %v4515, %v4520
    %v4536 = vadd.f32 %v4516, %v4520
    %v4537 = vadd.f32 %v4517, %v4520
    %v4538 = vld [vmem:[#allocation16] sm:$0xf]
    %v4539 = vld [vmem:[#allocation16 + $0x4] sm:$0xf]
    %v4540 = vld [vmem:[#allocation16 + $0x8] sm:$0xf]
    %v4541 = vld [vmem:[#allocation16 + $0xc] sm:$0xf]
    %v4542 = vpack.c.bf16 %v4523, %v4522
    %v4543 = vpack.c.bf16 %v4525, %v4524
    %v4544 = vpack.c.bf16 %v4527, %v4526
    %v4545 = vpack.c.bf16 %v4529, %v4528
    %v4546 = vpack.c.bf16 %v4531, %v4530
    %v4547 = vpack.c.bf16 %v4533, %v4532
    %v4548 = vpack.c.bf16 %v4535, %v4534
    %v4549 = vpack.c.bf16 %v4537, %v4536
    %v4550 = vld [vmem:[#allocation18] sm:$0x1]
    %v4552 = vperm.slane %v4550, 0
    %v4558 = vunpack.c.l.b16 %v4538
    %v4559 = vunpack.c.l.b16 %v4539
    %v4560 = vunpack.c.l.b16 %v4540
    %v4561 = vunpack.c.l.b16 %v4541
    %v4562 = vpack.c.b16 %v4559, %v4558
    %v4563 = vpack.c.b16 %v4561, %v4560
    %v4567 = vsel %vm739, %v4542, 0
    %v4570 = vsel %vm739, %v4543, 0
    %v4573 = vsel %vm739, %v4544, 0
    %v4576 = vsel %vm739, %v4545, 0
    %v4579 = vsel %vm739, %v4546, 0
    %v4582 = vsel %vm739, %v4547, 0
    %v4585 = vsel %vm739, %v4548, 0
    %v4588 = vsel %vm739, %v4549, 0
    %4590 = vmatpush.bf16.msra.mxu0 0
    %4591 = vmatpush.bf16.msra.mxu0 0
    %4592 = vmatpush.bf16.msra.mxu0 0
    %4593 = vmatpush.bf16.msra.mxu0 0
    %4594 = vmatpush.bf16.msra.mxu0 0
    %4595 = vmatpush.bf16.msra.mxu0 0
    %4596 = vmatpush.bf16.msra.mxu0 %v4563
    %4597 = vmatpush.bf16.msra.mxu0 %v4562
    %4598 = vmatmul.bf16.gmra.mxu0 %v4567
    %v4599 = vpop.f32.mrf.mxu0
    %v4600 = vadd.f32 %v4552, %v4599
    %v4601 = vpop.f32.mrf.mxu0
    %v4602 = vadd.f32 %v4552, %v4601
    %4603 = vmatmul.bf16.gmra.mxu0 %v4570
    %v4604 = vpop.f32.mrf.mxu0
    %v4605 = vadd.f32 %v4552, %v4604
    %v4606 = vpop.f32.mrf.mxu0
    %v4607 = vadd.f32 %v4552, %v4606
    %4608 = vmatmul.bf16.gmra.mxu0 %v4573
    %v4609 = vpop.f32.mrf.mxu0
    %v4610 = vadd.f32 %v4552, %v4609
    %v4611 = vpop.f32.mrf.mxu0
    %v4612 = vadd.f32 %v4552, %v4611
    %4613 = vmatmul.bf16.gmra.mxu0 %v4576
    %v4614 = vpop.f32.mrf.mxu0
    %v4615 = vadd.f32 %v4552, %v4614
    %v4616 = vpop.f32.mrf.mxu0
    %v4617 = vadd.f32 %v4552, %v4616
    %4618 = vmatmul.bf16.gmra.mxu0 %v4579
    %v4619 = vpop.f32.mrf.mxu0
    %v4620 = vadd.f32 %v4552, %v4619
    %v4621 = vpop.f32.mrf.mxu0
    %v4622 = vadd.f32 %v4552, %v4621
    %4623 = vmatmul.bf16.gmra.mxu0 %v4582
    %v4624 = vpop.f32.mrf.mxu0
    %v4625 = vadd.f32 %v4552, %v4624
    %v4626 = vpop.f32.mrf.mxu0
    %v4627 = vadd.f32 %v4552, %v4626
    %4628 = vmatmul.bf16.gmra.mxu0 %v4585
    %v4629 = vpop.f32.mrf.mxu0
    %v4630 = vadd.f32 %v4552, %v4629
    %v4631 = vpop.f32.mrf.mxu0
    %v4632 = vadd.f32 %v4552, %v4631
    %4633 = vmatmul.bf16.gmra.mxu0 %v4588
    %v4634 = vpop.f32.mrf.mxu0
    %v4635 = vadd.f32 %v4552, %v4634
    %v4636 = vpop.f32.mrf.mxu0
    %v4637 = vadd.f32 %v4552, %v4636
    %4638 = vdwg.mxu0
    %v4639 = vmul.f32 %v4600, %v4600
    %v4640 = vmul.f32 %v4602, %v4602
    %v4641 = vmul.f32 %v4605, %v4605
    %v4642 = vmul.f32 %v4607, %v4607
    %v4643 = vmul.f32 %v4610, %v4610
    %v4644 = vmul.f32 %v4612, %v4612
    %v4645 = vmul.f32 %v4615, %v4615
    %v4646 = vmul.f32 %v4617, %v4617
    %v4647 = vmul.f32 %v4620, %v4620
    %v4648 = vmul.f32 %v4622, %v4622
    %v4649 = vmul.f32 %v4625, %v4625
    %v4650 = vmul.f32 %v4627, %v4627
    %v4651 = vmul.f32 %v4630, %v4630
    %v4652 = vmul.f32 %v4632, %v4632
    %v4653 = vmul.f32 %v4635, %v4635
    %v4654 = vmul.f32 %v4637, %v4637
    %v4655 = vmul.f32 %v4600, %v4639
    %v4656 = vmul.f32 %v4602, %v4640
    %v4657 = vmul.f32 %v4605, %v4641
    %v4658 = vmul.f32 %v4607, %v4642
    %v4659 = vmul.f32 %v4610, %v4643
    %v4660 = vmul.f32 %v4612, %v4644
    %v4661 = vmul.f32 %v4615, %v4645
    %v4662 = vmul.f32 %v4617, %v4646
    %v4663 = vmul.f32 %v4620, %v4647
    %v4664 = vmul.f32 %v4622, %v4648
    %v4665 = vmul.f32 %v4625, %v4649
    %v4666 = vmul.f32 %v4627, %v4650
    %v4667 = vmul.f32 %v4630, %v4651
    %v4668 = vmul.f32 %v4632, %v4652
    %v4669 = vmul.f32 %v4635, %v4653
    %v4670 = vmul.f32 %v4637, %v4654
    %v4671 = vmul.f32 %v4655, 0.044715
    %v4672 = vmul.f32 %v4656, 0.044715
    %v4673 = vmul.f32 %v4657, 0.044715
    %v4674 = vmul.f32 %v4658, 0.044715
    %v4675 = vmul.f32 %v4659, 0.044715
    %v4676 = vmul.f32 %v4660, 0.044715
    %v4677 = vmul.f32 %v4661, 0.044715
    %v4678 = vmul.f32 %v4662, 0.044715
    %v4679 = vmul.f32 %v4663, 0.044715
    %v4680 = vmul.f32 %v4664, 0.044715
    %v4681 = vmul.f32 %v4665, 0.044715
    %v4682 = vmul.f32 %v4666, 0.044715
    %v4683 = vmul.f32 %v4667, 0.044715
    %v4684 = vmul.f32 %v4668, 0.044715
    %v4685 = vmul.f32 %v4669, 0.044715
    %v4686 = vmul.f32 %v4670, 0.044715
    %v4687 = vadd.f32 %v4600, %v4671
    %v4688 = vadd.f32 %v4602, %v4672
    %v4689 = vadd.f32 %v4605, %v4673
    %v4690 = vadd.f32 %v4607, %v4674
    %v4691 = vadd.f32 %v4610, %v4675
    %v4692 = vadd.f32 %v4612, %v4676
    %v4693 = vadd.f32 %v4615, %v4677
    %v4694 = vadd.f32 %v4617, %v4678
    %v4695 = vadd.f32 %v4620, %v4679
    %v4696 = vadd.f32 %v4622, %v4680
    %v4697 = vadd.f32 %v4625, %v4681
    %v4698 = vadd.f32 %v4627, %v4682
    %v4699 = vadd.f32 %v4630, %v4683
    %v4700 = vadd.f32 %v4632, %v4684
    %v4701 = vadd.f32 %v4635, %v4685
    %v4702 = vadd.f32 %v4637, %v4686
    %v4703 = vmul.f32 %v4687, 0.7978846
    %v4704 = vmul.f32 %v4688, 0.7978846
    %v4705 = vmul.f32 %v4689, 0.7978846
    %v4706 = vmul.f32 %v4690, 0.7978846
    %v4707 = vmul.f32 %v4691, 0.7978846
    %v4708 = vmul.f32 %v4692, 0.7978846
    %v4709 = vmul.f32 %v4693, 0.7978846
    %v4710 = vmul.f32 %v4694, 0.7978846
    %v4711 = vmul.f32 %v4695, 0.7978846
    %v4712 = vmul.f32 %v4696, 0.7978846
    %v4713 = vmul.f32 %v4697, 0.7978846
    %v4714 = vmul.f32 %v4698, 0.7978846
    %v4715 = vmul.f32 %v4699, 0.7978846
    %v4716 = vmul.f32 %v4700, 0.7978846
    %v4717 = vmul.f32 %v4701, 0.7978846
    %v4718 = vmul.f32 %v4702, 0.7978846
    %v4719 = vtanh.pop %v4703
    %v4720 = vtanh.pop %v4704
    %v4721 = vtanh.pop %v4705
    %v4722 = vtanh.pop %v4706
    %v4723 = vtanh.pop %v4707
    %v4724 = vtanh.pop %v4708
    %v4725 = vtanh.pop %v4709
    %v4726 = vtanh.pop %v4710
    %v4727 = vtanh.pop %v4711
    %v4728 = vtanh.pop %v4712
    %v4729 = vtanh.pop %v4713
    %v4730 = vtanh.pop %v4714
    %v4731 = vtanh.pop %v4715
    %v4732 = vtanh.pop %v4716
    %v4733 = vtanh.pop %v4717
    %v4734 = vtanh.pop %v4718
    %v4735 = vadd.f32 %v4719, 1.0
    %v4736 = vadd.f32 %v4720, 1.0
    %v4737 = vadd.f32 %v4721, 1.0
    %v4738 = vadd.f32 %v4722, 1.0
    %v4739 = vadd.f32 %v4723, 1.0
    %v4740 = vadd.f32 %v4724, 1.0
    %v4741 = vadd.f32 %v4725, 1.0
    %v4742 = vadd.f32 %v4726, 1.0
    %v4743 = vadd.f32 %v4727, 1.0
    %v4744 = vadd.f32 %v4728, 1.0
    %v4745 = vadd.f32 %v4729, 1.0
    %v4746 = vadd.f32 %v4730, 1.0
    %v4747 = vadd.f32 %v4731, 1.0
    %v4748 = vadd.f32 %v4732, 1.0
    %v4749 = vadd.f32 %v4733, 1.0
    %v4750 = vadd.f32 %v4734, 1.0
    %v4751 = vmul.f32 %v4735, 0.5
    %v4752 = vmul.f32 %v4736, 0.5
    %v4753 = vmul.f32 %v4737, 0.5
    %v4754 = vmul.f32 %v4738, 0.5
    %v4755 = vmul.f32 %v4739, 0.5
    %v4756 = vmul.f32 %v4740, 0.5
    %v4757 = vmul.f32 %v4741, 0.5
    %v4758 = vmul.f32 %v4742, 0.5
    %v4759 = vmul.f32 %v4743, 0.5
    %v4760 = vmul.f32 %v4744, 0.5
    %v4761 = vmul.f32 %v4745, 0.5
    %v4762 = vmul.f32 %v4746, 0.5
    %v4763 = vmul.f32 %v4747, 0.5
    %v4764 = vmul.f32 %v4748, 0.5
    %v4765 = vmul.f32 %v4749, 0.5
    %v4766 = vmul.f32 %v4750, 0.5
    %v4767 = vmul.f32 %v4600, %v4751
    %v4768 = vmul.f32 %v4602, %v4752
    %v4769 = vmul.f32 %v4605, %v4753
    %v4770 = vmul.f32 %v4607, %v4754
    %v4771 = vmul.f32 %v4610, %v4755
    %v4772 = vmul.f32 %v4612, %v4756
    %v4773 = vmul.f32 %v4615, %v4757
    %v4774 = vmul.f32 %v4617, %v4758
    %v4775 = vmul.f32 %v4620, %v4759
    %v4776 = vmul.f32 %v4622, %v4760
    %v4777 = vmul.f32 %v4625, %v4761
    %v4778 = vmul.f32 %v4627, %v4762
    %v4779 = vmul.f32 %v4630, %v4763
    %v4780 = vmul.f32 %v4632, %v4764
    %v4781 = vmul.f32 %v4635, %v4765
    %v4782 = vmul.f32 %v4637, %v4766
    %v4783 = vld [vmem:[%s29] sm:$0xf]
    %v4784 = vld [vmem:[%s29 + $0x4] sm:$0xf]
    %v4785 = vld [vmem:[%s29 + $0x8] sm:$0xf]
    %v4786 = vld [vmem:[%s29 + $0xc] sm:$0xf]
    %v4787 = vld [vmem:[%s29 + $0x10] sm:$0xf]
    %v4788 = vld [vmem:[%s29 + $0x14] sm:$0xf]
    %v4789 = vld [vmem:[%s29 + $0x18] sm:$0xf]
    %v4790 = vld [vmem:[%s29 + $0x1c] sm:$0xf]
    %v4791 = vld [vmem:[%s29 + $0x20] sm:$0xf]
    %v4792 = vld [vmem:[%s29 + $0x24] sm:$0xf]
    %v4793 = vld [vmem:[%s29 + $0x28] sm:$0xf]
    %v4794 = vld [vmem:[%s29 + $0x2c] sm:$0xf]
    %v4795 = vld [vmem:[%s29 + $0x30] sm:$0xf]
    %v4796 = vld [vmem:[%s29 + $0x34] sm:$0xf]
    %v4797 = vld [vmem:[%s29 + $0x38] sm:$0xf]
    %v4798 = vld [vmem:[%s29 + $0x3c] sm:$0xf]
    %v4799 = vpack.c.bf16 %v4768, %v4767
    %v4800 = vpack.c.bf16 %v4770, %v4769
    %v4801 = vpack.c.bf16 %v4772, %v4771
    %v4802 = vpack.c.bf16 %v4774, %v4773
    %v4803 = vpack.c.bf16 %v4776, %v4775
    %v4804 = vpack.c.bf16 %v4778, %v4777
    %v4805 = vpack.c.bf16 %v4780, %v4779
    %v4806 = vpack.c.bf16 %v4782, %v4781
    %v4823 = vunpack.c.l.b16 %v4783
    %v4824 = vunpack.c.l.b16 %v4784
    %v4825 = vunpack.c.l.b16 %v4785
    %v4826 = vunpack.c.l.b16 %v4786
    %v4827 = vunpack.c.l.b16 %v4787
    %v4828 = vunpack.c.l.b16 %v4788
    %v4829 = vunpack.c.l.b16 %v4789
    %v4830 = vunpack.c.l.b16 %v4790
    %v4831 = vunpack.c.l.b16 %v4791
    %v4832 = vunpack.c.l.b16 %v4792
    %v4833 = vunpack.c.l.b16 %v4793
    %v4834 = vunpack.c.l.b16 %v4794
    %v4835 = vunpack.c.l.b16 %v4795
    %v4836 = vunpack.c.l.b16 %v4796
    %v4837 = vunpack.c.l.b16 %v4797
    %v4838 = vunpack.c.l.b16 %v4798
    %v4839 = vpack.c.b16 %v4824, %v4823
    %v4840 = vpack.c.b16 %v4826, %v4825
    %v4841 = vpack.c.b16 %v4828, %v4827
    %v4842 = vpack.c.b16 %v4830, %v4829
    %v4843 = vpack.c.b16 %v4832, %v4831
    %v4844 = vpack.c.b16 %v4834, %v4833
    %v4845 = vpack.c.b16 %v4836, %v4835
    %v4846 = vpack.c.b16 %v4838, %v4837
    %4855 = vmatpush.bf16.msra.mxu0 %v4846
    %4856 = vmatpush.bf16.msra.mxu0 %v4845
    %4857 = vmatpush.bf16.msra.mxu0 %v4844
    %4858 = vmatpush.bf16.msra.mxu0 %v4843
    %4859 = vmatpush.bf16.msra.mxu0 %v4842
    %4860 = vmatpush.bf16.msra.mxu0 %v4841
    %4861 = vmatpush.bf16.msra.mxu0 %v4840
    %4862 = vmatpush.bf16.msra.mxu0 %v4839
    %4863 = vmatmul.bf16.gmra.mxu0 %v4799
    %v4864 = vpop.f32.mrf.mxu0
    %v4865 = vadd.f32 0.0, %v4864
    %v4866 = vpop.f32.mrf.mxu0
    %v4867 = vadd.f32 0.0, %v4866
    %4868 = vmatmul.bf16.gmra.mxu0 %v4800
    %v4869 = vpop.f32.mrf.mxu0
    %v4870 = vadd.f32 0.0, %v4869
    %v4871 = vpop.f32.mrf.mxu0
    %v4872 = vadd.f32 0.0, %v4871
    %4873 = vmatmul.bf16.gmra.mxu0 %v4801
    %v4874 = vpop.f32.mrf.mxu0
    %v4875 = vadd.f32 0.0, %v4874
    %v4876 = vpop.f32.mrf.mxu0
    %v4877 = vadd.f32 0.0, %v4876
    %4878 = vmatmul.bf16.gmra.mxu0 %v4802
    %v4879 = vpop.f32.mrf.mxu0
    %v4880 = vadd.f32 0.0, %v4879
    %v4881 = vpop.f32.mrf.mxu0
    %v4882 = vadd.f32 0.0, %v4881
    %4883 = vmatmul.bf16.gmra.mxu0 %v4803
    %v4884 = vpop.f32.mrf.mxu0
    %v4885 = vadd.f32 0.0, %v4884
    %v4886 = vpop.f32.mrf.mxu0
    %v4887 = vadd.f32 0.0, %v4886
    %4888 = vmatmul.bf16.gmra.mxu0 %v4804
    %v4889 = vpop.f32.mrf.mxu0
    %v4890 = vadd.f32 0.0, %v4889
    %v4891 = vpop.f32.mrf.mxu0
    %v4892 = vadd.f32 0.0, %v4891
    %4893 = vmatmul.bf16.gmra.mxu0 %v4805
    %v4894 = vpop.f32.mrf.mxu0
    %v4895 = vadd.f32 0.0, %v4894
    %v4896 = vpop.f32.mrf.mxu0
    %v4897 = vadd.f32 0.0, %v4896
    %4898 = vmatmul.bf16.gmra.mxu0 %v4806
    %v4899 = vpop.f32.mrf.mxu0
    %v4900 = vadd.f32 0.0, %v4899
    %v4901 = vpop.f32.mrf.mxu0
    %v4902 = vadd.f32 0.0, %v4901
    %4903 = vdwg.mxu0
    %v4904 = vadd.f32 %v4130, %v4865
    %v4905 = vadd.f32 %v4131, %v4867
    %v4906 = vadd.f32 %v4132, %v4870
    %v4907 = vadd.f32 %v4133, %v4872
    %v4908 = vadd.f32 %v4134, %v4875
    %v4909 = vadd.f32 %v4135, %v4877
    %v4910 = vadd.f32 %v4136, %v4880
    %v4911 = vadd.f32 %v4137, %v4882
    %v4912 = vadd.f32 %v4138, %v4885
    %v4913 = vadd.f32 %v4139, %v4887
    %v4914 = vadd.f32 %v4140, %v4890
    %v4915 = vadd.f32 %v4141, %v4892
    %v4916 = vadd.f32 %v4142, %v4895
    %v4917 = vadd.f32 %v4143, %v4897
    %v4918 = vadd.f32 %v4144, %v4900
    %v4919 = vadd.f32 %v4145, %v4902
    %v4920 = vld [vmem:[#allocation19] sm:$0x1]
    %v4922 = vperm.slane %v4920, 0
    %v4924 = vadd.f32 %v4904, %v4922
    %v4925 = vadd.f32 %v4905, %v4922
    %v4926 = vadd.f32 %v4906, %v4922
    %v4927 = vadd.f32 %v4907, %v4922
    %v4928 = vadd.f32 %v4908, %v4922
    %v4929 = vadd.f32 %v4909, %v4922
    %v4930 = vadd.f32 %v4910, %v4922
    %v4931 = vadd.f32 %v4911, %v4922
    %v4932 = vadd.f32 %v4912, %v4922
    %v4933 = vadd.f32 %v4913, %v4922
    %v4934 = vadd.f32 %v4914, %v4922
    %v4935 = vadd.f32 %v4915, %v4922
    %v4936 = vadd.f32 %v4916, %v4922
    %v4937 = vadd.f32 %v4917, %v4922
    %v4938 = vadd.f32 %v4918, %v4922
    %v4939 = vadd.f32 %v4919, %v4922
    %v4940 = vsel %vm739, %v4924, 0.0
    %4941 = vadd.xlane.f32.xlu0 %v4940
    %v4942 = vpop.xlane.xlu0 %4941
    %v4943 = vsel %vm739, %v4925, 0.0
    %4944 = vadd.xlane.f32.xlu0 %v4943
    %v4945 = vpop.xlane.xlu0 %4944
    %v4946 = vsel %vm739, %v4926, 0.0
    %4947 = vadd.xlane.f32.xlu0 %v4946
    %v4948 = vpop.xlane.xlu0 %4947
    %v4949 = vsel %vm739, %v4927, 0.0
    %4950 = vadd.xlane.f32.xlu0 %v4949
    %v4951 = vpop.xlane.xlu0 %4950
    %v4952 = vsel %vm739, %v4928, 0.0
    %4953 = vadd.xlane.f32.xlu0 %v4952
    %v4954 = vpop.xlane.xlu0 %4953
    %v4955 = vsel %vm739, %v4929, 0.0
    %4956 = vadd.xlane.f32.xlu0 %v4955
    %v4957 = vpop.xlane.xlu0 %4956
    %v4958 = vsel %vm739, %v4930, 0.0
    %4959 = vadd.xlane.f32.xlu0 %v4958
    %v4960 = vpop.xlane.xlu0 %4959
    %v4961 = vsel %vm739, %v4931, 0.0
    %4962 = vadd.xlane.f32.xlu0 %v4961
    %v4963 = vpop.xlane.xlu0 %4962
    %v4964 = vsel %vm739, %v4932, 0.0
    %4965 = vadd.xlane.f32.xlu0 %v4964
    %v4966 = vpop.xlane.xlu0 %4965
    %v4967 = vsel %vm739, %v4933, 0.0
    %4968 = vadd.xlane.f32.xlu0 %v4967
    %v4969 = vpop.xlane.xlu0 %4968
    %v4970 = vsel %vm739, %v4934, 0.0
    %4971 = vadd.xlane.f32.xlu0 %v4970
    %v4972 = vpop.xlane.xlu0 %4971
    %v4973 = vsel %vm739, %v4935, 0.0
    %4974 = vadd.xlane.f32.xlu0 %v4973
    %v4975 = vpop.xlane.xlu0 %4974
    %v4976 = vsel %vm739, %v4936, 0.0
    %4977 = vadd.xlane.f32.xlu0 %v4976
    %v4978 = vpop.xlane.xlu0 %4977
    %v4979 = vsel %vm739, %v4937, 0.0
    %4980 = vadd.xlane.f32.xlu0 %v4979
    %v4981 = vpop.xlane.xlu0 %4980
    %v4982 = vsel %vm739, %v4938, 0.0
    %4983 = vadd.xlane.f32.xlu0 %v4982
    %v4984 = vpop.xlane.xlu0 %4983
    %v4985 = vsel %vm739, %v4939, 0.0
    %4986 = vadd.xlane.f32.xlu0 %v4985
    %v4987 = vpop.xlane.xlu0 %4986
    %v4988 = vmul.f32 %v4942, %v794
    %v4989 = vmul.f32 %v4945, %v794
    %v4990 = vmul.f32 %v4948, %v794
    %v4991 = vmul.f32 %v4951, %v794
    %v4992 = vmul.f32 %v4954, %v794
    %v4993 = vmul.f32 %v4957, %v794
    %v4994 = vmul.f32 %v4960, %v794
    %v4995 = vmul.f32 %v4963, %v794
    %v4996 = vmul.f32 %v4966, %v794
    %v4997 = vmul.f32 %v4969, %v794
    %v4998 = vmul.f32 %v4972, %v794
    %v4999 = vmul.f32 %v4975, %v794
    %v5000 = vmul.f32 %v4978, %v794
    %v5001 = vmul.f32 %v4981, %v794
    %v5002 = vmul.f32 %v4984, %v794
    %v5003 = vmul.f32 %v4987, %v794
    %v5004 = vsub.f32 %v4924, %v4988
    %v5005 = vsub.f32 %v4925, %v4989
    %v5006 = vsub.f32 %v4926, %v4990
    %v5007 = vsub.f32 %v4927, %v4991
    %v5008 = vsub.f32 %v4928, %v4992
    %v5009 = vsub.f32 %v4929, %v4993
    %v5010 = vsub.f32 %v4930, %v4994
    %v5011 = vsub.f32 %v4931, %v4995
    %v5012 = vsub.f32 %v4932, %v4996
    %v5013 = vsub.f32 %v4933, %v4997
    %v5014 = vsub.f32 %v4934, %v4998
    %v5015 = vsub.f32 %v4935, %v4999
    %v5016 = vsub.f32 %v4936, %v5000
    %v5017 = vsub.f32 %v4937, %v5001
    %v5018 = vsub.f32 %v4938, %v5002
    %v5019 = vsub.f32 %v4939, %v5003
    %v5020 = vmul.f32 %v5004, %v5004
    %v5021 = vmul.f32 %v5005, %v5005
    %v5022 = vmul.f32 %v5006, %v5006
    %v5023 = vmul.f32 %v5007, %v5007
    %v5024 = vmul.f32 %v5008, %v5008
    %v5025 = vmul.f32 %v5009, %v5009
    %v5026 = vmul.f32 %v5010, %v5010
    %v5027 = vmul.f32 %v5011, %v5011
    %v5028 = vmul.f32 %v5012, %v5012
    %v5029 = vmul.f32 %v5013, %v5013
    %v5030 = vmul.f32 %v5014, %v5014
    %v5031 = vmul.f32 %v5015, %v5015
    %v5032 = vmul.f32 %v5016, %v5016
    %v5033 = vmul.f32 %v5017, %v5017
    %v5034 = vmul.f32 %v5018, %v5018
    %v5035 = vmul.f32 %v5019, %v5019
    %v5036 = vsel %vm739, %v5020, 0.0
    %5037 = vadd.xlane.f32.xlu0 %v5036
    %v5038 = vpop.xlane.xlu0 %5037
    %v5039 = vsel %vm739, %v5021, 0.0
    %5040 = vadd.xlane.f32.xlu0 %v5039
    %v5041 = vpop.xlane.xlu0 %5040
    %v5042 = vsel %vm739, %v5022, 0.0
    %5043 = vadd.xlane.f32.xlu0 %v5042
    %v5044 = vpop.xlane.xlu0 %5043
    %v5045 = vsel %vm739, %v5023, 0.0
    %5046 = vadd.xlane.f32.xlu0 %v5045
    %v5047 = vpop.xlane.xlu0 %5046
    %v5048 = vsel %vm739, %v5024, 0.0
    %5049 = vadd.xlane.f32.xlu0 %v5048
    %v5050 = vpop.xlane.xlu0 %5049
    %v5051 = vsel %vm739, %v5025, 0.0
    %5052 = vadd.xlane.f32.xlu0 %v5051
    %v5053 = vpop.xlane.xlu0 %5052
    %v5054 = vsel %vm739, %v5026, 0.0
    %5055 = vadd.xlane.f32.xlu0 %v5054
    %v5056 = vpop.xlane.xlu0 %5055
    %v5057 = vsel %vm739, %v5027, 0.0
    %5058 = vadd.xlane.f32.xlu0 %v5057
    %v5059 = vpop.xlane.xlu0 %5058
    %v5060 = vsel %vm739, %v5028, 0.0
    %5061 = vadd.xlane.f32.xlu0 %v5060
    %v5062 = vpop.xlane.xlu0 %5061
    %v5063 = vsel %vm739, %v5029, 0.0
    %5064 = vadd.xlane.f32.xlu0 %v5063
    %v5065 = vpop.xlane.xlu0 %5064
    %v5066 = vsel %vm739, %v5030, 0.0
    %5067 = vadd.xlane.f32.xlu0 %v5066
    %v5068 = vpop.xlane.xlu0 %5067
    %v5069 = vsel %vm739, %v5031, 0.0
    %5070 = vadd.xlane.f32.xlu0 %v5069
    %v5071 = vpop.xlane.xlu0 %5070
    %v5072 = vsel %vm739, %v5032, 0.0
    %5073 = vadd.xlane.f32.xlu0 %v5072
    %v5074 = vpop.xlane.xlu0 %5073
    %v5075 = vsel %vm739, %v5033, 0.0
    %5076 = vadd.xlane.f32.xlu0 %v5075
    %v5077 = vpop.xlane.xlu0 %5076
    %v5078 = vsel %vm739, %v5034, 0.0
    %5079 = vadd.xlane.f32.xlu0 %v5078
    %v5080 = vpop.xlane.xlu0 %5079
    %v5081 = vsel %vm739, %v5035, 0.0
    %5082 = vadd.xlane.f32.xlu0 %v5081
    %v5083 = vpop.xlane.xlu0 %5082
    %v5084 = vmul.f32 %v5038, %v794
    %v5085 = vmul.f32 %v5041, %v794
    %v5086 = vmul.f32 %v5044, %v794
    %v5087 = vmul.f32 %v5047, %v794
    %v5088 = vmul.f32 %v5050, %v794
    %v5089 = vmul.f32 %v5053, %v794
    %v5090 = vmul.f32 %v5056, %v794
    %v5091 = vmul.f32 %v5059, %v794
    %v5092 = vmul.f32 %v5062, %v794
    %v5093 = vmul.f32 %v5065, %v794
    %v5094 = vmul.f32 %v5068, %v794
    %v5095 = vmul.f32 %v5071, %v794
    %v5096 = vmul.f32 %v5074, %v794
    %v5097 = vmul.f32 %v5077, %v794
    %v5098 = vmul.f32 %v5080, %v794
    %v5099 = vmul.f32 %v5083, %v794
    %v5100 = vadd.f32 %v5084, 1e-05
    %v5101 = vadd.f32 %v5085, 1e-05
    %v5102 = vadd.f32 %v5086, 1e-05
    %v5103 = vadd.f32 %v5087, 1e-05
    %v5104 = vadd.f32 %v5088, 1e-05
    %v5105 = vadd.f32 %v5089, 1e-05
    %v5106 = vadd.f32 %v5090, 1e-05
    %v5107 = vadd.f32 %v5091, 1e-05
    %v5108 = vadd.f32 %v5092, 1e-05
    %v5109 = vadd.f32 %v5093, 1e-05
    %v5110 = vadd.f32 %v5094, 1e-05
    %v5111 = vadd.f32 %v5095, 1e-05
    %v5112 = vadd.f32 %v5096, 1e-05
    %v5113 = vadd.f32 %v5097, 1e-05
    %v5114 = vadd.f32 %v5098, 1e-05
    %v5115 = vadd.f32 %v5099, 1e-05
    %v5116 = vrsqrt.pop %v5100
    %v5117 = vmul.f32 %v5116, %v5100
    %v5118 = vmul.f32 %v5117, %v5116
    %v5119 = vmul.f32 0.5, %v5118
    %v5120 = vsub.f32 1.5, %v5119
    %v5121 = vmul.f32 %v5116, %v5120
    %vm5122 = vweird.f32 %v5100
    %vm5123 = vweird.f32 %v5116
    %vm5124 = vmor %vm5122, %vm5123
    %v5125 = vsel %vm5124, %v5116, %v5121
    %v5126 = vrsqrt.pop %v5101
    %v5127 = vmul.f32 %v5126, %v5101
    %v5128 = vmul.f32 %v5127, %v5126
    %v5129 = vmul.f32 0.5, %v5128
    %v5130 = vsub.f32 1.5, %v5129
    %v5131 = vmul.f32 %v5126, %v5130
    %vm5132 = vweird.f32 %v5101
    %vm5133 = vweird.f32 %v5126
    %vm5134 = vmor %vm5132, %vm5133
    %v5135 = vsel %vm5134, %v5126, %v5131
    %v5136 = vrsqrt.pop %v5102
    %v5137 = vmul.f32 %v5136, %v5102
    %v5138 = vmul.f32 %v5137, %v5136
    %v5139 = vmul.f32 0.5, %v5138
    %v5140 = vsub.f32 1.5, %v5139
    %v5141 = vmul.f32 %v5136, %v5140
    %vm5142 = vweird.f32 %v5102
    %vm5143 = vweird.f32 %v5136
    %vm5144 = vmor %vm5142, %vm5143
    %v5145 = vsel %vm5144, %v5136, %v5141
    %v5146 = vrsqrt.pop %v5103
    %v5147 = vmul.f32 %v5146, %v5103
    %v5148 = vmul.f32 %v5147, %v5146
    %v5149 = vmul.f32 0.5, %v5148
    %v5150 = vsub.f32 1.5, %v5149
    %v5151 = vmul.f32 %v5146, %v5150
    %vm5152 = vweird.f32 %v5103
    %vm5153 = vweird.f32 %v5146
    %vm5154 = vmor %vm5152, %vm5153
    %v5155 = vsel %vm5154, %v5146, %v5151
    %v5156 = vrsqrt.pop %v5104
    %v5157 = vmul.f32 %v5156, %v5104
    %v5158 = vmul.f32 %v5157, %v5156
    %v5159 = vmul.f32 0.5, %v5158
    %v5160 = vsub.f32 1.5, %v5159
    %v5161 = vmul.f32 %v5156, %v5160
    %vm5162 = vweird.f32 %v5104
    %vm5163 = vweird.f32 %v5156
    %vm5164 = vmor %vm5162, %vm5163
    %v5165 = vsel %vm5164, %v5156, %v5161
    %v5166 = vrsqrt.pop %v5105
    %v5167 = vmul.f32 %v5166, %v5105
    %v5168 = vmul.f32 %v5167, %v5166
    %v5169 = vmul.f32 0.5, %v5168
    %v5170 = vsub.f32 1.5, %v5169
    %v5171 = vmul.f32 %v5166, %v5170
    %vm5172 = vweird.f32 %v5105
    %vm5173 = vweird.f32 %v5166
    %vm5174 = vmor %vm5172, %vm5173
    %v5175 = vsel %vm5174, %v5166, %v5171
    %v5176 = vrsqrt.pop %v5106
    %v5177 = vmul.f32 %v5176, %v5106
    %v5178 = vmul.f32 %v5177, %v5176
    %v5179 = vmul.f32 0.5, %v5178
    %v5180 = vsub.f32 1.5, %v5179
    %v5181 = vmul.f32 %v5176, %v5180
    %vm5182 = vweird.f32 %v5106
    %vm5183 = vweird.f32 %v5176
    %vm5184 = vmor %vm5182, %vm5183
    %v5185 = vsel %vm5184, %v5176, %v5181
    %v5186 = vrsqrt.pop %v5107
    %v5187 = vmul.f32 %v5186, %v5107
    %v5188 = vmul.f32 %v5187, %v5186
    %v5189 = vmul.f32 0.5, %v5188
    %v5190 = vsub.f32 1.5, %v5189
    %v5191 = vmul.f32 %v5186, %v5190
    %vm5192 = vweird.f32 %v5107
    %vm5193 = vweird.f32 %v5186
    %vm5194 = vmor %vm5192, %vm5193
    %v5195 = vsel %vm5194, %v5186, %v5191
    %v5196 = vrsqrt.pop %v5108
    %v5197 = vmul.f32 %v5196, %v5108
    %v5198 = vmul.f32 %v5197, %v5196
    %v5199 = vmul.f32 0.5, %v5198
    %v5200 = vsub.f32 1.5, %v5199
    %v5201 = vmul.f32 %v5196, %v5200
    %vm5202 = vweird.f32 %v5108
    %vm5203 = vweird.f32 %v5196
    %vm5204 = vmor %vm5202, %vm5203
    %v5205 = vsel %vm5204, %v5196, %v5201
    %v5206 = vrsqrt.pop %v5109
    %v5207 = vmul.f32 %v5206, %v5109
    %v5208 = vmul.f32 %v5207, %v5206
    %v5209 = vmul.f32 0.5, %v5208
    %v5210 = vsub.f32 1.5, %v5209
    %v5211 = vmul.f32 %v5206, %v5210
    %vm5212 = vweird.f32 %v5109
    %vm5213 = vweird.f32 %v5206
    %vm5214 = vmor %vm5212, %vm5213
    %v5215 = vsel %vm5214, %v5206, %v5211
    %v5216 = vrsqrt.pop %v5110
    %v5217 = vmul.f32 %v5216, %v5110
    %v5218 = vmul.f32 %v5217, %v5216
    %v5219 = vmul.f32 0.5, %v5218
    %v5220 = vsub.f32 1.5, %v5219
    %v5221 = vmul.f32 %v5216, %v5220
    %vm5222 = vweird.f32 %v5110
    %vm5223 = vweird.f32 %v5216
    %vm5224 = vmor %vm5222, %vm5223
    %v5225 = vsel %vm5224, %v5216, %v5221
    %v5226 = vrsqrt.pop %v5111
    %v5227 = vmul.f32 %v5226, %v5111
    %v5228 = vmul.f32 %v5227, %v5226
    %v5229 = vmul.f32 0.5, %v5228
    %v5230 = vsub.f32 1.5, %v5229
    %v5231 = vmul.f32 %v5226, %v5230
    %vm5232 = vweird.f32 %v5111
    %vm5233 = vweird.f32 %v5226
    %vm5234 = vmor %vm5232, %vm5233
    %v5235 = vsel %vm5234, %v5226, %v5231
    %v5236 = vrsqrt.pop %v5112
    %v5237 = vmul.f32 %v5236, %v5112
    %v5238 = vmul.f32 %v5237, %v5236
    %v5239 = vmul.f32 0.5, %v5238
    %v5240 = vsub.f32 1.5, %v5239
    %v5241 = vmul.f32 %v5236, %v5240
    %vm5242 = vweird.f32 %v5112
    %vm5243 = vweird.f32 %v5236
    %vm5244 = vmor %vm5242, %vm5243
    %v5245 = vsel %vm5244, %v5236, %v5241
    %v5246 = vrsqrt.pop %v5113
    %v5247 = vmul.f32 %v5246, %v5113
    %v5248 = vmul.f32 %v5247, %v5246
    %v5249 = vmul.f32 0.5, %v5248
    %v5250 = vsub.f32 1.5, %v5249
    %v5251 = vmul.f32 %v5246, %v5250
    %vm5252 = vweird.f32 %v5113
    %vm5253 = vweird.f32 %v5246
    %vm5254 = vmor %vm5252, %vm5253
    %v5255 = vsel %vm5254, %v5246, %v5251
    %v5256 = vrsqrt.pop %v5114
    %v5257 = vmul.f32 %v5256, %v5114
    %v5258 = vmul.f32 %v5257, %v5256
    %v5259 = vmul.f32 0.5, %v5258
    %v5260 = vsub.f32 1.5, %v5259
    %v5261 = vmul.f32 %v5256, %v5260
    %vm5262 = vweird.f32 %v5114
    %vm5263 = vweird.f32 %v5256
    %vm5264 = vmor %vm5262, %vm5263
    %v5265 = vsel %vm5264, %v5256, %v5261
    %v5266 = vrsqrt.pop %v5115
    %v5267 = vmul.f32 %v5266, %v5115
    %v5268 = vmul.f32 %v5267, %v5266
    %v5269 = vmul.f32 0.5, %v5268
    %v5270 = vsub.f32 1.5, %v5269
    %v5271 = vmul.f32 %v5266, %v5270
    %vm5272 = vweird.f32 %v5115
    %vm5273 = vweird.f32 %v5266
    %vm5274 = vmor %vm5272, %vm5273
    %v5275 = vsel %vm5274, %v5266, %v5271
    %v5276 = vmul.f32 %v5004, %v5125
    %v5277 = vmul.f32 %v5005, %v5135
    %v5278 = vmul.f32 %v5006, %v5145
    %v5279 = vmul.f32 %v5007, %v5155
    %v5280 = vmul.f32 %v5008, %v5165
    %v5281 = vmul.f32 %v5009, %v5175
    %v5282 = vmul.f32 %v5010, %v5185
    %v5283 = vmul.f32 %v5011, %v5195
    %v5284 = vmul.f32 %v5012, %v5205
    %v5285 = vmul.f32 %v5013, %v5215
    %v5286 = vmul.f32 %v5014, %v5225
    %v5287 = vmul.f32 %v5015, %v5235
    %v5288 = vmul.f32 %v5016, %v5245
    %v5289 = vmul.f32 %v5017, %v5255
    %v5290 = vmul.f32 %v5018, %v5265
    %v5291 = vmul.f32 %v5019, %v5275
    %v5292 = vld [vmem:[#allocation21] sm:$0x1]
    %v5294 = vperm.slane %v5292, 0
    %v5296 = vmul.f32 %v5276, %v5294
    %v5297 = vmul.f32 %v5277, %v5294
    %v5298 = vmul.f32 %v5278, %v5294
    %v5299 = vmul.f32 %v5279, %v5294
    %v5300 = vmul.f32 %v5280, %v5294
    %v5301 = vmul.f32 %v5281, %v5294
    %v5302 = vmul.f32 %v5282, %v5294
    %v5303 = vmul.f32 %v5283, %v5294
    %v5304 = vmul.f32 %v5284, %v5294
    %v5305 = vmul.f32 %v5285, %v5294
    %v5306 = vmul.f32 %v5286, %v5294
    %v5307 = vmul.f32 %v5287, %v5294
    %v5308 = vmul.f32 %v5288, %v5294
    %v5309 = vmul.f32 %v5289, %v5294
    %v5310 = vmul.f32 %v5290, %v5294
    %v5311 = vmul.f32 %v5291, %v5294
    %v5312 = vld [vmem:[#allocation22] sm:$0x1]
    %v5314 = vperm.slane %v5312, 0
    %v5316 = vadd.f32 %v5296, %v5314
    %v5317 = vadd.f32 %v5297, %v5314
    %v5318 = vadd.f32 %v5298, %v5314
    %v5319 = vadd.f32 %v5299, %v5314
    %v5320 = vadd.f32 %v5300, %v5314
    %v5321 = vadd.f32 %v5301, %v5314
    %v5322 = vadd.f32 %v5302, %v5314
    %v5323 = vadd.f32 %v5303, %v5314
    %v5324 = vadd.f32 %v5304, %v5314
    %v5325 = vadd.f32 %v5305, %v5314
    %v5326 = vadd.f32 %v5306, %v5314
    %v5327 = vadd.f32 %v5307, %v5314
    %v5328 = vadd.f32 %v5308, %v5314
    %v5329 = vadd.f32 %v5309, %v5314
    %v5330 = vadd.f32 %v5310, %v5314
    %v5331 = vadd.f32 %v5311, %v5314
    %v5332 = vld [vmem:[#allocation24] sm:$0xf]
    %v5333 = vld [vmem:[#allocation24 + $0x4] sm:$0xf]
    %v5334 = vld [vmem:[#allocation24 + $0x8] sm:$0xf]
    %v5335 = vld [vmem:[#allocation24 + $0xc] sm:$0xf]
    %v5336 = vpack.c.bf16 %v5317, %v5316
    %v5337 = vpack.c.bf16 %v5319, %v5318
    %v5338 = vpack.c.bf16 %v5321, %v5320
    %v5339 = vpack.c.bf16 %v5323, %v5322
    %v5340 = vpack.c.bf16 %v5325, %v5324
    %v5341 = vpack.c.bf16 %v5327, %v5326
    %v5342 = vpack.c.bf16 %v5329, %v5328
    %v5343 = vpack.c.bf16 %v5331, %v5330
    %v5344 = vld [vmem:[#allocation25] sm:$0x1]
    %v5346 = vperm.slane %v5344, 0
    %v5352 = vunpack.c.l.b16 %v5332
    %v5353 = vunpack.c.l.b16 %v5333
    %v5354 = vunpack.c.l.b16 %v5334
    %v5355 = vunpack.c.l.b16 %v5335
    %v5356 = vpack.c.b16 %v5353, %v5352
    %v5357 = vpack.c.b16 %v5355, %v5354
    %v5361 = vsel %vm739, %v5336, 0
    %v5364 = vsel %vm739, %v5337, 0
    %v5367 = vsel %vm739, %v5338, 0
    %v5370 = vsel %vm739, %v5339, 0
    %v5373 = vsel %vm739, %v5340, 0
    %v5376 = vsel %vm739, %v5341, 0
    %v5379 = vsel %vm739, %v5342, 0
    %v5382 = vsel %vm739, %v5343, 0
    %5384 = vmatpush.bf16.msra.mxu0 0
    %5385 = vmatpush.bf16.msra.mxu0 0
    %5386 = vmatpush.bf16.msra.mxu0 0
    %5387 = vmatpush.bf16.msra.mxu0 0
    %5388 = vmatpush.bf16.msra.mxu0 0
    %5389 = vmatpush.bf16.msra.mxu0 0
    %5390 = vmatpush.bf16.msra.mxu0 %v5357
    %5391 = vmatpush.bf16.msra.mxu0 %v5356
    %5392 = vmatmul.bf16.gmra.mxu0 %v5361
    %v5393 = vpop.f32.mrf.mxu0
    %v5394 = vadd.f32 %v5346, %v5393
    %v5395 = vpop.f32.mrf.mxu0
    %v5396 = vadd.f32 %v5346, %v5395
    %5397 = vmatmul.bf16.gmra.mxu0 %v5364
    %v5398 = vpop.f32.mrf.mxu0
    %v5399 = vadd.f32 %v5346, %v5398
    %v5400 = vpop.f32.mrf.mxu0
    %v5401 = vadd.f32 %v5346, %v5400
    %5402 = vmatmul.bf16.gmra.mxu0 %v5367
    %v5403 = vpop.f32.mrf.mxu0
    %v5404 = vadd.f32 %v5346, %v5403
    %v5405 = vpop.f32.mrf.mxu0
    %v5406 = vadd.f32 %v5346, %v5405
    %5407 = vmatmul.bf16.gmra.mxu0 %v5370
    %v5408 = vpop.f32.mrf.mxu0
    %v5409 = vadd.f32 %v5346, %v5408
    %v5410 = vpop.f32.mrf.mxu0
    %v5411 = vadd.f32 %v5346, %v5410
    %5412 = vmatmul.bf16.gmra.mxu0 %v5373
    %v5413 = vpop.f32.mrf.mxu0
    %v5414 = vadd.f32 %v5346, %v5413
    %v5415 = vpop.f32.mrf.mxu0
    %v5416 = vadd.f32 %v5346, %v5415
    %5417 = vmatmul.bf16.gmra.mxu0 %v5376
    %v5418 = vpop.f32.mrf.mxu0
    %v5419 = vadd.f32 %v5346, %v5418
    %v5420 = vpop.f32.mrf.mxu0
    %v5421 = vadd.f32 %v5346, %v5420
    %5422 = vmatmul.bf16.gmra.mxu0 %v5379
    %v5423 = vpop.f32.mrf.mxu0
    %v5424 = vadd.f32 %v5346, %v5423
    %v5425 = vpop.f32.mrf.mxu0
    %v5426 = vadd.f32 %v5346, %v5425
    %5427 = vmatmul.bf16.gmra.mxu0 %v5382
    %v5428 = vpop.f32.mrf.mxu0
    %v5429 = vadd.f32 %v5346, %v5428
    %v5430 = vpop.f32.mrf.mxu0
    %v5431 = vadd.f32 %v5346, %v5430
    %5432 = vdwg.mxu0
    %5441 = vrot.lane.b32.xlu0 %v5394, 120
    %v5442 = vpop.permute.xlu0 %5441
    %5443 = vrot.lane.b32.xlu0 %v5396, 120
    %v5444 = vpop.permute.xlu0 %5443
    %5445 = vrot.lane.b32.xlu0 %v5399, 120
    %v5446 = vpop.permute.xlu0 %5445
    %5447 = vrot.lane.b32.xlu0 %v5401, 120
    %v5448 = vpop.permute.xlu0 %5447
    %5449 = vrot.lane.b32.xlu0 %v5404, 120
    %v5450 = vpop.permute.xlu0 %5449
    %5451 = vrot.lane.b32.xlu0 %v5406, 120
    %v5452 = vpop.permute.xlu0 %5451
    %5453 = vrot.lane.b32.xlu0 %v5409, 120
    %v5454 = vpop.permute.xlu0 %5453
    %5455 = vrot.lane.b32.xlu0 %v5411, 120
    %v5456 = vpop.permute.xlu0 %5455
    %5465 = vrot.lane.b32.xlu0 %v5394, 112
    %v5466 = vpop.permute.xlu0 %5465
    %5467 = vrot.lane.b32.xlu0 %v5396, 112
    %v5468 = vpop.permute.xlu0 %5467
    %5469 = vrot.lane.b32.xlu0 %v5399, 112
    %v5470 = vpop.permute.xlu0 %5469
    %5471 = vrot.lane.b32.xlu0 %v5401, 112
    %v5472 = vpop.permute.xlu0 %5471
    %5473 = vrot.lane.b32.xlu0 %v5404, 112
    %v5474 = vpop.permute.xlu0 %5473
    %5475 = vrot.lane.b32.xlu0 %v5406, 112
    %v5476 = vpop.permute.xlu0 %5475
    %5477 = vrot.lane.b32.xlu0 %v5409, 112
    %v5478 = vpop.permute.xlu0 %5477
    %5479 = vrot.lane.b32.xlu0 %v5411, 112
    %v5480 = vpop.permute.xlu0 %5479
    %5489 = vrot.lane.b32.xlu0 %v5394, 104
    %v5490 = vpop.permute.xlu0 %5489
    %5491 = vrot.lane.b32.xlu0 %v5396, 104
    %v5492 = vpop.permute.xlu0 %5491
    %5493 = vrot.lane.b32.xlu0 %v5399, 104
    %v5494 = vpop.permute.xlu0 %5493
    %5495 = vrot.lane.b32.xlu0 %v5401, 104
    %v5496 = vpop.permute.xlu0 %5495
    %5497 = vrot.lane.b32.xlu0 %v5404, 104
    %v5498 = vpop.permute.xlu0 %5497
    %5499 = vrot.lane.b32.xlu0 %v5406, 104
    %v5500 = vpop.permute.xlu0 %5499
    %5501 = vrot.lane.b32.xlu0 %v5409, 104
    %v5502 = vpop.permute.xlu0 %5501
    %5503 = vrot.lane.b32.xlu0 %v5411, 104
    %v5504 = vpop.permute.xlu0 %5503
    %v5513 = vpack.c.bf16 %v5394, %v5394
    %v5514 = vpack.c.bf16 %v5396, %v5396
    %v5515 = vpack.c.bf16 %v5399, %v5399
    %v5516 = vpack.c.bf16 %v5401, %v5401
    %v5517 = vpack.c.bf16 %v5404, %v5404
    %v5518 = vpack.c.bf16 %v5406, %v5406
    %v5519 = vpack.c.bf16 %v5409, %v5409
    %v5520 = vpack.c.bf16 %v5411, %v5411
    %v5521 = vpack.c.bf16 %v5442, %v5442
    %v5522 = vpack.c.bf16 %v5444, %v5444
    %v5523 = vpack.c.bf16 %v5446, %v5446
    %v5524 = vpack.c.bf16 %v5448, %v5448
    %v5525 = vpack.c.bf16 %v5450, %v5450
    %v5526 = vpack.c.bf16 %v5452, %v5452
    %v5527 = vpack.c.bf16 %v5454, %v5454
    %v5528 = vpack.c.bf16 %v5456, %v5456
    %v5529 = vpack.c.bf16 %v5466, %v5466
    %v5530 = vpack.c.bf16 %v5468, %v5468
    %v5531 = vpack.c.bf16 %v5470, %v5470
    %v5532 = vpack.c.bf16 %v5472, %v5472
    %v5533 = vpack.c.bf16 %v5474, %v5474
    %v5534 = vpack.c.bf16 %v5476, %v5476
    %v5535 = vpack.c.bf16 %v5478, %v5478
    %v5536 = vpack.c.bf16 %v5480, %v5480
    %v5537 = vpack.c.bf16 %v5490, %v5490
    %v5538 = vpack.c.bf16 %v5492, %v5492
    %v5539 = vpack.c.bf16 %v5494, %v5494
    %v5540 = vpack.c.bf16 %v5496, %v5496
    %v5541 = vpack.c.bf16 %v5498, %v5498
    %v5542 = vpack.c.bf16 %v5500, %v5500
    %v5543 = vpack.c.bf16 %v5502, %v5502
    %v5544 = vpack.c.bf16 %v5504, %v5504
    %v5553 = vunpack.c.l.b16 %v5513
    %v5554 = vunpack.c.l.b16 %v5514
    %v5555 = vunpack.c.l.b16 %v5515
    %v5556 = vunpack.c.l.b16 %v5516
    %v5557 = vunpack.c.l.b16 %v5517
    %v5558 = vunpack.c.l.b16 %v5518
    %v5559 = vunpack.c.l.b16 %v5519
    %v5560 = vunpack.c.l.b16 %v5520
    %v5561 = vpack.c.b16 %v5554, %v5553
    %v5562 = vpack.c.b16 %v5556, %v5555
    %v5563 = vpack.c.b16 %v5558, %v5557
    %v5564 = vpack.c.b16 %v5560, %v5559
    %5565 = vrot.lane.b32.xlu0 %v5561, 96
    %v5566 = vpop.permute.xlu0 %5565
    %5567 = vrot.lane.b32.xlu0 %v5562, 96
    %v5568 = vpop.permute.xlu0 %5567
    %5569 = vrot.lane.b32.xlu0 %v5563, 96
    %v5570 = vpop.permute.xlu0 %5569
    %5571 = vrot.lane.b32.xlu0 %v5564, 96
    %v5572 = vpop.permute.xlu0 %5571
    %v5574 = vsel %vm1380, %v5561, 0
    %v5577 = vsel %vm1380, %v5562, 0
    %v5580 = vsel %vm1380, %v5563, 0
    %v5583 = vsel %vm1380, %v5564, 0
    %v5586 = vsel %vm1380, %v5566, 0
    %v5589 = vsel %vm1380, %v5568, 0
    %v5592 = vsel %vm1380, %v5570, 0
    %v5595 = vsel %vm1380, %v5572, 0
    %5597 = vmatpush.bf16.xpose.msra.mxu0 0
    %5598 = vmatpush.bf16.xpose.msra.mxu0 0
    %5599 = vmatpush.bf16.xpose.msra.mxu0 0
    %5600 = vmatpush.bf16.xpose.msra.mxu0 0
    %5601 = vmatpush.bf16.xpose.msra.mxu0 %v5595
    %5602 = vmatpush.bf16.xpose.msra.mxu0 %v5592
    %5603 = vmatpush.bf16.xpose.msra.mxu0 %v5589
    %5604 = vmatpush.bf16.xpose.msra.mxu0 %v5586
    %5605 = vmatmul.bf16.gmra.mxu0 %v5574
    %v5606 = vpop.f32.mrf.mxu0
    %v5607 = vadd.f32 0.0, %v5606
    %v5608 = vpop.f32.mrf.mxu0
    %v5609 = vadd.f32 0.0, %v5608
    %5610 = vmatmul.bf16.gmra.mxu0 %v5577
    %v5611 = vpop.f32.mrf.mxu0
    %v5612 = vadd.f32 0.0, %v5611
    %v5613 = vpop.f32.mrf.mxu0
    %v5614 = vadd.f32 0.0, %v5613
    %5615 = vmatmul.bf16.gmra.mxu0 %v5580
    %v5616 = vpop.f32.mrf.mxu0
    %v5617 = vadd.f32 0.0, %v5616
    %v5618 = vpop.f32.mrf.mxu0
    %v5619 = vadd.f32 0.0, %v5618
    %5620 = vmatmul.bf16.gmra.mxu0 %v5583
    %v5621 = vpop.f32.mrf.mxu0
    %v5622 = vadd.f32 0.0, %v5621
    %v5623 = vpop.f32.mrf.mxu0
    %v5624 = vadd.f32 0.0, %v5623
    %5625 = vdwg.mxu0
    %v5634 = vunpack.c.l.b16 %v5521
    %v5635 = vunpack.c.l.b16 %v5522
    %v5636 = vunpack.c.l.b16 %v5523
    %v5637 = vunpack.c.l.b16 %v5524
    %v5638 = vunpack.c.l.b16 %v5525
    %v5639 = vunpack.c.l.b16 %v5526
    %v5640 = vunpack.c.l.b16 %v5527
    %v5641 = vunpack.c.l.b16 %v5528
    %v5642 = vpack.c.b16 %v5635, %v5634
    %v5643 = vpack.c.b16 %v5637, %v5636
    %v5644 = vpack.c.b16 %v5639, %v5638
    %v5645 = vpack.c.b16 %v5641, %v5640
    %5646 = vrot.lane.b32.xlu0 %v5642, 96
    %v5647 = vpop.permute.xlu0 %5646
    %5648 = vrot.lane.b32.xlu0 %v5643, 96
    %v5649 = vpop.permute.xlu0 %5648
    %5650 = vrot.lane.b32.xlu0 %v5644, 96
    %v5651 = vpop.permute.xlu0 %5650
    %5652 = vrot.lane.b32.xlu0 %v5645, 96
    %v5653 = vpop.permute.xlu0 %5652
    %v5655 = vsel %vm1380, %v5642, 0
    %v5658 = vsel %vm1380, %v5643, 0
    %v5661 = vsel %vm1380, %v5644, 0
    %v5664 = vsel %vm1380, %v5645, 0
    %v5667 = vsel %vm1380, %v5647, 0
    %v5670 = vsel %vm1380, %v5649, 0
    %v5673 = vsel %vm1380, %v5651, 0
    %v5676 = vsel %vm1380, %v5653, 0
    %5678 = vmatpush.bf16.xpose.msra.mxu0 0
    %5679 = vmatpush.bf16.xpose.msra.mxu0 0
    %5680 = vmatpush.bf16.xpose.msra.mxu0 0
    %5681 = vmatpush.bf16.xpose.msra.mxu0 0
    %5682 = vmatpush.bf16.xpose.msra.mxu0 %v5676
    %5683 = vmatpush.bf16.xpose.msra.mxu0 %v5673
    %5684 = vmatpush.bf16.xpose.msra.mxu0 %v5670
    %5685 = vmatpush.bf16.xpose.msra.mxu0 %v5667
    %5686 = vmatmul.bf16.gmra.mxu0 %v5655
    %v5687 = vpop.f32.mrf.mxu0
    %v5688 = vadd.f32 0.0, %v5687
    %v5689 = vpop.f32.mrf.mxu0
    %v5690 = vadd.f32 0.0, %v5689
    %5691 = vmatmul.bf16.gmra.mxu0 %v5658
    %v5692 = vpop.f32.mrf.mxu0
    %v5693 = vadd.f32 0.0, %v5692
    %v5694 = vpop.f32.mrf.mxu0
    %v5695 = vadd.f32 0.0, %v5694
    %5696 = vmatmul.bf16.gmra.mxu0 %v5661
    %v5697 = vpop.f32.mrf.mxu0
    %v5698 = vadd.f32 0.0, %v5697
    %v5699 = vpop.f32.mrf.mxu0
    %v5700 = vadd.f32 0.0, %v5699
    %5701 = vmatmul.bf16.gmra.mxu0 %v5664
    %v5702 = vpop.f32.mrf.mxu0
    %v5703 = vadd.f32 0.0, %v5702
    %v5704 = vpop.f32.mrf.mxu0
    %v5705 = vadd.f32 0.0, %v5704
    %5706 = vdwg.mxu0
    %v5715 = vunpack.c.l.b16 %v5529
    %v5716 = vunpack.c.l.b16 %v5530
    %v5717 = vunpack.c.l.b16 %v5531
    %v5718 = vunpack.c.l.b16 %v5532
    %v5719 = vunpack.c.l.b16 %v5533
    %v5720 = vunpack.c.l.b16 %v5534
    %v5721 = vunpack.c.l.b16 %v5535
    %v5722 = vunpack.c.l.b16 %v5536
    %v5723 = vpack.c.b16 %v5716, %v5715
    %v5724 = vpack.c.b16 %v5718, %v5717
    %v5725 = vpack.c.b16 %v5720, %v5719
    %v5726 = vpack.c.b16 %v5722, %v5721
    %5727 = vrot.lane.b32.xlu0 %v5723, 96
    %v5728 = vpop.permute.xlu0 %5727
    %5729 = vrot.lane.b32.xlu0 %v5724, 96
    %v5730 = vpop.permute.xlu0 %5729
    %5731 = vrot.lane.b32.xlu0 %v5725, 96
    %v5732 = vpop.permute.xlu0 %5731
    %5733 = vrot.lane.b32.xlu0 %v5726, 96
    %v5734 = vpop.permute.xlu0 %5733
    %v5736 = vsel %vm1380, %v5723, 0
    %v5739 = vsel %vm1380, %v5724, 0
    %v5742 = vsel %vm1380, %v5725, 0
    %v5745 = vsel %vm1380, %v5726, 0
    %v5748 = vsel %vm1380, %v5728, 0
    %v5751 = vsel %vm1380, %v5730, 0
    %v5754 = vsel %vm1380, %v5732, 0
    %v5757 = vsel %vm1380, %v5734, 0
    %5759 = vmatpush.bf16.xpose.msra.mxu0 0
    %5760 = vmatpush.bf16.xpose.msra.mxu0 0
    %5761 = vmatpush.bf16.xpose.msra.mxu0 0
    %5762 = vmatpush.bf16.xpose.msra.mxu0 0
    %5763 = vmatpush.bf16.xpose.msra.mxu0 %v5757
    %5764 = vmatpush.bf16.xpose.msra.mxu0 %v5754
    %5765 = vmatpush.bf16.xpose.msra.mxu0 %v5751
    %5766 = vmatpush.bf16.xpose.msra.mxu0 %v5748
    %5767 = vmatmul.bf16.gmra.mxu0 %v5736
    %v5768 = vpop.f32.mrf.mxu0
    %v5769 = vadd.f32 0.0, %v5768
    %v5770 = vpop.f32.mrf.mxu0
    %v5771 = vadd.f32 0.0, %v5770
    %5772 = vmatmul.bf16.gmra.mxu0 %v5739
    %v5773 = vpop.f32.mrf.mxu0
    %v5774 = vadd.f32 0.0, %v5773
    %v5775 = vpop.f32.mrf.mxu0
    %v5776 = vadd.f32 0.0, %v5775
    %5777 = vmatmul.bf16.gmra.mxu0 %v5742
    %v5778 = vpop.f32.mrf.mxu0
    %v5779 = vadd.f32 0.0, %v5778
    %v5780 = vpop.f32.mrf.mxu0
    %v5781 = vadd.f32 0.0, %v5780
    %5782 = vmatmul.bf16.gmra.mxu0 %v5745
    %v5783 = vpop.f32.mrf.mxu0
    %v5784 = vadd.f32 0.0, %v5783
    %v5785 = vpop.f32.mrf.mxu0
    %v5786 = vadd.f32 0.0, %v5785
    %5787 = vdwg.mxu0
    %v5796 = vunpack.c.l.b16 %v5537
    %v5797 = vunpack.c.l.b16 %v5538
    %v5798 = vunpack.c.l.b16 %v5539
    %v5799 = vunpack.c.l.b16 %v5540
    %v5800 = vunpack.c.l.b16 %v5541
    %v5801 = vunpack.c.l.b16 %v5542
    %v5802 = vunpack.c.l.b16 %v5543
    %v5803 = vunpack.c.l.b16 %v5544
    %v5804 = vpack.c.b16 %v5797, %v5796
    %v5805 = vpack.c.b16 %v5799, %v5798
    %v5806 = vpack.c.b16 %v5801, %v5800
    %v5807 = vpack.c.b16 %v5803, %v5802
    %5808 = vrot.lane.b32.xlu0 %v5804, 96
    %v5809 = vpop.permute.xlu0 %5808
    %5810 = vrot.lane.b32.xlu0 %v5805, 96
    %v5811 = vpop.permute.xlu0 %5810
    %5812 = vrot.lane.b32.xlu0 %v5806, 96
    %v5813 = vpop.permute.xlu0 %5812
    %5814 = vrot.lane.b32.xlu0 %v5807, 96
    %v5815 = vpop.permute.xlu0 %5814
    %v5817 = vsel %vm1380, %v5804, 0
    %v5820 = vsel %vm1380, %v5805, 0
    %v5823 = vsel %vm1380, %v5806, 0
    %v5826 = vsel %vm1380, %v5807, 0
    %v5829 = vsel %vm1380, %v5809, 0
    %v5832 = vsel %vm1380, %v5811, 0
    %v5835 = vsel %vm1380, %v5813, 0
    %v5838 = vsel %vm1380, %v5815, 0
    %5840 = vmatpush.bf16.xpose.msra.mxu0 0
    %5841 = vmatpush.bf16.xpose.msra.mxu0 0
    %5842 = vmatpush.bf16.xpose.msra.mxu0 0
    %5843 = vmatpush.bf16.xpose.msra.mxu0 0
    %5844 = vmatpush.bf16.xpose.msra.mxu0 %v5838
    %5845 = vmatpush.bf16.xpose.msra.mxu0 %v5835
    %5846 = vmatpush.bf16.xpose.msra.mxu0 %v5832
    %5847 = vmatpush.bf16.xpose.msra.mxu0 %v5829
    %5848 = vmatmul.bf16.gmra.mxu0 %v5817
    %v5849 = vpop.f32.mrf.mxu0
    %v5850 = vadd.f32 0.0, %v5849
    %v5851 = vpop.f32.mrf.mxu0
    %v5852 = vadd.f32 0.0, %v5851
    %5853 = vmatmul.bf16.gmra.mxu0 %v5820
    %v5854 = vpop.f32.mrf.mxu0
    %v5855 = vadd.f32 0.0, %v5854
    %v5856 = vpop.f32.mrf.mxu0
    %v5857 = vadd.f32 0.0, %v5856
    %5858 = vmatmul.bf16.gmra.mxu0 %v5823
    %v5859 = vpop.f32.mrf.mxu0
    %v5860 = vadd.f32 0.0, %v5859
    %v5861 = vpop.f32.mrf.mxu0
    %v5862 = vadd.f32 0.0, %v5861
    %5863 = vmatmul.bf16.gmra.mxu0 %v5826
    %v5864 = vpop.f32.mrf.mxu0
    %v5865 = vadd.f32 0.0, %v5864
    %v5866 = vpop.f32.mrf.mxu0
    %v5867 = vadd.f32 0.0, %v5866
    %5868 = vdwg.mxu0
    %v5869 = vsel %vm633, %v5607, -inf
    %5870 = vmax.xlane.f32.xlu0 %v5869
    %v5871 = vpop.xlane.xlu0 %5870
    %v5872 = vsel %vm633, %v5609, -inf
    %5873 = vmax.xlane.f32.xlu0 %v5872
    %v5874 = vpop.xlane.xlu0 %5873
    %v5875 = vsel %vm633, %v5612, -inf
    %5876 = vmax.xlane.f32.xlu0 %v5875
    %v5877 = vpop.xlane.xlu0 %5876
    %v5878 = vsel %vm633, %v5614, -inf
    %5879 = vmax.xlane.f32.xlu0 %v5878
    %v5880 = vpop.xlane.xlu0 %5879
    %v5881 = vsel %vm633, %v5617, -inf
    %5882 = vmax.xlane.f32.xlu0 %v5881
    %v5883 = vpop.xlane.xlu0 %5882
    %v5884 = vsel %vm633, %v5619, -inf
    %5885 = vmax.xlane.f32.xlu0 %v5884
    %v5886 = vpop.xlane.xlu0 %5885
    %v5887 = vsel %vm633, %v5622, -inf
    %5888 = vmax.xlane.f32.xlu0 %v5887
    %v5889 = vpop.xlane.xlu0 %5888
    %v5890 = vsel %vm633, %v5624, -inf
    %5891 = vmax.xlane.f32.xlu0 %v5890
    %v5892 = vpop.xlane.xlu0 %5891
    %v5893 = vsel %vm633, %v5688, -inf
    %5894 = vmax.xlane.f32.xlu0 %v5893
    %v5895 = vpop.xlane.xlu0 %5894
    %v5896 = vsel %vm633, %v5690, -inf
    %5897 = vmax.xlane.f32.xlu0 %v5896
    %v5898 = vpop.xlane.xlu0 %5897
    %v5899 = vsel %vm633, %v5693, -inf
    %5900 = vmax.xlane.f32.xlu0 %v5899
    %v5901 = vpop.xlane.xlu0 %5900
    %v5902 = vsel %vm633, %v5695, -inf
    %5903 = vmax.xlane.f32.xlu0 %v5902
    %v5904 = vpop.xlane.xlu0 %5903
    %v5905 = vsel %vm633, %v5698, -inf
    %5906 = vmax.xlane.f32.xlu0 %v5905
    %v5907 = vpop.xlane.xlu0 %5906
    %v5908 = vsel %vm633, %v5700, -inf
    %5909 = vmax.xlane.f32.xlu0 %v5908
    %v5910 = vpop.xlane.xlu0 %5909
    %v5911 = vsel %vm633, %v5703, -inf
    %5912 = vmax.xlane.f32.xlu0 %v5911
    %v5913 = vpop.xlane.xlu0 %5912
    %v5914 = vsel %vm633, %v5705, -inf
    %5915 = vmax.xlane.f32.xlu0 %v5914
    %v5916 = vpop.xlane.xlu0 %5915
    %v5917 = vsel %vm633, %v5769, -inf
    %5918 = vmax.xlane.f32.xlu0 %v5917
    %v5919 = vpop.xlane.xlu0 %5918
    %v5920 = vsel %vm633, %v5771, -inf
    %5921 = vmax.xlane.f32.xlu0 %v5920
    %v5922 = vpop.xlane.xlu0 %5921
    %v5923 = vsel %vm633, %v5774, -inf
    %5924 = vmax.xlane.f32.xlu0 %v5923
    %v5925 = vpop.xlane.xlu0 %5924
    %v5926 = vsel %vm633, %v5776, -inf
    %5927 = vmax.xlane.f32.xlu0 %v5926
    %v5928 = vpop.xlane.xlu0 %5927
    %v5929 = vsel %vm633, %v5779, -inf
    %5930 = vmax.xlane.f32.xlu0 %v5929
    %v5931 = vpop.xlane.xlu0 %5930
    %v5932 = vsel %vm633, %v5781, -inf
    %5933 = vmax.xlane.f32.xlu0 %v5932
    %v5934 = vpop.xlane.xlu0 %5933
    %v5935 = vsel %vm633, %v5784, -inf
    %5936 = vmax.xlane.f32.xlu0 %v5935
    %v5937 = vpop.xlane.xlu0 %5936
    %v5938 = vsel %vm633, %v5786, -inf
    %5939 = vmax.xlane.f32.xlu0 %v5938
    %v5940 = vpop.xlane.xlu0 %5939
    %v5941 = vsel %vm633, %v5850, -inf
    %5942 = vmax.xlane.f32.xlu0 %v5941
    %v5943 = vpop.xlane.xlu0 %5942
    %v5944 = vsel %vm633, %v5852, -inf
    %5945 = vmax.xlane.f32.xlu0 %v5944
    %v5946 = vpop.xlane.xlu0 %5945
    %v5947 = vsel %vm633, %v5855, -inf
    %5948 = vmax.xlane.f32.xlu0 %v5947
    %v5949 = vpop.xlane.xlu0 %5948
    %v5950 = vsel %vm633, %v5857, -inf
    %5951 = vmax.xlane.f32.xlu0 %v5950
    %v5952 = vpop.xlane.xlu0 %5951
    %v5953 = vsel %vm633, %v5860, -inf
    %5954 = vmax.xlane.f32.xlu0 %v5953
    %v5955 = vpop.xlane.xlu0 %5954
    %v5956 = vsel %vm633, %v5862, -inf
    %5957 = vmax.xlane.f32.xlu0 %v5956
    %v5958 = vpop.xlane.xlu0 %5957
    %v5959 = vsel %vm633, %v5865, -inf
    %5960 = vmax.xlane.f32.xlu0 %v5959
    %v5961 = vpop.xlane.xlu0 %5960
    %v5962 = vsel %vm633, %v5867, -inf
    %5963 = vmax.xlane.f32.xlu0 %v5962
    %v5964 = vpop.xlane.xlu0 %5963
    %v5965 = vsub.f32 %v5607, %v5871
    %v5966 = vsub.f32 %v5609, %v5874
    %v5967 = vsub.f32 %v5612, %v5877
    %v5968 = vsub.f32 %v5614, %v5880
    %v5969 = vsub.f32 %v5617, %v5883
    %v5970 = vsub.f32 %v5619, %v5886
    %v5971 = vsub.f32 %v5622, %v5889
    %v5972 = vsub.f32 %v5624, %v5892
    %v5973 = vsub.f32 %v5688, %v5895
    %v5974 = vsub.f32 %v5690, %v5898
    %v5975 = vsub.f32 %v5693, %v5901
    %v5976 = vsub.f32 %v5695, %v5904
    %v5977 = vsub.f32 %v5698, %v5907
    %v5978 = vsub.f32 %v5700, %v5910
    %v5979 = vsub.f32 %v5703, %v5913
    %v5980 = vsub.f32 %v5705, %v5916
    %v5981 = vsub.f32 %v5769, %v5919
    %v5982 = vsub.f32 %v5771, %v5922
    %v5983 = vsub.f32 %v5774, %v5925
    %v5984 = vsub.f32 %v5776, %v5928
    %v5985 = vsub.f32 %v5779, %v5931
    %v5986 = vsub.f32 %v5781, %v5934
    %v5987 = vsub.f32 %v5784, %v5937
    %v5988 = vsub.f32 %v5786, %v5940
    %v5989 = vsub.f32 %v5850, %v5943
    %v5990 = vsub.f32 %v5852, %v5946
    %v5991 = vsub.f32 %v5855, %v5949
    %v5992 = vsub.f32 %v5857, %v5952
    %v5993 = vsub.f32 %v5860, %v5955
    %v5994 = vsub.f32 %v5862, %v5958
    %v5995 = vsub.f32 %v5865, %v5961
    %v5996 = vsub.f32 %v5867, %v5964
    %v5997 = vmul.f32 %v5965, 1.442695
    %v5998 = vpow.pop %v5997
    %v5999 = vmul.f32 %v5966, 1.442695
    %v6000 = vpow.pop %v5999
    %v6001 = vmul.f32 %v5967, 1.442695
    %v6002 = vpow.pop %v6001
    %v6003 = vmul.f32 %v5968, 1.442695
    %v6004 = vpow.pop %v6003
    %v6005 = vmul.f32 %v5969, 1.442695
    %v6006 = vpow.pop %v6005
    %v6007 = vmul.f32 %v5970, 1.442695
    %v6008 = vpow.pop %v6007
    %v6009 = vmul.f32 %v5971, 1.442695
    %v6010 = vpow.pop %v6009
    %v6011 = vmul.f32 %v5972, 1.442695
    %v6012 = vpow.pop %v6011
    %v6013 = vmul.f32 %v5973, 1.442695
    %v6014 = vpow.pop %v6013
    %v6015 = vmul.f32 %v5974, 1.442695
    %v6016 = vpow.pop %v6015
    %v6017 = vmul.f32 %v5975, 1.442695
    %v6018 = vpow.pop %v6017
    %v6019 = vmul.f32 %v5976, 1.442695
    %v6020 = vpow.pop %v6019
    %v6021 = vmul.f32 %v5977, 1.442695
    %v6022 = vpow.pop %v6021
    %v6023 = vmul.f32 %v5978, 1.442695
    %v6024 = vpow.pop %v6023
    %v6025 = vmul.f32 %v5979, 1.442695
    %v6026 = vpow.pop %v6025
    %v6027 = vmul.f32 %v5980, 1.442695
    %v6028 = vpow.pop %v6027
    %v6029 = vmul.f32 %v5981, 1.442695
    %v6030 = vpow.pop %v6029
    %v6031 = vmul.f32 %v5982, 1.442695
    %v6032 = vpow.pop %v6031
    %v6033 = vmul.f32 %v5983, 1.442695
    %v6034 = vpow.pop %v6033
    %v6035 = vmul.f32 %v5984, 1.442695
    %v6036 = vpow.pop %v6035
    %v6037 = vmul.f32 %v5985, 1.442695
    %v6038 = vpow.pop %v6037
    %v6039 = vmul.f32 %v5986, 1.442695
    %v6040 = vpow.pop %v6039
    %v6041 = vmul.f32 %v5987, 1.442695
    %v6042 = vpow.pop %v6041
    %v6043 = vmul.f32 %v5988, 1.442695
    %v6044 = vpow.pop %v6043
    %v6045 = vmul.f32 %v5989, 1.442695
    %v6046 = vpow.pop %v6045
    %v6047 = vmul.f32 %v5990, 1.442695
    %v6048 = vpow.pop %v6047
    %v6049 = vmul.f32 %v5991, 1.442695
    %v6050 = vpow.pop %v6049
    %v6051 = vmul.f32 %v5992, 1.442695
    %v6052 = vpow.pop %v6051
    %v6053 = vmul.f32 %v5993, 1.442695
    %v6054 = vpow.pop %v6053
    %v6055 = vmul.f32 %v5994, 1.442695
    %v6056 = vpow.pop %v6055
    %v6057 = vmul.f32 %v5995, 1.442695
    %v6058 = vpow.pop %v6057
    %v6059 = vmul.f32 %v5996, 1.442695
    %v6060 = vpow.pop %v6059
    %v6061 = vsel %vm633, %v5998, 0.0
    %6062 = vadd.xlane.f32.xlu0 %v6061
    %v6063 = vpop.xlane.xlu0 %6062
    %v6064 = vsel %vm633, %v6000, 0.0
    %6065 = vadd.xlane.f32.xlu0 %v6064
    %v6066 = vpop.xlane.xlu0 %6065
    %v6067 = vsel %vm633, %v6002, 0.0
    %6068 = vadd.xlane.f32.xlu0 %v6067
    %v6069 = vpop.xlane.xlu0 %6068
    %v6070 = vsel %vm633, %v6004, 0.0
    %6071 = vadd.xlane.f32.xlu0 %v6070
    %v6072 = vpop.xlane.xlu0 %6071
    %v6073 = vsel %vm633, %v6006, 0.0
    %6074 = vadd.xlane.f32.xlu0 %v6073
    %v6075 = vpop.xlane.xlu0 %6074
    %v6076 = vsel %vm633, %v6008, 0.0
    %6077 = vadd.xlane.f32.xlu0 %v6076
    %v6078 = vpop.xlane.xlu0 %6077
    %v6079 = vsel %vm633, %v6010, 0.0
    %6080 = vadd.xlane.f32.xlu0 %v6079
    %v6081 = vpop.xlane.xlu0 %6080
    %v6082 = vsel %vm633, %v6012, 0.0
    %6083 = vadd.xlane.f32.xlu0 %v6082
    %v6084 = vpop.xlane.xlu0 %6083
    %v6085 = vsel %vm633, %v6014, 0.0
    %6086 = vadd.xlane.f32.xlu0 %v6085
    %v6087 = vpop.xlane.xlu0 %6086
    %v6088 = vsel %vm633, %v6016, 0.0
    %6089 = vadd.xlane.f32.xlu0 %v6088
    %v6090 = vpop.xlane.xlu0 %6089
    %v6091 = vsel %vm633, %v6018, 0.0
    %6092 = vadd.xlane.f32.xlu0 %v6091
    %v6093 = vpop.xlane.xlu0 %6092
    %v6094 = vsel %vm633, %v6020, 0.0
    %6095 = vadd.xlane.f32.xlu0 %v6094
    %v6096 = vpop.xlane.xlu0 %6095
    %v6097 = vsel %vm633, %v6022, 0.0
    %6098 = vadd.xlane.f32.xlu0 %v6097
    %v6099 = vpop.xlane.xlu0 %6098
    %v6100 = vsel %vm633, %v6024, 0.0
    %6101 = vadd.xlane.f32.xlu0 %v6100
    %v6102 = vpop.xlane.xlu0 %6101
    %v6103 = vsel %vm633, %v6026, 0.0
    %6104 = vadd.xlane.f32.xlu0 %v6103
    %v6105 = vpop.xlane.xlu0 %6104
    %v6106 = vsel %vm633, %v6028, 0.0
    %6107 = vadd.xlane.f32.xlu0 %v6106
    %v6108 = vpop.xlane.xlu0 %6107
    %v6109 = vsel %vm633, %v6030, 0.0
    %6110 = vadd.xlane.f32.xlu0 %v6109
    %v6111 = vpop.xlane.xlu0 %6110
    %v6112 = vsel %vm633, %v6032, 0.0
    %6113 = vadd.xlane.f32.xlu0 %v6112
    %v6114 = vpop.xlane.xlu0 %6113
    %v6115 = vsel %vm633, %v6034, 0.0
    %6116 = vadd.xlane.f32.xlu0 %v6115
    %v6117 = vpop.xlane.xlu0 %6116
    %v6118 = vsel %vm633, %v6036, 0.0
    %6119 = vadd.xlane.f32.xlu0 %v6118
    %v6120 = vpop.xlane.xlu0 %6119
    %v6121 = vsel %vm633, %v6038, 0.0
    %6122 = vadd.xlane.f32.xlu0 %v6121
    %v6123 = vpop.xlane.xlu0 %6122
    %v6124 = vsel %vm633, %v6040, 0.0
    %6125 = vadd.xlane.f32.xlu0 %v6124
    %v6126 = vpop.xlane.xlu0 %6125
    %v6127 = vsel %vm633, %v6042, 0.0
    %6128 = vadd.xlane.f32.xlu0 %v6127
    %v6129 = vpop.xlane.xlu0 %6128
    %v6130 = vsel %vm633, %v6044, 0.0
    %6131 = vadd.xlane.f32.xlu0 %v6130
    %v6132 = vpop.xlane.xlu0 %6131
    %v6133 = vsel %vm633, %v6046, 0.0
    %6134 = vadd.xlane.f32.xlu0 %v6133
    %v6135 = vpop.xlane.xlu0 %6134
    %v6136 = vsel %vm633, %v6048, 0.0
    %6137 = vadd.xlane.f32.xlu0 %v6136
    %v6138 = vpop.xlane.xlu0 %6137
    %v6139 = vsel %vm633, %v6050, 0.0
    %6140 = vadd.xlane.f32.xlu0 %v6139
    %v6141 = vpop.xlane.xlu0 %6140
    %v6142 = vsel %vm633, %v6052, 0.0
    %6143 = vadd.xlane.f32.xlu0 %v6142
    %v6144 = vpop.xlane.xlu0 %6143
    %v6145 = vsel %vm633, %v6054, 0.0
    %6146 = vadd.xlane.f32.xlu0 %v6145
    %v6147 = vpop.xlane.xlu0 %6146
    %v6148 = vsel %vm633, %v6056, 0.0
    %6149 = vadd.xlane.f32.xlu0 %v6148
    %v6150 = vpop.xlane.xlu0 %6149
    %v6151 = vsel %vm633, %v6058, 0.0
    %6152 = vadd.xlane.f32.xlu0 %v6151
    %v6153 = vpop.xlane.xlu0 %6152
    %v6154 = vsel %vm633, %v6060, 0.0
    %6155 = vadd.xlane.f32.xlu0 %v6154
    %v6156 = vpop.xlane.xlu0 %6155
    %v6157 = vpack.c.bf16 %v5998, %v5998
    %v6158 = vpack.c.bf16 %v6000, %v6000
    %v6159 = vpack.c.bf16 %v6002, %v6002
    %v6160 = vpack.c.bf16 %v6004, %v6004
    %v6161 = vpack.c.bf16 %v6006, %v6006
    %v6162 = vpack.c.bf16 %v6008, %v6008
    %v6163 = vpack.c.bf16 %v6010, %v6010
    %v6164 = vpack.c.bf16 %v6012, %v6012
    %v6165 = vpack.c.bf16 %v6014, %v6014
    %v6166 = vpack.c.bf16 %v6016, %v6016
    %v6167 = vpack.c.bf16 %v6018, %v6018
    %v6168 = vpack.c.bf16 %v6020, %v6020
    %v6169 = vpack.c.bf16 %v6022, %v6022
    %v6170 = vpack.c.bf16 %v6024, %v6024
    %v6171 = vpack.c.bf16 %v6026, %v6026
    %v6172 = vpack.c.bf16 %v6028, %v6028
    %v6173 = vpack.c.bf16 %v6030, %v6030
    %v6174 = vpack.c.bf16 %v6032, %v6032
    %v6175 = vpack.c.bf16 %v6034, %v6034
    %v6176 = vpack.c.bf16 %v6036, %v6036
    %v6177 = vpack.c.bf16 %v6038, %v6038
    %v6178 = vpack.c.bf16 %v6040, %v6040
    %v6179 = vpack.c.bf16 %v6042, %v6042
    %v6180 = vpack.c.bf16 %v6044, %v6044
    %v6181 = vpack.c.bf16 %v6046, %v6046
    %v6182 = vpack.c.bf16 %v6048, %v6048
    %v6183 = vpack.c.bf16 %v6050, %v6050
    %v6184 = vpack.c.bf16 %v6052, %v6052
    %v6185 = vpack.c.bf16 %v6054, %v6054
    %v6186 = vpack.c.bf16 %v6056, %v6056
    %v6187 = vpack.c.bf16 %v6058, %v6058
    %v6188 = vpack.c.bf16 %v6060, %v6060
    %v6197 = vunpack.c.l.b16 %v6157
    %v6198 = vunpack.c.l.b16 %v6158
    %v6199 = vunpack.c.l.b16 %v6159
    %v6200 = vunpack.c.l.b16 %v6160
    %v6201 = vunpack.c.l.b16 %v6161
    %v6202 = vunpack.c.l.b16 %v6162
    %v6203 = vunpack.c.l.b16 %v6163
    %v6204 = vunpack.c.l.b16 %v6164
    %v6205 = vpack.c.b16 %v6198, %v6197
    %v6206 = vpack.c.b16 %v6200, %v6199
    %v6207 = vpack.c.b16 %v6202, %v6201
    %v6208 = vpack.c.b16 %v6204, %v6203
    %6209 = vrot.lane.b32.xlu0 %v5561, 64
    %v6210 = vpop.permute.xlu0 %6209
    %6211 = vrot.lane.b32.xlu0 %v5562, 64
    %v6212 = vpop.permute.xlu0 %6211
    %6213 = vrot.lane.b32.xlu0 %v5563, 64
    %v6214 = vpop.permute.xlu0 %6213
    %6215 = vrot.lane.b32.xlu0 %v5564, 64
    %v6216 = vpop.permute.xlu0 %6215
    %v6222 = vsel %vm633, %v6205, 0
    %v6225 = vsel %vm633, %v6206, 0
    %v6228 = vsel %vm633, %v6207, 0
    %v6231 = vsel %vm633, %v6208, 0
    %6233 = vmatpush.bf16.msra.mxu0 0
    %6234 = vmatpush.bf16.msra.mxu0 0
    %6235 = vmatpush.bf16.msra.mxu0 0
    %6236 = vmatpush.bf16.msra.mxu0 0
    %6237 = vmatpush.bf16.msra.mxu0 %v6216
    %6238 = vmatpush.bf16.msra.mxu0 %v6214
    %6239 = vmatpush.bf16.msra.mxu0 %v6212
    %6240 = vmatpush.bf16.msra.mxu0 %v6210
    %6241 = vmatmul.bf16.gmra.mxu0 %v6222
    %v6242 = vpop.f32.mrf.mxu0
    %v6243 = vadd.f32 0.0, %v6242
    %v6244 = vpop.f32.mrf.mxu0
    %v6245 = vadd.f32 0.0, %v6244
    %6246 = vmatmul.bf16.gmra.mxu0 %v6225
    %v6247 = vpop.f32.mrf.mxu0
    %v6248 = vadd.f32 0.0, %v6247
    %v6249 = vpop.f32.mrf.mxu0
    %v6250 = vadd.f32 0.0, %v6249
    %6251 = vmatmul.bf16.gmra.mxu0 %v6228
    %v6252 = vpop.f32.mrf.mxu0
    %v6253 = vadd.f32 0.0, %v6252
    %v6254 = vpop.f32.mrf.mxu0
    %v6255 = vadd.f32 0.0, %v6254
    %6256 = vmatmul.bf16.gmra.mxu0 %v6231
    %v6257 = vpop.f32.mrf.mxu0
    %v6258 = vadd.f32 0.0, %v6257
    %v6259 = vpop.f32.mrf.mxu0
    %v6260 = vadd.f32 0.0, %v6259
    %6261 = vdwg.mxu0
    %v6270 = vunpack.c.l.b16 %v6165
    %v6271 = vunpack.c.l.b16 %v6166
    %v6272 = vunpack.c.l.b16 %v6167
    %v6273 = vunpack.c.l.b16 %v6168
    %v6274 = vunpack.c.l.b16 %v6169
    %v6275 = vunpack.c.l.b16 %v6170
    %v6276 = vunpack.c.l.b16 %v6171
    %v6277 = vunpack.c.l.b16 %v6172
    %v6278 = vpack.c.b16 %v6271, %v6270
    %v6279 = vpack.c.b16 %v6273, %v6272
    %v6280 = vpack.c.b16 %v6275, %v6274
    %v6281 = vpack.c.b16 %v6277, %v6276
    %6282 = vrot.lane.b32.xlu0 %v5642, 64
    %v6283 = vpop.permute.xlu0 %6282
    %6284 = vrot.lane.b32.xlu0 %v5643, 64
    %v6285 = vpop.permute.xlu0 %6284
    %6286 = vrot.lane.b32.xlu0 %v5644, 64
    %v6287 = vpop.permute.xlu0 %6286
    %6288 = vrot.lane.b32.xlu0 %v5645, 64
    %v6289 = vpop.permute.xlu0 %6288
    %v6295 = vsel %vm633, %v6278, 0
    %v6298 = vsel %vm633, %v6279, 0
    %v6301 = vsel %vm633, %v6280, 0
    %v6304 = vsel %vm633, %v6281, 0
    %6306 = vmatpush.bf16.msra.mxu0 0
    %6307 = vmatpush.bf16.msra.mxu0 0
    %6308 = vmatpush.bf16.msra.mxu0 0
    %6309 = vmatpush.bf16.msra.mxu0 0
    %6310 = vmatpush.bf16.msra.mxu0 %v6289
    %6311 = vmatpush.bf16.msra.mxu0 %v6287
    %6312 = vmatpush.bf16.msra.mxu0 %v6285
    %6313 = vmatpush.bf16.msra.mxu0 %v6283
    %6314 = vmatmul.bf16.gmra.mxu0 %v6295
    %v6315 = vpop.f32.mrf.mxu0
    %v6316 = vadd.f32 0.0, %v6315
    %v6317 = vpop.f32.mrf.mxu0
    %v6318 = vadd.f32 0.0, %v6317
    %6319 = vmatmul.bf16.gmra.mxu0 %v6298
    %v6320 = vpop.f32.mrf.mxu0
    %v6321 = vadd.f32 0.0, %v6320
    %v6322 = vpop.f32.mrf.mxu0
    %v6323 = vadd.f32 0.0, %v6322
    %6324 = vmatmul.bf16.gmra.mxu0 %v6301
    %v6325 = vpop.f32.mrf.mxu0
    %v6326 = vadd.f32 0.0, %v6325
    %v6327 = vpop.f32.mrf.mxu0
    %v6328 = vadd.f32 0.0, %v6327
    %6329 = vmatmul.bf16.gmra.mxu0 %v6304
    %v6330 = vpop.f32.mrf.mxu0
    %v6331 = vadd.f32 0.0, %v6330
    %v6332 = vpop.f32.mrf.mxu0
    %v6333 = vadd.f32 0.0, %v6332
    %6334 = vdwg.mxu0
    %v6343 = vunpack.c.l.b16 %v6173
    %v6344 = vunpack.c.l.b16 %v6174
    %v6345 = vunpack.c.l.b16 %v6175
    %v6346 = vunpack.c.l.b16 %v6176
    %v6347 = vunpack.c.l.b16 %v6177
    %v6348 = vunpack.c.l.b16 %v6178
    %v6349 = vunpack.c.l.b16 %v6179
    %v6350 = vunpack.c.l.b16 %v6180
    %v6351 = vpack.c.b16 %v6344, %v6343
    %v6352 = vpack.c.b16 %v6346, %v6345
    %v6353 = vpack.c.b16 %v6348, %v6347
    %v6354 = vpack.c.b16 %v6350, %v6349
    %6355 = vrot.lane.b32.xlu0 %v5723, 64
    %v6356 = vpop.permute.xlu0 %6355
    %6357 = vrot.lane.b32.xlu0 %v5724, 64
    %v6358 = vpop.permute.xlu0 %6357
    %6359 = vrot.lane.b32.xlu0 %v5725, 64
    %v6360 = vpop.permute.xlu0 %6359
    %6361 = vrot.lane.b32.xlu0 %v5726, 64
    %v6362 = vpop.permute.xlu0 %6361
    %v6368 = vsel %vm633, %v6351, 0
    %v6371 = vsel %vm633, %v6352, 0
    %v6374 = vsel %vm633, %v6353, 0
    %v6377 = vsel %vm633, %v6354, 0
    %6379 = vmatpush.bf16.msra.mxu0 0
    %6380 = vmatpush.bf16.msra.mxu0 0
    %6381 = vmatpush.bf16.msra.mxu0 0
    %6382 = vmatpush.bf16.msra.mxu0 0
    %6383 = vmatpush.bf16.msra.mxu0 %v6362
    %6384 = vmatpush.bf16.msra.mxu0 %v6360
    %6385 = vmatpush.bf16.msra.mxu0 %v6358
    %6386 = vmatpush.bf16.msra.mxu0 %v6356
    %6387 = vmatmul.bf16.gmra.mxu0 %v6368
    %v6388 = vpop.f32.mrf.mxu0
    %v6389 = vadd.f32 0.0, %v6388
    %v6390 = vpop.f32.mrf.mxu0
    %v6391 = vadd.f32 0.0, %v6390
    %6392 = vmatmul.bf16.gmra.mxu0 %v6371
    %v6393 = vpop.f32.mrf.mxu0
    %v6394 = vadd.f32 0.0, %v6393
    %v6395 = vpop.f32.mrf.mxu0
    %v6396 = vadd.f32 0.0, %v6395
    %6397 = vmatmul.bf16.gmra.mxu0 %v6374
    %v6398 = vpop.f32.mrf.mxu0
    %v6399 = vadd.f32 0.0, %v6398
    %v6400 = vpop.f32.mrf.mxu0
    %v6401 = vadd.f32 0.0, %v6400
    %6402 = vmatmul.bf16.gmra.mxu0 %v6377
    %v6403 = vpop.f32.mrf.mxu0
    %v6404 = vadd.f32 0.0, %v6403
    %v6405 = vpop.f32.mrf.mxu0
    %v6406 = vadd.f32 0.0, %v6405
    %6407 = vdwg.mxu0
    %v6416 = vunpack.c.l.b16 %v6181
    %v6417 = vunpack.c.l.b16 %v6182
    %v6418 = vunpack.c.l.b16 %v6183
    %v6419 = vunpack.c.l.b16 %v6184
    %v6420 = vunpack.c.l.b16 %v6185
    %v6421 = vunpack.c.l.b16 %v6186
    %v6422 = vunpack.c.l.b16 %v6187
    %v6423 = vunpack.c.l.b16 %v6188
    %v6424 = vpack.c.b16 %v6417, %v6416
    %v6425 = vpack.c.b16 %v6419, %v6418
    %v6426 = vpack.c.b16 %v6421, %v6420
    %v6427 = vpack.c.b16 %v6423, %v6422
    %6428 = vrot.lane.b32.xlu0 %v5804, 64
    %v6429 = vpop.permute.xlu0 %6428
    %6430 = vrot.lane.b32.xlu0 %v5805, 64
    %v6431 = vpop.permute.xlu0 %6430
    %6432 = vrot.lane.b32.xlu0 %v5806, 64
    %v6433 = vpop.permute.xlu0 %6432
    %6434 = vrot.lane.b32.xlu0 %v5807, 64
    %v6435 = vpop.permute.xlu0 %6434
    %v6441 = vsel %vm633, %v6424, 0
    %v6444 = vsel %vm633, %v6425, 0
    %v6447 = vsel %vm633, %v6426, 0
    %v6450 = vsel %vm633, %v6427, 0
    %6452 = vmatpush.bf16.msra.mxu0 0
    %6453 = vmatpush.bf16.msra.mxu0 0
    %6454 = vmatpush.bf16.msra.mxu0 0
    %6455 = vmatpush.bf16.msra.mxu0 0
    %6456 = vmatpush.bf16.msra.mxu0 %v6435
    %6457 = vmatpush.bf16.msra.mxu0 %v6433
    %6458 = vmatpush.bf16.msra.mxu0 %v6431
    %6459 = vmatpush.bf16.msra.mxu0 %v6429
    %6460 = vmatmul.bf16.gmra.mxu0 %v6441
    %v6461 = vpop.f32.mrf.mxu0
    %v6462 = vadd.f32 0.0, %v6461
    %v6463 = vpop.f32.mrf.mxu0
    %v6464 = vadd.f32 0.0, %v6463
    %6465 = vmatmul.bf16.gmra.mxu0 %v6444
    %v6466 = vpop.f32.mrf.mxu0
    %v6467 = vadd.f32 0.0, %v6466
    %v6468 = vpop.f32.mrf.mxu0
    %v6469 = vadd.f32 0.0, %v6468
    %6470 = vmatmul.bf16.gmra.mxu0 %v6447
    %v6471 = vpop.f32.mrf.mxu0
    %v6472 = vadd.f32 0.0, %v6471
    %v6473 = vpop.f32.mrf.mxu0
    %v6474 = vadd.f32 0.0, %v6473
    %6475 = vmatmul.bf16.gmra.mxu0 %v6450
    %v6476 = vpop.f32.mrf.mxu0
    %v6477 = vadd.f32 0.0, %v6476
    %v6478 = vpop.f32.mrf.mxu0
    %v6479 = vadd.f32 0.0, %v6478
    %6480 = vdwg.mxu0
    %v6481 = vrcp.pop %v6063
    %v6482 = vrcp.pop %v6066
    %v6483 = vrcp.pop %v6069
    %v6484 = vrcp.pop %v6072
    %v6485 = vrcp.pop %v6075
    %v6486 = vrcp.pop %v6078
    %v6487 = vrcp.pop %v6081
    %v6488 = vrcp.pop %v6084
    %v6489 = vrcp.pop %v6087
    %v6490 = vrcp.pop %v6090
    %v6491 = vrcp.pop %v6093
    %v6492 = vrcp.pop %v6096
    %v6493 = vrcp.pop %v6099
    %v6494 = vrcp.pop %v6102
    %v6495 = vrcp.pop %v6105
    %v6496 = vrcp.pop %v6108
    %v6497 = vrcp.pop %v6111
    %v6498 = vrcp.pop %v6114
    %v6499 = vrcp.pop %v6117
    %v6500 = vrcp.pop %v6120
    %v6501 = vrcp.pop %v6123
    %v6502 = vrcp.pop %v6126
    %v6503 = vrcp.pop %v6129
    %v6504 = vrcp.pop %v6132
    %v6505 = vrcp.pop %v6135
    %v6506 = vrcp.pop %v6138
    %v6507 = vrcp.pop %v6141
    %v6508 = vrcp.pop %v6144
    %v6509 = vrcp.pop %v6147
    %v6510 = vrcp.pop %v6150
    %v6511 = vrcp.pop %v6153
    %v6512 = vrcp.pop %v6156
    %v6513 = vmul.f32 %v6243, %v6481
    %v6514 = vmul.f32 %v6245, %v6482
    %v6515 = vmul.f32 %v6248, %v6483
    %v6516 = vmul.f32 %v6250, %v6484
    %v6517 = vmul.f32 %v6253, %v6485
    %v6518 = vmul.f32 %v6255, %v6486
    %v6519 = vmul.f32 %v6258, %v6487
    %v6520 = vmul.f32 %v6260, %v6488
    %v6521 = vmul.f32 %v6316, %v6489
    %v6522 = vmul.f32 %v6318, %v6490
    %v6523 = vmul.f32 %v6321, %v6491
    %v6524 = vmul.f32 %v6323, %v6492
    %v6525 = vmul.f32 %v6326, %v6493
    %v6526 = vmul.f32 %v6328, %v6494
    %v6527 = vmul.f32 %v6331, %v6495
    %v6528 = vmul.f32 %v6333, %v6496
    %v6529 = vmul.f32 %v6389, %v6497
    %v6530 = vmul.f32 %v6391, %v6498
    %v6531 = vmul.f32 %v6394, %v6499
    %v6532 = vmul.f32 %v6396, %v6500
    %v6533 = vmul.f32 %v6399, %v6501
    %v6534 = vmul.f32 %v6401, %v6502
    %v6535 = vmul.f32 %v6404, %v6503
    %v6536 = vmul.f32 %v6406, %v6504
    %v6537 = vmul.f32 %v6462, %v6505
    %v6538 = vmul.f32 %v6464, %v6506
    %v6539 = vmul.f32 %v6467, %v6507
    %v6540 = vmul.f32 %v6469, %v6508
    %v6541 = vmul.f32 %v6472, %v6509
    %v6542 = vmul.f32 %v6474, %v6510
    %v6543 = vmul.f32 %v6477, %v6511
    %v6544 = vmul.f32 %v6479, %v6512
    %6553 = vrot.lane.b32.xlu0 %v5414, 120
    %v6554 = vpop.permute.xlu0 %6553
    %6555 = vrot.lane.b32.xlu0 %v5416, 120
    %v6556 = vpop.permute.xlu0 %6555
    %6557 = vrot.lane.b32.xlu0 %v5419, 120
    %v6558 = vpop.permute.xlu0 %6557
    %6559 = vrot.lane.b32.xlu0 %v5421, 120
    %v6560 = vpop.permute.xlu0 %6559
    %6561 = vrot.lane.b32.xlu0 %v5424, 120
    %v6562 = vpop.permute.xlu0 %6561
    %6563 = vrot.lane.b32.xlu0 %v5426, 120
    %v6564 = vpop.permute.xlu0 %6563
    %6565 = vrot.lane.b32.xlu0 %v5429, 120
    %v6566 = vpop.permute.xlu0 %6565
    %6567 = vrot.lane.b32.xlu0 %v5431, 120
    %v6568 = vpop.permute.xlu0 %6567
    %6577 = vrot.lane.b32.xlu0 %v5414, 112
    %v6578 = vpop.permute.xlu0 %6577
    %6579 = vrot.lane.b32.xlu0 %v5416, 112
    %v6580 = vpop.permute.xlu0 %6579
    %6581 = vrot.lane.b32.xlu0 %v5419, 112
    %v6582 = vpop.permute.xlu0 %6581
    %6583 = vrot.lane.b32.xlu0 %v5421, 112
    %v6584 = vpop.permute.xlu0 %6583
    %6585 = vrot.lane.b32.xlu0 %v5424, 112
    %v6586 = vpop.permute.xlu0 %6585
    %6587 = vrot.lane.b32.xlu0 %v5426, 112
    %v6588 = vpop.permute.xlu0 %6587
    %6589 = vrot.lane.b32.xlu0 %v5429, 112
    %v6590 = vpop.permute.xlu0 %6589
    %6591 = vrot.lane.b32.xlu0 %v5431, 112
    %v6592 = vpop.permute.xlu0 %6591
    %6601 = vrot.lane.b32.xlu0 %v5414, 104
    %v6602 = vpop.permute.xlu0 %6601
    %6603 = vrot.lane.b32.xlu0 %v5416, 104
    %v6604 = vpop.permute.xlu0 %6603
    %6605 = vrot.lane.b32.xlu0 %v5419, 104
    %v6606 = vpop.permute.xlu0 %6605
    %6607 = vrot.lane.b32.xlu0 %v5421, 104
    %v6608 = vpop.permute.xlu0 %6607
    %6609 = vrot.lane.b32.xlu0 %v5424, 104
    %v6610 = vpop.permute.xlu0 %6609
    %6611 = vrot.lane.b32.xlu0 %v5426, 104
    %v6612 = vpop.permute.xlu0 %6611
    %6613 = vrot.lane.b32.xlu0 %v5429, 104
    %v6614 = vpop.permute.xlu0 %6613
    %6615 = vrot.lane.b32.xlu0 %v5431, 104
    %v6616 = vpop.permute.xlu0 %6615
    %v6625 = vpack.c.bf16 %v5414, %v5414
    %v6626 = vpack.c.bf16 %v5416, %v5416
    %v6627 = vpack.c.bf16 %v5419, %v5419
    %v6628 = vpack.c.bf16 %v5421, %v5421
    %v6629 = vpack.c.bf16 %v5424, %v5424
    %v6630 = vpack.c.bf16 %v5426, %v5426
    %v6631 = vpack.c.bf16 %v5429, %v5429
    %v6632 = vpack.c.bf16 %v5431, %v5431
    %v6633 = vpack.c.bf16 %v6554, %v6554
    %v6634 = vpack.c.bf16 %v6556, %v6556
    %v6635 = vpack.c.bf16 %v6558, %v6558
    %v6636 = vpack.c.bf16 %v6560, %v6560
    %v6637 = vpack.c.bf16 %v6562, %v6562
    %v6638 = vpack.c.bf16 %v6564, %v6564
    %v6639 = vpack.c.bf16 %v6566, %v6566
    %v6640 = vpack.c.bf16 %v6568, %v6568
    %v6641 = vpack.c.bf16 %v6578, %v6578
    %v6642 = vpack.c.bf16 %v6580, %v6580
    %v6643 = vpack.c.bf16 %v6582, %v6582
    %v6644 = vpack.c.bf16 %v6584, %v6584
    %v6645 = vpack.c.bf16 %v6586, %v6586
    %v6646 = vpack.c.bf16 %v6588, %v6588
    %v6647 = vpack.c.bf16 %v6590, %v6590
    %v6648 = vpack.c.bf16 %v6592, %v6592
    %v6649 = vpack.c.bf16 %v6602, %v6602
    %v6650 = vpack.c.bf16 %v6604, %v6604
    %v6651 = vpack.c.bf16 %v6606, %v6606
    %v6652 = vpack.c.bf16 %v6608, %v6608
    %v6653 = vpack.c.bf16 %v6610, %v6610
    %v6654 = vpack.c.bf16 %v6612, %v6612
    %v6655 = vpack.c.bf16 %v6614, %v6614
    %v6656 = vpack.c.bf16 %v6616, %v6616
    %v6665 = vunpack.c.l.b16 %v6625
    %v6666 = vunpack.c.l.b16 %v6626
    %v6667 = vunpack.c.l.b16 %v6627
    %v6668 = vunpack.c.l.b16 %v6628
    %v6669 = vunpack.c.l.b16 %v6629
    %v6670 = vunpack.c.l.b16 %v6630
    %v6671 = vunpack.c.l.b16 %v6631
    %v6672 = vunpack.c.l.b16 %v6632
    %v6673 = vpack.c.b16 %v6666, %v6665
    %v6674 = vpack.c.b16 %v6668, %v6667
    %v6675 = vpack.c.b16 %v6670, %v6669
    %v6676 = vpack.c.b16 %v6672, %v6671
    %6677 = vrot.lane.b32.xlu0 %v6673, 96
    %v6678 = vpop.permute.xlu0 %6677
    %6679 = vrot.lane.b32.xlu0 %v6674, 96
    %v6680 = vpop.permute.xlu0 %6679
    %6681 = vrot.lane.b32.xlu0 %v6675, 96
    %v6682 = vpop.permute.xlu0 %6681
    %6683 = vrot.lane.b32.xlu0 %v6676, 96
    %v6684 = vpop.permute.xlu0 %6683
    %v6686 = vsel %vm1380, %v6673, 0
    %v6689 = vsel %vm1380, %v6674, 0
    %v6692 = vsel %vm1380, %v6675, 0
    %v6695 = vsel %vm1380, %v6676, 0
    %v6698 = vsel %vm1380, %v6678, 0
    %v6701 = vsel %vm1380, %v6680, 0
    %v6704 = vsel %vm1380, %v6682, 0
    %v6707 = vsel %vm1380, %v6684, 0
    %6709 = vmatpush.bf16.xpose.msra.mxu0 0
    %6710 = vmatpush.bf16.xpose.msra.mxu0 0
    %6711 = vmatpush.bf16.xpose.msra.mxu0 0
    %6712 = vmatpush.bf16.xpose.msra.mxu0 0
    %6713 = vmatpush.bf16.xpose.msra.mxu0 %v6707
    %6714 = vmatpush.bf16.xpose.msra.mxu0 %v6704
    %6715 = vmatpush.bf16.xpose.msra.mxu0 %v6701
    %6716 = vmatpush.bf16.xpose.msra.mxu0 %v6698
    %6717 = vmatmul.bf16.gmra.mxu0 %v6686
    %v6718 = vpop.f32.mrf.mxu0
    %v6719 = vadd.f32 0.0, %v6718
    %v6720 = vpop.f32.mrf.mxu0
    %v6721 = vadd.f32 0.0, %v6720
    %6722 = vmatmul.bf16.gmra.mxu0 %v6689
    %v6723 = vpop.f32.mrf.mxu0
    %v6724 = vadd.f32 0.0, %v6723
    %v6725 = vpop.f32.mrf.mxu0
    %v6726 = vadd.f32 0.0, %v6725
    %6727 = vmatmul.bf16.gmra.mxu0 %v6692
    %v6728 = vpop.f32.mrf.mxu0
    %v6729 = vadd.f32 0.0, %v6728
    %v6730 = vpop.f32.mrf.mxu0
    %v6731 = vadd.f32 0.0, %v6730
    %6732 = vmatmul.bf16.gmra.mxu0 %v6695
    %v6733 = vpop.f32.mrf.mxu0
    %v6734 = vadd.f32 0.0, %v6733
    %v6735 = vpop.f32.mrf.mxu0
    %v6736 = vadd.f32 0.0, %v6735
    %6737 = vdwg.mxu0
    %v6746 = vunpack.c.l.b16 %v6633
    %v6747 = vunpack.c.l.b16 %v6634
    %v6748 = vunpack.c.l.b16 %v6635
    %v6749 = vunpack.c.l.b16 %v6636
    %v6750 = vunpack.c.l.b16 %v6637
    %v6751 = vunpack.c.l.b16 %v6638
    %v6752 = vunpack.c.l.b16 %v6639
    %v6753 = vunpack.c.l.b16 %v6640
    %v6754 = vpack.c.b16 %v6747, %v6746
    %v6755 = vpack.c.b16 %v6749, %v6748
    %v6756 = vpack.c.b16 %v6751, %v6750
    %v6757 = vpack.c.b16 %v6753, %v6752
    %6758 = vrot.lane.b32.xlu0 %v6754, 96
    %v6759 = vpop.permute.xlu0 %6758
    %6760 = vrot.lane.b32.xlu0 %v6755, 96
    %v6761 = vpop.permute.xlu0 %6760
    %6762 = vrot.lane.b32.xlu0 %v6756, 96
    %v6763 = vpop.permute.xlu0 %6762
    %6764 = vrot.lane.b32.xlu0 %v6757, 96
    %v6765 = vpop.permute.xlu0 %6764
    %v6767 = vsel %vm1380, %v6754, 0
    %v6770 = vsel %vm1380, %v6755, 0
    %v6773 = vsel %vm1380, %v6756, 0
    %v6776 = vsel %vm1380, %v6757, 0
    %v6779 = vsel %vm1380, %v6759, 0
    %v6782 = vsel %vm1380, %v6761, 0
    %v6785 = vsel %vm1380, %v6763, 0
    %v6788 = vsel %vm1380, %v6765, 0
    %6790 = vmatpush.bf16.xpose.msra.mxu0 0
    %6791 = vmatpush.bf16.xpose.msra.mxu0 0
    %6792 = vmatpush.bf16.xpose.msra.mxu0 0
    %6793 = vmatpush.bf16.xpose.msra.mxu0 0
    %6794 = vmatpush.bf16.xpose.msra.mxu0 %v6788
    %6795 = vmatpush.bf16.xpose.msra.mxu0 %v6785
    %6796 = vmatpush.bf16.xpose.msra.mxu0 %v6782
    %6797 = vmatpush.bf16.xpose.msra.mxu0 %v6779
    %6798 = vmatmul.bf16.gmra.mxu0 %v6767
    %v6799 = vpop.f32.mrf.mxu0
    %v6800 = vadd.f32 0.0, %v6799
    %v6801 = vpop.f32.mrf.mxu0
    %v6802 = vadd.f32 0.0, %v6801
    %6803 = vmatmul.bf16.gmra.mxu0 %v6770
    %v6804 = vpop.f32.mrf.mxu0
    %v6805 = vadd.f32 0.0, %v6804
    %v6806 = vpop.f32.mrf.mxu0
    %v6807 = vadd.f32 0.0, %v6806
    %6808 = vmatmul.bf16.gmra.mxu0 %v6773
    %v6809 = vpop.f32.mrf.mxu0
    %v6810 = vadd.f32 0.0, %v6809
    %v6811 = vpop.f32.mrf.mxu0
    %v6812 = vadd.f32 0.0, %v6811
    %6813 = vmatmul.bf16.gmra.mxu0 %v6776
    %v6814 = vpop.f32.mrf.mxu0
    %v6815 = vadd.f32 0.0, %v6814
    %v6816 = vpop.f32.mrf.mxu0
    %v6817 = vadd.f32 0.0, %v6816
    %6818 = vdwg.mxu0
    %v6827 = vunpack.c.l.b16 %v6641
    %v6828 = vunpack.c.l.b16 %v6642
    %v6829 = vunpack.c.l.b16 %v6643
    %v6830 = vunpack.c.l.b16 %v6644
    %v6831 = vunpack.c.l.b16 %v6645
    %v6832 = vunpack.c.l.b16 %v6646
    %v6833 = vunpack.c.l.b16 %v6647
    %v6834 = vunpack.c.l.b16 %v6648
    %v6835 = vpack.c.b16 %v6828, %v6827
    %v6836 = vpack.c.b16 %v6830, %v6829
    %v6837 = vpack.c.b16 %v6832, %v6831
    %v6838 = vpack.c.b16 %v6834, %v6833
    %6839 = vrot.lane.b32.xlu0 %v6835, 96
    %v6840 = vpop.permute.xlu0 %6839
    %6841 = vrot.lane.b32.xlu0 %v6836, 96
    %v6842 = vpop.permute.xlu0 %6841
    %6843 = vrot.lane.b32.xlu0 %v6837, 96
    %v6844 = vpop.permute.xlu0 %6843
    %6845 = vrot.lane.b32.xlu0 %v6838, 96
    %v6846 = vpop.permute.xlu0 %6845
    %v6848 = vsel %vm1380, %v6835, 0
    %v6851 = vsel %vm1380, %v6836, 0
    %v6854 = vsel %vm1380, %v6837, 0
    %v6857 = vsel %vm1380, %v6838, 0
    %v6860 = vsel %vm1380, %v6840, 0
    %v6863 = vsel %vm1380, %v6842, 0
    %v6866 = vsel %vm1380, %v6844, 0
    %v6869 = vsel %vm1380, %v6846, 0
    %6871 = vmatpush.bf16.xpose.msra.mxu0 0
    %6872 = vmatpush.bf16.xpose.msra.mxu0 0
    %6873 = vmatpush.bf16.xpose.msra.mxu0 0
    %6874 = vmatpush.bf16.xpose.msra.mxu0 0
    %6875 = vmatpush.bf16.xpose.msra.mxu0 %v6869
    %6876 = vmatpush.bf16.xpose.msra.mxu0 %v6866
    %6877 = vmatpush.bf16.xpose.msra.mxu0 %v6863
    %6878 = vmatpush.bf16.xpose.msra.mxu0 %v6860
    %6879 = vmatmul.bf16.gmra.mxu0 %v6848
    %v6880 = vpop.f32.mrf.mxu0
    %v6881 = vadd.f32 0.0, %v6880
    %v6882 = vpop.f32.mrf.mxu0
    %v6883 = vadd.f32 0.0, %v6882
    %6884 = vmatmul.bf16.gmra.mxu0 %v6851
    %v6885 = vpop.f32.mrf.mxu0
    %v6886 = vadd.f32 0.0, %v6885
    %v6887 = vpop.f32.mrf.mxu0
    %v6888 = vadd.f32 0.0, %v6887
    %6889 = vmatmul.bf16.gmra.mxu0 %v6854
    %v6890 = vpop.f32.mrf.mxu0
    %v6891 = vadd.f32 0.0, %v6890
    %v6892 = vpop.f32.mrf.mxu0
    %v6893 = vadd.f32 0.0, %v6892
    %6894 = vmatmul.bf16.gmra.mxu0 %v6857
    %v6895 = vpop.f32.mrf.mxu0
    %v6896 = vadd.f32 0.0, %v6895
    %v6897 = vpop.f32.mrf.mxu0
    %v6898 = vadd.f32 0.0, %v6897
    %6899 = vdwg.mxu0
    %v6908 = vunpack.c.l.b16 %v6649
    %v6909 = vunpack.c.l.b16 %v6650
    %v6910 = vunpack.c.l.b16 %v6651
    %v6911 = vunpack.c.l.b16 %v6652
    %v6912 = vunpack.c.l.b16 %v6653
    %v6913 = vunpack.c.l.b16 %v6654
    %v6914 = vunpack.c.l.b16 %v6655
    %v6915 = vunpack.c.l.b16 %v6656
    %v6916 = vpack.c.b16 %v6909, %v6908
    %v6917 = vpack.c.b16 %v6911, %v6910
    %v6918 = vpack.c.b16 %v6913, %v6912
    %v6919 = vpack.c.b16 %v6915, %v6914
    %6920 = vrot.lane.b32.xlu0 %v6916, 96
    %v6921 = vpop.permute.xlu0 %6920
    %6922 = vrot.lane.b32.xlu0 %v6917, 96
    %v6923 = vpop.permute.xlu0 %6922
    %6924 = vrot.lane.b32.xlu0 %v6918, 96
    %v6925 = vpop.permute.xlu0 %6924
    %6926 = vrot.lane.b32.xlu0 %v6919, 96
    %v6927 = vpop.permute.xlu0 %6926
    %v6929 = vsel %vm1380, %v6916, 0
    %v6932 = vsel %vm1380, %v6917, 0
    %v6935 = vsel %vm1380, %v6918, 0
    %v6938 = vsel %vm1380, %v6919, 0
    %v6941 = vsel %vm1380, %v6921, 0
    %v6944 = vsel %vm1380, %v6923, 0
    %v6947 = vsel %vm1380, %v6925, 0
    %v6950 = vsel %vm1380, %v6927, 0
    %6952 = vmatpush.bf16.xpose.msra.mxu0 0
    %6953 = vmatpush.bf16.xpose.msra.mxu0 0
    %6954 = vmatpush.bf16.xpose.msra.mxu0 0
    %6955 = vmatpush.bf16.xpose.msra.mxu0 0
    %6956 = vmatpush.bf16.xpose.msra.mxu0 %v6950
    %6957 = vmatpush.bf16.xpose.msra.mxu0 %v6947
    %6958 = vmatpush.bf16.xpose.msra.mxu0 %v6944
    %6959 = vmatpush.bf16.xpose.msra.mxu0 %v6941
    %6960 = vmatmul.bf16.gmra.mxu0 %v6929
    %v6961 = vpop.f32.mrf.mxu0
    %v6962 = vadd.f32 0.0, %v6961
    %v6963 = vpop.f32.mrf.mxu0
    %v6964 = vadd.f32 0.0, %v6963
    %6965 = vmatmul.bf16.gmra.mxu0 %v6932
    %v6966 = vpop.f32.mrf.mxu0
    %v6967 = vadd.f32 0.0, %v6966
    %v6968 = vpop.f32.mrf.mxu0
    %v6969 = vadd.f32 0.0, %v6968
    %6970 = vmatmul.bf16.gmra.mxu0 %v6935
    %v6971 = vpop.f32.mrf.mxu0
    %v6972 = vadd.f32 0.0, %v6971
    %v6973 = vpop.f32.mrf.mxu0
    %v6974 = vadd.f32 0.0, %v6973
    %6975 = vmatmul.bf16.gmra.mxu0 %v6938
    %v6976 = vpop.f32.mrf.mxu0
    %v6977 = vadd.f32 0.0, %v6976
    %v6978 = vpop.f32.mrf.mxu0
    %v6979 = vadd.f32 0.0, %v6978
    %6980 = vdwg.mxu0
    %v6981 = vsel %vm633, %v6719, -inf
    %6982 = vmax.xlane.f32.xlu0 %v6981
    %v6983 = vpop.xlane.xlu0 %6982
    %v6984 = vsel %vm633, %v6721, -inf
    %6985 = vmax.xlane.f32.xlu0 %v6984
    %v6986 = vpop.xlane.xlu0 %6985
    %v6987 = vsel %vm633, %v6724, -inf
    %6988 = vmax.xlane.f32.xlu0 %v6987
    %v6989 = vpop.xlane.xlu0 %6988
    %v6990 = vsel %vm633, %v6726, -inf
    %6991 = vmax.xlane.f32.xlu0 %v6990
    %v6992 = vpop.xlane.xlu0 %6991
    %v6993 = vsel %vm633, %v6729, -inf
    %6994 = vmax.xlane.f32.xlu0 %v6993
    %v6995 = vpop.xlane.xlu0 %6994
    %v6996 = vsel %vm633, %v6731, -inf
    %6997 = vmax.xlane.f32.xlu0 %v6996
    %v6998 = vpop.xlane.xlu0 %6997
    %v6999 = vsel %vm633, %v6734, -inf
    %7000 = vmax.xlane.f32.xlu0 %v6999
    %v7001 = vpop.xlane.xlu0 %7000
    %v7002 = vsel %vm633, %v6736, -inf
    %7003 = vmax.xlane.f32.xlu0 %v7002
    %v7004 = vpop.xlane.xlu0 %7003
    %v7005 = vsel %vm633, %v6800, -inf
    %7006 = vmax.xlane.f32.xlu0 %v7005
    %v7007 = vpop.xlane.xlu0 %7006
    %v7008 = vsel %vm633, %v6802, -inf
    %7009 = vmax.xlane.f32.xlu0 %v7008
    %v7010 = vpop.xlane.xlu0 %7009
    %v7011 = vsel %vm633, %v6805, -inf
    %7012 = vmax.xlane.f32.xlu0 %v7011
    %v7013 = vpop.xlane.xlu0 %7012
    %v7014 = vsel %vm633, %v6807, -inf
    %7015 = vmax.xlane.f32.xlu0 %v7014
    %v7016 = vpop.xlane.xlu0 %7015
    %v7017 = vsel %vm633, %v6810, -inf
    %7018 = vmax.xlane.f32.xlu0 %v7017
    %v7019 = vpop.xlane.xlu0 %7018
    %v7020 = vsel %vm633, %v6812, -inf
    %7021 = vmax.xlane.f32.xlu0 %v7020
    %v7022 = vpop.xlane.xlu0 %7021
    %v7023 = vsel %vm633, %v6815, -inf
    %7024 = vmax.xlane.f32.xlu0 %v7023
    %v7025 = vpop.xlane.xlu0 %7024
    %v7026 = vsel %vm633, %v6817, -inf
    %7027 = vmax.xlane.f32.xlu0 %v7026
    %v7028 = vpop.xlane.xlu0 %7027
    %v7029 = vsel %vm633, %v6881, -inf
    %7030 = vmax.xlane.f32.xlu0 %v7029
    %v7031 = vpop.xlane.xlu0 %7030
    %v7032 = vsel %vm633, %v6883, -inf
    %7033 = vmax.xlane.f32.xlu0 %v7032
    %v7034 = vpop.xlane.xlu0 %7033
    %v7035 = vsel %vm633, %v6886, -inf
    %7036 = vmax.xlane.f32.xlu0 %v7035
    %v7037 = vpop.xlane.xlu0 %7036
    %v7038 = vsel %vm633, %v6888, -inf
    %7039 = vmax.xlane.f32.xlu0 %v7038
    %v7040 = vpop.xlane.xlu0 %7039
    %v7041 = vsel %vm633, %v6891, -inf
    %7042 = vmax.xlane.f32.xlu0 %v7041
    %v7043 = vpop.xlane.xlu0 %7042
    %v7044 = vsel %vm633, %v6893, -inf
    %7045 = vmax.xlane.f32.xlu0 %v7044
    %v7046 = vpop.xlane.xlu0 %7045
    %v7047 = vsel %vm633, %v6896, -inf
    %7048 = vmax.xlane.f32.xlu0 %v7047
    %v7049 = vpop.xlane.xlu0 %7048
    %v7050 = vsel %vm633, %v6898, -inf
    %7051 = vmax.xlane.f32.xlu0 %v7050
    %v7052 = vpop.xlane.xlu0 %7051
    %v7053 = vsel %vm633, %v6962, -inf
    %7054 = vmax.xlane.f32.xlu0 %v7053
    %v7055 = vpop.xlane.xlu0 %7054
    %v7056 = vsel %vm633, %v6964, -inf
    %7057 = vmax.xlane.f32.xlu0 %v7056
    %v7058 = vpop.xlane.xlu0 %7057
    %v7059 = vsel %vm633, %v6967, -inf
    %7060 = vmax.xlane.f32.xlu0 %v7059
    %v7061 = vpop.xlane.xlu0 %7060
    %v7062 = vsel %vm633, %v6969, -inf
    %7063 = vmax.xlane.f32.xlu0 %v7062
    %v7064 = vpop.xlane.xlu0 %7063
    %v7065 = vsel %vm633, %v6972, -inf
    %7066 = vmax.xlane.f32.xlu0 %v7065
    %v7067 = vpop.xlane.xlu0 %7066
    %v7068 = vsel %vm633, %v6974, -inf
    %7069 = vmax.xlane.f32.xlu0 %v7068
    %v7070 = vpop.xlane.xlu0 %7069
    %v7071 = vsel %vm633, %v6977, -inf
    %7072 = vmax.xlane.f32.xlu0 %v7071
    %v7073 = vpop.xlane.xlu0 %7072
    %v7074 = vsel %vm633, %v6979, -inf
    %7075 = vmax.xlane.f32.xlu0 %v7074
    %v7076 = vpop.xlane.xlu0 %7075
    %v7077 = vsub.f32 %v6719, %v6983
    %v7078 = vsub.f32 %v6721, %v6986
    %v7079 = vsub.f32 %v6724, %v6989
    %v7080 = vsub.f32 %v6726, %v6992
    %v7081 = vsub.f32 %v6729, %v6995
    %v7082 = vsub.f32 %v6731, %v6998
    %v7083 = vsub.f32 %v6734, %v7001
    %v7084 = vsub.f32 %v6736, %v7004
    %v7085 = vsub.f32 %v6800, %v7007
    %v7086 = vsub.f32 %v6802, %v7010
    %v7087 = vsub.f32 %v6805, %v7013
    %v7088 = vsub.f32 %v6807, %v7016
    %v7089 = vsub.f32 %v6810, %v7019
    %v7090 = vsub.f32 %v6812, %v7022
    %v7091 = vsub.f32 %v6815, %v7025
    %v7092 = vsub.f32 %v6817, %v7028
    %v7093 = vsub.f32 %v6881, %v7031
    %v7094 = vsub.f32 %v6883, %v7034
    %v7095 = vsub.f32 %v6886, %v7037
    %v7096 = vsub.f32 %v6888, %v7040
    %v7097 = vsub.f32 %v6891, %v7043
    %v7098 = vsub.f32 %v6893, %v7046
    %v7099 = vsub.f32 %v6896, %v7049
    %v7100 = vsub.f32 %v6898, %v7052
    %v7101 = vsub.f32 %v6962, %v7055
    %v7102 = vsub.f32 %v6964, %v7058
    %v7103 = vsub.f32 %v6967, %v7061
    %v7104 = vsub.f32 %v6969, %v7064
    %v7105 = vsub.f32 %v6972, %v7067
    %v7106 = vsub.f32 %v6974, %v7070
    %v7107 = vsub.f32 %v6977, %v7073
    %v7108 = vsub.f32 %v6979, %v7076
    %v7109 = vmul.f32 %v7077, 1.442695
    %v7110 = vpow.pop %v7109
    %v7111 = vmul.f32 %v7078, 1.442695
    %v7112 = vpow.pop %v7111
    %v7113 = vmul.f32 %v7079, 1.442695
    %v7114 = vpow.pop %v7113
    %v7115 = vmul.f32 %v7080, 1.442695
    %v7116 = vpow.pop %v7115
    %v7117 = vmul.f32 %v7081, 1.442695
    %v7118 = vpow.pop %v7117
    %v7119 = vmul.f32 %v7082, 1.442695
    %v7120 = vpow.pop %v7119
    %v7121 = vmul.f32 %v7083, 1.442695
    %v7122 = vpow.pop %v7121
    %v7123 = vmul.f32 %v7084, 1.442695
    %v7124 = vpow.pop %v7123
    %v7125 = vmul.f32 %v7085, 1.442695
    %v7126 = vpow.pop %v7125
    %v7127 = vmul.f32 %v7086, 1.442695
    %v7128 = vpow.pop %v7127
    %v7129 = vmul.f32 %v7087, 1.442695
    %v7130 = vpow.pop %v7129
    %v7131 = vmul.f32 %v7088, 1.442695
    %v7132 = vpow.pop %v7131
    %v7133 = vmul.f32 %v7089, 1.442695
    %v7134 = vpow.pop %v7133
    %v7135 = vmul.f32 %v7090, 1.442695
    %v7136 = vpow.pop %v7135
    %v7137 = vmul.f32 %v7091, 1.442695
    %v7138 = vpow.pop %v7137
    %v7139 = vmul.f32 %v7092, 1.442695
    %v7140 = vpow.pop %v7139
    %v7141 = vmul.f32 %v7093, 1.442695
    %v7142 = vpow.pop %v7141
    %v7143 = vmul.f32 %v7094, 1.442695
    %v7144 = vpow.pop %v7143
    %v7145 = vmul.f32 %v7095, 1.442695
    %v7146 = vpow.pop %v7145
    %v7147 = vmul.f32 %v7096, 1.442695
    %v7148 = vpow.pop %v7147
    %v7149 = vmul.f32 %v7097, 1.442695
    %v7150 = vpow.pop %v7149
    %v7151 = vmul.f32 %v7098, 1.442695
    %v7152 = vpow.pop %v7151
    %v7153 = vmul.f32 %v7099, 1.442695
    %v7154 = vpow.pop %v7153
    %v7155 = vmul.f32 %v7100, 1.442695
    %v7156 = vpow.pop %v7155
    %v7157 = vmul.f32 %v7101, 1.442695
    %v7158 = vpow.pop %v7157
    %v7159 = vmul.f32 %v7102, 1.442695
    %v7160 = vpow.pop %v7159
    %v7161 = vmul.f32 %v7103, 1.442695
    %v7162 = vpow.pop %v7161
    %v7163 = vmul.f32 %v7104, 1.442695
    %v7164 = vpow.pop %v7163
    %v7165 = vmul.f32 %v7105, 1.442695
    %v7166 = vpow.pop %v7165
    %v7167 = vmul.f32 %v7106, 1.442695
    %v7168 = vpow.pop %v7167
    %v7169 = vmul.f32 %v7107, 1.442695
    %v7170 = vpow.pop %v7169
    %v7171 = vmul.f32 %v7108, 1.442695
    %v7172 = vpow.pop %v7171
    %v7173 = vsel %vm633, %v7110, 0.0
    %7174 = vadd.xlane.f32.xlu0 %v7173
    %v7175 = vpop.xlane.xlu0 %7174
    %v7176 = vsel %vm633, %v7112, 0.0
    %7177 = vadd.xlane.f32.xlu0 %v7176
    %v7178 = vpop.xlane.xlu0 %7177
    %v7179 = vsel %vm633, %v7114, 0.0
    %7180 = vadd.xlane.f32.xlu0 %v7179
    %v7181 = vpop.xlane.xlu0 %7180
    %v7182 = vsel %vm633, %v7116, 0.0
    %7183 = vadd.xlane.f32.xlu0 %v7182
    %v7184 = vpop.xlane.xlu0 %7183
    %v7185 = vsel %vm633, %v7118, 0.0
    %7186 = vadd.xlane.f32.xlu0 %v7185
    %v7187 = vpop.xlane.xlu0 %7186
    %v7188 = vsel %vm633, %v7120, 0.0
    %7189 = vadd.xlane.f32.xlu0 %v7188
    %v7190 = vpop.xlane.xlu0 %7189
    %v7191 = vsel %vm633, %v7122, 0.0
    %7192 = vadd.xlane.f32.xlu0 %v7191
    %v7193 = vpop.xlane.xlu0 %7192
    %v7194 = vsel %vm633, %v7124, 0.0
    %7195 = vadd.xlane.f32.xlu0 %v7194
    %v7196 = vpop.xlane.xlu0 %7195
    %v7197 = vsel %vm633, %v7126, 0.0
    %7198 = vadd.xlane.f32.xlu0 %v7197
    %v7199 = vpop.xlane.xlu0 %7198
    %v7200 = vsel %vm633, %v7128, 0.0
    %7201 = vadd.xlane.f32.xlu0 %v7200
    %v7202 = vpop.xlane.xlu0 %7201
    %v7203 = vsel %vm633, %v7130, 0.0
    %7204 = vadd.xlane.f32.xlu0 %v7203
    %v7205 = vpop.xlane.xlu0 %7204
    %v7206 = vsel %vm633, %v7132, 0.0
    %7207 = vadd.xlane.f32.xlu0 %v7206
    %v7208 = vpop.xlane.xlu0 %7207
    %v7209 = vsel %vm633, %v7134, 0.0
    %7210 = vadd.xlane.f32.xlu0 %v7209
    %v7211 = vpop.xlane.xlu0 %7210
    %v7212 = vsel %vm633, %v7136, 0.0
    %7213 = vadd.xlane.f32.xlu0 %v7212
    %v7214 = vpop.xlane.xlu0 %7213
    %v7215 = vsel %vm633, %v7138, 0.0
    %7216 = vadd.xlane.f32.xlu0 %v7215
    %v7217 = vpop.xlane.xlu0 %7216
    %v7218 = vsel %vm633, %v7140, 0.0
    %7219 = vadd.xlane.f32.xlu0 %v7218
    %v7220 = vpop.xlane.xlu0 %7219
    %v7221 = vsel %vm633, %v7142, 0.0
    %7222 = vadd.xlane.f32.xlu0 %v7221
    %v7223 = vpop.xlane.xlu0 %7222
    %v7224 = vsel %vm633, %v7144, 0.0
    %7225 = vadd.xlane.f32.xlu0 %v7224
    %v7226 = vpop.xlane.xlu0 %7225
    %v7227 = vsel %vm633, %v7146, 0.0
    %7228 = vadd.xlane.f32.xlu0 %v7227
    %v7229 = vpop.xlane.xlu0 %7228
    %v7230 = vsel %vm633, %v7148, 0.0
    %7231 = vadd.xlane.f32.xlu0 %v7230
    %v7232 = vpop.xlane.xlu0 %7231
    %v7233 = vsel %vm633, %v7150, 0.0
    %7234 = vadd.xlane.f32.xlu0 %v7233
    %v7235 = vpop.xlane.xlu0 %7234
    %v7236 = vsel %vm633, %v7152, 0.0
    %7237 = vadd.xlane.f32.xlu0 %v7236
    %v7238 = vpop.xlane.xlu0 %7237
    %v7239 = vsel %vm633, %v7154, 0.0
    %7240 = vadd.xlane.f32.xlu0 %v7239
    %v7241 = vpop.xlane.xlu0 %7240
    %v7242 = vsel %vm633, %v7156, 0.0
    %7243 = vadd.xlane.f32.xlu0 %v7242
    %v7244 = vpop.xlane.xlu0 %7243
    %v7245 = vsel %vm633, %v7158, 0.0
    %7246 = vadd.xlane.f32.xlu0 %v7245
    %v7247 = vpop.xlane.xlu0 %7246
    %v7248 = vsel %vm633, %v7160, 0.0
    %7249 = vadd.xlane.f32.xlu0 %v7248
    %v7250 = vpop.xlane.xlu0 %7249
    %v7251 = vsel %vm633, %v7162, 0.0
    %7252 = vadd.xlane.f32.xlu0 %v7251
    %v7253 = vpop.xlane.xlu0 %7252
    %v7254 = vsel %vm633, %v7164, 0.0
    %7255 = vadd.xlane.f32.xlu0 %v7254
    %v7256 = vpop.xlane.xlu0 %7255
    %v7257 = vsel %vm633, %v7166, 0.0
    %7258 = vadd.xlane.f32.xlu0 %v7257
    %v7259 = vpop.xlane.xlu0 %7258
    %v7260 = vsel %vm633, %v7168, 0.0
    %7261 = vadd.xlane.f32.xlu0 %v7260
    %v7262 = vpop.xlane.xlu0 %7261
    %v7263 = vsel %vm633, %v7170, 0.0
    %7264 = vadd.xlane.f32.xlu0 %v7263
    %v7265 = vpop.xlane.xlu0 %7264
    %v7266 = vsel %vm633, %v7172, 0.0
    %7267 = vadd.xlane.f32.xlu0 %v7266
    %v7268 = vpop.xlane.xlu0 %7267
    %v7269 = vpack.c.bf16 %v7110, %v7110
    %v7270 = vpack.c.bf16 %v7112, %v7112
    %v7271 = vpack.c.bf16 %v7114, %v7114
    %v7272 = vpack.c.bf16 %v7116, %v7116
    %v7273 = vpack.c.bf16 %v7118, %v7118
    %v7274 = vpack.c.bf16 %v7120, %v7120
    %v7275 = vpack.c.bf16 %v7122, %v7122
    %v7276 = vpack.c.bf16 %v7124, %v7124
    %v7277 = vpack.c.bf16 %v7126, %v7126
    %v7278 = vpack.c.bf16 %v7128, %v7128
    %v7279 = vpack.c.bf16 %v7130, %v7130
    %v7280 = vpack.c.bf16 %v7132, %v7132
    %v7281 = vpack.c.bf16 %v7134, %v7134
    %v7282 = vpack.c.bf16 %v7136, %v7136
    %v7283 = vpack.c.bf16 %v7138, %v7138
    %v7284 = vpack.c.bf16 %v7140, %v7140
    %v7285 = vpack.c.bf16 %v7142, %v7142
    %v7286 = vpack.c.bf16 %v7144, %v7144
    %v7287 = vpack.c.bf16 %v7146, %v7146
    %v7288 = vpack.c.bf16 %v7148, %v7148
    %v7289 = vpack.c.bf16 %v7150, %v7150
    %v7290 = vpack.c.bf16 %v7152, %v7152
    %v7291 = vpack.c.bf16 %v7154, %v7154
    %v7292 = vpack.c.bf16 %v7156, %v7156
    %v7293 = vpack.c.bf16 %v7158, %v7158
    %v7294 = vpack.c.bf16 %v7160, %v7160
    %v7295 = vpack.c.bf16 %v7162, %v7162
    %v7296 = vpack.c.bf16 %v7164, %v7164
    %v7297 = vpack.c.bf16 %v7166, %v7166
    %v7298 = vpack.c.bf16 %v7168, %v7168
    %v7299 = vpack.c.bf16 %v7170, %v7170
    %v7300 = vpack.c.bf16 %v7172, %v7172
    %v7309 = vunpack.c.l.b16 %v7269
    %v7310 = vunpack.c.l.b16 %v7270
    %v7311 = vunpack.c.l.b16 %v7271
    %v7312 = vunpack.c.l.b16 %v7272
    %v7313 = vunpack.c.l.b16 %v7273
    %v7314 = vunpack.c.l.b16 %v7274
    %v7315 = vunpack.c.l.b16 %v7275
    %v7316 = vunpack.c.l.b16 %v7276
    %v7317 = vpack.c.b16 %v7310, %v7309
    %v7318 = vpack.c.b16 %v7312, %v7311
    %v7319 = vpack.c.b16 %v7314, %v7313
    %v7320 = vpack.c.b16 %v7316, %v7315
    %7321 = vrot.lane.b32.xlu0 %v6673, 64
    %v7322 = vpop.permute.xlu0 %7321
    %7323 = vrot.lane.b32.xlu0 %v6674, 64
    %v7324 = vpop.permute.xlu0 %7323
    %7325 = vrot.lane.b32.xlu0 %v6675, 64
    %v7326 = vpop.permute.xlu0 %7325
    %7327 = vrot.lane.b32.xlu0 %v6676, 64
    %v7328 = vpop.permute.xlu0 %7327
    %v7334 = vsel %vm633, %v7317, 0
    %v7337 = vsel %vm633, %v7318, 0
    %v7340 = vsel %vm633, %v7319, 0
    %v7343 = vsel %vm633, %v7320, 0
    %7345 = vmatpush.bf16.msra.mxu0 0
    %7346 = vmatpush.bf16.msra.mxu0 0
    %7347 = vmatpush.bf16.msra.mxu0 0
    %7348 = vmatpush.bf16.msra.mxu0 0
    %7349 = vmatpush.bf16.msra.mxu0 %v7328
    %7350 = vmatpush.bf16.msra.mxu0 %v7326
    %7351 = vmatpush.bf16.msra.mxu0 %v7324
    %7352 = vmatpush.bf16.msra.mxu0 %v7322
    %7353 = vmatmul.bf16.gmra.mxu0 %v7334
    %v7354 = vpop.f32.mrf.mxu0
    %v7355 = vadd.f32 0.0, %v7354
    %v7356 = vpop.f32.mrf.mxu0
    %v7357 = vadd.f32 0.0, %v7356
    %7358 = vmatmul.bf16.gmra.mxu0 %v7337
    %v7359 = vpop.f32.mrf.mxu0
    %v7360 = vadd.f32 0.0, %v7359
    %v7361 = vpop.f32.mrf.mxu0
    %v7362 = vadd.f32 0.0, %v7361
    %7363 = vmatmul.bf16.gmra.mxu0 %v7340
    %v7364 = vpop.f32.mrf.mxu0
    %v7365 = vadd.f32 0.0, %v7364
    %v7366 = vpop.f32.mrf.mxu0
    %v7367 = vadd.f32 0.0, %v7366
    %7368 = vmatmul.bf16.gmra.mxu0 %v7343
    %v7369 = vpop.f32.mrf.mxu0
    %v7370 = vadd.f32 0.0, %v7369
    %v7371 = vpop.f32.mrf.mxu0
    %v7372 = vadd.f32 0.0, %v7371
    %7373 = vdwg.mxu0
    %v7382 = vunpack.c.l.b16 %v7277
    %v7383 = vunpack.c.l.b16 %v7278
    %v7384 = vunpack.c.l.b16 %v7279
    %v7385 = vunpack.c.l.b16 %v7280
    %v7386 = vunpack.c.l.b16 %v7281
    %v7387 = vunpack.c.l.b16 %v7282
    %v7388 = vunpack.c.l.b16 %v7283
    %v7389 = vunpack.c.l.b16 %v7284
    %v7390 = vpack.c.b16 %v7383, %v7382
    %v7391 = vpack.c.b16 %v7385, %v7384
    %v7392 = vpack.c.b16 %v7387, %v7386
    %v7393 = vpack.c.b16 %v7389, %v7388
    %7394 = vrot.lane.b32.xlu0 %v6754, 64
    %v7395 = vpop.permute.xlu0 %7394
    %7396 = vrot.lane.b32.xlu0 %v6755, 64
    %v7397 = vpop.permute.xlu0 %7396
    %7398 = vrot.lane.b32.xlu0 %v6756, 64
    %v7399 = vpop.permute.xlu0 %7398
    %7400 = vrot.lane.b32.xlu0 %v6757, 64
    %v7401 = vpop.permute.xlu0 %7400
    %v7407 = vsel %vm633, %v7390, 0
    %v7410 = vsel %vm633, %v7391, 0
    %v7413 = vsel %vm633, %v7392, 0
    %v7416 = vsel %vm633, %v7393, 0
    %7418 = vmatpush.bf16.msra.mxu0 0
    %7419 = vmatpush.bf16.msra.mxu0 0
    %7420 = vmatpush.bf16.msra.mxu0 0
    %7421 = vmatpush.bf16.msra.mxu0 0
    %7422 = vmatpush.bf16.msra.mxu0 %v7401
    %7423 = vmatpush.bf16.msra.mxu0 %v7399
    %7424 = vmatpush.bf16.msra.mxu0 %v7397
    %7425 = vmatpush.bf16.msra.mxu0 %v7395
    %7426 = vmatmul.bf16.gmra.mxu0 %v7407
    %v7427 = vpop.f32.mrf.mxu0
    %v7428 = vadd.f32 0.0, %v7427
    %v7429 = vpop.f32.mrf.mxu0
    %v7430 = vadd.f32 0.0, %v7429
    %7431 = vmatmul.bf16.gmra.mxu0 %v7410
    %v7432 = vpop.f32.mrf.mxu0
    %v7433 = vadd.f32 0.0, %v7432
    %v7434 = vpop.f32.mrf.mxu0
    %v7435 = vadd.f32 0.0, %v7434
    %7436 = vmatmul.bf16.gmra.mxu0 %v7413
    %v7437 = vpop.f32.mrf.mxu0
    %v7438 = vadd.f32 0.0, %v7437
    %v7439 = vpop.f32.mrf.mxu0
    %v7440 = vadd.f32 0.0, %v7439
    %7441 = vmatmul.bf16.gmra.mxu0 %v7416
    %v7442 = vpop.f32.mrf.mxu0
    %v7443 = vadd.f32 0.0, %v7442
    %v7444 = vpop.f32.mrf.mxu0
    %v7445 = vadd.f32 0.0, %v7444
    %7446 = vdwg.mxu0
    %v7455 = vunpack.c.l.b16 %v7285
    %v7456 = vunpack.c.l.b16 %v7286
    %v7457 = vunpack.c.l.b16 %v7287
    %v7458 = vunpack.c.l.b16 %v7288
    %v7459 = vunpack.c.l.b16 %v7289
    %v7460 = vunpack.c.l.b16 %v7290
    %v7461 = vunpack.c.l.b16 %v7291
    %v7462 = vunpack.c.l.b16 %v7292
    %v7463 = vpack.c.b16 %v7456, %v7455
    %v7464 = vpack.c.b16 %v7458, %v7457
    %v7465 = vpack.c.b16 %v7460, %v7459
    %v7466 = vpack.c.b16 %v7462, %v7461
    %7467 = vrot.lane.b32.xlu0 %v6835, 64
    %v7468 = vpop.permute.xlu0 %7467
    %7469 = vrot.lane.b32.xlu0 %v6836, 64
    %v7470 = vpop.permute.xlu0 %7469
    %7471 = vrot.lane.b32.xlu0 %v6837, 64
    %v7472 = vpop.permute.xlu0 %7471
    %7473 = vrot.lane.b32.xlu0 %v6838, 64
    %v7474 = vpop.permute.xlu0 %7473
    %v7480 = vsel %vm633, %v7463, 0
    %v7483 = vsel %vm633, %v7464, 0
    %v7486 = vsel %vm633, %v7465, 0
    %v7489 = vsel %vm633, %v7466, 0
    %7491 = vmatpush.bf16.msra.mxu0 0
    %7492 = vmatpush.bf16.msra.mxu0 0
    %7493 = vmatpush.bf16.msra.mxu0 0
    %7494 = vmatpush.bf16.msra.mxu0 0
    %7495 = vmatpush.bf16.msra.mxu0 %v7474
    %7496 = vmatpush.bf16.msra.mxu0 %v7472
    %7497 = vmatpush.bf16.msra.mxu0 %v7470
    %7498 = vmatpush.bf16.msra.mxu0 %v7468
    %7499 = vmatmul.bf16.gmra.mxu0 %v7480
    %v7500 = vpop.f32.mrf.mxu0
    %v7501 = vadd.f32 0.0, %v7500
    %v7502 = vpop.f32.mrf.mxu0
    %v7503 = vadd.f32 0.0, %v7502
    %7504 = vmatmul.bf16.gmra.mxu0 %v7483
    %v7505 = vpop.f32.mrf.mxu0
    %v7506 = vadd.f32 0.0, %v7505
    %v7507 = vpop.f32.mrf.mxu0
    %v7508 = vadd.f32 0.0, %v7507
    %7509 = vmatmul.bf16.gmra.mxu0 %v7486
    %v7510 = vpop.f32.mrf.mxu0
    %v7511 = vadd.f32 0.0, %v7510
    %v7512 = vpop.f32.mrf.mxu0
    %v7513 = vadd.f32 0.0, %v7512
    %7514 = vmatmul.bf16.gmra.mxu0 %v7489
    %v7515 = vpop.f32.mrf.mxu0
    %v7516 = vadd.f32 0.0, %v7515
    %v7517 = vpop.f32.mrf.mxu0
    %v7518 = vadd.f32 0.0, %v7517
    %7519 = vdwg.mxu0
    %v7528 = vunpack.c.l.b16 %v7293
    %v7529 = vunpack.c.l.b16 %v7294
    %v7530 = vunpack.c.l.b16 %v7295
    %v7531 = vunpack.c.l.b16 %v7296
    %v7532 = vunpack.c.l.b16 %v7297
    %v7533 = vunpack.c.l.b16 %v7298
    %v7534 = vunpack.c.l.b16 %v7299
    %v7535 = vunpack.c.l.b16 %v7300
    %v7536 = vpack.c.b16 %v7529, %v7528
    %v7537 = vpack.c.b16 %v7531, %v7530
    %v7538 = vpack.c.b16 %v7533, %v7532
    %v7539 = vpack.c.b16 %v7535, %v7534
    %7540 = vrot.lane.b32.xlu0 %v6916, 64
    %v7541 = vpop.permute.xlu0 %7540
    %7542 = vrot.lane.b32.xlu0 %v6917, 64
    %v7543 = vpop.permute.xlu0 %7542
    %7544 = vrot.lane.b32.xlu0 %v6918, 64
    %v7545 = vpop.permute.xlu0 %7544
    %7546 = vrot.lane.b32.xlu0 %v6919, 64
    %v7547 = vpop.permute.xlu0 %7546
    %v7553 = vsel %vm633, %v7536, 0
    %v7556 = vsel %vm633, %v7537, 0
    %v7559 = vsel %vm633, %v7538, 0
    %v7562 = vsel %vm633, %v7539, 0
    %7564 = vmatpush.bf16.msra.mxu0 0
    %7565 = vmatpush.bf16.msra.mxu0 0
    %7566 = vmatpush.bf16.msra.mxu0 0
    %7567 = vmatpush.bf16.msra.mxu0 0
    %7568 = vmatpush.bf16.msra.mxu0 %v7547
    %7569 = vmatpush.bf16.msra.mxu0 %v7545
    %7570 = vmatpush.bf16.msra.mxu0 %v7543
    %7571 = vmatpush.bf16.msra.mxu0 %v7541
    %7572 = vmatmul.bf16.gmra.mxu0 %v7553
    %v7573 = vpop.f32.mrf.mxu0
    %v7574 = vadd.f32 0.0, %v7573
    %v7575 = vpop.f32.mrf.mxu0
    %v7576 = vadd.f32 0.0, %v7575
    %7577 = vmatmul.bf16.gmra.mxu0 %v7556
    %v7578 = vpop.f32.mrf.mxu0
    %v7579 = vadd.f32 0.0, %v7578
    %v7580 = vpop.f32.mrf.mxu0
    %v7581 = vadd.f32 0.0, %v7580
    %7582 = vmatmul.bf16.gmra.mxu0 %v7559
    %v7583 = vpop.f32.mrf.mxu0
    %v7584 = vadd.f32 0.0, %v7583
    %v7585 = vpop.f32.mrf.mxu0
    %v7586 = vadd.f32 0.0, %v7585
    %7587 = vmatmul.bf16.gmra.mxu0 %v7562
    %v7588 = vpop.f32.mrf.mxu0
    %v7589 = vadd.f32 0.0, %v7588
    %v7590 = vpop.f32.mrf.mxu0
    %v7591 = vadd.f32 0.0, %v7590
    %7592 = vdwg.mxu0
    %v7593 = vrcp.pop %v7175
    %v7594 = vrcp.pop %v7178
    %v7595 = vrcp.pop %v7181
    %v7596 = vrcp.pop %v7184
    %v7597 = vrcp.pop %v7187
    %v7598 = vrcp.pop %v7190
    %v7599 = vrcp.pop %v7193
    %v7600 = vrcp.pop %v7196
    %v7601 = vrcp.pop %v7199
    %v7602 = vrcp.pop %v7202
    %v7603 = vrcp.pop %v7205
    %v7604 = vrcp.pop %v7208
    %v7605 = vrcp.pop %v7211
    %v7606 = vrcp.pop %v7214
    %v7607 = vrcp.pop %v7217
    %v7608 = vrcp.pop %v7220
    %v7609 = vrcp.pop %v7223
    %v7610 = vrcp.pop %v7226
    %v7611 = vrcp.pop %v7229
    %v7612 = vrcp.pop %v7232
    %v7613 = vrcp.pop %v7235
    %v7614 = vrcp.pop %v7238
    %v7615 = vrcp.pop %v7241
    %v7616 = vrcp.pop %v7244
    %v7617 = vrcp.pop %v7247
    %v7618 = vrcp.pop %v7250
    %v7619 = vrcp.pop %v7253
    %v7620 = vrcp.pop %v7256
    %v7621 = vrcp.pop %v7259
    %v7622 = vrcp.pop %v7262
    %v7623 = vrcp.pop %v7265
    %v7624 = vrcp.pop %v7268
    %v7625 = vmul.f32 %v7355, %v7593
    %v7626 = vmul.f32 %v7357, %v7594
    %v7627 = vmul.f32 %v7360, %v7595
    %v7628 = vmul.f32 %v7362, %v7596
    %v7629 = vmul.f32 %v7365, %v7597
    %v7630 = vmul.f32 %v7367, %v7598
    %v7631 = vmul.f32 %v7370, %v7599
    %v7632 = vmul.f32 %v7372, %v7600
    %v7633 = vmul.f32 %v7428, %v7601
    %v7634 = vmul.f32 %v7430, %v7602
    %v7635 = vmul.f32 %v7433, %v7603
    %v7636 = vmul.f32 %v7435, %v7604
    %v7637 = vmul.f32 %v7438, %v7605
    %v7638 = vmul.f32 %v7440, %v7606
    %v7639 = vmul.f32 %v7443, %v7607
    %v7640 = vmul.f32 %v7445, %v7608
    %v7641 = vmul.f32 %v7501, %v7609
    %v7642 = vmul.f32 %v7503, %v7610
    %v7643 = vmul.f32 %v7506, %v7611
    %v7644 = vmul.f32 %v7508, %v7612
    %v7645 = vmul.f32 %v7511, %v7613
    %v7646 = vmul.f32 %v7513, %v7614
    %v7647 = vmul.f32 %v7516, %v7615
    %v7648 = vmul.f32 %v7518, %v7616
    %v7649 = vmul.f32 %v7574, %v7617
    %v7650 = vmul.f32 %v7576, %v7618
    %v7651 = vmul.f32 %v7579, %v7619
    %v7652 = vmul.f32 %v7581, %v7620
    %v7653 = vmul.f32 %v7584, %v7621
    %v7654 = vmul.f32 %v7586, %v7622
    %v7655 = vmul.f32 %v7589, %v7623
    %v7656 = vmul.f32 %v7591, %v7624
    %v7657 = vpack.c.bf16 %v6513, %v6513
    %v7658 = vpack.c.bf16 %v6514, %v6514
    %v7659 = vpack.c.bf16 %v6515, %v6515
    %v7660 = vpack.c.bf16 %v6516, %v6516
    %v7661 = vpack.c.bf16 %v6517, %v6517
    %v7662 = vpack.c.bf16 %v6518, %v6518
    %v7663 = vpack.c.bf16 %v6519, %v6519
    %v7664 = vpack.c.bf16 %v6520, %v6520
    %v7665 = vpack.c.bf16 %v7625, %v7625
    %v7666 = vpack.c.bf16 %v7626, %v7626
    %v7667 = vpack.c.bf16 %v7627, %v7627
    %v7668 = vpack.c.bf16 %v7628, %v7628
    %v7669 = vpack.c.bf16 %v7629, %v7629
    %v7670 = vpack.c.bf16 %v7630, %v7630
    %v7671 = vpack.c.bf16 %v7631, %v7631
    %v7672 = vpack.c.bf16 %v7632, %v7632
    %v7673 = vpack.c.bf16 %v6521, %v6521
    %v7674 = vpack.c.bf16 %v6522, %v6522
    %v7675 = vpack.c.bf16 %v6523, %v6523
    %v7676 = vpack.c.bf16 %v6524, %v6524
    %v7677 = vpack.c.bf16 %v6525, %v6525
    %v7678 = vpack.c.bf16 %v6526, %v6526
    %v7679 = vpack.c.bf16 %v6527, %v6527
    %v7680 = vpack.c.bf16 %v6528, %v6528
    %v7681 = vpack.c.bf16 %v7633, %v7633
    %v7682 = vpack.c.bf16 %v7634, %v7634
    %v7683 = vpack.c.bf16 %v7635, %v7635
    %v7684 = vpack.c.bf16 %v7636, %v7636
    %v7685 = vpack.c.bf16 %v7637, %v7637
    %v7686 = vpack.c.bf16 %v7638, %v7638
    %v7687 = vpack.c.bf16 %v7639, %v7639
    %v7688 = vpack.c.bf16 %v7640, %v7640
    %v7689 = vpack.c.bf16 %v6529, %v6529
    %v7690 = vpack.c.bf16 %v6530, %v6530
    %v7691 = vpack.c.bf16 %v6531, %v6531
    %v7692 = vpack.c.bf16 %v6532, %v6532
    %v7693 = vpack.c.bf16 %v6533, %v6533
    %v7694 = vpack.c.bf16 %v6534, %v6534
    %v7695 = vpack.c.bf16 %v6535, %v6535
    %v7696 = vpack.c.bf16 %v6536, %v6536
    %v7697 = vpack.c.bf16 %v7641, %v7641
    %v7698 = vpack.c.bf16 %v7642, %v7642
    %v7699 = vpack.c.bf16 %v7643, %v7643
    %v7700 = vpack.c.bf16 %v7644, %v7644
    %v7701 = vpack.c.bf16 %v7645, %v7645
    %v7702 = vpack.c.bf16 %v7646, %v7646
    %v7703 = vpack.c.bf16 %v7647, %v7647
    %v7704 = vpack.c.bf16 %v7648, %v7648
    %v7705 = vpack.c.bf16 %v6537, %v6537
    %v7706 = vpack.c.bf16 %v6538, %v6538
    %v7707 = vpack.c.bf16 %v6539, %v6539
    %v7708 = vpack.c.bf16 %v6540, %v6540
    %v7709 = vpack.c.bf16 %v6541, %v6541
    %v7710 = vpack.c.bf16 %v6542, %v6542
    %v7711 = vpack.c.bf16 %v6543, %v6543
    %v7712 = vpack.c.bf16 %v6544, %v6544
    %v7713 = vpack.c.bf16 %v7649, %v7649
    %v7714 = vpack.c.bf16 %v7650, %v7650
    %v7715 = vpack.c.bf16 %v7651, %v7651
    %v7716 = vpack.c.bf16 %v7652, %v7652
    %v7717 = vpack.c.bf16 %v7653, %v7653
    %v7718 = vpack.c.bf16 %v7654, %v7654
    %v7719 = vpack.c.bf16 %v7655, %v7655
    %v7720 = vpack.c.bf16 %v7656, %v7656
    %v7721 = vld [vmem:[#allocation27] sm:$0xf]
    %v7722 = vld [vmem:[#allocation27 + $0x4] sm:$0xf]
    %v7723 = vld [vmem:[#allocation27 + $0x8] sm:$0xf]
    %v7724 = vld [vmem:[#allocation27 + $0xc] sm:$0xf]
    %v7741 = vunpack.c.l.b16 %v7657
    %v7742 = vunpack.c.l.b16 %v7658
    %v7743 = vunpack.c.l.b16 %v7659
    %v7744 = vunpack.c.l.b16 %v7660
    %v7745 = vunpack.c.l.b16 %v7661
    %v7746 = vunpack.c.l.b16 %v7662
    %v7747 = vunpack.c.l.b16 %v7663
    %v7748 = vunpack.c.l.b16 %v7664
    %v7749 = vunpack.c.l.b16 %v7665
    %v7750 = vunpack.c.l.b16 %v7666
    %v7751 = vunpack.c.l.b16 %v7667
    %v7752 = vunpack.c.l.b16 %v7668
    %v7753 = vunpack.c.l.b16 %v7669
    %v7754 = vunpack.c.l.b16 %v7670
    %v7755 = vunpack.c.l.b16 %v7671
    %v7756 = vunpack.c.l.b16 %v7672
    %v7757 = vpack.c.b16 %v7742, %v7741
    %v7758 = vpack.c.b16 %v7744, %v7743
    %v7759 = vpack.c.b16 %v7746, %v7745
    %v7760 = vpack.c.b16 %v7748, %v7747
    %v7761 = vpack.c.b16 %v7750, %v7749
    %v7762 = vpack.c.b16 %v7752, %v7751
    %v7763 = vpack.c.b16 %v7754, %v7753
    %v7764 = vpack.c.b16 %v7756, %v7755
    %v7766 = vsel %vm1380, %v7757, 0
    %v7769 = vsel %vm1380, %v7758, 0
    %v7772 = vsel %vm1380, %v7759, 0
    %v7775 = vsel %vm1380, %v7760, 0
    %v7778 = vsel %vm1380, %v7761, 0
    %v7781 = vsel %vm1380, %v7762, 0
    %v7784 = vsel %vm1380, %v7763, 0
    %v7787 = vsel %vm1380, %v7764, 0
    %v7790 = vsel %vm3597, %v7721, 0
    %7792 = vmatpush.bf16.msra.mxu0 0
    %7793 = vmatpush.bf16.msra.mxu0 0
    %7794 = vmatpush.bf16.msra.mxu0 0
    %7795 = vmatpush.bf16.msra.mxu0 0
    %7796 = vmatpush.bf16.msra.mxu0 0
    %7797 = vmatpush.bf16.msra.mxu0 0
    %7798 = vmatpush.bf16.msra.mxu0 0
    %7799 = vmatpush.bf16.msra.mxu0 %v7790
    %7800 = vmatmul.bf16.gmra.mxu0 %v7766
    %v7801 = vpop.f32.mrf.mxu0
    %v7802 = vadd.f32 0.0, %v7801
    %v7803 = vpop.f32.mrf.mxu0
    %v7804 = vadd.f32 0.0, %v7803
    %7805 = vmatmul.bf16.gmra.mxu0 %v7769
    %v7806 = vpop.f32.mrf.mxu0
    %v7807 = vadd.f32 0.0, %v7806
    %v7808 = vpop.f32.mrf.mxu0
    %v7809 = vadd.f32 0.0, %v7808
    %7810 = vmatmul.bf16.gmra.mxu0 %v7772
    %v7811 = vpop.f32.mrf.mxu0
    %v7812 = vadd.f32 0.0, %v7811
    %v7813 = vpop.f32.mrf.mxu0
    %v7814 = vadd.f32 0.0, %v7813
    %7815 = vmatmul.bf16.gmra.mxu0 %v7775
    %v7816 = vpop.f32.mrf.mxu0
    %v7817 = vadd.f32 0.0, %v7816
    %v7818 = vpop.f32.mrf.mxu0
    %v7819 = vadd.f32 0.0, %v7818
    %7820 = vmatmul.bf16.gmra.mxu0 %v7778
    %v7821 = vpop.f32.mrf.mxu0
    %v7822 = vadd.f32 0.0, %v7821
    %v7823 = vpop.f32.mrf.mxu0
    %v7824 = vadd.f32 0.0, %v7823
    %7825 = vmatmul.bf16.gmra.mxu0 %v7781
    %v7826 = vpop.f32.mrf.mxu0
    %v7827 = vadd.f32 0.0, %v7826
    %v7828 = vpop.f32.mrf.mxu0
    %v7829 = vadd.f32 0.0, %v7828
    %7830 = vmatmul.bf16.gmra.mxu0 %v7784
    %v7831 = vpop.f32.mrf.mxu0
    %v7832 = vadd.f32 0.0, %v7831
    %v7833 = vpop.f32.mrf.mxu0
    %v7834 = vadd.f32 0.0, %v7833
    %7835 = vmatmul.bf16.gmra.mxu0 %v7787
    %v7836 = vpop.f32.mrf.mxu0
    %v7837 = vadd.f32 0.0, %v7836
    %v7838 = vpop.f32.mrf.mxu0
    %v7839 = vadd.f32 0.0, %v7838
    %7840 = vdwg.mxu0
    %v7857 = vunpack.c.l.b16 %v7673
    %v7858 = vunpack.c.l.b16 %v7674
    %v7859 = vunpack.c.l.b16 %v7675
    %v7860 = vunpack.c.l.b16 %v7676
    %v7861 = vunpack.c.l.b16 %v7677
    %v7862 = vunpack.c.l.b16 %v7678
    %v7863 = vunpack.c.l.b16 %v7679
    %v7864 = vunpack.c.l.b16 %v7680
    %v7865 = vunpack.c.l.b16 %v7681
    %v7866 = vunpack.c.l.b16 %v7682
    %v7867 = vunpack.c.l.b16 %v7683
    %v7868 = vunpack.c.l.b16 %v7684
    %v7869 = vunpack.c.l.b16 %v7685
    %v7870 = vunpack.c.l.b16 %v7686
    %v7871 = vunpack.c.l.b16 %v7687
    %v7872 = vunpack.c.l.b16 %v7688
    %v7873 = vpack.c.b16 %v7858, %v7857
    %v7874 = vpack.c.b16 %v7860, %v7859
    %v7875 = vpack.c.b16 %v7862, %v7861
    %v7876 = vpack.c.b16 %v7864, %v7863
    %v7877 = vpack.c.b16 %v7866, %v7865
    %v7878 = vpack.c.b16 %v7868, %v7867
    %v7879 = vpack.c.b16 %v7870, %v7869
    %v7880 = vpack.c.b16 %v7872, %v7871
    %v7882 = vsel %vm1380, %v7873, 0
    %v7885 = vsel %vm1380, %v7874, 0
    %v7888 = vsel %vm1380, %v7875, 0
    %v7891 = vsel %vm1380, %v7876, 0
    %v7894 = vsel %vm1380, %v7877, 0
    %v7897 = vsel %vm1380, %v7878, 0
    %v7900 = vsel %vm1380, %v7879, 0
    %v7903 = vsel %vm1380, %v7880, 0
    %v7906 = vsel %vm3597, %v7722, 0
    %7908 = vmatpush.bf16.msra.mxu0 0
    %7909 = vmatpush.bf16.msra.mxu0 0
    %7910 = vmatpush.bf16.msra.mxu0 0
    %7911 = vmatpush.bf16.msra.mxu0 0
    %7912 = vmatpush.bf16.msra.mxu0 0
    %7913 = vmatpush.bf16.msra.mxu0 0
    %7914 = vmatpush.bf16.msra.mxu0 0
    %7915 = vmatpush.bf16.msra.mxu0 %v7906
    %7916 = vmatmul.bf16.gmra.mxu0 %v7882
    %v7917 = vpop.f32.mrf.mxu0
    %v7918 = vadd.f32 0.0, %v7917
    %v7919 = vpop.f32.mrf.mxu0
    %v7920 = vadd.f32 0.0, %v7919
    %7921 = vmatmul.bf16.gmra.mxu0 %v7885
    %v7922 = vpop.f32.mrf.mxu0
    %v7923 = vadd.f32 0.0, %v7922
    %v7924 = vpop.f32.mrf.mxu0
    %v7925 = vadd.f32 0.0, %v7924
    %7926 = vmatmul.bf16.gmra.mxu0 %v7888
    %v7927 = vpop.f32.mrf.mxu0
    %v7928 = vadd.f32 0.0, %v7927
    %v7929 = vpop.f32.mrf.mxu0
    %v7930 = vadd.f32 0.0, %v7929
    %7931 = vmatmul.bf16.gmra.mxu0 %v7891
    %v7932 = vpop.f32.mrf.mxu0
    %v7933 = vadd.f32 0.0, %v7932
    %v7934 = vpop.f32.mrf.mxu0
    %v7935 = vadd.f32 0.0, %v7934
    %7936 = vmatmul.bf16.gmra.mxu0 %v7894
    %v7937 = vpop.f32.mrf.mxu0
    %v7938 = vadd.f32 0.0, %v7937
    %v7939 = vpop.f32.mrf.mxu0
    %v7940 = vadd.f32 0.0, %v7939
    %7941 = vmatmul.bf16.gmra.mxu0 %v7897
    %v7942 = vpop.f32.mrf.mxu0
    %v7943 = vadd.f32 0.0, %v7942
    %v7944 = vpop.f32.mrf.mxu0
    %v7945 = vadd.f32 0.0, %v7944
    %7946 = vmatmul.bf16.gmra.mxu0 %v7900
    %v7947 = vpop.f32.mrf.mxu0
    %v7948 = vadd.f32 0.0, %v7947
    %v7949 = vpop.f32.mrf.mxu0
    %v7950 = vadd.f32 0.0, %v7949
    %7951 = vmatmul.bf16.gmra.mxu0 %v7903
    %v7952 = vpop.f32.mrf.mxu0
    %v7953 = vadd.f32 0.0, %v7952
    %v7954 = vpop.f32.mrf.mxu0
    %v7955 = vadd.f32 0.0, %v7954
    %7956 = vdwg.mxu0
    %v7973 = vunpack.c.l.b16 %v7689
    %v7974 = vunpack.c.l.b16 %v7690
    %v7975 = vunpack.c.l.b16 %v7691
    %v7976 = vunpack.c.l.b16 %v7692
    %v7977 = vunpack.c.l.b16 %v7693
    %v7978 = vunpack.c.l.b16 %v7694
    %v7979 = vunpack.c.l.b16 %v7695
    %v7980 = vunpack.c.l.b16 %v7696
    %v7981 = vunpack.c.l.b16 %v7697
    %v7982 = vunpack.c.l.b16 %v7698
    %v7983 = vunpack.c.l.b16 %v7699
    %v7984 = vunpack.c.l.b16 %v7700
    %v7985 = vunpack.c.l.b16 %v7701
    %v7986 = vunpack.c.l.b16 %v7702
    %v7987 = vunpack.c.l.b16 %v7703
    %v7988 = vunpack.c.l.b16 %v7704
    %v7989 = vpack.c.b16 %v7974, %v7973
    %v7990 = vpack.c.b16 %v7976, %v7975
    %v7991 = vpack.c.b16 %v7978, %v7977
    %v7992 = vpack.c.b16 %v7980, %v7979
    %v7993 = vpack.c.b16 %v7982, %v7981
    %v7994 = vpack.c.b16 %v7984, %v7983
    %v7995 = vpack.c.b16 %v7986, %v7985
    %v7996 = vpack.c.b16 %v7988, %v7987
    %v7998 = vsel %vm1380, %v7989, 0
    %v8001 = vsel %vm1380, %v7990, 0
    %v8004 = vsel %vm1380, %v7991, 0
    %v8007 = vsel %vm1380, %v7992, 0
    %v8010 = vsel %vm1380, %v7993, 0
    %v8013 = vsel %vm1380, %v7994, 0
    %v8016 = vsel %vm1380, %v7995, 0
    %v8019 = vsel %vm1380, %v7996, 0
    %v8022 = vsel %vm3597, %v7723, 0
    %8024 = vmatpush.bf16.msra.mxu0 0
    %8025 = vmatpush.bf16.msra.mxu0 0
    %8026 = vmatpush.bf16.msra.mxu0 0
    %8027 = vmatpush.bf16.msra.mxu0 0
    %8028 = vmatpush.bf16.msra.mxu0 0
    %8029 = vmatpush.bf16.msra.mxu0 0
    %8030 = vmatpush.bf16.msra.mxu0 0
    %8031 = vmatpush.bf16.msra.mxu0 %v8022
    %8032 = vmatmul.bf16.gmra.mxu0 %v7998
    %v8033 = vpop.f32.mrf.mxu0
    %v8034 = vadd.f32 0.0, %v8033
    %v8035 = vpop.f32.mrf.mxu0
    %v8036 = vadd.f32 0.0, %v8035
    %8037 = vmatmul.bf16.gmra.mxu0 %v8001
    %v8038 = vpop.f32.mrf.mxu0
    %v8039 = vadd.f32 0.0, %v8038
    %v8040 = vpop.f32.mrf.mxu0
    %v8041 = vadd.f32 0.0, %v8040
    %8042 = vmatmul.bf16.gmra.mxu0 %v8004
    %v8043 = vpop.f32.mrf.mxu0
    %v8044 = vadd.f32 0.0, %v8043
    %v8045 = vpop.f32.mrf.mxu0
    %v8046 = vadd.f32 0.0, %v8045
    %8047 = vmatmul.bf16.gmra.mxu0 %v8007
    %v8048 = vpop.f32.mrf.mxu0
    %v8049 = vadd.f32 0.0, %v8048
    %v8050 = vpop.f32.mrf.mxu0
    %v8051 = vadd.f32 0.0, %v8050
    %8052 = vmatmul.bf16.gmra.mxu0 %v8010
    %v8053 = vpop.f32.mrf.mxu0
    %v8054 = vadd.f32 0.0, %v8053
    %v8055 = vpop.f32.mrf.mxu0
    %v8056 = vadd.f32 0.0, %v8055
    %8057 = vmatmul.bf16.gmra.mxu0 %v8013
    %v8058 = vpop.f32.mrf.mxu0
    %v8059 = vadd.f32 0.0, %v8058
    %v8060 = vpop.f32.mrf.mxu0
    %v8061 = vadd.f32 0.0, %v8060
    %8062 = vmatmul.bf16.gmra.mxu0 %v8016
    %v8063 = vpop.f32.mrf.mxu0
    %v8064 = vadd.f32 0.0, %v8063
    %v8065 = vpop.f32.mrf.mxu0
    %v8066 = vadd.f32 0.0, %v8065
    %8067 = vmatmul.bf16.gmra.mxu0 %v8019
    %v8068 = vpop.f32.mrf.mxu0
    %v8069 = vadd.f32 0.0, %v8068
    %v8070 = vpop.f32.mrf.mxu0
    %v8071 = vadd.f32 0.0, %v8070
    %8072 = vdwg.mxu0
    %v8089 = vunpack.c.l.b16 %v7705
    %v8090 = vunpack.c.l.b16 %v7706
    %v8091 = vunpack.c.l.b16 %v7707
    %v8092 = vunpack.c.l.b16 %v7708
    %v8093 = vunpack.c.l.b16 %v7709
    %v8094 = vunpack.c.l.b16 %v7710
    %v8095 = vunpack.c.l.b16 %v7711
    %v8096 = vunpack.c.l.b16 %v7712
    %v8097 = vunpack.c.l.b16 %v7713
    %v8098 = vunpack.c.l.b16 %v7714
    %v8099 = vunpack.c.l.b16 %v7715
    %v8100 = vunpack.c.l.b16 %v7716
    %v8101 = vunpack.c.l.b16 %v7717
    %v8102 = vunpack.c.l.b16 %v7718
    %v8103 = vunpack.c.l.b16 %v7719
    %v8104 = vunpack.c.l.b16 %v7720
    %v8105 = vpack.c.b16 %v8090, %v8089
    %v8106 = vpack.c.b16 %v8092, %v8091
    %v8107 = vpack.c.b16 %v8094, %v8093
    %v8108 = vpack.c.b16 %v8096, %v8095
    %v8109 = vpack.c.b16 %v8098, %v8097
    %v8110 = vpack.c.b16 %v8100, %v8099
    %v8111 = vpack.c.b16 %v8102, %v8101
    %v8112 = vpack.c.b16 %v8104, %v8103
    %v8114 = vsel %vm1380, %v8105, 0
    %v8117 = vsel %vm1380, %v8106, 0
    %v8120 = vsel %vm1380, %v8107, 0
    %v8123 = vsel %vm1380, %v8108, 0
    %v8126 = vsel %vm1380, %v8109, 0
    %v8129 = vsel %vm1380, %v8110, 0
    %v8132 = vsel %vm1380, %v8111, 0
    %v8135 = vsel %vm1380, %v8112, 0
    %v8138 = vsel %vm3597, %v7724, 0
    %8140 = vmatpush.bf16.msra.mxu0 0
    %8141 = vmatpush.bf16.msra.mxu0 0
    %8142 = vmatpush.bf16.msra.mxu0 0
    %8143 = vmatpush.bf16.msra.mxu0 0
    %8144 = vmatpush.bf16.msra.mxu0 0
    %8145 = vmatpush.bf16.msra.mxu0 0
    %8146 = vmatpush.bf16.msra.mxu0 0
    %8147 = vmatpush.bf16.msra.mxu0 %v8138
    %8148 = vmatmul.bf16.gmra.mxu0 %v8114
    %v8149 = vpop.f32.mrf.mxu0
    %v8150 = vadd.f32 0.0, %v8149
    %v8151 = vpop.f32.mrf.mxu0
    %v8152 = vadd.f32 0.0, %v8151
    %8153 = vmatmul.bf16.gmra.mxu0 %v8117
    %v8154 = vpop.f32.mrf.mxu0
    %v8155 = vadd.f32 0.0, %v8154
    %v8156 = vpop.f32.mrf.mxu0
    %v8157 = vadd.f32 0.0, %v8156
    %8158 = vmatmul.bf16.gmra.mxu0 %v8120
    %v8159 = vpop.f32.mrf.mxu0
    %v8160 = vadd.f32 0.0, %v8159
    %v8161 = vpop.f32.mrf.mxu0
    %v8162 = vadd.f32 0.0, %v8161
    %8163 = vmatmul.bf16.gmra.mxu0 %v8123
    %v8164 = vpop.f32.mrf.mxu0
    %v8165 = vadd.f32 0.0, %v8164
    %v8166 = vpop.f32.mrf.mxu0
    %v8167 = vadd.f32 0.0, %v8166
    %8168 = vmatmul.bf16.gmra.mxu0 %v8126
    %v8169 = vpop.f32.mrf.mxu0
    %v8170 = vadd.f32 0.0, %v8169
    %v8171 = vpop.f32.mrf.mxu0
    %v8172 = vadd.f32 0.0, %v8171
    %8173 = vmatmul.bf16.gmra.mxu0 %v8129
    %v8174 = vpop.f32.mrf.mxu0
    %v8175 = vadd.f32 0.0, %v8174
    %v8176 = vpop.f32.mrf.mxu0
    %v8177 = vadd.f32 0.0, %v8176
    %8178 = vmatmul.bf16.gmra.mxu0 %v8132
    %v8179 = vpop.f32.mrf.mxu0
    %v8180 = vadd.f32 0.0, %v8179
    %v8181 = vpop.f32.mrf.mxu0
    %v8182 = vadd.f32 0.0, %v8181
    %8183 = vmatmul.bf16.gmra.mxu0 %v8135
    %v8184 = vpop.f32.mrf.mxu0
    %v8185 = vadd.f32 0.0, %v8184
    %v8186 = vpop.f32.mrf.mxu0
    %v8187 = vadd.f32 0.0, %v8186
    %8188 = vdwg.mxu0
    %v8189 = vsel %vm739, %v7802, 0.0
    %v8190 = vsel %vm739, %v7918, 0.0
    %v8191 = vadd.f32 %v8189, %v8190
    %v8192 = vsel %vm739, %v8034, 0.0
    %v8193 = vadd.f32 %v8191, %v8192
    %v8194 = vsel %vm739, %v8150, 0.0
    %v8195 = vadd.f32 %v8193, %v8194
    %v8196 = vsel %vm739, %v7804, 0.0
    %v8197 = vsel %vm739, %v7920, 0.0
    %v8198 = vadd.f32 %v8196, %v8197
    %v8199 = vsel %vm739, %v8036, 0.0
    %v8200 = vadd.f32 %v8198, %v8199
    %v8201 = vsel %vm739, %v8152, 0.0
    %v8202 = vadd.f32 %v8200, %v8201
    %v8203 = vsel %vm739, %v7807, 0.0
    %v8204 = vsel %vm739, %v7923, 0.0
    %v8205 = vadd.f32 %v8203, %v8204
    %v8206 = vsel %vm739, %v8039, 0.0
    %v8207 = vadd.f32 %v8205, %v8206
    %v8208 = vsel %vm739, %v8155, 0.0
    %v8209 = vadd.f32 %v8207, %v8208
    %v8210 = vsel %vm739, %v7809, 0.0
    %v8211 = vsel %vm739, %v7925, 0.0
    %v8212 = vadd.f32 %v8210, %v8211
    %v8213 = vsel %vm739, %v8041, 0.0
    %v8214 = vadd.f32 %v8212, %v8213
    %v8215 = vsel %vm739, %v8157, 0.0
    %v8216 = vadd.f32 %v8214, %v8215
    %v8217 = vsel %vm739, %v7812, 0.0
    %v8218 = vsel %vm739, %v7928, 0.0
    %v8219 = vadd.f32 %v8217, %v8218
    %v8220 = vsel %vm739, %v8044, 0.0
    %v8221 = vadd.f32 %v8219, %v8220
    %v8222 = vsel %vm739, %v8160, 0.0
    %v8223 = vadd.f32 %v8221, %v8222
    %v8224 = vsel %vm739, %v7814, 0.0
    %v8225 = vsel %vm739, %v7930, 0.0
    %v8226 = vadd.f32 %v8224, %v8225
    %v8227 = vsel %vm739, %v8046, 0.0
    %v8228 = vadd.f32 %v8226, %v8227
    %v8229 = vsel %vm739, %v8162, 0.0
    %v8230 = vadd.f32 %v8228, %v8229
    %v8231 = vsel %vm739, %v7817, 0.0
    %v8232 = vsel %vm739, %v7933, 0.0
    %v8233 = vadd.f32 %v8231, %v8232
    %v8234 = vsel %vm739, %v8049, 0.0
    %v8235 = vadd.f32 %v8233, %v8234
    %v8236 = vsel %vm739, %v8165, 0.0
    %v8237 = vadd.f32 %v8235, %v8236
    %v8238 = vsel %vm739, %v7819, 0.0
    %v8239 = vsel %vm739, %v7935, 0.0
    %v8240 = vadd.f32 %v8238, %v8239
    %v8241 = vsel %vm739, %v8051, 0.0
    %v8242 = vadd.f32 %v8240, %v8241
    %v8243 = vsel %vm739, %v8167, 0.0
    %v8244 = vadd.f32 %v8242, %v8243
    %v8245 = vsel %vm739, %v7822, 0.0
    %v8246 = vsel %vm739, %v7938, 0.0
    %v8247 = vadd.f32 %v8245, %v8246
    %v8248 = vsel %vm739, %v8054, 0.0
    %v8249 = vadd.f32 %v8247, %v8248
    %v8250 = vsel %vm739, %v8170, 0.0
    %v8251 = vadd.f32 %v8249, %v8250
    %v8252 = vsel %vm739, %v7824, 0.0
    %v8253 = vsel %vm739, %v7940, 0.0
    %v8254 = vadd.f32 %v8252, %v8253
    %v8255 = vsel %vm739, %v8056, 0.0
    %v8256 = vadd.f32 %v8254, %v8255
    %v8257 = vsel %vm739, %v8172, 0.0
    %v8258 = vadd.f32 %v8256, %v8257
    %v8259 = vsel %vm739, %v7827, 0.0
    %v8260 = vsel %vm739, %v7943, 0.0
    %v8261 = vadd.f32 %v8259, %v8260
    %v8262 = vsel %vm739, %v8059, 0.0
    %v8263 = vadd.f32 %v8261, %v8262
    %v8264 = vsel %vm739, %v8175, 0.0
    %v8265 = vadd.f32 %v8263, %v8264
    %v8266 = vsel %vm739, %v7829, 0.0
    %v8267 = vsel %vm739, %v7945, 0.0
    %v8268 = vadd.f32 %v8266, %v8267
    %v8269 = vsel %vm739, %v8061, 0.0
    %v8270 = vadd.f32 %v8268, %v8269
    %v8271 = vsel %vm739, %v8177, 0.0
    %v8272 = vadd.f32 %v8270, %v8271
    %v8273 = vsel %vm739, %v7832, 0.0
    %v8274 = vsel %vm739, %v7948, 0.0
    %v8275 = vadd.f32 %v8273, %v8274
    %v8276 = vsel %vm739, %v8064, 0.0
    %v8277 = vadd.f32 %v8275, %v8276
    %v8278 = vsel %vm739, %v8180, 0.0
    %v8279 = vadd.f32 %v8277, %v8278
    %v8280 = vsel %vm739, %v7834, 0.0
    %v8281 = vsel %vm739, %v7950, 0.0
    %v8282 = vadd.f32 %v8280, %v8281
    %v8283 = vsel %vm739, %v8066, 0.0
    %v8284 = vadd.f32 %v8282, %v8283
    %v8285 = vsel %vm739, %v8182, 0.0
    %v8286 = vadd.f32 %v8284, %v8285
    %v8287 = vsel %vm739, %v7837, 0.0
    %v8288 = vsel %vm739, %v7953, 0.0
    %v8289 = vadd.f32 %v8287, %v8288
    %v8290 = vsel %vm739, %v8069, 0.0
    %v8291 = vadd.f32 %v8289, %v8290
    %v8292 = vsel %vm739, %v8185, 0.0
    %v8293 = vadd.f32 %v8291, %v8292
    %v8294 = vsel %vm739, %v7839, 0.0
    %v8295 = vsel %vm739, %v7955, 0.0
    %v8296 = vadd.f32 %v8294, %v8295
    %v8297 = vsel %vm739, %v8071, 0.0
    %v8298 = vadd.f32 %v8296, %v8297
    %v8299 = vsel %vm739, %v8187, 0.0
    %v8300 = vadd.f32 %v8298, %v8299
    %v8301 = vadd.f32 %v4924, %v8195
    %v8302 = vadd.f32 %v4925, %v8202
    %v8303 = vadd.f32 %v4926, %v8209
    %v8304 = vadd.f32 %v4927, %v8216
    %v8305 = vadd.f32 %v4928, %v8223
    %v8306 = vadd.f32 %v4929, %v8230
    %v8307 = vadd.f32 %v4930, %v8237
    %v8308 = vadd.f32 %v4931, %v8244
    %v8309 = vadd.f32 %v4932, %v8251
    %v8310 = vadd.f32 %v4933, %v8258
    %v8311 = vadd.f32 %v4934, %v8265
    %v8312 = vadd.f32 %v4935, %v8272
    %v8313 = vadd.f32 %v4936, %v8279
    %v8314 = vadd.f32 %v4937, %v8286
    %v8315 = vadd.f32 %v4938, %v8293
    %v8316 = vadd.f32 %v4939, %v8300
    %v8317 = vld [vmem:[#allocation28] sm:$0x1]
    %v8319 = vperm.slane %v8317, 0
    %v8321 = vadd.f32 %v8301, %v8319
    %v8322 = vadd.f32 %v8302, %v8319
    %v8323 = vadd.f32 %v8303, %v8319
    %v8324 = vadd.f32 %v8304, %v8319
    %v8325 = vadd.f32 %v8305, %v8319
    %v8326 = vadd.f32 %v8306, %v8319
    %v8327 = vadd.f32 %v8307, %v8319
    %v8328 = vadd.f32 %v8308, %v8319
    %v8329 = vadd.f32 %v8309, %v8319
    %v8330 = vadd.f32 %v8310, %v8319
    %v8331 = vadd.f32 %v8311, %v8319
    %v8332 = vadd.f32 %v8312, %v8319
    %v8333 = vadd.f32 %v8313, %v8319
    %v8334 = vadd.f32 %v8314, %v8319
    %v8335 = vadd.f32 %v8315, %v8319
    %v8336 = vadd.f32 %v8316, %v8319
    %v8337 = vsel %vm739, %v8321, 0.0
    %8338 = vadd.xlane.f32.xlu0 %v8337
    %v8339 = vpop.xlane.xlu0 %8338
    %v8340 = vsel %vm739, %v8322, 0.0
    %8341 = vadd.xlane.f32.xlu0 %v8340
    %v8342 = vpop.xlane.xlu0 %8341
    %v8343 = vsel %vm739, %v8323, 0.0
    %8344 = vadd.xlane.f32.xlu0 %v8343
    %v8345 = vpop.xlane.xlu0 %8344
    %v8346 = vsel %vm739, %v8324, 0.0
    %8347 = vadd.xlane.f32.xlu0 %v8346
    %v8348 = vpop.xlane.xlu0 %8347
    %v8349 = vsel %vm739, %v8325, 0.0
    %8350 = vadd.xlane.f32.xlu0 %v8349
    %v8351 = vpop.xlane.xlu0 %8350
    %v8352 = vsel %vm739, %v8326, 0.0
    %8353 = vadd.xlane.f32.xlu0 %v8352
    %v8354 = vpop.xlane.xlu0 %8353
    %v8355 = vsel %vm739, %v8327, 0.0
    %8356 = vadd.xlane.f32.xlu0 %v8355
    %v8357 = vpop.xlane.xlu0 %8356
    %v8358 = vsel %vm739, %v8328, 0.0
    %8359 = vadd.xlane.f32.xlu0 %v8358
    %v8360 = vpop.xlane.xlu0 %8359
    %v8361 = vsel %vm739, %v8329, 0.0
    %8362 = vadd.xlane.f32.xlu0 %v8361
    %v8363 = vpop.xlane.xlu0 %8362
    %v8364 = vsel %vm739, %v8330, 0.0
    %8365 = vadd.xlane.f32.xlu0 %v8364
    %v8366 = vpop.xlane.xlu0 %8365
    %v8367 = vsel %vm739, %v8331, 0.0
    %8368 = vadd.xlane.f32.xlu0 %v8367
    %v8369 = vpop.xlane.xlu0 %8368
    %v8370 = vsel %vm739, %v8332, 0.0
    %8371 = vadd.xlane.f32.xlu0 %v8370
    %v8372 = vpop.xlane.xlu0 %8371
    %v8373 = vsel %vm739, %v8333, 0.0
    %8374 = vadd.xlane.f32.xlu0 %v8373
    %v8375 = vpop.xlane.xlu0 %8374
    %v8376 = vsel %vm739, %v8334, 0.0
    %8377 = vadd.xlane.f32.xlu0 %v8376
    %v8378 = vpop.xlane.xlu0 %8377
    %v8379 = vsel %vm739, %v8335, 0.0
    %8380 = vadd.xlane.f32.xlu0 %v8379
    %v8381 = vpop.xlane.xlu0 %8380
    %v8382 = vsel %vm739, %v8336, 0.0
    %8383 = vadd.xlane.f32.xlu0 %v8382
    %v8384 = vpop.xlane.xlu0 %8383
    %v8385 = vmul.f32 %v8339, %v794
    %v8386 = vmul.f32 %v8342, %v794
    %v8387 = vmul.f32 %v8345, %v794
    %v8388 = vmul.f32 %v8348, %v794
    %v8389 = vmul.f32 %v8351, %v794
    %v8390 = vmul.f32 %v8354, %v794
    %v8391 = vmul.f32 %v8357, %v794
    %v8392 = vmul.f32 %v8360, %v794
    %v8393 = vmul.f32 %v8363, %v794
    %v8394 = vmul.f32 %v8366, %v794
    %v8395 = vmul.f32 %v8369, %v794
    %v8396 = vmul.f32 %v8372, %v794
    %v8397 = vmul.f32 %v8375, %v794
    %v8398 = vmul.f32 %v8378, %v794
    %v8399 = vmul.f32 %v8381, %v794
    %v8400 = vmul.f32 %v8384, %v794
    %v8401 = vsub.f32 %v8321, %v8385
    %v8402 = vsub.f32 %v8322, %v8386
    %v8403 = vsub.f32 %v8323, %v8387
    %v8404 = vsub.f32 %v8324, %v8388
    %v8405 = vsub.f32 %v8325, %v8389
    %v8406 = vsub.f32 %v8326, %v8390
    %v8407 = vsub.f32 %v8327, %v8391
    %v8408 = vsub.f32 %v8328, %v8392
    %v8409 = vsub.f32 %v8329, %v8393
    %v8410 = vsub.f32 %v8330, %v8394
    %v8411 = vsub.f32 %v8331, %v8395
    %v8412 = vsub.f32 %v8332, %v8396
    %v8413 = vsub.f32 %v8333, %v8397
    %v8414 = vsub.f32 %v8334, %v8398
    %v8415 = vsub.f32 %v8335, %v8399
    %v8416 = vsub.f32 %v8336, %v8400
    %v8417 = vmul.f32 %v8401, %v8401
    %v8418 = vmul.f32 %v8402, %v8402
    %v8419 = vmul.f32 %v8403, %v8403
    %v8420 = vmul.f32 %v8404, %v8404
    %v8421 = vmul.f32 %v8405, %v8405
    %v8422 = vmul.f32 %v8406, %v8406
    %v8423 = vmul.f32 %v8407, %v8407
    %v8424 = vmul.f32 %v8408, %v8408
    %v8425 = vmul.f32 %v8409, %v8409
    %v8426 = vmul.f32 %v8410, %v8410
    %v8427 = vmul.f32 %v8411, %v8411
    %v8428 = vmul.f32 %v8412, %v8412
    %v8429 = vmul.f32 %v8413, %v8413
    %v8430 = vmul.f32 %v8414, %v8414
    %v8431 = vmul.f32 %v8415, %v8415
    %v8432 = vmul.f32 %v8416, %v8416
    %v8433 = vsel %vm739, %v8417, 0.0
    %8434 = vadd.xlane.f32.xlu0 %v8433
    %v8435 = vpop.xlane.xlu0 %8434
    %v8436 = vsel %vm739, %v8418, 0.0
    %8437 = vadd.xlane.f32.xlu0 %v8436
    %v8438 = vpop.xlane.xlu0 %8437
    %v8439 = vsel %vm739, %v8419, 0.0
    %8440 = vadd.xlane.f32.xlu0 %v8439
    %v8441 = vpop.xlane.xlu0 %8440
    %v8442 = vsel %vm739, %v8420, 0.0
    %8443 = vadd.xlane.f32.xlu0 %v8442
    %v8444 = vpop.xlane.xlu0 %8443
    %v8445 = vsel %vm739, %v8421, 0.0
    %8446 = vadd.xlane.f32.xlu0 %v8445
    %v8447 = vpop.xlane.xlu0 %8446
    %v8448 = vsel %vm739, %v8422, 0.0
    %8449 = vadd.xlane.f32.xlu0 %v8448
    %v8450 = vpop.xlane.xlu0 %8449
    %v8451 = vsel %vm739, %v8423, 0.0
    %8452 = vadd.xlane.f32.xlu0 %v8451
    %v8453 = vpop.xlane.xlu0 %8452
    %v8454 = vsel %vm739, %v8424, 0.0
    %8455 = vadd.xlane.f32.xlu0 %v8454
    %v8456 = vpop.xlane.xlu0 %8455
    %v8457 = vsel %vm739, %v8425, 0.0
    %8458 = vadd.xlane.f32.xlu0 %v8457
    %v8459 = vpop.xlane.xlu0 %8458
    %v8460 = vsel %vm739, %v8426, 0.0
    %8461 = vadd.xlane.f32.xlu0 %v8460
    %v8462 = vpop.xlane.xlu0 %8461
    %v8463 = vsel %vm739, %v8427, 0.0
    %8464 = vadd.xlane.f32.xlu0 %v8463
    %v8465 = vpop.xlane.xlu0 %8464
    %v8466 = vsel %vm739, %v8428, 0.0
    %8467 = vadd.xlane.f32.xlu0 %v8466
    %v8468 = vpop.xlane.xlu0 %8467
    %v8469 = vsel %vm739, %v8429, 0.0
    %8470 = vadd.xlane.f32.xlu0 %v8469
    %v8471 = vpop.xlane.xlu0 %8470
    %v8472 = vsel %vm739, %v8430, 0.0
    %8473 = vadd.xlane.f32.xlu0 %v8472
    %v8474 = vpop.xlane.xlu0 %8473
    %v8475 = vsel %vm739, %v8431, 0.0
    %8476 = vadd.xlane.f32.xlu0 %v8475
    %v8477 = vpop.xlane.xlu0 %8476
    %v8478 = vsel %vm739, %v8432, 0.0
    %8479 = vadd.xlane.f32.xlu0 %v8478
    %v8480 = vpop.xlane.xlu0 %8479
    %v8481 = vmul.f32 %v8435, %v794
    %v8482 = vmul.f32 %v8438, %v794
    %v8483 = vmul.f32 %v8441, %v794
    %v8484 = vmul.f32 %v8444, %v794
    %v8485 = vmul.f32 %v8447, %v794
    %v8486 = vmul.f32 %v8450, %v794
    %v8487 = vmul.f32 %v8453, %v794
    %v8488 = vmul.f32 %v8456, %v794
    %v8489 = vmul.f32 %v8459, %v794
    %v8490 = vmul.f32 %v8462, %v794
    %v8491 = vmul.f32 %v8465, %v794
    %v8492 = vmul.f32 %v8468, %v794
    %v8493 = vmul.f32 %v8471, %v794
    %v8494 = vmul.f32 %v8474, %v794
    %v8495 = vmul.f32 %v8477, %v794
    %v8496 = vmul.f32 %v8480, %v794
    %v8497 = vadd.f32 %v8481, 1e-05
    %v8498 = vadd.f32 %v8482, 1e-05
    %v8499 = vadd.f32 %v8483, 1e-05
    %v8500 = vadd.f32 %v8484, 1e-05
    %v8501 = vadd.f32 %v8485, 1e-05
    %v8502 = vadd.f32 %v8486, 1e-05
    %v8503 = vadd.f32 %v8487, 1e-05
    %v8504 = vadd.f32 %v8488, 1e-05
    %v8505 = vadd.f32 %v8489, 1e-05
    %v8506 = vadd.f32 %v8490, 1e-05
    %v8507 = vadd.f32 %v8491, 1e-05
    %v8508 = vadd.f32 %v8492, 1e-05
    %v8509 = vadd.f32 %v8493, 1e-05
    %v8510 = vadd.f32 %v8494, 1e-05
    %v8511 = vadd.f32 %v8495, 1e-05
    %v8512 = vadd.f32 %v8496, 1e-05
    %v8513 = vrsqrt.pop %v8497
    %v8514 = vmul.f32 %v8513, %v8497
    %v8515 = vmul.f32 %v8514, %v8513
    %v8516 = vmul.f32 0.5, %v8515
    %v8517 = vsub.f32 1.5, %v8516
    %v8518 = vmul.f32 %v8513, %v8517
    %vm8519 = vweird.f32 %v8497
    %vm8520 = vweird.f32 %v8513
    %vm8521 = vmor %vm8519, %vm8520
    %v8522 = vsel %vm8521, %v8513, %v8518
    %v8523 = vrsqrt.pop %v8498
    %v8524 = vmul.f32 %v8523, %v8498
    %v8525 = vmul.f32 %v8524, %v8523
    %v8526 = vmul.f32 0.5, %v8525
    %v8527 = vsub.f32 1.5, %v8526
    %v8528 = vmul.f32 %v8523, %v8527
    %vm8529 = vweird.f32 %v8498
    %vm8530 = vweird.f32 %v8523
    %vm8531 = vmor %vm8529, %vm8530
    %v8532 = vsel %vm8531, %v8523, %v8528
    %v8533 = vrsqrt.pop %v8499
    %v8534 = vmul.f32 %v8533, %v8499
    %v8535 = vmul.f32 %v8534, %v8533
    %v8536 = vmul.f32 0.5, %v8535
    %v8537 = vsub.f32 1.5, %v8536
    %v8538 = vmul.f32 %v8533, %v8537
    %vm8539 = vweird.f32 %v8499
    %vm8540 = vweird.f32 %v8533
    %vm8541 = vmor %vm8539, %vm8540
    %v8542 = vsel %vm8541, %v8533, %v8538
    %v8543 = vrsqrt.pop %v8500
    %v8544 = vmul.f32 %v8543, %v8500
    %v8545 = vmul.f32 %v8544, %v8543
    %v8546 = vmul.f32 0.5, %v8545
    %v8547 = vsub.f32 1.5, %v8546
    %v8548 = vmul.f32 %v8543, %v8547
    %vm8549 = vweird.f32 %v8500
    %vm8550 = vweird.f32 %v8543
    %vm8551 = vmor %vm8549, %vm8550
    %v8552 = vsel %vm8551, %v8543, %v8548
    %v8553 = vrsqrt.pop %v8501
    %v8554 = vmul.f32 %v8553, %v8501
    %v8555 = vmul.f32 %v8554, %v8553
    %v8556 = vmul.f32 0.5, %v8555
    %v8557 = vsub.f32 1.5, %v8556
    %v8558 = vmul.f32 %v8553, %v8557
    %vm8559 = vweird.f32 %v8501
    %vm8560 = vweird.f32 %v8553
    %vm8561 = vmor %vm8559, %vm8560
    %v8562 = vsel %vm8561, %v8553, %v8558
    %v8563 = vrsqrt.pop %v8502
    %v8564 = vmul.f32 %v8563, %v8502
    %v8565 = vmul.f32 %v8564, %v8563
    %v8566 = vmul.f32 0.5, %v8565
    %v8567 = vsub.f32 1.5, %v8566
    %v8568 = vmul.f32 %v8563, %v8567
    %vm8569 = vweird.f32 %v8502
    %vm8570 = vweird.f32 %v8563
    %vm8571 = vmor %vm8569, %vm8570
    %v8572 = vsel %vm8571, %v8563, %v8568
    %v8573 = vrsqrt.pop %v8503
    %v8574 = vmul.f32 %v8573, %v8503
    %v8575 = vmul.f32 %v8574, %v8573
    %v8576 = vmul.f32 0.5, %v8575
    %v8577 = vsub.f32 1.5, %v8576
    %v8578 = vmul.f32 %v8573, %v8577
    %vm8579 = vweird.f32 %v8503
    %vm8580 = vweird.f32 %v8573
    %vm8581 = vmor %vm8579, %vm8580
    %v8582 = vsel %vm8581, %v8573, %v8578
    %v8583 = vrsqrt.pop %v8504
    %v8584 = vmul.f32 %v8583, %v8504
    %v8585 = vmul.f32 %v8584, %v8583
    %v8586 = vmul.f32 0.5, %v8585
    %v8587 = vsub.f32 1.5, %v8586
    %v8588 = vmul.f32 %v8583, %v8587
    %vm8589 = vweird.f32 %v8504
    %vm8590 = vweird.f32 %v8583
    %vm8591 = vmor %vm8589, %vm8590
    %v8592 = vsel %vm8591, %v8583, %v8588
    %v8593 = vrsqrt.pop %v8505
    %v8594 = vmul.f32 %v8593, %v8505
    %v8595 = vmul.f32 %v8594, %v8593
    %v8596 = vmul.f32 0.5, %v8595
    %v8597 = vsub.f32 1.5, %v8596
    %v8598 = vmul.f32 %v8593, %v8597
    %vm8599 = vweird.f32 %v8505
    %vm8600 = vweird.f32 %v8593
    %vm8601 = vmor %vm8599, %vm8600
    %v8602 = vsel %vm8601, %v8593, %v8598
    %v8603 = vrsqrt.pop %v8506
    %v8604 = vmul.f32 %v8603, %v8506
    %v8605 = vmul.f32 %v8604, %v8603
    %v8606 = vmul.f32 0.5, %v8605
    %v8607 = vsub.f32 1.5, %v8606
    %v8608 = vmul.f32 %v8603, %v8607
    %vm8609 = vweird.f32 %v8506
    %vm8610 = vweird.f32 %v8603
    %vm8611 = vmor %vm8609, %vm8610
    %v8612 = vsel %vm8611, %v8603, %v8608
    %v8613 = vrsqrt.pop %v8507
    %v8614 = vmul.f32 %v8613, %v8507
    %v8615 = vmul.f32 %v8614, %v8613
    %v8616 = vmul.f32 0.5, %v8615
    %v8617 = vsub.f32 1.5, %v8616
    %v8618 = vmul.f32 %v8613, %v8617
    %vm8619 = vweird.f32 %v8507
    %vm8620 = vweird.f32 %v8613
    %vm8621 = vmor %vm8619, %vm8620
    %v8622 = vsel %vm8621, %v8613, %v8618
    %v8623 = vrsqrt.pop %v8508
    %v8624 = vmul.f32 %v8623, %v8508
    %v8625 = vmul.f32 %v8624, %v8623
    %v8626 = vmul.f32 0.5, %v8625
    %v8627 = vsub.f32 1.5, %v8626
    %v8628 = vmul.f32 %v8623, %v8627
    %vm8629 = vweird.f32 %v8508
    %vm8630 = vweird.f32 %v8623
    %vm8631 = vmor %vm8629, %vm8630
    %v8632 = vsel %vm8631, %v8623, %v8628
    %v8633 = vrsqrt.pop %v8509
    %v8634 = vmul.f32 %v8633, %v8509
    %v8635 = vmul.f32 %v8634, %v8633
    %v8636 = vmul.f32 0.5, %v8635
    %v8637 = vsub.f32 1.5, %v8636
    %v8638 = vmul.f32 %v8633, %v8637
    %vm8639 = vweird.f32 %v8509
    %vm8640 = vweird.f32 %v8633
    %vm8641 = vmor %vm8639, %vm8640
    %v8642 = vsel %vm8641, %v8633, %v8638
    %v8643 = vrsqrt.pop %v8510
    %v8644 = vmul.f32 %v8643, %v8510
    %v8645 = vmul.f32 %v8644, %v8643
    %v8646 = vmul.f32 0.5, %v8645
    %v8647 = vsub.f32 1.5, %v8646
    %v8648 = vmul.f32 %v8643, %v8647
    %vm8649 = vweird.f32 %v8510
    %vm8650 = vweird.f32 %v8643
    %vm8651 = vmor %vm8649, %vm8650
    %v8652 = vsel %vm8651, %v8643, %v8648
    %v8653 = vrsqrt.pop %v8511
    %v8654 = vmul.f32 %v8653, %v8511
    %v8655 = vmul.f32 %v8654, %v8653
    %v8656 = vmul.f32 0.5, %v8655
    %v8657 = vsub.f32 1.5, %v8656
    %v8658 = vmul.f32 %v8653, %v8657
    %vm8659 = vweird.f32 %v8511
    %vm8660 = vweird.f32 %v8653
    %vm8661 = vmor %vm8659, %vm8660
    %v8662 = vsel %vm8661, %v8653, %v8658
    %v8663 = vrsqrt.pop %v8512
    %v8664 = vmul.f32 %v8663, %v8512
    %v8665 = vmul.f32 %v8664, %v8663
    %v8666 = vmul.f32 0.5, %v8665
    %v8667 = vsub.f32 1.5, %v8666
    %v8668 = vmul.f32 %v8663, %v8667
    %vm8669 = vweird.f32 %v8512
    %vm8670 = vweird.f32 %v8663
    %vm8671 = vmor %vm8669, %vm8670
    %v8672 = vsel %vm8671, %v8663, %v8668
    %v8673 = vmul.f32 %v8401, %v8522
    %v8674 = vmul.f32 %v8402, %v8532
    %v8675 = vmul.f32 %v8403, %v8542
    %v8676 = vmul.f32 %v8404, %v8552
    %v8677 = vmul.f32 %v8405, %v8562
    %v8678 = vmul.f32 %v8406, %v8572
    %v8679 = vmul.f32 %v8407, %v8582
    %v8680 = vmul.f32 %v8408, %v8592
    %v8681 = vmul.f32 %v8409, %v8602
    %v8682 = vmul.f32 %v8410, %v8612
    %v8683 = vmul.f32 %v8411, %v8622
    %v8684 = vmul.f32 %v8412, %v8632
    %v8685 = vmul.f32 %v8413, %v8642
    %v8686 = vmul.f32 %v8414, %v8652
    %v8687 = vmul.f32 %v8415, %v8662
    %v8688 = vmul.f32 %v8416, %v8672
    %v8689 = vld [vmem:[#allocation30] sm:$0x1]
    %v8691 = vperm.slane %v8689, 0
    %v8693 = vmul.f32 %v8673, %v8691
    %v8694 = vmul.f32 %v8674, %v8691
    %v8695 = vmul.f32 %v8675, %v8691
    %v8696 = vmul.f32 %v8676, %v8691
    %v8697 = vmul.f32 %v8677, %v8691
    %v8698 = vmul.f32 %v8678, %v8691
    %v8699 = vmul.f32 %v8679, %v8691
    %v8700 = vmul.f32 %v8680, %v8691
    %v8701 = vmul.f32 %v8681, %v8691
    %v8702 = vmul.f32 %v8682, %v8691
    %v8703 = vmul.f32 %v8683, %v8691
    %v8704 = vmul.f32 %v8684, %v8691
    %v8705 = vmul.f32 %v8685, %v8691
    %v8706 = vmul.f32 %v8686, %v8691
    %v8707 = vmul.f32 %v8687, %v8691
    %v8708 = vmul.f32 %v8688, %v8691
    %v8709 = vld [vmem:[#allocation31] sm:$0x1]
    %v8711 = vperm.slane %v8709, 0
    %v8713 = vadd.f32 %v8693, %v8711
    %v8714 = vadd.f32 %v8694, %v8711
    %v8715 = vadd.f32 %v8695, %v8711
    %v8716 = vadd.f32 %v8696, %v8711
    %v8717 = vadd.f32 %v8697, %v8711
    %v8718 = vadd.f32 %v8698, %v8711
    %v8719 = vadd.f32 %v8699, %v8711
    %v8720 = vadd.f32 %v8700, %v8711
    %v8721 = vadd.f32 %v8701, %v8711
    %v8722 = vadd.f32 %v8702, %v8711
    %v8723 = vadd.f32 %v8703, %v8711
    %v8724 = vadd.f32 %v8704, %v8711
    %v8725 = vadd.f32 %v8705, %v8711
    %v8726 = vadd.f32 %v8706, %v8711
    %v8727 = vadd.f32 %v8707, %v8711
    %v8728 = vadd.f32 %v8708, %v8711
    %v8729 = vld [vmem:[#allocation33] sm:$0xf]
    %v8730 = vld [vmem:[#allocation33 + $0x4] sm:$0xf]
    %v8731 = vld [vmem:[#allocation33 + $0x8] sm:$0xf]
    %v8732 = vld [vmem:[#allocation33 + $0xc] sm:$0xf]
    %v8733 = vpack.c.bf16 %v8714, %v8713
    %v8734 = vpack.c.bf16 %v8716, %v8715
    %v8735 = vpack.c.bf16 %v8718, %v8717
    %v8736 = vpack.c.bf16 %v8720, %v8719
    %v8737 = vpack.c.bf16 %v8722, %v8721
    %v8738 = vpack.c.bf16 %v8724, %v8723
    %v8739 = vpack.c.bf16 %v8726, %v8725
    %v8740 = vpack.c.bf16 %v8728, %v8727
    %v8741 = vld [vmem:[#allocation34] sm:$0x1]
    %v8743 = vperm.slane %v8741, 0
    %v8749 = vunpack.c.l.b16 %v8729
    %v8750 = vunpack.c.l.b16 %v8730
    %v8751 = vunpack.c.l.b16 %v8731
    %v8752 = vunpack.c.l.b16 %v8732
    %v8753 = vpack.c.b16 %v8750, %v8749
    %v8754 = vpack.c.b16 %v8752, %v8751
    %v8758 = vsel %vm739, %v8733, 0
    %v8761 = vsel %vm739, %v8734, 0
    %v8764 = vsel %vm739, %v8735, 0
    %v8767 = vsel %vm739, %v8736, 0
    %v8770 = vsel %vm739, %v8737, 0
    %v8773 = vsel %vm739, %v8738, 0
    %v8776 = vsel %vm739, %v8739, 0
    %v8779 = vsel %vm739, %v8740, 0
    %8781 = vmatpush.bf16.msra.mxu0 0
    %8782 = vmatpush.bf16.msra.mxu0 0
    %8783 = vmatpush.bf16.msra.mxu0 0
    %8784 = vmatpush.bf16.msra.mxu0 0
    %8785 = vmatpush.bf16.msra.mxu0 0
    %8786 = vmatpush.bf16.msra.mxu0 0
    %8787 = vmatpush.bf16.msra.mxu0 %v8754
    %8788 = vmatpush.bf16.msra.mxu0 %v8753
    %8789 = vmatmul.bf16.gmra.mxu0 %v8758
    %v8790 = vpop.f32.mrf.mxu0
    %v8791 = vadd.f32 %v8743, %v8790
    %v8792 = vpop.f32.mrf.mxu0
    %v8793 = vadd.f32 %v8743, %v8792
    %8794 = vmatmul.bf16.gmra.mxu0 %v8761
    %v8795 = vpop.f32.mrf.mxu0
    %v8796 = vadd.f32 %v8743, %v8795
    %v8797 = vpop.f32.mrf.mxu0
    %v8798 = vadd.f32 %v8743, %v8797
    %8799 = vmatmul.bf16.gmra.mxu0 %v8764
    %v8800 = vpop.f32.mrf.mxu0
    %v8801 = vadd.f32 %v8743, %v8800
    %v8802 = vpop.f32.mrf.mxu0
    %v8803 = vadd.f32 %v8743, %v8802
    %8804 = vmatmul.bf16.gmra.mxu0 %v8767
    %v8805 = vpop.f32.mrf.mxu0
    %v8806 = vadd.f32 %v8743, %v8805
    %v8807 = vpop.f32.mrf.mxu0
    %v8808 = vadd.f32 %v8743, %v8807
    %8809 = vmatmul.bf16.gmra.mxu0 %v8770
    %v8810 = vpop.f32.mrf.mxu0
    %v8811 = vadd.f32 %v8743, %v8810
    %v8812 = vpop.f32.mrf.mxu0
    %v8813 = vadd.f32 %v8743, %v8812
    %8814 = vmatmul.bf16.gmra.mxu0 %v8773
    %v8815 = vpop.f32.mrf.mxu0
    %v8816 = vadd.f32 %v8743, %v8815
    %v8817 = vpop.f32.mrf.mxu0
    %v8818 = vadd.f32 %v8743, %v8817
    %8819 = vmatmul.bf16.gmra.mxu0 %v8776
    %v8820 = vpop.f32.mrf.mxu0
    %v8821 = vadd.f32 %v8743, %v8820
    %v8822 = vpop.f32.mrf.mxu0
    %v8823 = vadd.f32 %v8743, %v8822
    %8824 = vmatmul.bf16.gmra.mxu0 %v8779
    %v8825 = vpop.f32.mrf.mxu0
    %v8826 = vadd.f32 %v8743, %v8825
    %v8827 = vpop.f32.mrf.mxu0
    %v8828 = vadd.f32 %v8743, %v8827
    %8829 = vdwg.mxu0
    %v8830 = vmul.f32 %v8791, %v8791
    %v8831 = vmul.f32 %v8793, %v8793
    %v8832 = vmul.f32 %v8796, %v8796
    %v8833 = vmul.f32 %v8798, %v8798
    %v8834 = vmul.f32 %v8801, %v8801
    %v8835 = vmul.f32 %v8803, %v8803
    %v8836 = vmul.f32 %v8806, %v8806
    %v8837 = vmul.f32 %v8808, %v8808
    %v8838 = vmul.f32 %v8811, %v8811
    %v8839 = vmul.f32 %v8813, %v8813
    %v8840 = vmul.f32 %v8816, %v8816
    %v8841 = vmul.f32 %v8818, %v8818
    %v8842 = vmul.f32 %v8821, %v8821
    %v8843 = vmul.f32 %v8823, %v8823
    %v8844 = vmul.f32 %v8826, %v8826
    %v8845 = vmul.f32 %v8828, %v8828
    %v8846 = vmul.f32 %v8791, %v8830
    %v8847 = vmul.f32 %v8793, %v8831
    %v8848 = vmul.f32 %v8796, %v8832
    %v8849 = vmul.f32 %v8798, %v8833
    %v8850 = vmul.f32 %v8801, %v8834
    %v8851 = vmul.f32 %v8803, %v8835
    %v8852 = vmul.f32 %v8806, %v8836
    %v8853 = vmul.f32 %v8808, %v8837
    %v8854 = vmul.f32 %v8811, %v8838
    %v8855 = vmul.f32 %v8813, %v8839
    %v8856 = vmul.f32 %v8816, %v8840
    %v8857 = vmul.f32 %v8818, %v8841
    %v8858 = vmul.f32 %v8821, %v8842
    %v8859 = vmul.f32 %v8823, %v8843
    %v8860 = vmul.f32 %v8826, %v8844
    %v8861 = vmul.f32 %v8828, %v8845
    %v8862 = vmul.f32 %v8846, 0.044715
    %v8863 = vmul.f32 %v8847, 0.044715
    %v8864 = vmul.f32 %v8848, 0.044715
    %v8865 = vmul.f32 %v8849, 0.044715
    %v8866 = vmul.f32 %v8850, 0.044715
    %v8867 = vmul.f32 %v8851, 0.044715
    %v8868 = vmul.f32 %v8852, 0.044715
    %v8869 = vmul.f32 %v8853, 0.044715
    %v8870 = vmul.f32 %v8854, 0.044715
    %v8871 = vmul.f32 %v8855, 0.044715
    %v8872 = vmul.f32 %v8856, 0.044715
    %v8873 = vmul.f32 %v8857, 0.044715
    %v8874 = vmul.f32 %v8858, 0.044715
    %v8875 = vmul.f32 %v8859, 0.044715
    %v8876 = vmul.f32 %v8860, 0.044715
    %v8877 = vmul.f32 %v8861, 0.044715
    %v8878 = vadd.f32 %v8791, %v8862
    %v8879 = vadd.f32 %v8793, %v8863
    %v8880 = vadd.f32 %v8796, %v8864
    %v8881 = vadd.f32 %v8798, %v8865
    %v8882 = vadd.f32 %v8801, %v8866
    %v8883 = vadd.f32 %v8803, %v8867
    %v8884 = vadd.f32 %v8806, %v8868
    %v8885 = vadd.f32 %v8808, %v8869
    %v8886 = vadd.f32 %v8811, %v8870
    %v8887 = vadd.f32 %v8813, %v8871
    %v8888 = vadd.f32 %v8816, %v8872
    %v8889 = vadd.f32 %v8818, %v8873
    %v8890 = vadd.f32 %v8821, %v8874
    %v8891 = vadd.f32 %v8823, %v8875
    %v8892 = vadd.f32 %v8826, %v8876
    %v8893 = vadd.f32 %v8828, %v8877
    %v8894 = vmul.f32 %v8878, 0.7978846
    %v8895 = vmul.f32 %v8879, 0.7978846
    %v8896 = vmul.f32 %v8880, 0.7978846
    %v8897 = vmul.f32 %v8881, 0.7978846
    %v8898 = vmul.f32 %v8882, 0.7978846
    %v8899 = vmul.f32 %v8883, 0.7978846
    %v8900 = vmul.f32 %v8884, 0.7978846
    %v8901 = vmul.f32 %v8885, 0.7978846
    %v8902 = vmul.f32 %v8886, 0.7978846
    %v8903 = vmul.f32 %v8887, 0.7978846
    %v8904 = vmul.f32 %v8888, 0.7978846
    %v8905 = vmul.f32 %v8889, 0.7978846
    %v8906 = vmul.f32 %v8890, 0.7978846
    %v8907 = vmul.f32 %v8891, 0.7978846
    %v8908 = vmul.f32 %v8892, 0.7978846
    %v8909 = vmul.f32 %v8893, 0.7978846
    %v8910 = vtanh.pop %v8894
    %v8911 = vtanh.pop %v8895
    %v8912 = vtanh.pop %v8896
    %v8913 = vtanh.pop %v8897
    %v8914 = vtanh.pop %v8898
    %v8915 = vtanh.pop %v8899
    %v8916 = vtanh.pop %v8900
    %v8917 = vtanh.pop %v8901
    %v8918 = vtanh.pop %v8902
    %v8919 = vtanh.pop %v8903
    %v8920 = vtanh.pop %v8904
    %v8921 = vtanh.pop %v8905
    %v8922 = vtanh.pop %v8906
    %v8923 = vtanh.pop %v8907
    %v8924 = vtanh.pop %v8908
    %v8925 = vtanh.pop %v8909
    %v8926 = vadd.f32 %v8910, 1.0
    %v8927 = vadd.f32 %v8911, 1.0
    %v8928 = vadd.f32 %v8912, 1.0
    %v8929 = vadd.f32 %v8913, 1.0
    %v8930 = vadd.f32 %v8914, 1.0
    %v8931 = vadd.f32 %v8915, 1.0
    %v8932 = vadd.f32 %v8916, 1.0
    %v8933 = vadd.f32 %v8917, 1.0
    %v8934 = vadd.f32 %v8918, 1.0
    %v8935 = vadd.f32 %v8919, 1.0
    %v8936 = vadd.f32 %v8920, 1.0
    %v8937 = vadd.f32 %v8921, 1.0
    %v8938 = vadd.f32 %v8922, 1.0
    %v8939 = vadd.f32 %v8923, 1.0
    %v8940 = vadd.f32 %v8924, 1.0
    %v8941 = vadd.f32 %v8925, 1.0
    %v8942 = vmul.f32 %v8926, 0.5
    %v8943 = vmul.f32 %v8927, 0.5
    %v8944 = vmul.f32 %v8928, 0.5
    %v8945 = vmul.f32 %v8929, 0.5
    %v8946 = vmul.f32 %v8930, 0.5
    %v8947 = vmul.f32 %v8931, 0.5
    %v8948 = vmul.f32 %v8932, 0.5
    %v8949 = vmul.f32 %v8933, 0.5
    %v8950 = vmul.f32 %v8934, 0.5
    %v8951 = vmul.f32 %v8935, 0.5
    %v8952 = vmul.f32 %v8936, 0.5
    %v8953 = vmul.f32 %v8937, 0.5
    %v8954 = vmul.f32 %v8938, 0.5
    %v8955 = vmul.f32 %v8939, 0.5
    %v8956 = vmul.f32 %v8940, 0.5
    %v8957 = vmul.f32 %v8941, 0.5
    %v8958 = vmul.f32 %v8791, %v8942
    %v8959 = vmul.f32 %v8793, %v8943
    %v8960 = vmul.f32 %v8796, %v8944
    %v8961 = vmul.f32 %v8798, %v8945
    %v8962 = vmul.f32 %v8801, %v8946
    %v8963 = vmul.f32 %v8803, %v8947
    %v8964 = vmul.f32 %v8806, %v8948
    %v8965 = vmul.f32 %v8808, %v8949
    %v8966 = vmul.f32 %v8811, %v8950
    %v8967 = vmul.f32 %v8813, %v8951
    %v8968 = vmul.f32 %v8816, %v8952
    %v8969 = vmul.f32 %v8818, %v8953
    %v8970 = vmul.f32 %v8821, %v8954
    %v8971 = vmul.f32 %v8823, %v8955
    %v8972 = vmul.f32 %v8826, %v8956
    %v8973 = vmul.f32 %v8828, %v8957
    %v8974 = vld [vmem:[%s53] sm:$0xf]
    %v8975 = vld [vmem:[%s53 + $0x4] sm:$0xf]
    %v8976 = vld [vmem:[%s53 + $0x8] sm:$0xf]
    %v8977 = vld [vmem:[%s53 + $0xc] sm:$0xf]
    %v8978 = vld [vmem:[%s53 + $0x10] sm:$0xf]
    %v8979 = vld [vmem:[%s53 + $0x14] sm:$0xf]
    %v8980 = vld [vmem:[%s53 + $0x18] sm:$0xf]
    %v8981 = vld [vmem:[%s53 + $0x1c] sm:$0xf]
    %v8982 = vld [vmem:[%s53 + $0x20] sm:$0xf]
    %v8983 = vld [vmem:[%s53 + $0x24] sm:$0xf]
    %v8984 = vld [vmem:[%s53 + $0x28] sm:$0xf]
    %v8985 = vld [vmem:[%s53 + $0x2c] sm:$0xf]
    %v8986 = vld [vmem:[%s53 + $0x30] sm:$0xf]
    %v8987 = vld [vmem:[%s53 + $0x34] sm:$0xf]
    %v8988 = vld [vmem:[%s53 + $0x38] sm:$0xf]
    %v8989 = vld [vmem:[%s53 + $0x3c] sm:$0xf]
    %v8990 = vpack.c.bf16 %v8959, %v8958
    %v8991 = vpack.c.bf16 %v8961, %v8960
    %v8992 = vpack.c.bf16 %v8963, %v8962
    %v8993 = vpack.c.bf16 %v8965, %v8964
    %v8994 = vpack.c.bf16 %v8967, %v8966
    %v8995 = vpack.c.bf16 %v8969, %v8968
    %v8996 = vpack.c.bf16 %v8971, %v8970
    %v8997 = vpack.c.bf16 %v8973, %v8972
    %v9014 = vunpack.c.l.b16 %v8974
    %v9015 = vunpack.c.l.b16 %v8975
    %v9016 = vunpack.c.l.b16 %v8976
    %v9017 = vunpack.c.l.b16 %v8977
    %v9018 = vunpack.c.l.b16 %v8978
    %v9019 = vunpack.c.l.b16 %v8979
    %v9020 = vunpack.c.l.b16 %v8980
    %v9021 = vunpack.c.l.b16 %v8981
    %v9022 = vunpack.c.l.b16 %v8982
    %v9023 = vunpack.c.l.b16 %v8983
    %v9024 = vunpack.c.l.b16 %v8984
    %v9025 = vunpack.c.l.b16 %v8985
    %v9026 = vunpack.c.l.b16 %v8986
    %v9027 = vunpack.c.l.b16 %v8987
    %v9028 = vunpack.c.l.b16 %v8988
    %v9029 = vunpack.c.l.b16 %v8989
    %v9030 = vpack.c.b16 %v9015, %v9014
    %v9031 = vpack.c.b16 %v9017, %v9016
    %v9032 = vpack.c.b16 %v9019, %v9018
    %v9033 = vpack.c.b16 %v9021, %v9020
    %v9034 = vpack.c.b16 %v9023, %v9022
    %v9035 = vpack.c.b16 %v9025, %v9024
    %v9036 = vpack.c.b16 %v9027, %v9026
    %v9037 = vpack.c.b16 %v9029, %v9028
    %9046 = vmatpush.bf16.msra.mxu0 %v9037
    %9047 = vmatpush.bf16.msra.mxu0 %v9036
    %9048 = vmatpush.bf16.msra.mxu0 %v9035
    %9049 = vmatpush.bf16.msra.mxu0 %v9034
    %9050 = vmatpush.bf16.msra.mxu0 %v9033
    %9051 = vmatpush.bf16.msra.mxu0 %v9032
    %9052 = vmatpush.bf16.msra.mxu0 %v9031
    %9053 = vmatpush.bf16.msra.mxu0 %v9030
    %9054 = vmatmul.bf16.gmra.mxu0 %v8990
    %v9055 = vpop.f32.mrf.mxu0
    %v9056 = vadd.f32 0.0, %v9055
    %v9057 = vpop.f32.mrf.mxu0
    %v9058 = vadd.f32 0.0, %v9057
    %9059 = vmatmul.bf16.gmra.mxu0 %v8991
    %v9060 = vpop.f32.mrf.mxu0
    %v9061 = vadd.f32 0.0, %v9060
    %v9062 = vpop.f32.mrf.mxu0
    %v9063 = vadd.f32 0.0, %v9062
    %9064 = vmatmul.bf16.gmra.mxu0 %v8992
    %v9065 = vpop.f32.mrf.mxu0
    %v9066 = vadd.f32 0.0, %v9065
    %v9067 = vpop.f32.mrf.mxu0
    %v9068 = vadd.f32 0.0, %v9067
    %9069 = vmatmul.bf16.gmra.mxu0 %v8993
    %v9070 = vpop.f32.mrf.mxu0
    %v9071 = vadd.f32 0.0, %v9070
    %v9072 = vpop.f32.mrf.mxu0
    %v9073 = vadd.f32 0.0, %v9072
    %9074 = vmatmul.bf16.gmra.mxu0 %v8994
    %v9075 = vpop.f32.mrf.mxu0
    %v9076 = vadd.f32 0.0, %v9075
    %v9077 = vpop.f32.mrf.mxu0
    %v9078 = vadd.f32 0.0, %v9077
    %9079 = vmatmul.bf16.gmra.mxu0 %v8995
    %v9080 = vpop.f32.mrf.mxu0
    %v9081 = vadd.f32 0.0, %v9080
    %v9082 = vpop.f32.mrf.mxu0
    %v9083 = vadd.f32 0.0, %v9082
    %9084 = vmatmul.bf16.gmra.mxu0 %v8996
    %v9085 = vpop.f32.mrf.mxu0
    %v9086 = vadd.f32 0.0, %v9085
    %v9087 = vpop.f32.mrf.mxu0
    %v9088 = vadd.f32 0.0, %v9087
    %9089 = vmatmul.bf16.gmra.mxu0 %v8997
    %v9090 = vpop.f32.mrf.mxu0
    %v9091 = vadd.f32 0.0, %v9090
    %v9092 = vpop.f32.mrf.mxu0
    %v9093 = vadd.f32 0.0, %v9092
    %9094 = vdwg.mxu0
    %v9095 = vadd.f32 %v8321, %v9056
    %v9096 = vadd.f32 %v8322, %v9058
    %v9097 = vadd.f32 %v8323, %v9061
    %v9098 = vadd.f32 %v8324, %v9063
    %v9099 = vadd.f32 %v8325, %v9066
    %v9100 = vadd.f32 %v8326, %v9068
    %v9101 = vadd.f32 %v8327, %v9071
    %v9102 = vadd.f32 %v8328, %v9073
    %v9103 = vadd.f32 %v8329, %v9076
    %v9104 = vadd.f32 %v8330, %v9078
    %v9105 = vadd.f32 %v8331, %v9081
    %v9106 = vadd.f32 %v8332, %v9083
    %v9107 = vadd.f32 %v8333, %v9086
    %v9108 = vadd.f32 %v8334, %v9088
    %v9109 = vadd.f32 %v8335, %v9091
    %v9110 = vadd.f32 %v8336, %v9093
    %v9111 = vld [vmem:[#allocation36] sm:$0x1]
    %v9113 = vperm.slane %v9111, 0
    %v9115 = vadd.f32 %v9095, %v9113
    %v9116 = vadd.f32 %v9096, %v9113
    %v9117 = vadd.f32 %v9097, %v9113
    %v9118 = vadd.f32 %v9098, %v9113
    %v9119 = vadd.f32 %v9099, %v9113
    %v9120 = vadd.f32 %v9100, %v9113
    %v9121 = vadd.f32 %v9101, %v9113
    %v9122 = vadd.f32 %v9102, %v9113
    %v9123 = vadd.f32 %v9103, %v9113
    %v9124 = vadd.f32 %v9104, %v9113
    %v9125 = vadd.f32 %v9105, %v9113
    %v9126 = vadd.f32 %v9106, %v9113
    %v9127 = vadd.f32 %v9107, %v9113
    %v9128 = vadd.f32 %v9108, %v9113
    %v9129 = vadd.f32 %v9109, %v9113
    %v9130 = vadd.f32 %v9110, %v9113
    %v9131 = vsel %vm739, %v9115, 0.0
    %9132 = vadd.xlane.f32.xlu0 %v9131
    %v9133 = vpop.xlane.xlu0 %9132
    %v9134 = vsel %vm739, %v9116, 0.0
    %9135 = vadd.xlane.f32.xlu0 %v9134
    %v9136 = vpop.xlane.xlu0 %9135
    %v9137 = vsel %vm739, %v9117, 0.0
    %9138 = vadd.xlane.f32.xlu0 %v9137
    %v9139 = vpop.xlane.xlu0 %9138
    %v9140 = vsel %vm739, %v9118, 0.0
    %9141 = vadd.xlane.f32.xlu0 %v9140
    %v9142 = vpop.xlane.xlu0 %9141
    %v9143 = vsel %vm739, %v9119, 0.0
    %9144 = vadd.xlane.f32.xlu0 %v9143
    %v9145 = vpop.xlane.xlu0 %9144
    %v9146 = vsel %vm739, %v9120, 0.0
    %9147 = vadd.xlane.f32.xlu0 %v9146
    %v9148 = vpop.xlane.xlu0 %9147
    %v9149 = vsel %vm739, %v9121, 0.0
    %9150 = vadd.xlane.f32.xlu0 %v9149
    %v9151 = vpop.xlane.xlu0 %9150
    %v9152 = vsel %vm739, %v9122, 0.0
    %9153 = vadd.xlane.f32.xlu0 %v9152
    %v9154 = vpop.xlane.xlu0 %9153
    %v9155 = vsel %vm739, %v9123, 0.0
    %9156 = vadd.xlane.f32.xlu0 %v9155
    %v9157 = vpop.xlane.xlu0 %9156
    %v9158 = vsel %vm739, %v9124, 0.0
    %9159 = vadd.xlane.f32.xlu0 %v9158
    %v9160 = vpop.xlane.xlu0 %9159
    %v9161 = vsel %vm739, %v9125, 0.0
    %9162 = vadd.xlane.f32.xlu0 %v9161
    %v9163 = vpop.xlane.xlu0 %9162
    %v9164 = vsel %vm739, %v9126, 0.0
    %9165 = vadd.xlane.f32.xlu0 %v9164
    %v9166 = vpop.xlane.xlu0 %9165
    %v9167 = vsel %vm739, %v9127, 0.0
    %9168 = vadd.xlane.f32.xlu0 %v9167
    %v9169 = vpop.xlane.xlu0 %9168
    %v9170 = vsel %vm739, %v9128, 0.0
    %9171 = vadd.xlane.f32.xlu0 %v9170
    %v9172 = vpop.xlane.xlu0 %9171
    %v9173 = vsel %vm739, %v9129, 0.0
    %9174 = vadd.xlane.f32.xlu0 %v9173
    %v9175 = vpop.xlane.xlu0 %9174
    %v9176 = vsel %vm739, %v9130, 0.0
    %9177 = vadd.xlane.f32.xlu0 %v9176
    %v9178 = vpop.xlane.xlu0 %9177
    %v9179 = vmul.f32 %v9133, %v794
    %v9180 = vmul.f32 %v9136, %v794
    %v9181 = vmul.f32 %v9139, %v794
    %v9182 = vmul.f32 %v9142, %v794
    %v9183 = vmul.f32 %v9145, %v794
    %v9184 = vmul.f32 %v9148, %v794
    %v9185 = vmul.f32 %v9151, %v794
    %v9186 = vmul.f32 %v9154, %v794
    %v9187 = vmul.f32 %v9157, %v794
    %v9188 = vmul.f32 %v9160, %v794
    %v9189 = vmul.f32 %v9163, %v794
    %v9190 = vmul.f32 %v9166, %v794
    %v9191 = vmul.f32 %v9169, %v794
    %v9192 = vmul.f32 %v9172, %v794
    %v9193 = vmul.f32 %v9175, %v794
    %v9194 = vmul.f32 %v9178, %v794
    %v9195 = vsub.f32 %v9115, %v9179
    %v9196 = vsub.f32 %v9116, %v9180
    %v9197 = vsub.f32 %v9117, %v9181
    %v9198 = vsub.f32 %v9118, %v9182
    %v9199 = vsub.f32 %v9119, %v9183
    %v9200 = vsub.f32 %v9120, %v9184
    %v9201 = vsub.f32 %v9121, %v9185
    %v9202 = vsub.f32 %v9122, %v9186
    %v9203 = vsub.f32 %v9123, %v9187
    %v9204 = vsub.f32 %v9124, %v9188
    %v9205 = vsub.f32 %v9125, %v9189
    %v9206 = vsub.f32 %v9126, %v9190
    %v9207 = vsub.f32 %v9127, %v9191
    %v9208 = vsub.f32 %v9128, %v9192
    %v9209 = vsub.f32 %v9129, %v9193
    %v9210 = vsub.f32 %v9130, %v9194
    %v9211 = vmul.f32 %v9195, %v9195
    %v9212 = vmul.f32 %v9196, %v9196
    %v9213 = vmul.f32 %v9197, %v9197
    %v9214 = vmul.f32 %v9198, %v9198
    %v9215 = vmul.f32 %v9199, %v9199
    %v9216 = vmul.f32 %v9200, %v9200
    %v9217 = vmul.f32 %v9201, %v9201
    %v9218 = vmul.f32 %v9202, %v9202
    %v9219 = vmul.f32 %v9203, %v9203
    %v9220 = vmul.f32 %v9204, %v9204
    %v9221 = vmul.f32 %v9205, %v9205
    %v9222 = vmul.f32 %v9206, %v9206
    %v9223 = vmul.f32 %v9207, %v9207
    %v9224 = vmul.f32 %v9208, %v9208
    %v9225 = vmul.f32 %v9209, %v9209
    %v9226 = vmul.f32 %v9210, %v9210
    %v9227 = vsel %vm739, %v9211, 0.0
    %9228 = vadd.xlane.f32.xlu0 %v9227
    %v9229 = vpop.xlane.xlu0 %9228
    %v9230 = vsel %vm739, %v9212, 0.0
    %9231 = vadd.xlane.f32.xlu0 %v9230
    %v9232 = vpop.xlane.xlu0 %9231
    %v9233 = vsel %vm739, %v9213, 0.0
    %9234 = vadd.xlane.f32.xlu0 %v9233
    %v9235 = vpop.xlane.xlu0 %9234
    %v9236 = vsel %vm739, %v9214, 0.0
    %9237 = vadd.xlane.f32.xlu0 %v9236
    %v9238 = vpop.xlane.xlu0 %9237
    %v9239 = vsel %vm739, %v9215, 0.0
    %9240 = vadd.xlane.f32.xlu0 %v9239
    %v9241 = vpop.xlane.xlu0 %9240
    %v9242 = vsel %vm739, %v9216, 0.0
    %9243 = vadd.xlane.f32.xlu0 %v9242
    %v9244 = vpop.xlane.xlu0 %9243
    %v9245 = vsel %vm739, %v9217, 0.0
    %9246 = vadd.xlane.f32.xlu0 %v9245
    %v9247 = vpop.xlane.xlu0 %9246
    %v9248 = vsel %vm739, %v9218, 0.0
    %9249 = vadd.xlane.f32.xlu0 %v9248
    %v9250 = vpop.xlane.xlu0 %9249
    %v9251 = vsel %vm739, %v9219, 0.0
    %9252 = vadd.xlane.f32.xlu0 %v9251
    %v9253 = vpop.xlane.xlu0 %9252
    %v9254 = vsel %vm739, %v9220, 0.0
    %9255 = vadd.xlane.f32.xlu0 %v9254
    %v9256 = vpop.xlane.xlu0 %9255
    %v9257 = vsel %vm739, %v9221, 0.0
    %9258 = vadd.xlane.f32.xlu0 %v9257
    %v9259 = vpop.xlane.xlu0 %9258
    %v9260 = vsel %vm739, %v9222, 0.0
    %9261 = vadd.xlane.f32.xlu0 %v9260
    %v9262 = vpop.xlane.xlu0 %9261
    %v9263 = vsel %vm739, %v9223, 0.0
    %9264 = vadd.xlane.f32.xlu0 %v9263
    %v9265 = vpop.xlane.xlu0 %9264
    %v9266 = vsel %vm739, %v9224, 0.0
    %9267 = vadd.xlane.f32.xlu0 %v9266
    %v9268 = vpop.xlane.xlu0 %9267
    %v9269 = vsel %vm739, %v9225, 0.0
    %9270 = vadd.xlane.f32.xlu0 %v9269
    %v9271 = vpop.xlane.xlu0 %9270
    %v9272 = vsel %vm739, %v9226, 0.0
    %9273 = vadd.xlane.f32.xlu0 %v9272
    %v9274 = vpop.xlane.xlu0 %9273
    %v9275 = vmul.f32 %v9229, %v794
    %v9276 = vmul.f32 %v9232, %v794
    %v9277 = vmul.f32 %v9235, %v794
    %v9278 = vmul.f32 %v9238, %v794
    %v9279 = vmul.f32 %v9241, %v794
    %v9280 = vmul.f32 %v9244, %v794
    %v9281 = vmul.f32 %v9247, %v794
    %v9282 = vmul.f32 %v9250, %v794
    %v9283 = vmul.f32 %v9253, %v794
    %v9284 = vmul.f32 %v9256, %v794
    %v9285 = vmul.f32 %v9259, %v794
    %v9286 = vmul.f32 %v9262, %v794
    %v9287 = vmul.f32 %v9265, %v794
    %v9288 = vmul.f32 %v9268, %v794
    %v9289 = vmul.f32 %v9271, %v794
    %v9290 = vmul.f32 %v9274, %v794
    %v9291 = vadd.f32 %v9275, 1e-05
    %v9292 = vadd.f32 %v9276, 1e-05
    %v9293 = vadd.f32 %v9277, 1e-05
    %v9294 = vadd.f32 %v9278, 1e-05
    %v9295 = vadd.f32 %v9279, 1e-05
    %v9296 = vadd.f32 %v9280, 1e-05
    %v9297 = vadd.f32 %v9281, 1e-05
    %v9298 = vadd.f32 %v9282, 1e-05
    %v9299 = vadd.f32 %v9283, 1e-05
    %v9300 = vadd.f32 %v9284, 1e-05
    %v9301 = vadd.f32 %v9285, 1e-05
    %v9302 = vadd.f32 %v9286, 1e-05
    %v9303 = vadd.f32 %v9287, 1e-05
    %v9304 = vadd.f32 %v9288, 1e-05
    %v9305 = vadd.f32 %v9289, 1e-05
    %v9306 = vadd.f32 %v9290, 1e-05
    %v9307 = vrsqrt.pop %v9291
    %v9308 = vmul.f32 %v9307, %v9291
    %v9309 = vmul.f32 %v9308, %v9307
    %v9310 = vmul.f32 0.5, %v9309
    %v9311 = vsub.f32 1.5, %v9310
    %v9312 = vmul.f32 %v9307, %v9311
    %vm9313 = vweird.f32 %v9291
    %vm9314 = vweird.f32 %v9307
    %vm9315 = vmor %vm9313, %vm9314
    %v9316 = vsel %vm9315, %v9307, %v9312
    %v9317 = vrsqrt.pop %v9292
    %v9318 = vmul.f32 %v9317, %v9292
    %v9319 = vmul.f32 %v9318, %v9317
    %v9320 = vmul.f32 0.5, %v9319
    %v9321 = vsub.f32 1.5, %v9320
    %v9322 = vmul.f32 %v9317, %v9321
    %vm9323 = vweird.f32 %v9292
    %vm9324 = vweird.f32 %v9317
    %vm9325 = vmor %vm9323, %vm9324
    %v9326 = vsel %vm9325, %v9317, %v9322
    %v9327 = vrsqrt.pop %v9293
    %v9328 = vmul.f32 %v9327, %v9293
    %v9329 = vmul.f32 %v9328, %v9327
    %v9330 = vmul.f32 0.5, %v9329
    %v9331 = vsub.f32 1.5, %v9330
    %v9332 = vmul.f32 %v9327, %v9331
    %vm9333 = vweird.f32 %v9293
    %vm9334 = vweird.f32 %v9327
    %vm9335 = vmor %vm9333, %vm9334
    %v9336 = vsel %vm9335, %v9327, %v9332
    %v9337 = vrsqrt.pop %v9294
    %v9338 = vmul.f32 %v9337, %v9294
    %v9339 = vmul.f32 %v9338, %v9337
    %v9340 = vmul.f32 0.5, %v9339
    %v9341 = vsub.f32 1.5, %v9340
    %v9342 = vmul.f32 %v9337, %v9341
    %vm9343 = vweird.f32 %v9294
    %vm9344 = vweird.f32 %v9337
    %vm9345 = vmor %vm9343, %vm9344
    %v9346 = vsel %vm9345, %v9337, %v9342
    %v9347 = vrsqrt.pop %v9295
    %v9348 = vmul.f32 %v9347, %v9295
    %v9349 = vmul.f32 %v9348, %v9347
    %v9350 = vmul.f32 0.5, %v9349
    %v9351 = vsub.f32 1.5, %v9350
    %v9352 = vmul.f32 %v9347, %v9351
    %vm9353 = vweird.f32 %v9295
    %vm9354 = vweird.f32 %v9347
    %vm9355 = vmor %vm9353, %vm9354
    %v9356 = vsel %vm9355, %v9347, %v9352
    %v9357 = vrsqrt.pop %v9296
    %v9358 = vmul.f32 %v9357, %v9296
    %v9359 = vmul.f32 %v9358, %v9357
    %v9360 = vmul.f32 0.5, %v9359
    %v9361 = vsub.f32 1.5, %v9360
    %v9362 = vmul.f32 %v9357, %v9361
    %vm9363 = vweird.f32 %v9296
    %vm9364 = vweird.f32 %v9357
    %vm9365 = vmor %vm9363, %vm9364
    %v9366 = vsel %vm9365, %v9357, %v9362
    %v9367 = vrsqrt.pop %v9297
    %v9368 = vmul.f32 %v9367, %v9297
    %v9369 = vmul.f32 %v9368, %v9367
    %v9370 = vmul.f32 0.5, %v9369
    %v9371 = vsub.f32 1.5, %v9370
    %v9372 = vmul.f32 %v9367, %v9371
    %vm9373 = vweird.f32 %v9297
    %vm9374 = vweird.f32 %v9367
    %vm9375 = vmor %vm9373, %vm9374
    %v9376 = vsel %vm9375, %v9367, %v9372
    %v9377 = vrsqrt.pop %v9298
    %v9378 = vmul.f32 %v9377, %v9298
    %v9379 = vmul.f32 %v9378, %v9377
    %v9380 = vmul.f32 0.5, %v9379
    %v9381 = vsub.f32 1.5, %v9380
    %v9382 = vmul.f32 %v9377, %v9381
    %vm9383 = vweird.f32 %v9298
    %vm9384 = vweird.f32 %v9377
    %vm9385 = vmor %vm9383, %vm9384
    %v9386 = vsel %vm9385, %v9377, %v9382
    %v9387 = vrsqrt.pop %v9299
    %v9388 = vmul.f32 %v9387, %v9299
    %v9389 = vmul.f32 %v9388, %v9387
    %v9390 = vmul.f32 0.5, %v9389
    %v9391 = vsub.f32 1.5, %v9390
    %v9392 = vmul.f32 %v9387, %v9391
    %vm9393 = vweird.f32 %v9299
    %vm9394 = vweird.f32 %v9387
    %vm9395 = vmor %vm9393, %vm9394
    %v9396 = vsel %vm9395, %v9387, %v9392
    %v9397 = vrsqrt.pop %v9300
    %v9398 = vmul.f32 %v9397, %v9300
    %v9399 = vmul.f32 %v9398, %v9397
    %v9400 = vmul.f32 0.5, %v9399
    %v9401 = vsub.f32 1.5, %v9400
    %v9402 = vmul.f32 %v9397, %v9401
    %vm9403 = vweird.f32 %v9300
    %vm9404 = vweird.f32 %v9397
    %vm9405 = vmor %vm9403, %vm9404
    %v9406 = vsel %vm9405, %v9397, %v9402
    %v9407 = vrsqrt.pop %v9301
    %v9408 = vmul.f32 %v9407, %v9301
    %v9409 = vmul.f32 %v9408, %v9407
    %v9410 = vmul.f32 0.5, %v9409
    %v9411 = vsub.f32 1.5, %v9410
    %v9412 = vmul.f32 %v9407, %v9411
    %vm9413 = vweird.f32 %v9301
    %vm9414 = vweird.f32 %v9407
    %vm9415 = vmor %vm9413, %vm9414
    %v9416 = vsel %vm9415, %v9407, %v9412
    %v9417 = vrsqrt.pop %v9302
    %v9418 = vmul.f32 %v9417, %v9302
    %v9419 = vmul.f32 %v9418, %v9417
    %v9420 = vmul.f32 0.5, %v9419
    %v9421 = vsub.f32 1.5, %v9420
    %v9422 = vmul.f32 %v9417, %v9421
    %vm9423 = vweird.f32 %v9302
    %vm9424 = vweird.f32 %v9417
    %vm9425 = vmor %vm9423, %vm9424
    %v9426 = vsel %vm9425, %v9417, %v9422
    %v9427 = vrsqrt.pop %v9303
    %v9428 = vmul.f32 %v9427, %v9303
    %v9429 = vmul.f32 %v9428, %v9427
    %v9430 = vmul.f32 0.5, %v9429
    %v9431 = vsub.f32 1.5, %v9430
    %v9432 = vmul.f32 %v9427, %v9431
    %vm9433 = vweird.f32 %v9303
    %vm9434 = vweird.f32 %v9427
    %vm9435 = vmor %vm9433, %vm9434
    %v9436 = vsel %vm9435, %v9427, %v9432
    %v9437 = vrsqrt.pop %v9304
    %v9438 = vmul.f32 %v9437, %v9304
    %v9439 = vmul.f32 %v9438, %v9437
    %v9440 = vmul.f32 0.5, %v9439
    %v9441 = vsub.f32 1.5, %v9440
    %v9442 = vmul.f32 %v9437, %v9441
    %vm9443 = vweird.f32 %v9304
    %vm9444 = vweird.f32 %v9437
    %vm9445 = vmor %vm9443, %vm9444
    %v9446 = vsel %vm9445, %v9437, %v9442
    %v9447 = vrsqrt.pop %v9305
    %v9448 = vmul.f32 %v9447, %v9305
    %v9449 = vmul.f32 %v9448, %v9447
    %v9450 = vmul.f32 0.5, %v9449
    %v9451 = vsub.f32 1.5, %v9450
    %v9452 = vmul.f32 %v9447, %v9451
    %vm9453 = vweird.f32 %v9305
    %vm9454 = vweird.f32 %v9447
    %vm9455 = vmor %vm9453, %vm9454
    %v9456 = vsel %vm9455, %v9447, %v9452
    %v9457 = vrsqrt.pop %v9306
    %v9458 = vmul.f32 %v9457, %v9306
    %v9459 = vmul.f32 %v9458, %v9457
    %v9460 = vmul.f32 0.5, %v9459
    %v9461 = vsub.f32 1.5, %v9460
    %v9462 = vmul.f32 %v9457, %v9461
    %vm9463 = vweird.f32 %v9306
    %vm9464 = vweird.f32 %v9457
    %vm9465 = vmor %vm9463, %vm9464
    %v9466 = vsel %vm9465, %v9457, %v9462
    %v9467 = vmul.f32 %v9195, %v9316
    %v9468 = vmul.f32 %v9196, %v9326
    %v9469 = vmul.f32 %v9197, %v9336
    %v9470 = vmul.f32 %v9198, %v9346
    %v9471 = vmul.f32 %v9199, %v9356
    %v9472 = vmul.f32 %v9200, %v9366
    %v9473 = vmul.f32 %v9201, %v9376
    %v9474 = vmul.f32 %v9202, %v9386
    %v9475 = vmul.f32 %v9203, %v9396
    %v9476 = vmul.f32 %v9204, %v9406
    %v9477 = vmul.f32 %v9205, %v9416
    %v9478 = vmul.f32 %v9206, %v9426
    %v9479 = vmul.f32 %v9207, %v9436
    %v9480 = vmul.f32 %v9208, %v9446
    %v9481 = vmul.f32 %v9209, %v9456
    %v9482 = vmul.f32 %v9210, %v9466
    %v9483 = vld [vmem:[#allocation37] sm:$0x1]
    %v9485 = vperm.slane %v9483, 0
    %v9487 = vmul.f32 %v9467, %v9485
    %v9488 = vmul.f32 %v9468, %v9485
    %v9489 = vmul.f32 %v9469, %v9485
    %v9490 = vmul.f32 %v9470, %v9485
    %v9491 = vmul.f32 %v9471, %v9485
    %v9492 = vmul.f32 %v9472, %v9485
    %v9493 = vmul.f32 %v9473, %v9485
    %v9494 = vmul.f32 %v9474, %v9485
    %v9495 = vmul.f32 %v9475, %v9485
    %v9496 = vmul.f32 %v9476, %v9485
    %v9497 = vmul.f32 %v9477, %v9485
    %v9498 = vmul.f32 %v9478, %v9485
    %v9499 = vmul.f32 %v9479, %v9485
    %v9500 = vmul.f32 %v9480, %v9485
    %v9501 = vmul.f32 %v9481, %v9485
    %v9502 = vmul.f32 %v9482, %v9485
    %v9503 = vld [vmem:[#allocation39] sm:$0x1]
    %v9505 = vperm.slane %v9503, 0
    %v9507 = vadd.f32 %v9487, %v9505
    %v9508 = vadd.f32 %v9488, %v9505
    %v9509 = vadd.f32 %v9489, %v9505
    %v9510 = vadd.f32 %v9490, %v9505
    %v9511 = vadd.f32 %v9491, %v9505
    %v9512 = vadd.f32 %v9492, %v9505
    %v9513 = vadd.f32 %v9493, %v9505
    %v9514 = vadd.f32 %v9494, %v9505
    %v9515 = vadd.f32 %v9495, %v9505
    %v9516 = vadd.f32 %v9496, %v9505
    %v9517 = vadd.f32 %v9497, %v9505
    %v9518 = vadd.f32 %v9498, %v9505
    %v9519 = vadd.f32 %v9499, %v9505
    %v9520 = vadd.f32 %v9500, %v9505
    %v9521 = vadd.f32 %v9501, %v9505
    %v9522 = vadd.f32 %v9502, %v9505
    %v9523 = vld [vmem:[#allocation40] sm:$0xf]
    %v9524 = vld [vmem:[#allocation40 + $0x4] sm:$0xf]
    %v9525 = vld [vmem:[#allocation40 + $0x8] sm:$0xf]
    %v9526 = vld [vmem:[#allocation40 + $0xc] sm:$0xf]
    %v9527 = vpack.c.bf16 %v9508, %v9507
    %v9528 = vpack.c.bf16 %v9510, %v9509
    %v9529 = vpack.c.bf16 %v9512, %v9511
    %v9530 = vpack.c.bf16 %v9514, %v9513
    %v9531 = vpack.c.bf16 %v9516, %v9515
    %v9532 = vpack.c.bf16 %v9518, %v9517
    %v9533 = vpack.c.bf16 %v9520, %v9519
    %v9534 = vpack.c.bf16 %v9522, %v9521
    %v9535 = vld [vmem:[#allocation42] sm:$0x1]
    %v9537 = vperm.slane %v9535, 0
    %v9543 = vunpack.c.l.b16 %v9523
    %v9544 = vunpack.c.l.b16 %v9524
    %v9545 = vunpack.c.l.b16 %v9525
    %v9546 = vunpack.c.l.b16 %v9526
    %v9547 = vpack.c.b16 %v9544, %v9543
    %v9548 = vpack.c.b16 %v9546, %v9545
    %v9552 = vsel %vm739, %v9527, 0
    %v9555 = vsel %vm739, %v9528, 0
    %v9558 = vsel %vm739, %v9529, 0
    %v9561 = vsel %vm739, %v9530, 0
    %v9564 = vsel %vm739, %v9531, 0
    %v9567 = vsel %vm739, %v9532, 0
    %v9570 = vsel %vm739, %v9533, 0
    %v9573 = vsel %vm739, %v9534, 0
    %9575 = vmatpush.bf16.msra.mxu0 0
    %9576 = vmatpush.bf16.msra.mxu0 0
    %9577 = vmatpush.bf16.msra.mxu0 0
    %9578 = vmatpush.bf16.msra.mxu0 0
    %9579 = vmatpush.bf16.msra.mxu0 0
    %9580 = vmatpush.bf16.msra.mxu0 0
    %9581 = vmatpush.bf16.msra.mxu0 %v9548
    %9582 = vmatpush.bf16.msra.mxu0 %v9547
    %9583 = vmatmul.bf16.gmra.mxu0 %v9552
    %v9584 = vpop.f32.mrf.mxu0
    %v9585 = vadd.f32 %v9537, %v9584
    %v9586 = vpop.f32.mrf.mxu0
    %v9587 = vadd.f32 %v9537, %v9586
    %9588 = vmatmul.bf16.gmra.mxu0 %v9555
    %v9589 = vpop.f32.mrf.mxu0
    %v9590 = vadd.f32 %v9537, %v9589
    %v9591 = vpop.f32.mrf.mxu0
    %v9592 = vadd.f32 %v9537, %v9591
    %9593 = vmatmul.bf16.gmra.mxu0 %v9558
    %v9594 = vpop.f32.mrf.mxu0
    %v9595 = vadd.f32 %v9537, %v9594
    %v9596 = vpop.f32.mrf.mxu0
    %v9597 = vadd.f32 %v9537, %v9596
    %9598 = vmatmul.bf16.gmra.mxu0 %v9561
    %v9599 = vpop.f32.mrf.mxu0
    %v9600 = vadd.f32 %v9537, %v9599
    %v9601 = vpop.f32.mrf.mxu0
    %v9602 = vadd.f32 %v9537, %v9601
    %9603 = vmatmul.bf16.gmra.mxu0 %v9564
    %v9604 = vpop.f32.mrf.mxu0
    %v9605 = vadd.f32 %v9537, %v9604
    %v9606 = vpop.f32.mrf.mxu0
    %v9607 = vadd.f32 %v9537, %v9606
    %9608 = vmatmul.bf16.gmra.mxu0 %v9567
    %v9609 = vpop.f32.mrf.mxu0
    %v9610 = vadd.f32 %v9537, %v9609
    %v9611 = vpop.f32.mrf.mxu0
    %v9612 = vadd.f32 %v9537, %v9611
    %9613 = vmatmul.bf16.gmra.mxu0 %v9570
    %v9614 = vpop.f32.mrf.mxu0
    %v9615 = vadd.f32 %v9537, %v9614
    %v9616 = vpop.f32.mrf.mxu0
    %v9617 = vadd.f32 %v9537, %v9616
    %9618 = vmatmul.bf16.gmra.mxu0 %v9573
    %v9619 = vpop.f32.mrf.mxu0
    %v9620 = vadd.f32 %v9537, %v9619
    %v9621 = vpop.f32.mrf.mxu0
    %v9622 = vadd.f32 %v9537, %v9621
    %9623 = vdwg.mxu0
    %v9624 = vmax.f32 %v9585, 0.0
    %v9625 = vmax.f32 %v9587, 0.0
    %v9626 = vmax.f32 %v9590, 0.0
    %v9627 = vmax.f32 %v9592, 0.0
    %v9628 = vmax.f32 %v9595, 0.0
    %v9629 = vmax.f32 %v9597, 0.0
    %v9630 = vmax.f32 %v9600, 0.0
    %v9631 = vmax.f32 %v9602, 0.0
    %v9632 = vmax.f32 %v9605, 0.0
    %v9633 = vmax.f32 %v9607, 0.0
    %v9634 = vmax.f32 %v9610, 0.0
    %v9635 = vmax.f32 %v9612, 0.0
    %v9636 = vmax.f32 %v9615, 0.0
    %v9637 = vmax.f32 %v9617, 0.0
    %v9638 = vmax.f32 %v9620, 0.0
    %v9639 = vmax.f32 %v9622, 0.0
    %v9640 = vld [vmem:[#allocation43] sm:$0xff]
    %v9641 = vld [vmem:[#allocation43 + $0x8] sm:$0xff]
    %v9642 = vld [vmem:[#allocation43 + $0x10] sm:$0xff]
    %v9643 = vld [vmem:[#allocation43 + $0x18] sm:$0xff]
    %v9644 = vld [vmem:[#allocation43 + $0x20] sm:$0xff]
    %v9645 = vld [vmem:[#allocation43 + $0x28] sm:$0xff]
    %v9646 = vld [vmem:[#allocation43 + $0x30] sm:$0xff]
    %v9647 = vld [vmem:[#allocation43 + $0x38] sm:$0xff]
    %v9648 = vld [vmem:[#allocation43 + $0x40] sm:$0xff]
    %v9649 = vld [vmem:[#allocation43 + $0x48] sm:$0xff]
    %v9650 = vld [vmem:[#allocation43 + $0x50] sm:$0xff]
    %v9651 = vld [vmem:[#allocation43 + $0x58] sm:$0xff]
    %v9652 = vld [vmem:[#allocation43 + $0x60] sm:$0xff]
    %v9653 = vld [vmem:[#allocation43 + $0x68] sm:$0xff]
    %v9654 = vld [vmem:[#allocation43 + $0x70] sm:$0xff]
    %v9655 = vld [vmem:[#allocation43 + $0x78] sm:$0xff]
    %v9656 = vld [vmem:[#allocation43 + $0x80] sm:$0xff]
    %v9657 = vld [vmem:[#allocation43 + $0x88] sm:$0xff]
    %v9658 = vld [vmem:[#allocation43 + $0x90] sm:$0xff]
    %v9659 = vld [vmem:[#allocation43 + $0x98] sm:$0xff]
    %v9660 = vld [vmem:[#allocation43 + $0xa0] sm:$0xff]
    %v9661 = vld [vmem:[#allocation43 + $0xa8] sm:$0xff]
    %v9662 = vld [vmem:[#allocation43 + $0xb0] sm:$0xff]
    %v9663 = vld [vmem:[#allocation43 + $0xb8] sm:$0xff]
    %v9664 = vld [vmem:[#allocation43 + $0xc0] sm:$0xff]
    %v9665 = vld [vmem:[#allocation43 + $0xc8] sm:$0xff]
    %v9666 = vld [vmem:[#allocation43 + $0xd0] sm:$0xff]
    %v9667 = vld [vmem:[#allocation43 + $0xd8] sm:$0xff]
    %v9668 = vld [vmem:[#allocation43 + $0xe0] sm:$0xff]
    %v9669 = vld [vmem:[#allocation43 + $0xe8] sm:$0xff]
    %v9670 = vld [vmem:[#allocation43 + $0xf0] sm:$0xff]
    %v9671 = vld [vmem:[#allocation43 + $0xf8] sm:$0xff]
    %v9672 = vld [vmem:[#allocation43 + $0x100] sm:$0xff]
    %v9673 = vld [vmem:[#allocation43 + $0x108] sm:$0xff]
    %v9674 = vld [vmem:[#allocation43 + $0x110] sm:$0xff]
    %v9675 = vld [vmem:[#allocation43 + $0x118] sm:$0xff]
    %v9676 = vld [vmem:[#allocation43 + $0x120] sm:$0xff]
    %v9677 = vld [vmem:[#allocation43 + $0x128] sm:$0xff]
    %v9678 = vld [vmem:[#allocation43 + $0x130] sm:$0xff]
    %v9679 = vld [vmem:[#allocation43 + $0x138] sm:$0xff]
    %v9680 = vld [vmem:[#allocation43 + $0x140] sm:$0xff]
    %v9681 = vld [vmem:[#allocation43 + $0x148] sm:$0xff]
    %v9682 = vld [vmem:[#allocation43 + $0x150] sm:$0xff]
    %v9683 = vld [vmem:[#allocation43 + $0x158] sm:$0xff]
    %v9684 = vld [vmem:[#allocation43 + $0x160] sm:$0xff]
    %v9685 = vld [vmem:[#allocation43 + $0x168] sm:$0xff]
    %v9686 = vld [vmem:[#allocation43 + $0x170] sm:$0xff]
    %v9687 = vld [vmem:[#allocation43 + $0x178] sm:$0xff]
    %v9688 = vpack.c.bf16 %v9625, %v9624
    %v9689 = vpack.c.bf16 %v9627, %v9626
    %v9690 = vpack.c.bf16 %v9629, %v9628
    %v9691 = vpack.c.bf16 %v9631, %v9630
    %v9692 = vpack.c.bf16 %v9633, %v9632
    %v9693 = vpack.c.bf16 %v9635, %v9634
    %v9694 = vpack.c.bf16 %v9637, %v9636
    %v9695 = vpack.c.bf16 %v9639, %v9638
    %v9696 = vld [vmem:[#allocation45] sm:$0x3f]
    %v9698 = vperm.slane %v9696, 0
    %v9699 = vperm.slane %v9696, 1
    %v9700 = vperm.slane %v9696, 2
    %v9701 = vperm.slane %v9696, 3
    %v9702 = vperm.slane %v9696, 4
    %v9703 = vperm.slane %v9696, 5
    %v9758 = vunpack.c.l.b16 %v9640
    %v9759 = vunpack.c.h.b16 %v9640
    %v9760 = vunpack.c.l.b16 %v9641
    %v9761 = vunpack.c.h.b16 %v9641
    %v9762 = vunpack.c.l.b16 %v9642
    %v9763 = vunpack.c.h.b16 %v9642
    %v9764 = vunpack.c.l.b16 %v9643
    %v9765 = vunpack.c.h.b16 %v9643
    %v9766 = vunpack.c.l.b16 %v9644
    %v9767 = vunpack.c.h.b16 %v9644
    %v9768 = vunpack.c.l.b16 %v9645
    %v9769 = vunpack.c.h.b16 %v9645
    %v9770 = vunpack.c.l.b16 %v9646
    %v9771 = vunpack.c.h.b16 %v9646
    %v9772 = vunpack.c.l.b16 %v9647
    %v9773 = vunpack.c.h.b16 %v9647
    %v9774 = vunpack.c.l.b16 %v9648
    %v9775 = vunpack.c.h.b16 %v9648
    %v9776 = vunpack.c.l.b16 %v9649
    %v9777 = vunpack.c.h.b16 %v9649
    %v9778 = vunpack.c.l.b16 %v9650
    %v9779 = vunpack.c.h.b16 %v9650
    %v9780 = vunpack.c.l.b16 %v9651
    %v9781 = vunpack.c.h.b16 %v9651
    %v9782 = vunpack.c.l.b16 %v9652
    %v9783 = vunpack.c.h.b16 %v9652
    %v9784 = vunpack.c.l.b16 %v9653
    %v9785 = vunpack.c.h.b16 %v9653
    %v9786 = vunpack.c.l.b16 %v9654
    %v9787 = vunpack.c.h.b16 %v9654
    %v9788 = vunpack.c.l.b16 %v9655
    %v9789 = vunpack.c.h.b16 %v9655
    %v9790 = vunpack.c.l.b16 %v9656
    %v9791 = vunpack.c.h.b16 %v9656
    %v9792 = vunpack.c.l.b16 %v9657
    %v9793 = vunpack.c.h.b16 %v9657
    %v9794 = vunpack.c.l.b16 %v9658
    %v9795 = vunpack.c.h.b16 %v9658
    %v9796 = vunpack.c.l.b16 %v9659
    %v9797 = vunpack.c.h.b16 %v9659
    %v9798 = vunpack.c.l.b16 %v9660
    %v9799 = vunpack.c.h.b16 %v9660
    %v9800 = vunpack.c.l.b16 %v9661
    %v9801 = vunpack.c.h.b16 %v9661
    %v9802 = vunpack.c.l.b16 %v9662
    %v9803 = vunpack.c.h.b16 %v9662
    %v9804 = vunpack.c.l.b16 %v9663
    %v9805 = vunpack.c.h.b16 %v9663
    %v9806 = vunpack.c.l.b16 %v9664
    %v9807 = vunpack.c.h.b16 %v9664
    %v9808 = vunpack.c.l.b16 %v9665
    %v9809 = vunpack.c.h.b16 %v9665
    %v9810 = vunpack.c.l.b16 %v9666
    %v9811 = vunpack.c.h.b16 %v9666
    %v9812 = vunpack.c.l.b16 %v9667
    %v9813 = vunpack.c.h.b16 %v9667
    %v9814 = vunpack.c.l.b16 %v9668
    %v9815 = vunpack.c.h.b16 %v9668
    %v9816 = vunpack.c.l.b16 %v9669
    %v9817 = vunpack.c.h.b16 %v9669
    %v9818 = vunpack.c.l.b16 %v9670
    %v9819 = vunpack.c.h.b16 %v9670
    %v9820 = vunpack.c.l.b16 %v9671
    %v9821 = vunpack.c.h.b16 %v9671
    %v9822 = vunpack.c.l.b16 %v9672
    %v9823 = vunpack.c.h.b16 %v9672
    %v9824 = vunpack.c.l.b16 %v9673
    %v9825 = vunpack.c.h.b16 %v9673
    %v9826 = vunpack.c.l.b16 %v9674
    %v9827 = vunpack.c.h.b16 %v9674
    %v9828 = vunpack.c.l.b16 %v9675
    %v9829 = vunpack.c.h.b16 %v9675
    %v9830 = vunpack.c.l.b16 %v9676
    %v9831 = vunpack.c.h.b16 %v9676
    %v9832 = vunpack.c.l.b16 %v9677
    %v9833 = vunpack.c.h.b16 %v9677
    %v9834 = vunpack.c.l.b16 %v9678
    %v9835 = vunpack.c.h.b16 %v9678
    %v9836 = vunpack.c.l.b16 %v9679
    %v9837 = vunpack.c.h.b16 %v9679
    %v9838 = vunpack.c.l.b16 %v9680
    %v9839 = vunpack.c.h.b16 %v9680
    %v9840 = vunpack.c.l.b16 %v9681
    %v9841 = vunpack.c.h.b16 %v9681
    %v9842 = vunpack.c.l.b16 %v9682
    %v9843 = vunpack.c.h.b16 %v9682
    %v9844 = vunpack.c.l.b16 %v9683
    %v9845 = vunpack.c.h.b16 %v9683
    %v9846 = vunpack.c.l.b16 %v9684
    %v9847 = vunpack.c.h.b16 %v9684
    %v9848 = vunpack.c.l.b16 %v9685
    %v9849 = vunpack.c.h.b16 %v9685
    %v9850 = vunpack.c.l.b16 %v9686
    %v9851 = vunpack.c.h.b16 %v9686
    %v9852 = vunpack.c.l.b16 %v9687
    %v9853 = vunpack.c.h.b16 %v9687
    %v9854 = vpack.c.b16 %v9764, %v9758
    %v9855 = vpack.c.b16 %v9765, %v9759
    %v9856 = vpack.c.b16 %v9766, %v9760
    %v9857 = vpack.c.b16 %v9767, %v9761
    %v9858 = vpack.c.b16 %v9768, %v9762
    %v9859 = vpack.c.b16 %v9769, %v9763
    %v9860 = vpack.c.b16 %v9776, %v9770
    %v9861 = vpack.c.b16 %v9777, %v9771
    %v9862 = vpack.c.b16 %v9778, %v9772
    %v9863 = vpack.c.b16 %v9779, %v9773
    %v9864 = vpack.c.b16 %v9780, %v9774
    %v9865 = vpack.c.b16 %v9781, %v9775
    %v9866 = vpack.c.b16 %v9788, %v9782
    %v9867 = vpack.c.b16 %v9789, %v9783
    %v9868 = vpack.c.b16 %v9790, %v9784
    %v9869 = vpack.c.b16 %v9791, %v9785
    %v9870 = vpack.c.b16 %v9792, %v9786
    %v9871 = vpack.c.b16 %v9793, %v9787
    %v9872 = vpack.c.b16 %v9800, %v9794
    %v9873 = vpack.c.b16 %v9801, %v9795
    %v9874 = vpack.c.b16 %v9802, %v9796
    %v9875 = vpack.c.b16 %v9803, %v9797
    %v9876 = vpack.c.b16 %v9804, %v9798
    %v9877 = vpack.c.b16 %v9805, %v9799
    %v9878 = vpack.c.b16 %v9812, %v9806
    %v9879 = vpack.c.b16 %v9813, %v9807
    %v9880 = vpack.c.b16 %v9814, %v9808
    %v9881 = vpack.c.b16 %v9815, %v9809
    %v9882 = vpack.c.b16 %v9816, %v9810
    %v9883 = vpack.c.b16 %v9817, %v9811
    %v9884 = vpack.c.b16 %v9824, %v9818
    %v9885 = vpack.c.b16 %v9825, %v9819
    %v9886 = vpack.c.b16 %v9826, %v9820
    %v9887 = vpack.c.b16 %v9827, %v9821
    %v9888 = vpack.c.b16 %v9828, %v9822
    %v9889 = vpack.c.b16 %v9829, %v9823
    %v9890 = vpack.c.b16 %v9836, %v9830
    %v9891 = vpack.c.b16 %v9837, %v9831
    %v9892 = vpack.c.b16 %v9838, %v9832
    %v9893 = vpack.c.b16 %v9839, %v9833
    %v9894 = vpack.c.b16 %v9840, %v9834
    %v9895 = vpack.c.b16 %v9841, %v9835
    %v9896 = vpack.c.b16 %v9848, %v9842
    %v9897 = vpack.c.b16 %v9849, %v9843
    %v9898 = vpack.c.b16 %v9850, %v9844
    %v9899 = vpack.c.b16 %v9851, %v9845
    %v9900 = vpack.c.b16 %v9852, %v9846
    %v9901 = vpack.c.b16 %v9853, %v9847
    %9950 = vmatpush.bf16.msra.mxu0 %v9896
    %9951 = vmatpush.bf16.msra.mxu0 %v9890
    %9952 = vmatpush.bf16.msra.mxu0 %v9884
    %9953 = vmatpush.bf16.msra.mxu0 %v9878
    %9954 = vmatpush.bf16.msra.mxu0 %v9872
    %9955 = vmatpush.bf16.msra.mxu0 %v9866
    %9956 = vmatpush.bf16.msra.mxu0 %v9860
    %9957 = vmatpush.bf16.msra.mxu0 %v9854
    %9958 = vmatmul.bf16.gmra.mxu0 %v9688
    %v9959 = vpop.f32.mrf.mxu0
    %v9960 = vadd.f32 %v9698, %v9959
    %v9961 = vpop.f32.mrf.mxu0
    %v9962 = vadd.f32 %v9698, %v9961
    %9963 = vmatmul.bf16.gmra.mxu0 %v9689
    %v9964 = vpop.f32.mrf.mxu0
    %v9965 = vadd.f32 %v9698, %v9964
    %v9966 = vpop.f32.mrf.mxu0
    %v9967 = vadd.f32 %v9698, %v9966
    %9968 = vmatmul.bf16.gmra.mxu0 %v9690
    %v9969 = vpop.f32.mrf.mxu0
    %v9970 = vadd.f32 %v9698, %v9969
    %v9971 = vpop.f32.mrf.mxu0
    %v9972 = vadd.f32 %v9698, %v9971
    %9973 = vmatmul.bf16.gmra.mxu0 %v9691
    %v9974 = vpop.f32.mrf.mxu0
    %v9975 = vadd.f32 %v9698, %v9974
    %v9976 = vpop.f32.mrf.mxu0
    %v9977 = vadd.f32 %v9698, %v9976
    %9978 = vmatmul.bf16.gmra.mxu0 %v9692
    %v9979 = vpop.f32.mrf.mxu0
    %v9980 = vadd.f32 %v9698, %v9979
    %v9981 = vpop.f32.mrf.mxu0
    %v9982 = vadd.f32 %v9698, %v9981
    %9983 = vmatmul.bf16.gmra.mxu0 %v9693
    %v9984 = vpop.f32.mrf.mxu0
    %v9985 = vadd.f32 %v9698, %v9984
    %v9986 = vpop.f32.mrf.mxu0
    %v9987 = vadd.f32 %v9698, %v9986
    %9988 = vmatmul.bf16.gmra.mxu0 %v9694
    %v9989 = vpop.f32.mrf.mxu0
    %v9990 = vadd.f32 %v9698, %v9989
    %v9991 = vpop.f32.mrf.mxu0
    %v9992 = vadd.f32 %v9698, %v9991
    %9993 = vmatmul.bf16.gmra.mxu0 %v9695
    %v9994 = vpop.f32.mrf.mxu0
    %v9995 = vadd.f32 %v9698, %v9994
    %v9996 = vpop.f32.mrf.mxu0
    %v9997 = vadd.f32 %v9698, %v9996
    %9998 = vdwg.mxu0
    %9999 = vmatpush.bf16.msra.mxu0 %v9897
    %10000 = vmatpush.bf16.msra.mxu0 %v9891
    %10001 = vmatpush.bf16.msra.mxu0 %v9885
    %10002 = vmatpush.bf16.msra.mxu0 %v9879
    %10003 = vmatpush.bf16.msra.mxu0 %v9873
    %10004 = vmatpush.bf16.msra.mxu0 %v9867
    %10005 = vmatpush.bf16.msra.mxu0 %v9861
    %10006 = vmatpush.bf16.msra.mxu0 %v9855
    %10007 = vmatmul.bf16.gmra.mxu0 %v9688
    %v10008 = vpop.f32.mrf.mxu0
    %v10009 = vadd.f32 %v9699, %v10008
    %v10010 = vpop.f32.mrf.mxu0
    %v10011 = vadd.f32 %v9699, %v10010
    %10012 = vmatmul.bf16.gmra.mxu0 %v9689
    %v10013 = vpop.f32.mrf.mxu0
    %v10014 = vadd.f32 %v9699, %v10013
    %v10015 = vpop.f32.mrf.mxu0
    %v10016 = vadd.f32 %v9699, %v10015
    %10017 = vmatmul.bf16.gmra.mxu0 %v9690
    %v10018 = vpop.f32.mrf.mxu0
    %v10019 = vadd.f32 %v9699, %v10018
    %v10020 = vpop.f32.mrf.mxu0
    %v10021 = vadd.f32 %v9699, %v10020
    %10022 = vmatmul.bf16.gmra.mxu0 %v9691
    %v10023 = vpop.f32.mrf.mxu0
    %v10024 = vadd.f32 %v9699, %v10023
    %v10025 = vpop.f32.mrf.mxu0
    %v10026 = vadd.f32 %v9699, %v10025
    %10027 = vmatmul.bf16.gmra.mxu0 %v9692
    %v10028 = vpop.f32.mrf.mxu0
    %v10029 = vadd.f32 %v9699, %v10028
    %v10030 = vpop.f32.mrf.mxu0
    %v10031 = vadd.f32 %v9699, %v10030
    %10032 = vmatmul.bf16.gmra.mxu0 %v9693
    %v10033 = vpop.f32.mrf.mxu0
    %v10034 = vadd.f32 %v9699, %v10033
    %v10035 = vpop.f32.mrf.mxu0
    %v10036 = vadd.f32 %v9699, %v10035
    %10037 = vmatmul.bf16.gmra.mxu0 %v9694
    %v10038 = vpop.f32.mrf.mxu0
    %v10039 = vadd.f32 %v9699, %v10038
    %v10040 = vpop.f32.mrf.mxu0
    %v10041 = vadd.f32 %v9699, %v10040
    %10042 = vmatmul.bf16.gmra.mxu0 %v9695
    %v10043 = vpop.f32.mrf.mxu0
    %v10044 = vadd.f32 %v9699, %v10043
    %v10045 = vpop.f32.mrf.mxu0
    %v10046 = vadd.f32 %v9699, %v10045
    %10047 = vdwg.mxu0
    %10048 = vmatpush.bf16.msra.mxu0 %v9898
    %10049 = vmatpush.bf16.msra.mxu0 %v9892
    %10050 = vmatpush.bf16.msra.mxu0 %v9886
    %10051 = vmatpush.bf16.msra.mxu0 %v9880
    %10052 = vmatpush.bf16.msra.mxu0 %v9874
    %10053 = vmatpush.bf16.msra.mxu0 %v9868
    %10054 = vmatpush.bf16.msra.mxu0 %v9862
    %10055 = vmatpush.bf16.msra.mxu0 %v9856
    %10056 = vmatmul.bf16.gmra.mxu0 %v9688
    %v10057 = vpop.f32.mrf.mxu0
    %v10058 = vadd.f32 %v9700, %v10057
    %v10059 = vpop.f32.mrf.mxu0
    %v10060 = vadd.f32 %v9700, %v10059
    %10061 = vmatmul.bf16.gmra.mxu0 %v9689
    %v10062 = vpop.f32.mrf.mxu0
    %v10063 = vadd.f32 %v9700, %v10062
    %v10064 = vpop.f32.mrf.mxu0
    %v10065 = vadd.f32 %v9700, %v10064
    %10066 = vmatmul.bf16.gmra.mxu0 %v9690
    %v10067 = vpop.f32.mrf.mxu0
    %v10068 = vadd.f32 %v9700, %v10067
    %v10069 = vpop.f32.mrf.mxu0
    %v10070 = vadd.f32 %v9700, %v10069
    %10071 = vmatmul.bf16.gmra.mxu0 %v9691
    %v10072 = vpop.f32.mrf.mxu0
    %v10073 = vadd.f32 %v9700, %v10072
    %v10074 = vpop.f32.mrf.mxu0
    %v10075 = vadd.f32 %v9700, %v10074
    %10076 = vmatmul.bf16.gmra.mxu0 %v9692
    %v10077 = vpop.f32.mrf.mxu0
    %v10078 = vadd.f32 %v9700, %v10077
    %v10079 = vpop.f32.mrf.mxu0
    %v10080 = vadd.f32 %v9700, %v10079
    %10081 = vmatmul.bf16.gmra.mxu0 %v9693
    %v10082 = vpop.f32.mrf.mxu0
    %v10083 = vadd.f32 %v9700, %v10082
    %v10084 = vpop.f32.mrf.mxu0
    %v10085 = vadd.f32 %v9700, %v10084
    %10086 = vmatmul.bf16.gmra.mxu0 %v9694
    %v10087 = vpop.f32.mrf.mxu0
    %v10088 = vadd.f32 %v9700, %v10087
    %v10089 = vpop.f32.mrf.mxu0
    %v10090 = vadd.f32 %v9700, %v10089
    %10091 = vmatmul.bf16.gmra.mxu0 %v9695
    %v10092 = vpop.f32.mrf.mxu0
    %v10093 = vadd.f32 %v9700, %v10092
    %v10094 = vpop.f32.mrf.mxu0
    %v10095 = vadd.f32 %v9700, %v10094
    %10096 = vdwg.mxu0
    %10097 = vmatpush.bf16.msra.mxu0 %v9899
    %10098 = vmatpush.bf16.msra.mxu0 %v9893
    %10099 = vmatpush.bf16.msra.mxu0 %v9887
    %10100 = vmatpush.bf16.msra.mxu0 %v9881
    %10101 = vmatpush.bf16.msra.mxu0 %v9875
    %10102 = vmatpush.bf16.msra.mxu0 %v9869
    %10103 = vmatpush.bf16.msra.mxu0 %v9863
    %10104 = vmatpush.bf16.msra.mxu0 %v9857
    %10105 = vmatmul.bf16.gmra.mxu0 %v9688
    %v10106 = vpop.f32.mrf.mxu0
    %v10107 = vadd.f32 %v9701, %v10106
    %v10108 = vpop.f32.mrf.mxu0
    %v10109 = vadd.f32 %v9701, %v10108
    %10110 = vmatmul.bf16.gmra.mxu0 %v9689
    %v10111 = vpop.f32.mrf.mxu0
    %v10112 = vadd.f32 %v9701, %v10111
    %v10113 = vpop.f32.mrf.mxu0
    %v10114 = vadd.f32 %v9701, %v10113
    %10115 = vmatmul.bf16.gmra.mxu0 %v9690
    %v10116 = vpop.f32.mrf.mxu0
    %v10117 = vadd.f32 %v9701, %v10116
    %v10118 = vpop.f32.mrf.mxu0
    %v10119 = vadd.f32 %v9701, %v10118
    %10120 = vmatmul.bf16.gmra.mxu0 %v9691
    %v10121 = vpop.f32.mrf.mxu0
    %v10122 = vadd.f32 %v9701, %v10121
    %v10123 = vpop.f32.mrf.mxu0
    %v10124 = vadd.f32 %v9701, %v10123
    %10125 = vmatmul.bf16.gmra.mxu0 %v9692
    %v10126 = vpop.f32.mrf.mxu0
    %v10127 = vadd.f32 %v9701, %v10126
    %v10128 = vpop.f32.mrf.mxu0
    %v10129 = vadd.f32 %v9701, %v10128
    %10130 = vmatmul.bf16.gmra.mxu0 %v9693
    %v10131 = vpop.f32.mrf.mxu0
    %v10132 = vadd.f32 %v9701, %v10131
    %v10133 = vpop.f32.mrf.mxu0
    %v10134 = vadd.f32 %v9701, %v10133
    %10135 = vmatmul.bf16.gmra.mxu0 %v9694
    %v10136 = vpop.f32.mrf.mxu0
    %v10137 = vadd.f32 %v9701, %v10136
    %v10138 = vpop.f32.mrf.mxu0
    %v10139 = vadd.f32 %v9701, %v10138
    %10140 = vmatmul.bf16.gmra.mxu0 %v9695
    %v10141 = vpop.f32.mrf.mxu0
    %v10142 = vadd.f32 %v9701, %v10141
    %v10143 = vpop.f32.mrf.mxu0
    %v10144 = vadd.f32 %v9701, %v10143
    %10145 = vdwg.mxu0
    %10146 = vmatpush.bf16.msra.mxu0 %v9900
    %10147 = vmatpush.bf16.msra.mxu0 %v9894
    %10148 = vmatpush.bf16.msra.mxu0 %v9888
    %10149 = vmatpush.bf16.msra.mxu0 %v9882
    %10150 = vmatpush.bf16.msra.mxu0 %v9876
    %10151 = vmatpush.bf16.msra.mxu0 %v9870
    %10152 = vmatpush.bf16.msra.mxu0 %v9864
    %10153 = vmatpush.bf16.msra.mxu0 %v9858
    %10154 = vmatmul.bf16.gmra.mxu0 %v9688
    %v10155 = vpop.f32.mrf.mxu0
    %v10156 = vadd.f32 %v9702, %v10155
    %v10157 = vpop.f32.mrf.mxu0
    %v10158 = vadd.f32 %v9702, %v10157
    %10159 = vmatmul.bf16.gmra.mxu0 %v9689
    %v10160 = vpop.f32.mrf.mxu0
    %v10161 = vadd.f32 %v9702, %v10160
    %v10162 = vpop.f32.mrf.mxu0
    %v10163 = vadd.f32 %v9702, %v10162
    %10164 = vmatmul.bf16.gmra.mxu0 %v9690
    %v10165 = vpop.f32.mrf.mxu0
    %v10166 = vadd.f32 %v9702, %v10165
    %v10167 = vpop.f32.mrf.mxu0
    %v10168 = vadd.f32 %v9702, %v10167
    %10169 = vmatmul.bf16.gmra.mxu0 %v9691
    %v10170 = vpop.f32.mrf.mxu0
    %v10171 = vadd.f32 %v9702, %v10170
    %v10172 = vpop.f32.mrf.mxu0
    %v10173 = vadd.f32 %v9702, %v10172
    %10174 = vmatmul.bf16.gmra.mxu0 %v9692
    %v10175 = vpop.f32.mrf.mxu0
    %v10176 = vadd.f32 %v9702, %v10175
    %v10177 = vpop.f32.mrf.mxu0
    %v10178 = vadd.f32 %v9702, %v10177
    %10179 = vmatmul.bf16.gmra.mxu0 %v9693
    %v10180 = vpop.f32.mrf.mxu0
    %v10181 = vadd.f32 %v9702, %v10180
    %v10182 = vpop.f32.mrf.mxu0
    %v10183 = vadd.f32 %v9702, %v10182
    %10184 = vmatmul.bf16.gmra.mxu0 %v9694
    %v10185 = vpop.f32.mrf.mxu0
    %v10186 = vadd.f32 %v9702, %v10185
    %v10187 = vpop.f32.mrf.mxu0
    %v10188 = vadd.f32 %v9702, %v10187
    %10189 = vmatmul.bf16.gmra.mxu0 %v9695
    %v10190 = vpop.f32.mrf.mxu0
    %v10191 = vadd.f32 %v9702, %v10190
    %v10192 = vpop.f32.mrf.mxu0
    %v10193 = vadd.f32 %v9702, %v10192
    %10194 = vdwg.mxu0
    %10195 = vmatpush.bf16.msra.mxu0 %v9901
    %10196 = vmatpush.bf16.msra.mxu0 %v9895
    %10197 = vmatpush.bf16.msra.mxu0 %v9889
    %10198 = vmatpush.bf16.msra.mxu0 %v9883
    %10199 = vmatpush.bf16.msra.mxu0 %v9877
    %10200 = vmatpush.bf16.msra.mxu0 %v9871
    %10201 = vmatpush.bf16.msra.mxu0 %v9865
    %10202 = vmatpush.bf16.msra.mxu0 %v9859
    %10203 = vmatmul.bf16.gmra.mxu0 %v9688
    %v10204 = vpop.f32.mrf.mxu0
    %v10205 = vadd.f32 %v9703, %v10204
    %v10206 = vpop.f32.mrf.mxu0
    %v10207 = vadd.f32 %v9703, %v10206
    %10208 = vmatmul.bf16.gmra.mxu0 %v9689
    %v10209 = vpop.f32.mrf.mxu0
    %v10210 = vadd.f32 %v9703, %v10209
    %v10211 = vpop.f32.mrf.mxu0
    %v10212 = vadd.f32 %v9703, %v10211
    %10213 = vmatmul.bf16.gmra.mxu0 %v9690
    %v10214 = vpop.f32.mrf.mxu0
    %v10215 = vadd.f32 %v9703, %v10214
    %v10216 = vpop.f32.mrf.mxu0
    %v10217 = vadd.f32 %v9703, %v10216
    %10218 = vmatmul.bf16.gmra.mxu0 %v9691
    %v10219 = vpop.f32.mrf.mxu0
    %v10220 = vadd.f32 %v9703, %v10219
    %v10221 = vpop.f32.mrf.mxu0
    %v10222 = vadd.f32 %v9703, %v10221
    %10223 = vmatmul.bf16.gmra.mxu0 %v9692
    %v10224 = vpop.f32.mrf.mxu0
    %v10225 = vadd.f32 %v9703, %v10224
    %v10226 = vpop.f32.mrf.mxu0
    %v10227 = vadd.f32 %v9703, %v10226
    %10228 = vmatmul.bf16.gmra.mxu0 %v9693
    %v10229 = vpop.f32.mrf.mxu0
    %v10230 = vadd.f32 %v9703, %v10229
    %v10231 = vpop.f32.mrf.mxu0
    %v10232 = vadd.f32 %v9703, %v10231
    %10233 = vmatmul.bf16.gmra.mxu0 %v9694
    %v10234 = vpop.f32.mrf.mxu0
    %v10235 = vadd.f32 %v9703, %v10234
    %v10236 = vpop.f32.mrf.mxu0
    %v10237 = vadd.f32 %v9703, %v10236
    %10238 = vmatmul.bf16.gmra.mxu0 %v9695
    %v10239 = vpop.f32.mrf.mxu0
    %v10240 = vadd.f32 %v9703, %v10239
    %v10241 = vpop.f32.mrf.mxu0
    %v10242 = vadd.f32 %v9703, %v10241
    %10243 = vdwg.mxu0
    %v10244 = vmax.f32 %v9960, 0.0
    %v10245 = vmax.f32 %v10009, 0.0
    %v10246 = vmax.f32 %v10058, 0.0
    %v10247 = vmax.f32 %v10107, 0.0
    %v10248 = vmax.f32 %v10156, 0.0
    %v10249 = vmax.f32 %v10205, 0.0
    %v10250 = vmax.f32 %v9962, 0.0
    %v10251 = vmax.f32 %v10011, 0.0
    %v10252 = vmax.f32 %v10060, 0.0
    %v10253 = vmax.f32 %v10109, 0.0
    %v10254 = vmax.f32 %v10158, 0.0
    %v10255 = vmax.f32 %v10207, 0.0
    %v10256 = vmax.f32 %v9965, 0.0
    %v10257 = vmax.f32 %v10014, 0.0
    %v10258 = vmax.f32 %v10063, 0.0
    %v10259 = vmax.f32 %v10112, 0.0
    %v10260 = vmax.f32 %v10161, 0.0
    %v10261 = vmax.f32 %v10210, 0.0
    %v10262 = vmax.f32 %v9967, 0.0
    %v10263 = vmax.f32 %v10016, 0.0
    %v10264 = vmax.f32 %v10065, 0.0
    %v10265 = vmax.f32 %v10114, 0.0
    %v10266 = vmax.f32 %v10163, 0.0
    %v10267 = vmax.f32 %v10212, 0.0
    %v10268 = vmax.f32 %v9970, 0.0
    %v10269 = vmax.f32 %v10019, 0.0
    %v10270 = vmax.f32 %v10068, 0.0
    %v10271 = vmax.f32 %v10117, 0.0
    %v10272 = vmax.f32 %v10166, 0.0
    %v10273 = vmax.f32 %v10215, 0.0
    %v10274 = vmax.f32 %v9972, 0.0
    %v10275 = vmax.f32 %v10021, 0.0
    %v10276 = vmax.f32 %v10070, 0.0
    %v10277 = vmax.f32 %v10119, 0.0
    %v10278 = vmax.f32 %v10168, 0.0
    %v10279 = vmax.f32 %v10217, 0.0
    %v10280 = vmax.f32 %v9975, 0.0
    %v10281 = vmax.f32 %v10024, 0.0
    %v10282 = vmax.f32 %v10073, 0.0
    %v10283 = vmax.f32 %v10122, 0.0
    %v10284 = vmax.f32 %v10171, 0.0
    %v10285 = vmax.f32 %v10220, 0.0
    %v10286 = vmax.f32 %v9977, 0.0
    %v10287 = vmax.f32 %v10026, 0.0
    %v10288 = vmax.f32 %v10075, 0.0
    %v10289 = vmax.f32 %v10124, 0.0
    %v10290 = vmax.f32 %v10173, 0.0
    %v10291 = vmax.f32 %v10222, 0.0
    %v10292 = vmax.f32 %v9980, 0.0
    %v10293 = vmax.f32 %v10029, 0.0
    %v10294 = vmax.f32 %v10078, 0.0
    %v10295 = vmax.f32 %v10127, 0.0
    %v10296 = vmax.f32 %v10176, 0.0
    %v10297 = vmax.f32 %v10225, 0.0
    %v10298 = vmax.f32 %v9982, 0.0
    %v10299 = vmax.f32 %v10031, 0.0
    %v10300 = vmax.f32 %v10080, 0.0
    %v10301 = vmax.f32 %v10129, 0.0
    %v10302 = vmax.f32 %v10178, 0.0
    %v10303 = vmax.f32 %v10227, 0.0
    %v10304 = vmax.f32 %v9985, 0.0
    %v10305 = vmax.f32 %v10034, 0.0
    %v10306 = vmax.f32 %v10083, 0.0
    %v10307 = vmax.f32 %v10132, 0.0
    %v10308 = vmax.f32 %v10181, 0.0
    %v10309 = vmax.f32 %v10230, 0.0
    %v10310 = vmax.f32 %v9987, 0.0
    %v10311 = vmax.f32 %v10036, 0.0
    %v10312 = vmax.f32 %v10085, 0.0
    %v10313 = vmax.f32 %v10134, 0.0
    %v10314 = vmax.f32 %v10183, 0.0
    %v10315 = vmax.f32 %v10232, 0.0
    %v10316 = vmax.f32 %v9990, 0.0
    %v10317 = vmax.f32 %v10039, 0.0
    %v10318 = vmax.f32 %v10088, 0.0
    %v10319 = vmax.f32 %v10137, 0.0
    %v10320 = vmax.f32 %v10186, 0.0
    %v10321 = vmax.f32 %v10235, 0.0
    %v10322 = vmax.f32 %v9992, 0.0
    %v10323 = vmax.f32 %v10041, 0.0
    %v10324 = vmax.f32 %v10090, 0.0
    %v10325 = vmax.f32 %v10139, 0.0
    %v10326 = vmax.f32 %v10188, 0.0
    %v10327 = vmax.f32 %v10237, 0.0
    %v10328 = vmax.f32 %v9995, 0.0
    %v10329 = vmax.f32 %v10044, 0.0
    %v10330 = vmax.f32 %v10093, 0.0
    %v10331 = vmax.f32 %v10142, 0.0
    %v10332 = vmax.f32 %v10191, 0.0
    %v10333 = vmax.f32 %v10240, 0.0
    %v10334 = vmax.f32 %v9997, 0.0
    %v10335 = vmax.f32 %v10046, 0.0
    %v10336 = vmax.f32 %v10095, 0.0
    %v10337 = vmax.f32 %v10144, 0.0
    %v10338 = vmax.f32 %v10193, 0.0
    %v10339 = vmax.f32 %v10242, 0.0
    %v10340 = vld [vmem:[%s69] sm:$0xff]
    %v10341 = vld [vmem:[%s69 + $0x8] sm:$0xff]
    %v10342 = vld [vmem:[%s69 + $0x10] sm:$0xff]
    %v10343 = vld [vmem:[%s69 + $0x18] sm:$0xff]
    %v10344 = vld [vmem:[%s69 + $0x20] sm:$0xff]
    %v10345 = vld [vmem:[%s69 + $0x28] sm:$0xff]
    %v10346 = vld [vmem:[%s69 + $0x30] sm:$0xff]
    %v10347 = vld [vmem:[%s69 + $0x38] sm:$0xff]
    %v10348 = vld [vmem:[%s69 + $0x40] sm:$0xff]
    %v10349 = vld [vmem:[%s69 + $0x48] sm:$0xff]
    %v10350 = vld [vmem:[%s69 + $0x50] sm:$0xff]
    %v10351 = vld [vmem:[%s69 + $0x58] sm:$0xff]
    %v10352 = vld [vmem:[%s69 + $0x60] sm:$0xff]
    %v10353 = vld [vmem:[%s69 + $0x68] sm:$0xff]
    %v10354 = vld [vmem:[%s69 + $0x70] sm:$0xff]
    %v10355 = vld [vmem:[%s69 + $0x78] sm:$0xff]
    %v10356 = vld [vmem:[%s69 + $0x80] sm:$0xff]
    %v10357 = vld [vmem:[%s69 + $0x88] sm:$0xff]
    %v10358 = vld [vmem:[%s69 + $0x90] sm:$0xff]
    %v10359 = vld [vmem:[%s69 + $0x98] sm:$0xff]
    %v10360 = vld [vmem:[%s69 + $0xa0] sm:$0xff]
    %v10361 = vld [vmem:[%s69 + $0xa8] sm:$0xff]
    %v10362 = vld [vmem:[%s69 + $0xb0] sm:$0xff]
    %v10363 = vld [vmem:[%s69 + $0xb8] sm:$0xff]
    %v10364 = vld [vmem:[%s69 + $0xc0] sm:$0xff]
    %v10365 = vld [vmem:[%s69 + $0xc8] sm:$0xff]
    %v10366 = vld [vmem:[%s69 + $0xd0] sm:$0xff]
    %v10367 = vld [vmem:[%s69 + $0xd8] sm:$0xff]
    %v10368 = vld [vmem:[%s69 + $0xe0] sm:$0xff]
    %v10369 = vld [vmem:[%s69 + $0xe8] sm:$0xff]
    %v10370 = vld [vmem:[%s69 + $0xf0] sm:$0xff]
    %v10371 = vld [vmem:[%s69 + $0xf8] sm:$0xff]
    %v10372 = vld [vmem:[%s69 + $0x100] sm:$0xff]
    %v10373 = vld [vmem:[%s69 + $0x108] sm:$0xff]
    %v10374 = vld [vmem:[%s69 + $0x110] sm:$0xff]
    %v10375 = vld [vmem:[%s69 + $0x118] sm:$0xff]
    %v10376 = vld [vmem:[%s69 + $0x120] sm:$0xff]
    %v10377 = vld [vmem:[%s69 + $0x128] sm:$0xff]
    %v10378 = vld [vmem:[%s69 + $0x130] sm:$0xff]
    %v10379 = vld [vmem:[%s69 + $0x138] sm:$0xff]
    %v10380 = vld [vmem:[%s69 + $0x140] sm:$0xff]
    %v10381 = vld [vmem:[%s69 + $0x148] sm:$0xff]
    %v10382 = vld [vmem:[%s69 + $0x150] sm:$0xff]
    %v10383 = vld [vmem:[%s69 + $0x158] sm:$0xff]
    %v10384 = vld [vmem:[%s69 + $0x160] sm:$0xff]
    %v10385 = vld [vmem:[%s69 + $0x168] sm:$0xff]
    %v10386 = vld [vmem:[%s69 + $0x170] sm:$0xff]
    %v10387 = vld [vmem:[%s69 + $0x178] sm:$0xff]
    %v10388 = vld [vmem:[%s69 + $0x180] sm:$0xff]
    %v10389 = vld [vmem:[%s69 + $0x188] sm:$0xff]
    %v10390 = vld [vmem:[%s69 + $0x190] sm:$0xff]
    %v10391 = vld [vmem:[%s69 + $0x198] sm:$0xff]
    %v10392 = vld [vmem:[%s69 + $0x1a0] sm:$0xff]
    %v10393 = vld [vmem:[%s69 + $0x1a8] sm:$0xff]
    %v10394 = vld [vmem:[%s69 + $0x1b0] sm:$0xff]
    %v10395 = vld [vmem:[%s69 + $0x1b8] sm:$0xff]
    %v10396 = vld [vmem:[%s69 + $0x1c0] sm:$0xff]
    %v10397 = vld [vmem:[%s69 + $0x1c8] sm:$0xff]
    %v10398 = vld [vmem:[%s69 + $0x1d0] sm:$0xff]
    %v10399 = vld [vmem:[%s69 + $0x1d8] sm:$0xff]
    %v10400 = vld [vmem:[%s69 + $0x1e0] sm:$0xff]
    %v10401 = vld [vmem:[%s69 + $0x1e8] sm:$0xff]
    %v10402 = vld [vmem:[%s69 + $0x1f0] sm:$0xff]
    %v10403 = vld [vmem:[%s69 + $0x1f8] sm:$0xff]
    %v10404 = vld [vmem:[%s69 + $0x200] sm:$0xff]
    %v10405 = vld [vmem:[%s69 + $0x208] sm:$0xff]
    %v10406 = vld [vmem:[%s69 + $0x210] sm:$0xff]
    %v10407 = vld [vmem:[%s69 + $0x218] sm:$0xff]
    %v10408 = vld [vmem:[%s69 + $0x220] sm:$0xff]
    %v10409 = vld [vmem:[%s69 + $0x228] sm:$0xff]
    %v10410 = vld [vmem:[%s69 + $0x230] sm:$0xff]
    %v10411 = vld [vmem:[%s69 + $0x238] sm:$0xff]
    %v10412 = vld [vmem:[%s69 + $0x240] sm:$0xff]
    %v10413 = vld [vmem:[%s69 + $0x248] sm:$0xff]
    %v10414 = vld [vmem:[%s69 + $0x250] sm:$0xff]
    %v10415 = vld [vmem:[%s69 + $0x258] sm:$0xff]
    %v10416 = vld [vmem:[%s69 + $0x260] sm:$0xff]
    %v10417 = vld [vmem:[%s69 + $0x268] sm:$0xff]
    %v10418 = vld [vmem:[%s69 + $0x270] sm:$0xff]
    %v10419 = vld [vmem:[%s69 + $0x278] sm:$0xff]
    %v10420 = vld [vmem:[%s69 + $0x280] sm:$0xff]
    %v10421 = vld [vmem:[%s69 + $0x288] sm:$0xff]
    %v10422 = vld [vmem:[%s69 + $0x290] sm:$0xff]
    %v10423 = vld [vmem:[%s69 + $0x298] sm:$0xff]
    %v10424 = vld [vmem:[%s69 + $0x2a0] sm:$0xff]
    %v10425 = vld [vmem:[%s69 + $0x2a8] sm:$0xff]
    %v10426 = vld [vmem:[%s69 + $0x2b0] sm:$0xff]
    %v10427 = vld [vmem:[%s69 + $0x2b8] sm:$0xff]
    %v10428 = vld [vmem:[%s69 + $0x2c0] sm:$0xff]
    %v10429 = vld [vmem:[%s69 + $0x2c8] sm:$0xff]
    %v10430 = vld [vmem:[%s69 + $0x2d0] sm:$0xff]
    %v10431 = vld [vmem:[%s69 + $0x2d8] sm:$0xff]
    %v10432 = vld [vmem:[%s69 + $0x2e0] sm:$0xff]
    %v10433 = vld [vmem:[%s69 + $0x2e8] sm:$0xff]
    %v10434 = vld [vmem:[%s69 + $0x2f0] sm:$0xff]
    %v10435 = vld [vmem:[%s69 + $0x2f8] sm:$0xff]
    %v10436 = vpack.c.bf16 %v10250, %v10244
    %v10437 = vpack.c.bf16 %v10251, %v10245
    %v10438 = vpack.c.bf16 %v10252, %v10246
    %v10439 = vpack.c.bf16 %v10253, %v10247
    %v10440 = vpack.c.bf16 %v10254, %v10248
    %v10441 = vpack.c.bf16 %v10255, %v10249
    %v10442 = vpack.c.bf16 %v10262, %v10256
    %v10443 = vpack.c.bf16 %v10263, %v10257
    %v10444 = vpack.c.bf16 %v10264, %v10258
    %v10445 = vpack.c.bf16 %v10265, %v10259
    %v10446 = vpack.c.bf16 %v10266, %v10260
    %v10447 = vpack.c.bf16 %v10267, %v10261
    %v10448 = vpack.c.bf16 %v10274, %v10268
    %v10449 = vpack.c.bf16 %v10275, %v10269
    %v10450 = vpack.c.bf16 %v10276, %v10270
    %v10451 = vpack.c.bf16 %v10277, %v10271
    %v10452 = vpack.c.bf16 %v10278, %v10272
    %v10453 = vpack.c.bf16 %v10279, %v10273
    %v10454 = vpack.c.bf16 %v10286, %v10280
    %v10455 = vpack.c.bf16 %v10287, %v10281
    %v10456 = vpack.c.bf16 %v10288, %v10282
    %v10457 = vpack.c.bf16 %v10289, %v10283
    %v10458 = vpack.c.bf16 %v10290, %v10284
    %v10459 = vpack.c.bf16 %v10291, %v10285
    %v10460 = vpack.c.bf16 %v10298, %v10292
    %v10461 = vpack.c.bf16 %v10299, %v10293
    %v10462 = vpack.c.bf16 %v10300, %v10294
    %v10463 = vpack.c.bf16 %v10301, %v10295
    %v10464 = vpack.c.bf16 %v10302, %v10296
    %v10465 = vpack.c.bf16 %v10303, %v10297
    %v10466 = vpack.c.bf16 %v10310, %v10304
    %v10467 = vpack.c.bf16 %v10311, %v10305
    %v10468 = vpack.c.bf16 %v10312, %v10306
    %v10469 = vpack.c.bf16 %v10313, %v10307
    %v10470 = vpack.c.bf16 %v10314, %v10308
    %v10471 = vpack.c.bf16 %v10315, %v10309
    %v10472 = vpack.c.bf16 %v10322, %v10316
    %v10473 = vpack.c.bf16 %v10323, %v10317
    %v10474 = vpack.c.bf16 %v10324, %v10318
    %v10475 = vpack.c.bf16 %v10325, %v10319
    %v10476 = vpack.c.bf16 %v10326, %v10320
    %v10477 = vpack.c.bf16 %v10327, %v10321
    %v10478 = vpack.c.bf16 %v10334, %v10328
    %v10479 = vpack.c.bf16 %v10335, %v10329
    %v10480 = vpack.c.bf16 %v10336, %v10330
    %v10481 = vpack.c.bf16 %v10337, %v10331
    %v10482 = vpack.c.bf16 %v10338, %v10332
    %v10483 = vpack.c.bf16 %v10339, %v10333
    %v10484 = vld [vmem:[#allocation46] sm:$0x3]
    %v10486 = vperm.slane %v10484, 0
    %v10487 = vperm.slane %v10484, 1
    %v10586 = vunpack.c.l.b16 %v10340
    %v10587 = vunpack.c.h.b16 %v10340
    %v10588 = vunpack.c.l.b16 %v10341
    %v10589 = vunpack.c.h.b16 %v10341
    %v10590 = vunpack.c.l.b16 %v10342
    %v10591 = vunpack.c.h.b16 %v10342
    %v10592 = vunpack.c.l.b16 %v10343
    %v10593 = vunpack.c.h.b16 %v10343
    %v10594 = vunpack.c.l.b16 %v10344
    %v10595 = vunpack.c.h.b16 %v10344
    %v10596 = vunpack.c.l.b16 %v10345
    %v10597 = vunpack.c.h.b16 %v10345
    %v10598 = vunpack.c.l.b16 %v10346
    %v10599 = vunpack.c.h.b16 %v10346
    %v10600 = vunpack.c.l.b16 %v10347
    %v10601 = vunpack.c.h.b16 %v10347
    %v10602 = vunpack.c.l.b16 %v10348
    %v10603 = vunpack.c.h.b16 %v10348
    %v10604 = vunpack.c.l.b16 %v10349
    %v10605 = vunpack.c.h.b16 %v10349
    %v10606 = vunpack.c.l.b16 %v10350
    %v10607 = vunpack.c.h.b16 %v10350
    %v10608 = vunpack.c.l.b16 %v10351
    %v10609 = vunpack.c.h.b16 %v10351
    %v10610 = vunpack.c.l.b16 %v10352
    %v10611 = vunpack.c.h.b16 %v10352
    %v10612 = vunpack.c.l.b16 %v10353
    %v10613 = vunpack.c.h.b16 %v10353
    %v10614 = vunpack.c.l.b16 %v10354
    %v10615 = vunpack.c.h.b16 %v10354
    %v10616 = vunpack.c.l.b16 %v10355
    %v10617 = vunpack.c.h.b16 %v10355
    %v10618 = vunpack.c.l.b16 %v10356
    %v10619 = vunpack.c.h.b16 %v10356
    %v10620 = vunpack.c.l.b16 %v10357
    %v10621 = vunpack.c.h.b16 %v10357
    %v10622 = vunpack.c.l.b16 %v10358
    %v10623 = vunpack.c.h.b16 %v10358
    %v10624 = vunpack.c.l.b16 %v10359
    %v10625 = vunpack.c.h.b16 %v10359
    %v10626 = vunpack.c.l.b16 %v10360
    %v10627 = vunpack.c.h.b16 %v10360
    %v10628 = vunpack.c.l.b16 %v10361
    %v10629 = vunpack.c.h.b16 %v10361
    %v10630 = vunpack.c.l.b16 %v10362
    %v10631 = vunpack.c.h.b16 %v10362
    %v10632 = vunpack.c.l.b16 %v10363
    %v10633 = vunpack.c.h.b16 %v10363
    %v10634 = vunpack.c.l.b16 %v10364
    %v10635 = vunpack.c.h.b16 %v10364
    %v10636 = vunpack.c.l.b16 %v10365
    %v10637 = vunpack.c.h.b16 %v10365
    %v10638 = vunpack.c.l.b16 %v10366
    %v10639 = vunpack.c.h.b16 %v10366
    %v10640 = vunpack.c.l.b16 %v10367
    %v10641 = vunpack.c.h.b16 %v10367
    %v10642 = vunpack.c.l.b16 %v10368
    %v10643 = vunpack.c.h.b16 %v10368
    %v10644 = vunpack.c.l.b16 %v10369
    %v10645 = vunpack.c.h.b16 %v10369
    %v10646 = vunpack.c.l.b16 %v10370
    %v10647 = vunpack.c.h.b16 %v10370
    %v10648 = vunpack.c.l.b16 %v10371
    %v10649 = vunpack.c.h.b16 %v10371
    %v10650 = vunpack.c.l.b16 %v10372
    %v10651 = vunpack.c.h.b16 %v10372
    %v10652 = vunpack.c.l.b16 %v10373
    %v10653 = vunpack.c.h.b16 %v10373
    %v10654 = vunpack.c.l.b16 %v10374
    %v10655 = vunpack.c.h.b16 %v10374
    %v10656 = vunpack.c.l.b16 %v10375
    %v10657 = vunpack.c.h.b16 %v10375
    %v10658 = vunpack.c.l.b16 %v10376
    %v10659 = vunpack.c.h.b16 %v10376
    %v10660 = vunpack.c.l.b16 %v10377
    %v10661 = vunpack.c.h.b16 %v10377
    %v10662 = vunpack.c.l.b16 %v10378
    %v10663 = vunpack.c.h.b16 %v10378
    %v10664 = vunpack.c.l.b16 %v10379
    %v10665 = vunpack.c.h.b16 %v10379
    %v10666 = vunpack.c.l.b16 %v10380
    %v10667 = vunpack.c.h.b16 %v10380
    %v10668 = vunpack.c.l.b16 %v10381
    %v10669 = vunpack.c.h.b16 %v10381
    %v10670 = vunpack.c.l.b16 %v10382
    %v10671 = vunpack.c.h.b16 %v10382
    %v10672 = vunpack.c.l.b16 %v10383
    %v10673 = vunpack.c.h.b16 %v10383
    %v10674 = vunpack.c.l.b16 %v10384
    %v10675 = vunpack.c.h.b16 %v10384
    %v10676 = vunpack.c.l.b16 %v10385
    %v10677 = vunpack.c.h.b16 %v10385
    %v10678 = vunpack.c.l.b16 %v10386
    %v10679 = vunpack.c.h.b16 %v10386
    %v10680 = vunpack.c.l.b16 %v10387
    %v10681 = vunpack.c.h.b16 %v10387
    %v10682 = vunpack.c.l.b16 %v10388
    %v10683 = vunpack.c.h.b16 %v10388
    %v10684 = vunpack.c.l.b16 %v10389
    %v10685 = vunpack.c.h.b16 %v10389
    %v10686 = vunpack.c.l.b16 %v10390
    %v10687 = vunpack.c.h.b16 %v10390
    %v10688 = vunpack.c.l.b16 %v10391
    %v10689 = vunpack.c.h.b16 %v10391
    %v10690 = vunpack.c.l.b16 %v10392
    %v10691 = vunpack.c.h.b16 %v10392
    %v10692 = vunpack.c.l.b16 %v10393
    %v10693 = vunpack.c.h.b16 %v10393
    %v10694 = vunpack.c.l.b16 %v10394
    %v10695 = vunpack.c.h.b16 %v10394
    %v10696 = vunpack.c.l.b16 %v10395
    %v10697 = vunpack.c.h.b16 %v10395
    %v10698 = vunpack.c.l.b16 %v10396
    %v10699 = vunpack.c.h.b16 %v10396
    %v10700 = vunpack.c.l.b16 %v10397
    %v10701 = vunpack.c.h.b16 %v10397
    %v10702 = vunpack.c.l.b16 %v10398
    %v10703 = vunpack.c.h.b16 %v10398
    %v10704 = vunpack.c.l.b16 %v10399
    %v10705 = vunpack.c.h.b16 %v10399
    %v10706 = vunpack.c.l.b16 %v10400
    %v10707 = vunpack.c.h.b16 %v10400
    %v10708 = vunpack.c.l.b16 %v10401
    %v10709 = vunpack.c.h.b16 %v10401
    %v10710 = vunpack.c.l.b16 %v10402
    %v10711 = vunpack.c.h.b16 %v10402
    %v10712 = vunpack.c.l.b16 %v10403
    %v10713 = vunpack.c.h.b16 %v10403
    %v10714 = vunpack.c.l.b16 %v10404
    %v10715 = vunpack.c.h.b16 %v10404
    %v10716 = vunpack.c.l.b16 %v10405
    %v10717 = vunpack.c.h.b16 %v10405
    %v10718 = vunpack.c.l.b16 %v10406
    %v10719 = vunpack.c.h.b16 %v10406
    %v10720 = vunpack.c.l.b16 %v10407
    %v10721 = vunpack.c.h.b16 %v10407
    %v10722 = vunpack.c.l.b16 %v10408
    %v10723 = vunpack.c.h.b16 %v10408
    %v10724 = vunpack.c.l.b16 %v10409
    %v10725 = vunpack.c.h.b16 %v10409
    %v10726 = vunpack.c.l.b16 %v10410
    %v10727 = vunpack.c.h.b16 %v10410
    %v10728 = vunpack.c.l.b16 %v10411
    %v10729 = vunpack.c.h.b16 %v10411
    %v10730 = vunpack.c.l.b16 %v10412
    %v10731 = vunpack.c.h.b16 %v10412
    %v10732 = vunpack.c.l.b16 %v10413
    %v10733 = vunpack.c.h.b16 %v10413
    %v10734 = vunpack.c.l.b16 %v10414
    %v10735 = vunpack.c.h.b16 %v10414
    %v10736 = vunpack.c.l.b16 %v10415
    %v10737 = vunpack.c.h.b16 %v10415
    %v10738 = vunpack.c.l.b16 %v10416
    %v10739 = vunpack.c.h.b16 %v10416
    %v10740 = vunpack.c.l.b16 %v10417
    %v10741 = vunpack.c.h.b16 %v10417
    %v10742 = vunpack.c.l.b16 %v10418
    %v10743 = vunpack.c.h.b16 %v10418
    %v10744 = vunpack.c.l.b16 %v10419
    %v10745 = vunpack.c.h.b16 %v10419
    %v10746 = vunpack.c.l.b16 %v10420
    %v10747 = vunpack.c.h.b16 %v10420
    %v10748 = vunpack.c.l.b16 %v10421
    %v10749 = vunpack.c.h.b16 %v10421
    %v10750 = vunpack.c.l.b16 %v10422
    %v10751 = vunpack.c.h.b16 %v10422
    %v10752 = vunpack.c.l.b16 %v10423
    %v10753 = vunpack.c.h.b16 %v10423
    %v10754 = vunpack.c.l.b16 %v10424
    %v10755 = vunpack.c.h.b16 %v10424
    %v10756 = vunpack.c.l.b16 %v10425
    %v10757 = vunpack.c.h.b16 %v10425
    %v10758 = vunpack.c.l.b16 %v10426
    %v10759 = vunpack.c.h.b16 %v10426
    %v10760 = vunpack.c.l.b16 %v10427
    %v10761 = vunpack.c.h.b16 %v10427
    %v10762 = vunpack.c.l.b16 %v10428
    %v10763 = vunpack.c.h.b16 %v10428
    %v10764 = vunpack.c.l.b16 %v10429
    %v10765 = vunpack.c.h.b16 %v10429
    %v10766 = vunpack.c.l.b16 %v10430
    %v10767 = vunpack.c.h.b16 %v10430
    %v10768 = vunpack.c.l.b16 %v10431
    %v10769 = vunpack.c.h.b16 %v10431
    %v10770 = vunpack.c.l.b16 %v10432
    %v10771 = vunpack.c.h.b16 %v10432
    %v10772 = vunpack.c.l.b16 %v10433
    %v10773 = vunpack.c.h.b16 %v10433
    %v10774 = vunpack.c.l.b16 %v10434
    %v10775 = vunpack.c.h.b16 %v10434
    %v10776 = vunpack.c.l.b16 %v10435
    %v10777 = vunpack.c.h.b16 %v10435
    %v10778 = vpack.c.b16 %v10588, %v10586
    %v10779 = vpack.c.b16 %v10589, %v10587
    %v10780 = vpack.c.b16 %v10592, %v10590
    %v10781 = vpack.c.b16 %v10593, %v10591
    %v10782 = vpack.c.b16 %v10596, %v10594
    %v10783 = vpack.c.b16 %v10597, %v10595
    %v10784 = vpack.c.b16 %v10600, %v10598
    %v10785 = vpack.c.b16 %v10601, %v10599
    %v10786 = vpack.c.b16 %v10604, %v10602
    %v10787 = vpack.c.b16 %v10605, %v10603
    %v10788 = vpack.c.b16 %v10608, %v10606
    %v10789 = vpack.c.b16 %v10609, %v10607
    %v10790 = vpack.c.b16 %v10612, %v10610
    %v10791 = vpack.c.b16 %v10613, %v10611
    %v10792 = vpack.c.b16 %v10616, %v10614
    %v10793 = vpack.c.b16 %v10617, %v10615
    %v10794 = vpack.c.b16 %v10620, %v10618
    %v10795 = vpack.c.b16 %v10621, %v10619
    %v10796 = vpack.c.b16 %v10624, %v10622
    %v10797 = vpack.c.b16 %v10625, %v10623
    %v10798 = vpack.c.b16 %v10628, %v10626
    %v10799 = vpack.c.b16 %v10629, %v10627
    %v10800 = vpack.c.b16 %v10632, %v10630
    %v10801 = vpack.c.b16 %v10633, %v10631
    %v10802 = vpack.c.b16 %v10636, %v10634
    %v10803 = vpack.c.b16 %v10637, %v10635
    %v10804 = vpack.c.b16 %v10640, %v10638
    %v10805 = vpack.c.b16 %v10641, %v10639
    %v10806 = vpack.c.b16 %v10644, %v10642
    %v10807 = vpack.c.b16 %v10645, %v10643
    %v10808 = vpack.c.b16 %v10648, %v10646
    %v10809 = vpack.c.b16 %v10649, %v10647
    %v10810 = vpack.c.b16 %v10652, %v10650
    %v10811 = vpack.c.b16 %v10653, %v10651
    %v10812 = vpack.c.b16 %v10656, %v10654
    %v10813 = vpack.c.b16 %v10657, %v10655
    %v10814 = vpack.c.b16 %v10660, %v10658
    %v10815 = vpack.c.b16 %v10661, %v10659
    %v10816 = vpack.c.b16 %v10664, %v10662
    %v10817 = vpack.c.b16 %v10665, %v10663
    %v10818 = vpack.c.b16 %v10668, %v10666
    %v10819 = vpack.c.b16 %v10669, %v10667
    %v10820 = vpack.c.b16 %v10672, %v10670
    %v10821 = vpack.c.b16 %v10673, %v10671
    %v10822 = vpack.c.b16 %v10676, %v10674
    %v10823 = vpack.c.b16 %v10677, %v10675
    %v10824 = vpack.c.b16 %v10680, %v10678
    %v10825 = vpack.c.b16 %v10681, %v10679
    %v10826 = vpack.c.b16 %v10684, %v10682
    %v10827 = vpack.c.b16 %v10685, %v10683
    %v10828 = vpack.c.b16 %v10688, %v10686
    %v10829 = vpack.c.b16 %v10689, %v10687
    %v10830 = vpack.c.b16 %v10692, %v10690
    %v10831 = vpack.c.b16 %v10693, %v10691
    %v10832 = vpack.c.b16 %v10696, %v10694
    %v10833 = vpack.c.b16 %v10697, %v10695
    %v10834 = vpack.c.b16 %v10700, %v10698
    %v10835 = vpack.c.b16 %v10701, %v10699
    %v10836 = vpack.c.b16 %v10704, %v10702
    %v10837 = vpack.c.b16 %v10705, %v10703
    %v10838 = vpack.c.b16 %v10708, %v10706
    %v10839 = vpack.c.b16 %v10709, %v10707
    %v10840 = vpack.c.b16 %v10712, %v10710
    %v10841 = vpack.c.b16 %v10713, %v10711
    %v10842 = vpack.c.b16 %v10716, %v10714
    %v10843 = vpack.c.b16 %v10717, %v10715
    %v10844 = vpack.c.b16 %v10720, %v10718
    %v10845 = vpack.c.b16 %v10721, %v10719
    %v10846 = vpack.c.b16 %v10724, %v10722
    %v10847 = vpack.c.b16 %v10725, %v10723
    %v10848 = vpack.c.b16 %v10728, %v10726
    %v10849 = vpack.c.b16 %v10729, %v10727
    %v10850 = vpack.c.b16 %v10732, %v10730
    %v10851 = vpack.c.b16 %v10733, %v10731
    %v10852 = vpack.c.b16 %v10736, %v10734
    %v10853 = vpack.c.b16 %v10737, %v10735
    %v10854 = vpack.c.b16 %v10740, %v10738
    %v10855 = vpack.c.b16 %v10741, %v10739
    %v10856 = vpack.c.b16 %v10744, %v10742
    %v10857 = vpack.c.b16 %v10745, %v10743
    %v10858 = vpack.c.b16 %v10748, %v10746
    %v10859 = vpack.c.b16 %v10749, %v10747
    %v10860 = vpack.c.b16 %v10752, %v10750
    %v10861 = vpack.c.b16 %v10753, %v10751
    %v10862 = vpack.c.b16 %v10756, %v10754
    %v10863 = vpack.c.b16 %v10757, %v10755
    %v10864 = vpack.c.b16 %v10760, %v10758
    %v10865 = vpack.c.b16 %v10761, %v10759
    %v10866 = vpack.c.b16 %v10764, %v10762
    %v10867 = vpack.c.b16 %v10765, %v10763
    %v10868 = vpack.c.b16 %v10768, %v10766
    %v10869 = vpack.c.b16 %v10769, %v10767
    %v10870 = vpack.c.b16 %v10772, %v10770
    %v10871 = vpack.c.b16 %v10773, %v10771
    %v10872 = vpack.c.b16 %v10776, %v10774
    %v10873 = vpack.c.b16 %v10777, %v10775
    %10970 = vmatpush.bf16.msra.mxu0 %v10792
    %10971 = vmatpush.bf16.msra.mxu0 %v10790
    %10972 = vmatpush.bf16.msra.mxu0 %v10788
    %10973 = vmatpush.bf16.msra.mxu0 %v10786
    %10974 = vmatpush.bf16.msra.mxu0 %v10784
    %10975 = vmatpush.bf16.msra.mxu0 %v10782
    %10976 = vmatpush.bf16.msra.mxu0 %v10780
    %10977 = vmatpush.bf16.msra.mxu0 %v10778
    %10978 = vmatmul.bf16.gmra.mxu0 %v10436
    %v10979 = vpop.f32.mrf.mxu0
    %v10980 = vadd.f32 %v10486, %v10979
    %v10981 = vpop.f32.mrf.mxu0
    %v10982 = vadd.f32 %v10486, %v10981
    %10983 = vmatmul.bf16.gmra.mxu0 %v10442
    %v10984 = vpop.f32.mrf.mxu0
    %v10985 = vadd.f32 %v10486, %v10984
    %v10986 = vpop.f32.mrf.mxu0
    %v10987 = vadd.f32 %v10486, %v10986
    %10988 = vmatmul.bf16.gmra.mxu0 %v10448
    %v10989 = vpop.f32.mrf.mxu0
    %v10990 = vadd.f32 %v10486, %v10989
    %v10991 = vpop.f32.mrf.mxu0
    %v10992 = vadd.f32 %v10486, %v10991
    %10993 = vmatmul.bf16.gmra.mxu0 %v10454
    %v10994 = vpop.f32.mrf.mxu0
    %v10995 = vadd.f32 %v10486, %v10994
    %v10996 = vpop.f32.mrf.mxu0
    %v10997 = vadd.f32 %v10486, %v10996
    %10998 = vmatmul.bf16.gmra.mxu0 %v10460
    %v10999 = vpop.f32.mrf.mxu0
    %v11000 = vadd.f32 %v10486, %v10999
    %v11001 = vpop.f32.mrf.mxu0
    %v11002 = vadd.f32 %v10486, %v11001
    %11003 = vmatmul.bf16.gmra.mxu0 %v10466
    %v11004 = vpop.f32.mrf.mxu0
    %v11005 = vadd.f32 %v10486, %v11004
    %v11006 = vpop.f32.mrf.mxu0
    %v11007 = vadd.f32 %v10486, %v11006
    %11008 = vmatmul.bf16.gmra.mxu0 %v10472
    %v11009 = vpop.f32.mrf.mxu0
    %v11010 = vadd.f32 %v10486, %v11009
    %v11011 = vpop.f32.mrf.mxu0
    %v11012 = vadd.f32 %v10486, %v11011
    %11013 = vmatmul.bf16.gmra.mxu0 %v10478
    %v11014 = vpop.f32.mrf.mxu0
    %v11015 = vadd.f32 %v10486, %v11014
    %v11016 = vpop.f32.mrf.mxu0
    %v11017 = vadd.f32 %v10486, %v11016
    %11018 = vdwg.mxu0
    %11019 = vmatpush.bf16.msra.mxu0 %v10808
    %11020 = vmatpush.bf16.msra.mxu0 %v10806
    %11021 = vmatpush.bf16.msra.mxu0 %v10804
    %11022 = vmatpush.bf16.msra.mxu0 %v10802
    %11023 = vmatpush.bf16.msra.mxu0 %v10800
    %11024 = vmatpush.bf16.msra.mxu0 %v10798
    %11025 = vmatpush.bf16.msra.mxu0 %v10796
    %11026 = vmatpush.bf16.msra.mxu0 %v10794
    %11027 = vmatmul.bf16.gmra.mxu0 %v10437
    %v11028 = vpop.f32.mrf.mxu0
    %v11029 = vadd.f32 %v10980, %v11028
    %v11030 = vpop.f32.mrf.mxu0
    %v11031 = vadd.f32 %v10982, %v11030
    %11032 = vmatmul.bf16.gmra.mxu0 %v10443
    %v11033 = vpop.f32.mrf.mxu0
    %v11034 = vadd.f32 %v10985, %v11033
    %v11035 = vpop.f32.mrf.mxu0
    %v11036 = vadd.f32 %v10987, %v11035
    %11037 = vmatmul.bf16.gmra.mxu0 %v10449
    %v11038 = vpop.f32.mrf.mxu0
    %v11039 = vadd.f32 %v10990, %v11038
    %v11040 = vpop.f32.mrf.mxu0
    %v11041 = vadd.f32 %v10992, %v11040
    %11042 = vmatmul.bf16.gmra.mxu0 %v10455
    %v11043 = vpop.f32.mrf.mxu0
    %v11044 = vadd.f32 %v10995, %v11043
    %v11045 = vpop.f32.mrf.mxu0
    %v11046 = vadd.f32 %v10997, %v11045
    %11047 = vmatmul.bf16.gmra.mxu0 %v10461
    %v11048 = vpop.f32.mrf.mxu0
    %v11049 = vadd.f32 %v11000, %v11048
    %v11050 = vpop.f32.mrf.mxu0
    %v11051 = vadd.f32 %v11002, %v11050
    %11052 = vmatmul.bf16.gmra.mxu0 %v10467
    %v11053 = vpop.f32.mrf.mxu0
    %v11054 = vadd.f32 %v11005, %v11053
    %v11055 = vpop.f32.mrf.mxu0
    %v11056 = vadd.f32 %v11007, %v11055
    %11057 = vmatmul.bf16.gmra.mxu0 %v10473
    %v11058 = vpop.f32.mrf.mxu0
    %v11059 = vadd.f32 %v11010, %v11058
    %v11060 = vpop.f32.mrf.mxu0
    %v11061 = vadd.f32 %v11012, %v11060
    %11062 = vmatmul.bf16.gmra.mxu0 %v10479
    %v11063 = vpop.f32.mrf.mxu0
    %v11064 = vadd.f32 %v11015, %v11063
    %v11065 = vpop.f32.mrf.mxu0
    %v11066 = vadd.f32 %v11017, %v11065
    %11067 = vdwg.mxu0
    %11068 = vmatpush.bf16.msra.mxu0 %v10824
    %11069 = vmatpush.bf16.msra.mxu0 %v10822
    %11070 = vmatpush.bf16.msra.mxu0 %v10820
    %11071 = vmatpush.bf16.msra.mxu0 %v10818
    %11072 = vmatpush.bf16.msra.mxu0 %v10816
    %11073 = vmatpush.bf16.msra.mxu0 %v10814
    %11074 = vmatpush.bf16.msra.mxu0 %v10812
    %11075 = vmatpush.bf16.msra.mxu0 %v10810
    %11076 = vmatmul.bf16.gmra.mxu0 %v10438
    %v11077 = vpop.f32.mrf.mxu0
    %v11078 = vadd.f32 %v11029, %v11077
    %v11079 = vpop.f32.mrf.mxu0
    %v11080 = vadd.f32 %v11031, %v11079
    %11081 = vmatmul.bf16.gmra.mxu0 %v10444
    %v11082 = vpop.f32.mrf.mxu0
    %v11083 = vadd.f32 %v11034, %v11082
    %v11084 = vpop.f32.mrf.mxu0
    %v11085 = vadd.f32 %v11036, %v11084
    %11086 = vmatmul.bf16.gmra.mxu0 %v10450
    %v11087 = vpop.f32.mrf.mxu0
    %v11088 = vadd.f32 %v11039, %v11087
    %v11089 = vpop.f32.mrf.mxu0
    %v11090 = vadd.f32 %v11041, %v11089
    %11091 = vmatmul.bf16.gmra.mxu0 %v10456
    %v11092 = vpop.f32.mrf.mxu0
    %v11093 = vadd.f32 %v11044, %v11092
    %v11094 = vpop.f32.mrf.mxu0
    %v11095 = vadd.f32 %v11046, %v11094
    %11096 = vmatmul.bf16.gmra.mxu0 %v10462
    %v11097 = vpop.f32.mrf.mxu0
    %v11098 = vadd.f32 %v11049, %v11097
    %v11099 = vpop.f32.mrf.mxu0
    %v11100 = vadd.f32 %v11051, %v11099
    %11101 = vmatmul.bf16.gmra.mxu0 %v10468
    %v11102 = vpop.f32.mrf.mxu0
    %v11103 = vadd.f32 %v11054, %v11102
    %v11104 = vpop.f32.mrf.mxu0
    %v11105 = vadd.f32 %v11056, %v11104
    %11106 = vmatmul.bf16.gmra.mxu0 %v10474
    %v11107 = vpop.f32.mrf.mxu0
    %v11108 = vadd.f32 %v11059, %v11107
    %v11109 = vpop.f32.mrf.mxu0
    %v11110 = vadd.f32 %v11061, %v11109
    %11111 = vmatmul.bf16.gmra.mxu0 %v10480
    %v11112 = vpop.f32.mrf.mxu0
    %v11113 = vadd.f32 %v11064, %v11112
    %v11114 = vpop.f32.mrf.mxu0
    %v11115 = vadd.f32 %v11066, %v11114
    %11116 = vdwg.mxu0
    %11117 = vmatpush.bf16.msra.mxu0 %v10840
    %11118 = vmatpush.bf16.msra.mxu0 %v10838
    %11119 = vmatpush.bf16.msra.mxu0 %v10836
    %11120 = vmatpush.bf16.msra.mxu0 %v10834
    %11121 = vmatpush.bf16.msra.mxu0 %v10832
    %11122 = vmatpush.bf16.msra.mxu0 %v10830
    %11123 = vmatpush.bf16.msra.mxu0 %v10828
    %11124 = vmatpush.bf16.msra.mxu0 %v10826
    %11125 = vmatmul.bf16.gmra.mxu0 %v10439
    %v11126 = vpop.f32.mrf.mxu0
    %v11127 = vadd.f32 %v11078, %v11126
    %v11128 = vpop.f32.mrf.mxu0
    %v11129 = vadd.f32 %v11080, %v11128
    %11130 = vmatmul.bf16.gmra.mxu0 %v10445
    %v11131 = vpop.f32.mrf.mxu0
    %v11132 = vadd.f32 %v11083, %v11131
    %v11133 = vpop.f32.mrf.mxu0
    %v11134 = vadd.f32 %v11085, %v11133
    %11135 = vmatmul.bf16.gmra.mxu0 %v10451
    %v11136 = vpop.f32.mrf.mxu0
    %v11137 = vadd.f32 %v11088, %v11136
    %v11138 = vpop.f32.mrf.mxu0
    %v11139 = vadd.f32 %v11090, %v11138
    %11140 = vmatmul.bf16.gmra.mxu0 %v10457
    %v11141 = vpop.f32.mrf.mxu0
    %v11142 = vadd.f32 %v11093, %v11141
    %v11143 = vpop.f32.mrf.mxu0
    %v11144 = vadd.f32 %v11095, %v11143
    %11145 = vmatmul.bf16.gmra.mxu0 %v10463
    %v11146 = vpop.f32.mrf.mxu0
    %v11147 = vadd.f32 %v11098, %v11146
    %v11148 = vpop.f32.mrf.mxu0
    %v11149 = vadd.f32 %v11100, %v11148
    %11150 = vmatmul.bf16.gmra.mxu0 %v10469
    %v11151 = vpop.f32.mrf.mxu0
    %v11152 = vadd.f32 %v11103, %v11151
    %v11153 = vpop.f32.mrf.mxu0
    %v11154 = vadd.f32 %v11105, %v11153
    %11155 = vmatmul.bf16.gmra.mxu0 %v10475
    %v11156 = vpop.f32.mrf.mxu0
    %v11157 = vadd.f32 %v11108, %v11156
    %v11158 = vpop.f32.mrf.mxu0
    %v11159 = vadd.f32 %v11110, %v11158
    %11160 = vmatmul.bf16.gmra.mxu0 %v10481
    %v11161 = vpop.f32.mrf.mxu0
    %v11162 = vadd.f32 %v11113, %v11161
    %v11163 = vpop.f32.mrf.mxu0
    %v11164 = vadd.f32 %v11115, %v11163
    %11165 = vdwg.mxu0
    %11166 = vmatpush.bf16.msra.mxu0 %v10856
    %11167 = vmatpush.bf16.msra.mxu0 %v10854
    %11168 = vmatpush.bf16.msra.mxu0 %v10852
    %11169 = vmatpush.bf16.msra.mxu0 %v10850
    %11170 = vmatpush.bf16.msra.mxu0 %v10848
    %11171 = vmatpush.bf16.msra.mxu0 %v10846
    %11172 = vmatpush.bf16.msra.mxu0 %v10844
    %11173 = vmatpush.bf16.msra.mxu0 %v10842
    %11174 = vmatmul.bf16.gmra.mxu0 %v10440
    %v11175 = vpop.f32.mrf.mxu0
    %v11176 = vadd.f32 %v11127, %v11175
    %v11177 = vpop.f32.mrf.mxu0
    %v11178 = vadd.f32 %v11129, %v11177
    %11179 = vmatmul.bf16.gmra.mxu0 %v10446
    %v11180 = vpop.f32.mrf.mxu0
    %v11181 = vadd.f32 %v11132, %v11180
    %v11182 = vpop.f32.mrf.mxu0
    %v11183 = vadd.f32 %v11134, %v11182
    %11184 = vmatmul.bf16.gmra.mxu0 %v10452
    %v11185 = vpop.f32.mrf.mxu0
    %v11186 = vadd.f32 %v11137, %v11185
    %v11187 = vpop.f32.mrf.mxu0
    %v11188 = vadd.f32 %v11139, %v11187
    %11189 = vmatmul.bf16.gmra.mxu0 %v10458
    %v11190 = vpop.f32.mrf.mxu0
    %v11191 = vadd.f32 %v11142, %v11190
    %v11192 = vpop.f32.mrf.mxu0
    %v11193 = vadd.f32 %v11144, %v11192
    %11194 = vmatmul.bf16.gmra.mxu0 %v10464
    %v11195 = vpop.f32.mrf.mxu0
    %v11196 = vadd.f32 %v11147, %v11195
    %v11197 = vpop.f32.mrf.mxu0
    %v11198 = vadd.f32 %v11149, %v11197
    %11199 = vmatmul.bf16.gmra.mxu0 %v10470
    %v11200 = vpop.f32.mrf.mxu0
    %v11201 = vadd.f32 %v11152, %v11200
    %v11202 = vpop.f32.mrf.mxu0
    %v11203 = vadd.f32 %v11154, %v11202
    %11204 = vmatmul.bf16.gmra.mxu0 %v10476
    %v11205 = vpop.f32.mrf.mxu0
    %v11206 = vadd.f32 %v11157, %v11205
    %v11207 = vpop.f32.mrf.mxu0
    %v11208 = vadd.f32 %v11159, %v11207
    %11209 = vmatmul.bf16.gmra.mxu0 %v10482
    %v11210 = vpop.f32.mrf.mxu0
    %v11211 = vadd.f32 %v11162, %v11210
    %v11212 = vpop.f32.mrf.mxu0
    %v11213 = vadd.f32 %v11164, %v11212
    %11214 = vdwg.mxu0
    %11215 = vmatpush.bf16.msra.mxu0 %v10872
    %11216 = vmatpush.bf16.msra.mxu0 %v10870
    %11217 = vmatpush.bf16.msra.mxu0 %v10868
    %11218 = vmatpush.bf16.msra.mxu0 %v10866
    %11219 = vmatpush.bf16.msra.mxu0 %v10864
    %11220 = vmatpush.bf16.msra.mxu0 %v10862
    %11221 = vmatpush.bf16.msra.mxu0 %v10860
    %11222 = vmatpush.bf16.msra.mxu0 %v10858
    %11223 = vmatmul.bf16.gmra.mxu0 %v10441
    %v11224 = vpop.f32.mrf.mxu0
    %v11225 = vadd.f32 %v11176, %v11224
    %v11226 = vpop.f32.mrf.mxu0
    %v11227 = vadd.f32 %v11178, %v11226
    %11228 = vmatmul.bf16.gmra.mxu0 %v10447
    %v11229 = vpop.f32.mrf.mxu0
    %v11230 = vadd.f32 %v11181, %v11229
    %v11231 = vpop.f32.mrf.mxu0
    %v11232 = vadd.f32 %v11183, %v11231
    %11233 = vmatmul.bf16.gmra.mxu0 %v10453
    %v11234 = vpop.f32.mrf.mxu0
    %v11235 = vadd.f32 %v11186, %v11234
    %v11236 = vpop.f32.mrf.mxu0
    %v11237 = vadd.f32 %v11188, %v11236
    %11238 = vmatmul.bf16.gmra.mxu0 %v10459
    %v11239 = vpop.f32.mrf.mxu0
    %v11240 = vadd.f32 %v11191, %v11239
    %v11241 = vpop.f32.mrf.mxu0
    %v11242 = vadd.f32 %v11193, %v11241
    %11243 = vmatmul.bf16.gmra.mxu0 %v10465
    %v11244 = vpop.f32.mrf.mxu0
    %v11245 = vadd.f32 %v11196, %v11244
    %v11246 = vpop.f32.mrf.mxu0
    %v11247 = vadd.f32 %v11198, %v11246
    %11248 = vmatmul.bf16.gmra.mxu0 %v10471
    %v11249 = vpop.f32.mrf.mxu0
    %v11250 = vadd.f32 %v11201, %v11249
    %v11251 = vpop.f32.mrf.mxu0
    %v11252 = vadd.f32 %v11203, %v11251
    %11253 = vmatmul.bf16.gmra.mxu0 %v10477
    %v11254 = vpop.f32.mrf.mxu0
    %v11255 = vadd.f32 %v11206, %v11254
    %v11256 = vpop.f32.mrf.mxu0
    %v11257 = vadd.f32 %v11208, %v11256
    %11258 = vmatmul.bf16.gmra.mxu0 %v10483
    %v11259 = vpop.f32.mrf.mxu0
    %v11260 = vadd.f32 %v11211, %v11259
    %v11261 = vpop.f32.mrf.mxu0
    %v11262 = vadd.f32 %v11213, %v11261
    %11263 = vdwg.mxu0
    %11264 = vmatpush.bf16.msra.mxu0 %v10793
    %11265 = vmatpush.bf16.msra.mxu0 %v10791
    %11266 = vmatpush.bf16.msra.mxu0 %v10789
    %11267 = vmatpush.bf16.msra.mxu0 %v10787
    %11268 = vmatpush.bf16.msra.mxu0 %v10785
    %11269 = vmatpush.bf16.msra.mxu0 %v10783
    %11270 = vmatpush.bf16.msra.mxu0 %v10781
    %11271 = vmatpush.bf16.msra.mxu0 %v10779
    %11272 = vmatmul.bf16.gmra.mxu0 %v10436
    %v11273 = vpop.f32.mrf.mxu0
    %v11274 = vadd.f32 %v10487, %v11273
    %v11275 = vpop.f32.mrf.mxu0
    %v11276 = vadd.f32 %v10487, %v11275
    %11277 = vmatmul.bf16.gmra.mxu0 %v10442
    %v11278 = vpop.f32.mrf.mxu0
    %v11279 = vadd.f32 %v10487, %v11278
    %v11280 = vpop.f32.mrf.mxu0
    %v11281 = vadd.f32 %v10487, %v11280
    %11282 = vmatmul.bf16.gmra.mxu0 %v10448
    %v11283 = vpop.f32.mrf.mxu0
    %v11284 = vadd.f32 %v10487, %v11283
    %v11285 = vpop.f32.mrf.mxu0
    %v11286 = vadd.f32 %v10487, %v11285
    %11287 = vmatmul.bf16.gmra.mxu0 %v10454
    %v11288 = vpop.f32.mrf.mxu0
    %v11289 = vadd.f32 %v10487, %v11288
    %v11290 = vpop.f32.mrf.mxu0
    %v11291 = vadd.f32 %v10487, %v11290
    %11292 = vmatmul.bf16.gmra.mxu0 %v10460
    %v11293 = vpop.f32.mrf.mxu0
    %v11294 = vadd.f32 %v10487, %v11293
    %v11295 = vpop.f32.mrf.mxu0
    %v11296 = vadd.f32 %v10487, %v11295
    %11297 = vmatmul.bf16.gmra.mxu0 %v10466
    %v11298 = vpop.f32.mrf.mxu0
    %v11299 = vadd.f32 %v10487, %v11298
    %v11300 = vpop.f32.mrf.mxu0
    %v11301 = vadd.f32 %v10487, %v11300
    %11302 = vmatmul.bf16.gmra.mxu0 %v10472
    %v11303 = vpop.f32.mrf.mxu0
    %v11304 = vadd.f32 %v10487, %v11303
    %v11305 = vpop.f32.mrf.mxu0
    %v11306 = vadd.f32 %v10487, %v11305
    %11307 = vmatmul.bf16.gmra.mxu0 %v10478
    %v11308 = vpop.f32.mrf.mxu0
    %v11309 = vadd.f32 %v10487, %v11308
    %v11310 = vpop.f32.mrf.mxu0
    %v11311 = vadd.f32 %v10487, %v11310
    %11312 = vdwg.mxu0
    %11313 = vmatpush.bf16.msra.mxu0 %v10809
    %11314 = vmatpush.bf16.msra.mxu0 %v10807
    %11315 = vmatpush.bf16.msra.mxu0 %v10805
    %11316 = vmatpush.bf16.msra.mxu0 %v10803
    %11317 = vmatpush.bf16.msra.mxu0 %v10801
    %11318 = vmatpush.bf16.msra.mxu0 %v10799
    %11319 = vmatpush.bf16.msra.mxu0 %v10797
    %11320 = vmatpush.bf16.msra.mxu0 %v10795
    %11321 = vmatmul.bf16.gmra.mxu0 %v10437
    %v11322 = vpop.f32.mrf.mxu0
    %v11323 = vadd.f32 %v11274, %v11322
    %v11324 = vpop.f32.mrf.mxu0
    %v11325 = vadd.f32 %v11276, %v11324
    %11326 = vmatmul.bf16.gmra.mxu0 %v10443
    %v11327 = vpop.f32.mrf.mxu0
    %v11328 = vadd.f32 %v11279, %v11327
    %v11329 = vpop.f32.mrf.mxu0
    %v11330 = vadd.f32 %v11281, %v11329
    %11331 = vmatmul.bf16.gmra.mxu0 %v10449
    %v11332 = vpop.f32.mrf.mxu0
    %v11333 = vadd.f32 %v11284, %v11332
    %v11334 = vpop.f32.mrf.mxu0
    %v11335 = vadd.f32 %v11286, %v11334
    %11336 = vmatmul.bf16.gmra.mxu0 %v10455
    %v11337 = vpop.f32.mrf.mxu0
    %v11338 = vadd.f32 %v11289, %v11337
    %v11339 = vpop.f32.mrf.mxu0
    %v11340 = vadd.f32 %v11291, %v11339
    %11341 = vmatmul.bf16.gmra.mxu0 %v10461
    %v11342 = vpop.f32.mrf.mxu0
    %v11343 = vadd.f32 %v11294, %v11342
    %v11344 = vpop.f32.mrf.mxu0
    %v11345 = vadd.f32 %v11296, %v11344
    %11346 = vmatmul.bf16.gmra.mxu0 %v10467
    %v11347 = vpop.f32.mrf.mxu0
    %v11348 = vadd.f32 %v11299, %v11347
    %v11349 = vpop.f32.mrf.mxu0
    %v11350 = vadd.f32 %v11301, %v11349
    %11351 = vmatmul.bf16.gmra.mxu0 %v10473
    %v11352 = vpop.f32.mrf.mxu0
    %v11353 = vadd.f32 %v11304, %v11352
    %v11354 = vpop.f32.mrf.mxu0
    %v11355 = vadd.f32 %v11306, %v11354
    %11356 = vmatmul.bf16.gmra.mxu0 %v10479
    %v11357 = vpop.f32.mrf.mxu0
    %v11358 = vadd.f32 %v11309, %v11357
    %v11359 = vpop.f32.mrf.mxu0
    %v11360 = vadd.f32 %v11311, %v11359
    %11361 = vdwg.mxu0
    %11362 = vmatpush.bf16.msra.mxu0 %v10825
    %11363 = vmatpush.bf16.msra.mxu0 %v10823
    %11364 = vmatpush.bf16.msra.mxu0 %v10821
    %11365 = vmatpush.bf16.msra.mxu0 %v10819
    %11366 = vmatpush.bf16.msra.mxu0 %v10817
    %11367 = vmatpush.bf16.msra.mxu0 %v10815
    %11368 = vmatpush.bf16.msra.mxu0 %v10813
    %11369 = vmatpush.bf16.msra.mxu0 %v10811
    %11370 = vmatmul.bf16.gmra.mxu0 %v10438
    %v11371 = vpop.f32.mrf.mxu0
    %v11372 = vadd.f32 %v11323, %v11371
    %v11373 = vpop.f32.mrf.mxu0
    %v11374 = vadd.f32 %v11325, %v11373
    %11375 = vmatmul.bf16.gmra.mxu0 %v10444
    %v11376 = vpop.f32.mrf.mxu0
    %v11377 = vadd.f32 %v11328, %v11376
    %v11378 = vpop.f32.mrf.mxu0
    %v11379 = vadd.f32 %v11330, %v11378
    %11380 = vmatmul.bf16.gmra.mxu0 %v10450
    %v11381 = vpop.f32.mrf.mxu0
    %v11382 = vadd.f32 %v11333, %v11381
    %v11383 = vpop.f32.mrf.mxu0
    %v11384 = vadd.f32 %v11335, %v11383
    %11385 = vmatmul.bf16.gmra.mxu0 %v10456
    %v11386 = vpop.f32.mrf.mxu0
    %v11387 = vadd.f32 %v11338, %v11386
    %v11388 = vpop.f32.mrf.mxu0
    %v11389 = vadd.f32 %v11340, %v11388
    %11390 = vmatmul.bf16.gmra.mxu0 %v10462
    %v11391 = vpop.f32.mrf.mxu0
    %v11392 = vadd.f32 %v11343, %v11391
    %v11393 = vpop.f32.mrf.mxu0
    %v11394 = vadd.f32 %v11345, %v11393
    %11395 = vmatmul.bf16.gmra.mxu0 %v10468
    %v11396 = vpop.f32.mrf.mxu0
    %v11397 = vadd.f32 %v11348, %v11396
    %v11398 = vpop.f32.mrf.mxu0
    %v11399 = vadd.f32 %v11350, %v11398
    %11400 = vmatmul.bf16.gmra.mxu0 %v10474
    %v11401 = vpop.f32.mrf.mxu0
    %v11402 = vadd.f32 %v11353, %v11401
    %v11403 = vpop.f32.mrf.mxu0
    %v11404 = vadd.f32 %v11355, %v11403
    %11405 = vmatmul.bf16.gmra.mxu0 %v10480
    %v11406 = vpop.f32.mrf.mxu0
    %v11407 = vadd.f32 %v11358, %v11406
    %v11408 = vpop.f32.mrf.mxu0
    %v11409 = vadd.f32 %v11360, %v11408
    %11410 = vdwg.mxu0
    %11411 = vmatpush.bf16.msra.mxu0 %v10841
    %11412 = vmatpush.bf16.msra.mxu0 %v10839
    %11413 = vmatpush.bf16.msra.mxu0 %v10837
    %11414 = vmatpush.bf16.msra.mxu0 %v10835
    %11415 = vmatpush.bf16.msra.mxu0 %v10833
    %11416 = vmatpush.bf16.msra.mxu0 %v10831
    %11417 = vmatpush.bf16.msra.mxu0 %v10829
    %11418 = vmatpush.bf16.msra.mxu0 %v10827
    %11419 = vmatmul.bf16.gmra.mxu0 %v10439
    %v11420 = vpop.f32.mrf.mxu0
    %v11421 = vadd.f32 %v11372, %v11420
    %v11422 = vpop.f32.mrf.mxu0
    %v11423 = vadd.f32 %v11374, %v11422
    %11424 = vmatmul.bf16.gmra.mxu0 %v10445
    %v11425 = vpop.f32.mrf.mxu0
    %v11426 = vadd.f32 %v11377, %v11425
    %v11427 = vpop.f32.mrf.mxu0
    %v11428 = vadd.f32 %v11379, %v11427
    %11429 = vmatmul.bf16.gmra.mxu0 %v10451
    %v11430 = vpop.f32.mrf.mxu0
    %v11431 = vadd.f32 %v11382, %v11430
    %v11432 = vpop.f32.mrf.mxu0
    %v11433 = vadd.f32 %v11384, %v11432
    %11434 = vmatmul.bf16.gmra.mxu0 %v10457
    %v11435 = vpop.f32.mrf.mxu0
    %v11436 = vadd.f32 %v11387, %v11435
    %v11437 = vpop.f32.mrf.mxu0
    %v11438 = vadd.f32 %v11389, %v11437
    %11439 = vmatmul.bf16.gmra.mxu0 %v10463
    %v11440 = vpop.f32.mrf.mxu0
    %v11441 = vadd.f32 %v11392, %v11440
    %v11442 = vpop.f32.mrf.mxu0
    %v11443 = vadd.f32 %v11394, %v11442
    %11444 = vmatmul.bf16.gmra.mxu0 %v10469
    %v11445 = vpop.f32.mrf.mxu0
    %v11446 = vadd.f32 %v11397, %v11445
    %v11447 = vpop.f32.mrf.mxu0
    %v11448 = vadd.f32 %v11399, %v11447
    %11449 = vmatmul.bf16.gmra.mxu0 %v10475
    %v11450 = vpop.f32.mrf.mxu0
    %v11451 = vadd.f32 %v11402, %v11450
    %v11452 = vpop.f32.mrf.mxu0
    %v11453 = vadd.f32 %v11404, %v11452
    %11454 = vmatmul.bf16.gmra.mxu0 %v10481
    %v11455 = vpop.f32.mrf.mxu0
    %v11456 = vadd.f32 %v11407, %v11455
    %v11457 = vpop.f32.mrf.mxu0
    %v11458 = vadd.f32 %v11409, %v11457
    %11459 = vdwg.mxu0
    %11460 = vmatpush.bf16.msra.mxu0 %v10857
    %11461 = vmatpush.bf16.msra.mxu0 %v10855
    %11462 = vmatpush.bf16.msra.mxu0 %v10853
    %11463 = vmatpush.bf16.msra.mxu0 %v10851
    %11464 = vmatpush.bf16.msra.mxu0 %v10849
    %11465 = vmatpush.bf16.msra.mxu0 %v10847
    %11466 = vmatpush.bf16.msra.mxu0 %v10845
    %11467 = vmatpush.bf16.msra.mxu0 %v10843
    %11468 = vmatmul.bf16.gmra.mxu0 %v10440
    %v11469 = vpop.f32.mrf.mxu0
    %v11470 = vadd.f32 %v11421, %v11469
    %v11471 = vpop.f32.mrf.mxu0
    %v11472 = vadd.f32 %v11423, %v11471
    %11473 = vmatmul.bf16.gmra.mxu0 %v10446
    %v11474 = vpop.f32.mrf.mxu0
    %v11475 = vadd.f32 %v11426, %v11474
    %v11476 = vpop.f32.mrf.mxu0
    %v11477 = vadd.f32 %v11428, %v11476
    %11478 = vmatmul.bf16.gmra.mxu0 %v10452
    %v11479 = vpop.f32.mrf.mxu0
    %v11480 = vadd.f32 %v11431, %v11479
    %v11481 = vpop.f32.mrf.mxu0
    %v11482 = vadd.f32 %v11433, %v11481
    %11483 = vmatmul.bf16.gmra.mxu0 %v10458
    %v11484 = vpop.f32.mrf.mxu0
    %v11485 = vadd.f32 %v11436, %v11484
    %v11486 = vpop.f32.mrf.mxu0
    %v11487 = vadd.f32 %v11438, %v11486
    %11488 = vmatmul.bf16.gmra.mxu0 %v10464
    %v11489 = vpop.f32.mrf.mxu0
    %v11490 = vadd.f32 %v11441, %v11489
    %v11491 = vpop.f32.mrf.mxu0
    %v11492 = vadd.f32 %v11443, %v11491
    %11493 = vmatmul.bf16.gmra.mxu0 %v10470
    %v11494 = vpop.f32.mrf.mxu0
    %v11495 = vadd.f32 %v11446, %v11494
    %v11496 = vpop.f32.mrf.mxu0
    %v11497 = vadd.f32 %v11448, %v11496
    %11498 = vmatmul.bf16.gmra.mxu0 %v10476
    %v11499 = vpop.f32.mrf.mxu0
    %v11500 = vadd.f32 %v11451, %v11499
    %v11501 = vpop.f32.mrf.mxu0
    %v11502 = vadd.f32 %v11453, %v11501
    %11503 = vmatmul.bf16.gmra.mxu0 %v10482
    %v11504 = vpop.f32.mrf.mxu0
    %v11505 = vadd.f32 %v11456, %v11504
    %v11506 = vpop.f32.mrf.mxu0
    %v11507 = vadd.f32 %v11458, %v11506
    %11508 = vdwg.mxu0
    %11509 = vmatpush.bf16.msra.mxu0 %v10873
    %11510 = vmatpush.bf16.msra.mxu0 %v10871
    %11511 = vmatpush.bf16.msra.mxu0 %v10869
    %11512 = vmatpush.bf16.msra.mxu0 %v10867
    %11513 = vmatpush.bf16.msra.mxu0 %v10865
    %11514 = vmatpush.bf16.msra.mxu0 %v10863
    %11515 = vmatpush.bf16.msra.mxu0 %v10861
    %11516 = vmatpush.bf16.msra.mxu0 %v10859
    %11517 = vmatmul.bf16.gmra.mxu0 %v10441
    %v11518 = vpop.f32.mrf.mxu0
    %v11519 = vadd.f32 %v11470, %v11518
    %v11520 = vpop.f32.mrf.mxu0
    %v11521 = vadd.f32 %v11472, %v11520
    %11522 = vmatmul.bf16.gmra.mxu0 %v10447
    %v11523 = vpop.f32.mrf.mxu0
    %v11524 = vadd.f32 %v11475, %v11523
    %v11525 = vpop.f32.mrf.mxu0
    %v11526 = vadd.f32 %v11477, %v11525
    %11527 = vmatmul.bf16.gmra.mxu0 %v10453
    %v11528 = vpop.f32.mrf.mxu0
    %v11529 = vadd.f32 %v11480, %v11528
    %v11530 = vpop.f32.mrf.mxu0
    %v11531 = vadd.f32 %v11482, %v11530
    %11532 = vmatmul.bf16.gmra.mxu0 %v10459
    %v11533 = vpop.f32.mrf.mxu0
    %v11534 = vadd.f32 %v11485, %v11533
    %v11535 = vpop.f32.mrf.mxu0
    %v11536 = vadd.f32 %v11487, %v11535
    %11537 = vmatmul.bf16.gmra.mxu0 %v10465
    %v11538 = vpop.f32.mrf.mxu0
    %v11539 = vadd.f32 %v11490, %v11538
    %v11540 = vpop.f32.mrf.mxu0
    %v11541 = vadd.f32 %v11492, %v11540
    %11542 = vmatmul.bf16.gmra.mxu0 %v10471
    %v11543 = vpop.f32.mrf.mxu0
    %v11544 = vadd.f32 %v11495, %v11543
    %v11545 = vpop.f32.mrf.mxu0
    %v11546 = vadd.f32 %v11497, %v11545
    %11547 = vmatmul.bf16.gmra.mxu0 %v10477
    %v11548 = vpop.f32.mrf.mxu0
    %v11549 = vadd.f32 %v11500, %v11548
    %v11550 = vpop.f32.mrf.mxu0
    %v11551 = vadd.f32 %v11502, %v11550
    %11552 = vmatmul.bf16.gmra.mxu0 %v10483
    %v11553 = vpop.f32.mrf.mxu0
    %v11554 = vadd.f32 %v11505, %v11553
    %v11555 = vpop.f32.mrf.mxu0
    %v11556 = vadd.f32 %v11507, %v11555
    %11557 = vdwg.mxu0
    %v11558 = vxor.u32 %v11225, 2147483648
    %v11559 = vxor.u32 %v11519, 2147483648
    %v11560 = vxor.u32 %v11227, 2147483648
    %v11561 = vxor.u32 %v11521, 2147483648
    %v11562 = vxor.u32 %v11230, 2147483648
    %v11563 = vxor.u32 %v11524, 2147483648
    %v11564 = vxor.u32 %v11232, 2147483648
    %v11565 = vxor.u32 %v11526, 2147483648
    %v11566 = vxor.u32 %v11235, 2147483648
    %v11567 = vxor.u32 %v11529, 2147483648
    %v11568 = vxor.u32 %v11237, 2147483648
    %v11569 = vxor.u32 %v11531, 2147483648
    %v11570 = vxor.u32 %v11240, 2147483648
    %v11571 = vxor.u32 %v11534, 2147483648
    %v11572 = vxor.u32 %v11242, 2147483648
    %v11573 = vxor.u32 %v11536, 2147483648
    %v11574 = vxor.u32 %v11245, 2147483648
    %v11575 = vxor.u32 %v11539, 2147483648
    %v11576 = vxor.u32 %v11247, 2147483648
    %v11577 = vxor.u32 %v11541, 2147483648
    %v11578 = vxor.u32 %v11250, 2147483648
    %v11579 = vxor.u32 %v11544, 2147483648
    %v11580 = vxor.u32 %v11252, 2147483648
    %v11581 = vxor.u32 %v11546, 2147483648
    %v11582 = vxor.u32 %v11255, 2147483648
    %v11583 = vxor.u32 %v11549, 2147483648
    %v11584 = vxor.u32 %v11257, 2147483648
    %v11585 = vxor.u32 %v11551, 2147483648
    %v11586 = vxor.u32 %v11260, 2147483648
    %v11587 = vxor.u32 %v11554, 2147483648
    %v11588 = vxor.u32 %v11262, 2147483648
    %v11589 = vxor.u32 %v11556, 2147483648
    %v11590 = vmul.f32 %v11558, 1.442695
    %v11591 = vpow.pop %v11590
    %v11592 = vmul.f32 %v11559, 1.442695
    %v11593 = vpow.pop %v11592
    %v11594 = vmul.f32 %v11560, 1.442695
    %v11595 = vpow.pop %v11594
    %v11596 = vmul.f32 %v11561, 1.442695
    %v11597 = vpow.pop %v11596
    %v11598 = vmul.f32 %v11562, 1.442695
    %v11599 = vpow.pop %v11598
    %v11600 = vmul.f32 %v11563, 1.442695
    %v11601 = vpow.pop %v11600
    %v11602 = vmul.f32 %v11564, 1.442695
    %v11603 = vpow.pop %v11602
    %v11604 = vmul.f32 %v11565, 1.442695
    %v11605 = vpow.pop %v11604
    %v11606 = vmul.f32 %v11566, 1.442695
    %v11607 = vpow.pop %v11606
    %v11608 = vmul.f32 %v11567, 1.442695
    %v11609 = vpow.pop %v11608
    %v11610 = vmul.f32 %v11568, 1.442695
    %v11611 = vpow.pop %v11610
    %v11612 = vmul.f32 %v11569, 1.442695
    %v11613 = vpow.pop %v11612
    %v11614 = vmul.f32 %v11570, 1.442695
    %v11615 = vpow.pop %v11614
    %v11616 = vmul.f32 %v11571, 1.442695
    %v11617 = vpow.pop %v11616
    %v11618 = vmul.f32 %v11572, 1.442695
    %v11619 = vpow.pop %v11618
    %v11620 = vmul.f32 %v11573, 1.442695
    %v11621 = vpow.pop %v11620
    %v11622 = vmul.f32 %v11574, 1.442695
    %v11623 = vpow.pop %v11622
    %v11624 = vmul.f32 %v11575, 1.442695
    %v11625 = vpow.pop %v11624
    %v11626 = vmul.f32 %v11576, 1.442695
    %v11627 = vpow.pop %v11626
    %v11628 = vmul.f32 %v11577, 1.442695
    %v11629 = vpow.pop %v11628
    %v11630 = vmul.f32 %v11578, 1.442695
    %v11631 = vpow.pop %v11630
    %v11632 = vmul.f32 %v11579, 1.442695
    %v11633 = vpow.pop %v11632
    %v11634 = vmul.f32 %v11580, 1.442695
    %v11635 = vpow.pop %v11634
    %v11636 = vmul.f32 %v11581, 1.442695
    %v11637 = vpow.pop %v11636
    %v11638 = vmul.f32 %v11582, 1.442695
    %v11639 = vpow.pop %v11638
    %v11640 = vmul.f32 %v11583, 1.442695
    %v11641 = vpow.pop %v11640
    %v11642 = vmul.f32 %v11584, 1.442695
    %v11643 = vpow.pop %v11642
    %v11644 = vmul.f32 %v11585, 1.442695
    %v11645 = vpow.pop %v11644
    %v11646 = vmul.f32 %v11586, 1.442695
    %v11647 = vpow.pop %v11646
    %v11648 = vmul.f32 %v11587, 1.442695
    %v11649 = vpow.pop %v11648
    %v11650 = vmul.f32 %v11588, 1.442695
    %v11651 = vpow.pop %v11650
    %v11652 = vmul.f32 %v11589, 1.442695
    %v11653 = vpow.pop %v11652
    %v11654 = vadd.f32 %v11591, 1.0
    %v11655 = vadd.f32 %v11593, 1.0
    %v11656 = vadd.f32 %v11595, 1.0
    %v11657 = vadd.f32 %v11597, 1.0
    %v11658 = vadd.f32 %v11599, 1.0
    %v11659 = vadd.f32 %v11601, 1.0
    %v11660 = vadd.f32 %v11603, 1.0
    %v11661 = vadd.f32 %v11605, 1.0
    %v11662 = vadd.f32 %v11607, 1.0
    %v11663 = vadd.f32 %v11609, 1.0
    %v11664 = vadd.f32 %v11611, 1.0
    %v11665 = vadd.f32 %v11613, 1.0
    %v11666 = vadd.f32 %v11615, 1.0
    %v11667 = vadd.f32 %v11617, 1.0
    %v11668 = vadd.f32 %v11619, 1.0
    %v11669 = vadd.f32 %v11621, 1.0
    %v11670 = vadd.f32 %v11623, 1.0
    %v11671 = vadd.f32 %v11625, 1.0
    %v11672 = vadd.f32 %v11627, 1.0
    %v11673 = vadd.f32 %v11629, 1.0
    %v11674 = vadd.f32 %v11631, 1.0
    %v11675 = vadd.f32 %v11633, 1.0
    %v11676 = vadd.f32 %v11635, 1.0
    %v11677 = vadd.f32 %v11637, 1.0
    %v11678 = vadd.f32 %v11639, 1.0
    %v11679 = vadd.f32 %v11641, 1.0
    %v11680 = vadd.f32 %v11643, 1.0
    %v11681 = vadd.f32 %v11645, 1.0
    %v11682 = vadd.f32 %v11647, 1.0
    %v11683 = vadd.f32 %v11649, 1.0
    %v11684 = vadd.f32 %v11651, 1.0
    %v11685 = vadd.f32 %v11653, 1.0
    %v11686 = vrcp.pop %v11654
    %v11687 = vmul.f32 %v11654, %v11686
    %v11688 = vsub.f32 1.0, %v11687
    %v11689 = vmul.f32 %v11686, %v11688
    %v11690 = vadd.f32 %v11686, %v11689
    %vm11691 = vweird.f32 %v11654
    %vm11692 = vweird.f32 %v11686
    %vm11693 = vmor %vm11691, %vm11692
    %v11694 = vsel %vm11693, %v11686, %v11690
    %v11695 = vand.u32 2147483647, %v11654
    %vm11696 = vcmp.eq.f32.partialorder %v11695, 8.507059e+37
    %v11697 = vand.u32 %v11654, 2147483648
    %v11698 = vor.u32 1.1754944e-38, %v11697
    %v11699 = vsel %vm11696, %v11698, %v11694
    %v11700 = vmul.f32 1.0, %v11699
    %v11701 = vrcp.pop %v11655
    %v11702 = vmul.f32 %v11655, %v11701
    %v11703 = vsub.f32 1.0, %v11702
    %v11704 = vmul.f32 %v11701, %v11703
    %v11705 = vadd.f32 %v11701, %v11704
    %vm11706 = vweird.f32 %v11655
    %vm11707 = vweird.f32 %v11701
    %vm11708 = vmor %vm11706, %vm11707
    %v11709 = vsel %vm11708, %v11701, %v11705
    %v11710 = vand.u32 2147483647, %v11655
    %vm11711 = vcmp.eq.f32.partialorder %v11710, 8.507059e+37
    %v11712 = vand.u32 %v11655, 2147483648
    %v11713 = vor.u32 1.1754944e-38, %v11712
    %v11714 = vsel %vm11711, %v11713, %v11709
    %v11715 = vmul.f32 1.0, %v11714
    %v11716 = vrcp.pop %v11656
    %v11717 = vmul.f32 %v11656, %v11716
    %v11718 = vsub.f32 1.0, %v11717
    %v11719 = vmul.f32 %v11716, %v11718
    %v11720 = vadd.f32 %v11716, %v11719
    %vm11721 = vweird.f32 %v11656
    %vm11722 = vweird.f32 %v11716
    %vm11723 = vmor %vm11721, %vm11722
    %v11724 = vsel %vm11723, %v11716, %v11720
    %v11725 = vand.u32 2147483647, %v11656
    %vm11726 = vcmp.eq.f32.partialorder %v11725, 8.507059e+37
    %v11727 = vand.u32 %v11656, 2147483648
    %v11728 = vor.u32 1.1754944e-38, %v11727
    %v11729 = vsel %vm11726, %v11728, %v11724
    %v11730 = vmul.f32 1.0, %v11729
    %v11731 = vrcp.pop %v11657
    %v11732 = vmul.f32 %v11657, %v11731
    %v11733 = vsub.f32 1.0, %v11732
    %v11734 = vmul.f32 %v11731, %v11733
    %v11735 = vadd.f32 %v11731, %v11734
    %vm11736 = vweird.f32 %v11657
    %vm11737 = vweird.f32 %v11731
    %vm11738 = vmor %vm11736, %vm11737
    %v11739 = vsel %vm11738, %v11731, %v11735
    %v11740 = vand.u32 2147483647, %v11657
    %vm11741 = vcmp.eq.f32.partialorder %v11740, 8.507059e+37
    %v11742 = vand.u32 %v11657, 2147483648
    %v11743 = vor.u32 1.1754944e-38, %v11742
    %v11744 = vsel %vm11741, %v11743, %v11739
    %v11745 = vmul.f32 1.0, %v11744
    %v11746 = vrcp.pop %v11658
    %v11747 = vmul.f32 %v11658, %v11746
    %v11748 = vsub.f32 1.0, %v11747
    %v11749 = vmul.f32 %v11746, %v11748
    %v11750 = vadd.f32 %v11746, %v11749
    %vm11751 = vweird.f32 %v11658
    %vm11752 = vweird.f32 %v11746
    %vm11753 = vmor %vm11751, %vm11752
    %v11754 = vsel %vm11753, %v11746, %v11750
    %v11755 = vand.u32 2147483647, %v11658
    %vm11756 = vcmp.eq.f32.partialorder %v11755, 8.507059e+37
    %v11757 = vand.u32 %v11658, 2147483648
    %v11758 = vor.u32 1.1754944e-38, %v11757
    %v11759 = vsel %vm11756, %v11758, %v11754
    %v11760 = vmul.f32 1.0, %v11759
    %v11761 = vrcp.pop %v11659
    %v11762 = vmul.f32 %v11659, %v11761
    %v11763 = vsub.f32 1.0, %v11762
    %v11764 = vmul.f32 %v11761, %v11763
    %v11765 = vadd.f32 %v11761, %v11764
    %vm11766 = vweird.f32 %v11659
    %vm11767 = vweird.f32 %v11761
    %vm11768 = vmor %vm11766, %vm11767
    %v11769 = vsel %vm11768, %v11761, %v11765
    %v11770 = vand.u32 2147483647, %v11659
    %vm11771 = vcmp.eq.f32.partialorder %v11770, 8.507059e+37
    %v11772 = vand.u32 %v11659, 2147483648
    %v11773 = vor.u32 1.1754944e-38, %v11772
    %v11774 = vsel %vm11771, %v11773, %v11769
    %v11775 = vmul.f32 1.0, %v11774
    %v11776 = vrcp.pop %v11660
    %v11777 = vmul.f32 %v11660, %v11776
    %v11778 = vsub.f32 1.0, %v11777
    %v11779 = vmul.f32 %v11776, %v11778
    %v11780 = vadd.f32 %v11776, %v11779
    %vm11781 = vweird.f32 %v11660
    %vm11782 = vweird.f32 %v11776
    %vm11783 = vmor %vm11781, %vm11782
    %v11784 = vsel %vm11783, %v11776, %v11780
    %v11785 = vand.u32 2147483647, %v11660
    %vm11786 = vcmp.eq.f32.partialorder %v11785, 8.507059e+37
    %v11787 = vand.u32 %v11660, 2147483648
    %v11788 = vor.u32 1.1754944e-38, %v11787
    %v11789 = vsel %vm11786, %v11788, %v11784
    %v11790 = vmul.f32 1.0, %v11789
    %v11791 = vrcp.pop %v11661
    %v11792 = vmul.f32 %v11661, %v11791
    %v11793 = vsub.f32 1.0, %v11792
    %v11794 = vmul.f32 %v11791, %v11793
    %v11795 = vadd.f32 %v11791, %v11794
    %vm11796 = vweird.f32 %v11661
    %vm11797 = vweird.f32 %v11791
    %vm11798 = vmor %vm11796, %vm11797
    %v11799 = vsel %vm11798, %v11791, %v11795
    %v11800 = vand.u32 2147483647, %v11661
    %vm11801 = vcmp.eq.f32.partialorder %v11800, 8.507059e+37
    %v11802 = vand.u32 %v11661, 2147483648
    %v11803 = vor.u32 1.1754944e-38, %v11802
    %v11804 = vsel %vm11801, %v11803, %v11799
    %v11805 = vmul.f32 1.0, %v11804
    %v11806 = vrcp.pop %v11662
    %v11807 = vmul.f32 %v11662, %v11806
    %v11808 = vsub.f32 1.0, %v11807
    %v11809 = vmul.f32 %v11806, %v11808
    %v11810 = vadd.f32 %v11806, %v11809
    %vm11811 = vweird.f32 %v11662
    %vm11812 = vweird.f32 %v11806
    %vm11813 = vmor %vm11811, %vm11812
    %v11814 = vsel %vm11813, %v11806, %v11810
    %v11815 = vand.u32 2147483647, %v11662
    %vm11816 = vcmp.eq.f32.partialorder %v11815, 8.507059e+37
    %v11817 = vand.u32 %v11662, 2147483648
    %v11818 = vor.u32 1.1754944e-38, %v11817
    %v11819 = vsel %vm11816, %v11818, %v11814
    %v11820 = vmul.f32 1.0, %v11819
    %v11821 = vrcp.pop %v11663
    %v11822 = vmul.f32 %v11663, %v11821
    %v11823 = vsub.f32 1.0, %v11822
    %v11824 = vmul.f32 %v11821, %v11823
    %v11825 = vadd.f32 %v11821, %v11824
    %vm11826 = vweird.f32 %v11663
    %vm11827 = vweird.f32 %v11821
    %vm11828 = vmor %vm11826, %vm11827
    %v11829 = vsel %vm11828, %v11821, %v11825
    %v11830 = vand.u32 2147483647, %v11663
    %vm11831 = vcmp.eq.f32.partialorder %v11830, 8.507059e+37
    %v11832 = vand.u32 %v11663, 2147483648
    %v11833 = vor.u32 1.1754944e-38, %v11832
    %v11834 = vsel %vm11831, %v11833, %v11829
    %v11835 = vmul.f32 1.0, %v11834
    %v11836 = vrcp.pop %v11664
    %v11837 = vmul.f32 %v11664, %v11836
    %v11838 = vsub.f32 1.0, %v11837
    %v11839 = vmul.f32 %v11836, %v11838
    %v11840 = vadd.f32 %v11836, %v11839
    %vm11841 = vweird.f32 %v11664
    %vm11842 = vweird.f32 %v11836
    %vm11843 = vmor %vm11841, %vm11842
    %v11844 = vsel %vm11843, %v11836, %v11840
    %v11845 = vand.u32 2147483647, %v11664
    %vm11846 = vcmp.eq.f32.partialorder %v11845, 8.507059e+37
    %v11847 = vand.u32 %v11664, 2147483648
    %v11848 = vor.u32 1.1754944e-38, %v11847
    %v11849 = vsel %vm11846, %v11848, %v11844
    %v11850 = vmul.f32 1.0, %v11849
    %v11851 = vrcp.pop %v11665
    %v11852 = vmul.f32 %v11665, %v11851
    %v11853 = vsub.f32 1.0, %v11852
    %v11854 = vmul.f32 %v11851, %v11853
    %v11855 = vadd.f32 %v11851, %v11854
    %vm11856 = vweird.f32 %v11665
    %vm11857 = vweird.f32 %v11851
    %vm11858 = vmor %vm11856, %vm11857
    %v11859 = vsel %vm11858, %v11851, %v11855
    %v11860 = vand.u32 2147483647, %v11665
    %vm11861 = vcmp.eq.f32.partialorder %v11860, 8.507059e+37
    %v11862 = vand.u32 %v11665, 2147483648
    %v11863 = vor.u32 1.1754944e-38, %v11862
    %v11864 = vsel %vm11861, %v11863, %v11859
    %v11865 = vmul.f32 1.0, %v11864
    %v11866 = vrcp.pop %v11666
    %v11867 = vmul.f32 %v11666, %v11866
    %v11868 = vsub.f32 1.0, %v11867
    %v11869 = vmul.f32 %v11866, %v11868
    %v11870 = vadd.f32 %v11866, %v11869
    %vm11871 = vweird.f32 %v11666
    %vm11872 = vweird.f32 %v11866
    %vm11873 = vmor %vm11871, %vm11872
    %v11874 = vsel %vm11873, %v11866, %v11870
    %v11875 = vand.u32 2147483647, %v11666
    %vm11876 = vcmp.eq.f32.partialorder %v11875, 8.507059e+37
    %v11877 = vand.u32 %v11666, 2147483648
    %v11878 = vor.u32 1.1754944e-38, %v11877
    %v11879 = vsel %vm11876, %v11878, %v11874
    %v11880 = vmul.f32 1.0, %v11879
    %v11881 = vrcp.pop %v11667
    %v11882 = vmul.f32 %v11667, %v11881
    %v11883 = vsub.f32 1.0, %v11882
    %v11884 = vmul.f32 %v11881, %v11883
    %v11885 = vadd.f32 %v11881, %v11884
    %vm11886 = vweird.f32 %v11667
    %vm11887 = vweird.f32 %v11881
    %vm11888 = vmor %vm11886, %vm11887
    %v11889 = vsel %vm11888, %v11881, %v11885
    %v11890 = vand.u32 2147483647, %v11667
    %vm11891 = vcmp.eq.f32.partialorder %v11890, 8.507059e+37
    %v11892 = vand.u32 %v11667, 2147483648
    %v11893 = vor.u32 1.1754944e-38, %v11892
    %v11894 = vsel %vm11891, %v11893, %v11889
    %v11895 = vmul.f32 1.0, %v11894
    %v11896 = vrcp.pop %v11668
    %v11897 = vmul.f32 %v11668, %v11896
    %v11898 = vsub.f32 1.0, %v11897
    %v11899 = vmul.f32 %v11896, %v11898
    %v11900 = vadd.f32 %v11896, %v11899
    %vm11901 = vweird.f32 %v11668
    %vm11902 = vweird.f32 %v11896
    %vm11903 = vmor %vm11901, %vm11902
    %v11904 = vsel %vm11903, %v11896, %v11900
    %v11905 = vand.u32 2147483647, %v11668
    %vm11906 = vcmp.eq.f32.partialorder %v11905, 8.507059e+37
    %v11907 = vand.u32 %v11668, 2147483648
    %v11908 = vor.u32 1.1754944e-38, %v11907
    %v11909 = vsel %vm11906, %v11908, %v11904
    %v11910 = vmul.f32 1.0, %v11909
    %v11911 = vrcp.pop %v11669
    %v11912 = vmul.f32 %v11669, %v11911
    %v11913 = vsub.f32 1.0, %v11912
    %v11914 = vmul.f32 %v11911, %v11913
    %v11915 = vadd.f32 %v11911, %v11914
    %vm11916 = vweird.f32 %v11669
    %vm11917 = vweird.f32 %v11911
    %vm11918 = vmor %vm11916, %vm11917
    %v11919 = vsel %vm11918, %v11911, %v11915
    %v11920 = vand.u32 2147483647, %v11669
    %vm11921 = vcmp.eq.f32.partialorder %v11920, 8.507059e+37
    %v11922 = vand.u32 %v11669, 2147483648
    %v11923 = vor.u32 1.1754944e-38, %v11922
    %v11924 = vsel %vm11921, %v11923, %v11919
    %v11925 = vmul.f32 1.0, %v11924
    %v11926 = vrcp.pop %v11670
    %v11927 = vmul.f32 %v11670, %v11926
    %v11928 = vsub.f32 1.0, %v11927
    %v11929 = vmul.f32 %v11926, %v11928
    %v11930 = vadd.f32 %v11926, %v11929
    %vm11931 = vweird.f32 %v11670
    %vm11932 = vweird.f32 %v11926
    %vm11933 = vmor %vm11931, %vm11932
    %v11934 = vsel %vm11933, %v11926, %v11930
    %v11935 = vand.u32 2147483647, %v11670
    %vm11936 = vcmp.eq.f32.partialorder %v11935, 8.507059e+37
    %v11937 = vand.u32 %v11670, 2147483648
    %v11938 = vor.u32 1.1754944e-38, %v11937
    %v11939 = vsel %vm11936, %v11938, %v11934
    %v11940 = vmul.f32 1.0, %v11939
    %v11941 = vrcp.pop %v11671
    %v11942 = vmul.f32 %v11671, %v11941
    %v11943 = vsub.f32 1.0, %v11942
    %v11944 = vmul.f32 %v11941, %v11943
    %v11945 = vadd.f32 %v11941, %v11944
    %vm11946 = vweird.f32 %v11671
    %vm11947 = vweird.f32 %v11941
    %vm11948 = vmor %vm11946, %vm11947
    %v11949 = vsel %vm11948, %v11941, %v11945
    %v11950 = vand.u32 2147483647, %v11671
    %vm11951 = vcmp.eq.f32.partialorder %v11950, 8.507059e+37
    %v11952 = vand.u32 %v11671, 2147483648
    %v11953 = vor.u32 1.1754944e-38, %v11952
    %v11954 = vsel %vm11951, %v11953, %v11949
    %v11955 = vmul.f32 1.0, %v11954
    %v11956 = vrcp.pop %v11672
    %v11957 = vmul.f32 %v11672, %v11956
    %v11958 = vsub.f32 1.0, %v11957
    %v11959 = vmul.f32 %v11956, %v11958
    %v11960 = vadd.f32 %v11956, %v11959
    %vm11961 = vweird.f32 %v11672
    %vm11962 = vweird.f32 %v11956
    %vm11963 = vmor %vm11961, %vm11962
    %v11964 = vsel %vm11963, %v11956, %v11960
    %v11965 = vand.u32 2147483647, %v11672
    %vm11966 = vcmp.eq.f32.partialorder %v11965, 8.507059e+37
    %v11967 = vand.u32 %v11672, 2147483648
    %v11968 = vor.u32 1.1754944e-38, %v11967
    %v11969 = vsel %vm11966, %v11968, %v11964
    %v11970 = vmul.f32 1.0, %v11969
    %v11971 = vrcp.pop %v11673
    %v11972 = vmul.f32 %v11673, %v11971
    %v11973 = vsub.f32 1.0, %v11972
    %v11974 = vmul.f32 %v11971, %v11973
    %v11975 = vadd.f32 %v11971, %v11974
    %vm11976 = vweird.f32 %v11673
    %vm11977 = vweird.f32 %v11971
    %vm11978 = vmor %vm11976, %vm11977
    %v11979 = vsel %vm11978, %v11971, %v11975
    %v11980 = vand.u32 2147483647, %v11673
    %vm11981 = vcmp.eq.f32.partialorder %v11980, 8.507059e+37
    %v11982 = vand.u32 %v11673, 2147483648
    %v11983 = vor.u32 1.1754944e-38, %v11982
    %v11984 = vsel %vm11981, %v11983, %v11979
    %v11985 = vmul.f32 1.0, %v11984
    %v11986 = vrcp.pop %v11674
    %v11987 = vmul.f32 %v11674, %v11986
    %v11988 = vsub.f32 1.0, %v11987
    %v11989 = vmul.f32 %v11986, %v11988
    %v11990 = vadd.f32 %v11986, %v11989
    %vm11991 = vweird.f32 %v11674
    %vm11992 = vweird.f32 %v11986
    %vm11993 = vmor %vm11991, %vm11992
    %v11994 = vsel %vm11993, %v11986, %v11990
    %v11995 = vand.u32 2147483647, %v11674
    %vm11996 = vcmp.eq.f32.partialorder %v11995, 8.507059e+37
    %v11997 = vand.u32 %v11674, 2147483648
    %v11998 = vor.u32 1.1754944e-38, %v11997
    %v11999 = vsel %vm11996, %v11998, %v11994
    %v12000 = vmul.f32 1.0, %v11999
    %v12001 = vrcp.pop %v11675
    %v12002 = vmul.f32 %v11675, %v12001
    %v12003 = vsub.f32 1.0, %v12002
    %v12004 = vmul.f32 %v12001, %v12003
    %v12005 = vadd.f32 %v12001, %v12004
    %vm12006 = vweird.f32 %v11675
    %vm12007 = vweird.f32 %v12001
    %vm12008 = vmor %vm12006, %vm12007
    %v12009 = vsel %vm12008, %v12001, %v12005
    %v12010 = vand.u32 2147483647, %v11675
    %vm12011 = vcmp.eq.f32.partialorder %v12010, 8.507059e+37
    %v12012 = vand.u32 %v11675, 2147483648
    %v12013 = vor.u32 1.1754944e-38, %v12012
    %v12014 = vsel %vm12011, %v12013, %v12009
    %v12015 = vmul.f32 1.0, %v12014
    %v12016 = vrcp.pop %v11676
    %v12017 = vmul.f32 %v11676, %v12016
    %v12018 = vsub.f32 1.0, %v12017
    %v12019 = vmul.f32 %v12016, %v12018
    %v12020 = vadd.f32 %v12016, %v12019
    %vm12021 = vweird.f32 %v11676
    %vm12022 = vweird.f32 %v12016
    %vm12023 = vmor %vm12021, %vm12022
    %v12024 = vsel %vm12023, %v12016, %v12020
    %v12025 = vand.u32 2147483647, %v11676
    %vm12026 = vcmp.eq.f32.partialorder %v12025, 8.507059e+37
    %v12027 = vand.u32 %v11676, 2147483648
    %v12028 = vor.u32 1.1754944e-38, %v12027
    %v12029 = vsel %vm12026, %v12028, %v12024
    %v12030 = vmul.f32 1.0, %v12029
    %v12031 = vrcp.pop %v11677
    %v12032 = vmul.f32 %v11677, %v12031
    %v12033 = vsub.f32 1.0, %v12032
    %v12034 = vmul.f32 %v12031, %v12033
    %v12035 = vadd.f32 %v12031, %v12034
    %vm12036 = vweird.f32 %v11677
    %vm12037 = vweird.f32 %v12031
    %vm12038 = vmor %vm12036, %vm12037
    %v12039 = vsel %vm12038, %v12031, %v12035
    %v12040 = vand.u32 2147483647, %v11677
    %vm12041 = vcmp.eq.f32.partialorder %v12040, 8.507059e+37
    %v12042 = vand.u32 %v11677, 2147483648
    %v12043 = vor.u32 1.1754944e-38, %v12042
    %v12044 = vsel %vm12041, %v12043, %v12039
    %v12045 = vmul.f32 1.0, %v12044
    %v12046 = vrcp.pop %v11678
    %v12047 = vmul.f32 %v11678, %v12046
    %v12048 = vsub.f32 1.0, %v12047
    %v12049 = vmul.f32 %v12046, %v12048
    %v12050 = vadd.f32 %v12046, %v12049
    %vm12051 = vweird.f32 %v11678
    %vm12052 = vweird.f32 %v12046
    %vm12053 = vmor %vm12051, %vm12052
    %v12054 = vsel %vm12053, %v12046, %v12050
    %v12055 = vand.u32 2147483647, %v11678
    %vm12056 = vcmp.eq.f32.partialorder %v12055, 8.507059e+37
    %v12057 = vand.u32 %v11678, 2147483648
    %v12058 = vor.u32 1.1754944e-38, %v12057
    %v12059 = vsel %vm12056, %v12058, %v12054
    %v12060 = vmul.f32 1.0, %v12059
    %v12061 = vrcp.pop %v11679
    %v12062 = vmul.f32 %v11679, %v12061
    %v12063 = vsub.f32 1.0, %v12062
    %v12064 = vmul.f32 %v12061, %v12063
    %v12065 = vadd.f32 %v12061, %v12064
    %vm12066 = vweird.f32 %v11679
    %vm12067 = vweird.f32 %v12061
    %vm12068 = vmor %vm12066, %vm12067
    %v12069 = vsel %vm12068, %v12061, %v12065
    %v12070 = vand.u32 2147483647, %v11679
    %vm12071 = vcmp.eq.f32.partialorder %v12070, 8.507059e+37
    %v12072 = vand.u32 %v11679, 2147483648
    %v12073 = vor.u32 1.1754944e-38, %v12072
    %v12074 = vsel %vm12071, %v12073, %v12069
    %v12075 = vmul.f32 1.0, %v12074
    %v12076 = vrcp.pop %v11680
    %v12077 = vmul.f32 %v11680, %v12076
    %v12078 = vsub.f32 1.0, %v12077
    %v12079 = vmul.f32 %v12076, %v12078
    %v12080 = vadd.f32 %v12076, %v12079
    %vm12081 = vweird.f32 %v11680
    %vm12082 = vweird.f32 %v12076
    %vm12083 = vmor %vm12081, %vm12082
    %v12084 = vsel %vm12083, %v12076, %v12080
    %v12085 = vand.u32 2147483647, %v11680
    %vm12086 = vcmp.eq.f32.partialorder %v12085, 8.507059e+37
    %v12087 = vand.u32 %v11680, 2147483648
    %v12088 = vor.u32 1.1754944e-38, %v12087
    %v12089 = vsel %vm12086, %v12088, %v12084
    %v12090 = vmul.f32 1.0, %v12089
    %v12091 = vrcp.pop %v11681
    %v12092 = vmul.f32 %v11681, %v12091
    %v12093 = vsub.f32 1.0, %v12092
    %v12094 = vmul.f32 %v12091, %v12093
    %v12095 = vadd.f32 %v12091, %v12094
    %vm12096 = vweird.f32 %v11681
    %vm12097 = vweird.f32 %v12091
    %vm12098 = vmor %vm12096, %vm12097
    %v12099 = vsel %vm12098, %v12091, %v12095
    %v12100 = vand.u32 2147483647, %v11681
    %vm12101 = vcmp.eq.f32.partialorder %v12100, 8.507059e+37
    %v12102 = vand.u32 %v11681, 2147483648
    %v12103 = vor.u32 1.1754944e-38, %v12102
    %v12104 = vsel %vm12101, %v12103, %v12099
    %v12105 = vmul.f32 1.0, %v12104
    %v12106 = vrcp.pop %v11682
    %v12107 = vmul.f32 %v11682, %v12106
    %v12108 = vsub.f32 1.0, %v12107
    %v12109 = vmul.f32 %v12106, %v12108
    %v12110 = vadd.f32 %v12106, %v12109
    %vm12111 = vweird.f32 %v11682
    %vm12112 = vweird.f32 %v12106
    %vm12113 = vmor %vm12111, %vm12112
    %v12114 = vsel %vm12113, %v12106, %v12110
    %v12115 = vand.u32 2147483647, %v11682
    %vm12116 = vcmp.eq.f32.partialorder %v12115, 8.507059e+37
    %v12117 = vand.u32 %v11682, 2147483648
    %v12118 = vor.u32 1.1754944e-38, %v12117
    %v12119 = vsel %vm12116, %v12118, %v12114
    %v12120 = vmul.f32 1.0, %v12119
    %v12121 = vrcp.pop %v11683
    %v12122 = vmul.f32 %v11683, %v12121
    %v12123 = vsub.f32 1.0, %v12122
    %v12124 = vmul.f32 %v12121, %v12123
    %v12125 = vadd.f32 %v12121, %v12124
    %vm12126 = vweird.f32 %v11683
    %vm12127 = vweird.f32 %v12121
    %vm12128 = vmor %vm12126, %vm12127
    %v12129 = vsel %vm12128, %v12121, %v12125
    %v12130 = vand.u32 2147483647, %v11683
    %vm12131 = vcmp.eq.f32.partialorder %v12130, 8.507059e+37
    %v12132 = vand.u32 %v11683, 2147483648
    %v12133 = vor.u32 1.1754944e-38, %v12132
    %v12134 = vsel %vm12131, %v12133, %v12129
    %v12135 = vmul.f32 1.0, %v12134
    %v12136 = vrcp.pop %v11684
    %v12137 = vmul.f32 %v11684, %v12136
    %v12138 = vsub.f32 1.0, %v12137
    %v12139 = vmul.f32 %v12136, %v12138
    %v12140 = vadd.f32 %v12136, %v12139
    %vm12141 = vweird.f32 %v11684
    %vm12142 = vweird.f32 %v12136
    %vm12143 = vmor %vm12141, %vm12142
    %v12144 = vsel %vm12143, %v12136, %v12140
    %v12145 = vand.u32 2147483647, %v11684
    %vm12146 = vcmp.eq.f32.partialorder %v12145, 8.507059e+37
    %v12147 = vand.u32 %v11684, 2147483648
    %v12148 = vor.u32 1.1754944e-38, %v12147
    %v12149 = vsel %vm12146, %v12148, %v12144
    %v12150 = vmul.f32 1.0, %v12149
    %v12151 = vrcp.pop %v11685
    %v12152 = vmul.f32 %v11685, %v12151
    %v12153 = vsub.f32 1.0, %v12152
    %v12154 = vmul.f32 %v12151, %v12153
    %v12155 = vadd.f32 %v12151, %v12154
    %vm12156 = vweird.f32 %v11685
    %vm12157 = vweird.f32 %v12151
    %vm12158 = vmor %vm12156, %vm12157
    %v12159 = vsel %vm12158, %v12151, %v12155
    %v12160 = vand.u32 2147483647, %v11685
    %vm12161 = vcmp.eq.f32.partialorder %v12160, 8.507059e+37
    %v12162 = vand.u32 %v11685, 2147483648
    %v12163 = vor.u32 1.1754944e-38, %v12162
    %v12164 = vsel %vm12161, %v12163, %v12159
    %v12165 = vmul.f32 1.0, %v12164
    %12166 = vst [vmem:[%s73] sm:$0xff] %v11700
    %12167 = vst.msk [vmem:[%s73 + $0x8] sm:$0xff] %vm633, %v11715
    %12168 = vst [vmem:[%s73 + $0x10] sm:$0xff] %v11730
    %12169 = vst.msk [vmem:[%s73 + $0x18] sm:$0xff] %vm633, %v11745
    %12170 = vst [vmem:[%s73 + $0x20] sm:$0xff] %v11760
    %12171 = vst.msk [vmem:[%s73 + $0x28] sm:$0xff] %vm633, %v11775
    %12172 = vst [vmem:[%s73 + $0x30] sm:$0xff] %v11790
    %12173 = vst.msk [vmem:[%s73 + $0x38] sm:$0xff] %vm633, %v11805
    %12174 = vst [vmem:[%s73 + $0x40] sm:$0xff] %v11820
    %12175 = vst.msk [vmem:[%s73 + $0x48] sm:$0xff] %vm633, %v11835
    %12176 = vst [vmem:[%s73 + $0x50] sm:$0xff] %v11850
    %12177 = vst.msk [vmem:[%s73 + $0x58] sm:$0xff] %vm633, %v11865
    %12178 = vst [vmem:[%s73 + $0x60] sm:$0xff] %v11880
    %12179 = vst.msk [vmem:[%s73 + $0x68] sm:$0xff] %vm633, %v11895
    %12180 = vst [vmem:[%s73 + $0x70] sm:$0xff] %v11910
    %12181 = vst.msk [vmem:[%s73 + $0x78] sm:$0xff] %vm633, %v11925
    %12182 = vst [vmem:[%s73 + $0x80] sm:$0xff] %v11940
    %12183 = vst.msk [vmem:[%s73 + $0x88] sm:$0xff] %vm633, %v11955
    %12184 = vst [vmem:[%s73 + $0x90] sm:$0xff] %v11970
    %12185 = vst.msk [vmem:[%s73 + $0x98] sm:$0xff] %vm633, %v11985
    %12186 = vst [vmem:[%s73 + $0xa0] sm:$0xff] %v12000
    %12187 = vst.msk [vmem:[%s73 + $0xa8] sm:$0xff] %vm633, %v12015
    %12188 = vst [vmem:[%s73 + $0xb0] sm:$0xff] %v12030
    %12189 = vst.msk [vmem:[%s73 + $0xb8] sm:$0xff] %vm633, %v12045
    %12190 = vst [vmem:[%s73 + $0xc0] sm:$0xff] %v12060
    %12191 = vst.msk [vmem:[%s73 + $0xc8] sm:$0xff] %vm633, %v12075
    %12192 = vst [vmem:[%s73 + $0xd0] sm:$0xff] %v12090
    %12193 = vst.msk [vmem:[%s73 + $0xd8] sm:$0xff] %vm633, %v12105
    %12194 = vst [vmem:[%s73 + $0xe0] sm:$0xff] %v12120
    %12195 = vst.msk [vmem:[%s73 + $0xe8] sm:$0xff] %vm633, %v12135
    %12196 = vst [vmem:[%s73 + $0xf0] sm:$0xff] %v12150
    %12197 = vst.msk [vmem:[%s73 + $0xf8] sm:$0xff] %vm633, %v12165
    // Predicated region
    $region266: #{forward.1} parent=1 // pred_check
      _
    $region267: #{forward.1} parent=1 // pred_check_branch
      %12199 = sbr.rel (0) target = $region269
    $region268: #{forward.1} parent=1 // pred_region
      _
    $region269: #{forward.1} parent=1 // pred_fallthru
      _
    // Predicated region
    $region270: #{forward.1} parent=1 // pred_check
      _
    $region271: #{forward.1} parent=1 // pred_check_branch
      %12201 = sbr.rel (0) target = $region273
    $region272: #{forward.1} parent=1 // pred_region
      _
    $region273: #{forward.1} parent=1 // pred_fallthru
      _
    %12202 = vsyncpa [#allocation3], 1
    %12203 = vsyncpa [#allocation5], 1
    %12204 = vsyncpa [#allocation8], 1
    %12205 = vsyncpa [#allocation11], 1
    %12206 = vsyncpa [#allocation14], 1
    %12207 = vsyncpa [#allocation17], 1
    %12208 = vsyncpa [#allocation20], 1
    %12209 = vsyncpa [#allocation23], 1
    %12210 = vsyncpa [#allocation26], 1
    %12211 = vsyncpa [#allocation29], 1
    %12212 = vsyncpa [#allocation32], 1
    %12213 = vsyncpa [#allocation35], 1
    %12214 = vsyncpa [#allocation38], 1
    %12215 = vsyncpa [#allocation41], 1
    %12216 = vsyncpa [#allocation44], 1
    %12217 = vsyncpa [#allocation47], 1

</llo_original>
